<compile_context>
chip_gen: v6e
topology: v6e:2x2x1
jax: 0.10.0
libtpu: 0.0.40
codegen_flags: <defaults>
</compile_context>

<pallas_src>
import jax
import jax.numpy as jnp
from jax.experimental import pallas as pl
from jax.experimental.pallas import tpu as pltpu

BN_EPS = 1e-5  # PyTorch BatchNorm2d default


def _coord_att_kernel(x_ref,
                      w1_ref, b1_ref,
                      w2_ref, b2_ref,
                      w3_ref, b3_ref,
                      ph_ref, pw_ref, eh_ref, ew_ref,
                      o_ref):
    """One grid step processes B_TILE images, each stored lane-dense as (C, H*W).

    x_ref / o_ref : (B_TILE, C, H*W)
    w1 (BN folded): (TC, C),  b1: (TC, 1)
    w2 / w3       : (C, TC),  b2 / b3: (C, 1)
    ph : (H*W, H)  average-pool over W   (ph[s, h] = [s//W == h] / W)
    pw : (H*W, W)  average-pool over H   (pw[s, w] = [s% W == w] / H)
    eh : (H, H*W)  broadcast gate_h back onto the flat (h, w) lane axis
    ew : (W, H*W)  broadcast gate_w back onto the flat (h, w) lane axis
    """
    f32 = jnp.float32
    hi = jax.lax.Precision.HIGHEST

    w1 = w1_ref[...]; b1 = b1_ref[...]
    w2 = w2_ref[...]; b2 = b2_ref[...]
    w3 = w3_ref[...]; b3 = b3_ref[...]
    ph = ph_ref[...]; pw = pw_ref[...]
    eh = eh_ref[...]; ew = ew_ref[...]

    b_tile = x_ref.shape[0]
    for b in range(b_tile):  # static unroll over the per-step batch tile
        xb = x_ref[b]                                                       # (C, HW)

        # --- coordinate pooling via constant selector matmuls (no reshapes) ---
        x_h = jnp.dot(xb, ph, preferred_element_type=f32, precision=hi)     # (C, H)
        x_w = jnp.dot(xb, pw, preferred_element_type=f32, precision=hi)     # (C, W)

        # --- conv1 (1x1, BN folded) + h_swish, per branch (no concat/slice) ---
        y_h = jnp.dot(w1, x_h, preferred_element_type=f32, precision=hi) + b1   # (TC, H)
        y_w = jnp.dot(w1, x_w, preferred_element_type=f32, precision=hi) + b1   # (TC, W)
        y_h = y_h * jnp.clip(y_h + 3.0, 0.0, 6.0) * (1.0 / 6.0)
        y_w = y_w * jnp.clip(y_w + 3.0, 0.0, 6.0) * (1.0 / 6.0)

        # --- conv2 / conv3 (1x1) + sigmoid gates ---
        g_h = jax.nn.sigmoid(
            jnp.dot(w2, y_h, preferred_element_type=f32, precision=hi) + b2)    # (C, H)
        g_w = jax.nn.sigmoid(
            jnp.dot(w3, y_w, preferred_element_type=f32, precision=hi) + b3)    # (C, W)

        # --- broadcast gates onto the flat lane axis (MXU is idle) and apply ---
        gate = (jnp.dot(g_h, eh, preferred_element_type=f32, precision=hi) *
                jnp.dot(g_w, ew, preferred_element_type=f32, precision=hi))      # (C, HW)
        o_ref[b] = xb * gate                                                      # lane-dense store


def coord_attention2(x, params):
    """CoordAttention2 forward (BatchNorm in eval mode). x: (N, C, H, W) float32."""
    N, C, H, W = x.shape
    OC = params["w2"].shape[0]
    if OC != C or params["w3"].shape[0] != C:
        raise ValueError("CoordAttention2 gating requires out_channels == in_channels")

    f32 = jnp.float32
    HW = H * W
    x = x.astype(f32)

    # --- fold eval-mode BatchNorm into conv1 (exact) ---
    scale = params["gamma"] * jax.lax.rsqrt(params["var"] + BN_EPS)          # (TC, 1)
    w1f = (params["w1"] * scale).astype(f32)                                 # (TC, C)
    b1f = (scale * (params["b1"] - params["mean"]) + params["beta"]).astype(f32)

    # --- constant pooling / broadcast selector matrices (resident in VMEM) ---
    s = jnp.arange(HW, dtype=jnp.int32)
    h_of_s = s // W
    w_of_s = s % W
    ph = (h_of_s[:, None] == jnp.arange(H, dtype=jnp.int32)[None, :]).astype(f32) / W   # (HW, H)
    pw = (w_of_s[:, None] == jnp.arange(W, dtype=jnp.int32)[None, :]).astype(f32) / H   # (HW, W)
    eh = (jnp.arange(H, dtype=jnp.int32)[:, None] == h_of_s[None, :]).astype(f32)       # (H, HW)
    ew = (jnp.arange(W, dtype=jnp.int32)[:, None] == w_of_s[None, :]).astype(f32)       # (W, HW)

    # --- lane-dense flat layout + batch tiling ---
    x_flat = x.reshape(N, C, HW)
    per_image_bytes = C * HW * 4
    # x + out blocks, double-buffered => 4 * B_TILE * per_image_bytes; keep <= 16 MiB.
    cap = max(1, (16 << 20) // (4 * per_image_bytes))
    b_tile = 1
    for cand in range(min(N, cap), 0, -1):
        if N % cand == 0:
            b_tile = cand
            break
    grid = (N // b_tile,)

    const_arrays = (w1f, b1f, params["w2"], params["b2"], params["w3"], params["b3"],
                    ph, pw, eh, ew)
    const_bytes = sum(int(a.size) * 4 for a in const_arrays)
    pipelined_bytes = 4 * b_tile * per_image_bytes            # x + out, double-buffered
    vmem_limit = int(min(max(32 << 20, pipelined_bytes + 2 * const_bytes + (8 << 20)),
                         120 << 20))

    def _const_spec(a):
        return pl.BlockSpec(a.shape, lambda n: (0, 0))        # all consts are 2-D

    grid_spec = pltpu.PrefetchScalarGridSpec(
        num_scalar_prefetch=0,
        grid=grid,
        in_specs=[pl.BlockSpec((b_tile, C, HW), lambda n: (n, 0, 0))]
                 + [_const_spec(a) for a in const_arrays],
        out_specs=pl.BlockSpec((b_tile, C, HW), lambda n: (n, 0, 0)),
    )

    out_flat = pl.pallas_call(
        _coord_att_kernel,
        out_shape=jax.ShapeDtypeStruct((N, C, HW), f32),
        grid_spec=grid_spec,
        compiler_params=pltpu.CompilerParams(
            dimension_semantics=("parallel",),
            vmem_limit_bytes=vmem_limit),
    )(x_flat, *const_arrays)

    return out_flat.reshape(N, C, H, W)


def coord_attention2_ref(x, params):
    """Pure-JAX reference mirroring the PyTorch forward (BN in eval mode)."""
    N, C, H, W = x.shape
    x_h = jnp.mean(x, axis=3)                       # (N, C, H)
    x_w = jnp.mean(x, axis=2)                       # (N, C, W)
    x_cat = jnp.concatenate([x_h, x_w], axis=2)     # (N, C, H+W)
    y = jnp.einsum("tc,ncs->nts", params["w1"], x_cat, precision="highest") + params["b1"][None]
    inv = jax.lax.rsqrt(params["var"][None] + BN_EPS)
    y = (y - params["mean"][None]) * inv * params["gamma"][None] + params["beta"][None]
    y = y * jnp.clip(y + 3.0, 0.0, 6.0) / 6.0
    y_h, y_w = y[:, :, :H], y[:, :, H:]
    out_h = jax.nn.sigmoid(
        jnp.einsum("ot,nts->nos", params["w2"], y_h, precision="highest") + params["b2"][None])
    out_w = jax.nn.sigmoid(
        jnp.einsum("ot,nts->nos", params["w3"], y_w, precision="highest") + params["b3"][None])
    return x * out_w[:, :, None, :] * out_h[:, :, :, None]


def init_params(key, in_channels, out_channels, reduction=32):
    temp_c = max(8, in_channels // reduction)
    k1, k2, k3, k4, k5, k6 = jax.random.split(key, 6)
    f32 = jnp.float32
    return {
        # conv1: 1x1, in_channels -> temp_c
        "w1": 0.1 * jax.random.normal(k1, (temp_c, in_channels), f32),
        "b1": 0.1 * jax.random.normal(k2, (temp_c, 1), f32),
        # BatchNorm2d(temp_c): default init (gamma=1, beta=0, mean=0, var=1)
        "gamma": jnp.ones((temp_c, 1), f32),
        "beta": jnp.zeros((temp_c, 1), f32),
        "mean": jnp.zeros((temp_c, 1), f32),
        "var": jnp.ones((temp_c, 1), f32),
        # conv2 / conv3: 1x1, temp_c -> out_channels
        "w2": 0.1 * jax.random.normal(k3, (out_channels, temp_c), f32),
        "b2": 0.1 * jax.random.normal(k4, (out_channels, 1), f32),
        "w3": 0.1 * jax.random.normal(k5, (out_channels, temp_c), f32),
        "b3": 0.1 * jax.random.normal(k6, (out_channels, 1), f32),
    }


if __name__ == "__main__":
    key = jax.random.PRNGKey(0)
    kx, kp = jax.random.split(key)

    N, C, H, W = 2, 4, 16, 16
    x = jax.random.normal(kx, (N, C, H, W), jnp.float32)
    # out_channels must equal in_channels for the final gating multiply
    params = init_params(kp, in_channels=C, out_channels=C, reduction=32)

    out = coord_attention2(x, params)
    out = jax.block_until_ready(out)

    ref = coord_attention2_ref(x, params)
    assert out.shape == (N, C, H, W)
    assert jnp.allclose(out, ref, atol=1e-3, rtol=1e-3), "mismatch vs reference"

    print("KERNEL_OK")
</pallas_src>

<mosaic_0001>
module attributes {stable_mosaic.version = 11 : i64} {
  func.func @_coord_att_kernel(%arg0: i32, %arg1: memref<2x4x256xf32, #tpu.memory_space<vmem>>, %arg2: memref<8x4xf32, #tpu.memory_space<vmem>>, %arg3: memref<8x1xf32, #tpu.memory_space<vmem>>, %arg4: memref<4x8xf32, #tpu.memory_space<vmem>>, %arg5: memref<4x1xf32, #tpu.memory_space<vmem>>, %arg6: memref<4x8xf32, #tpu.memory_space<vmem>>, %arg7: memref<4x1xf32, #tpu.memory_space<vmem>>, %arg8: memref<256x16xf32, #tpu.memory_space<vmem>>, %arg9: memref<256x16xf32, #tpu.memory_space<vmem>>, %arg10: memref<16x256xf32, #tpu.memory_space<vmem>>, %arg11: memref<16x256xf32, #tpu.memory_space<vmem>>, %arg12: memref<2x4x256xf32, #tpu.memory_space<vmem>>) attributes {dimension_semantics = [#tpu.dimension_semantics<parallel>], iteration_bounds = array<i64: 1>, scalar_prefetch = 0 : i64, scratch_operands = 0 : i64, tpu.core_type = #tpu.core_type<tc>, window_params = [{transform_indices = @transform_0, window_bounds = array<i64: 2, 4, 256>}, {pipeline_mode = #tpu.pipeline_mode<synchronous>, transform_indices = @transform_1, window_bounds = array<i64: 8, 4>}, {pipeline_mode = #tpu.pipeline_mode<synchronous>, transform_indices = @transform_2, window_bounds = array<i64: 8, 1>}, {pipeline_mode = #tpu.pipeline_mode<synchronous>, transform_indices = @transform_3, window_bounds = array<i64: 4, 8>}, {pipeline_mode = #tpu.pipeline_mode<synchronous>, transform_indices = @transform_4, window_bounds = array<i64: 4, 1>}, {pipeline_mode = #tpu.pipeline_mode<synchronous>, transform_indices = @transform_5, window_bounds = array<i64: 4, 8>}, {pipeline_mode = #tpu.pipeline_mode<synchronous>, transform_indices = @transform_6, window_bounds = array<i64: 4, 1>}, {pipeline_mode = #tpu.pipeline_mode<synchronous>, transform_indices = @transform_7, window_bounds = array<i64: 256, 16>}, {pipeline_mode = #tpu.pipeline_mode<synchronous>, transform_indices = @transform_8, window_bounds = array<i64: 256, 16>}, {pipeline_mode = #tpu.pipeline_mode<synchronous>, transform_indices = @transform_9, window_bounds = array<i64: 16, 256>}, {pipeline_mode = #tpu.pipeline_mode<synchronous>, transform_indices = @transform_10, window_bounds = array<i64: 16, 256>}, {transform_indices = @transform_11, window_bounds = array<i64: 2, 4, 256>}]} {
    %c0 = arith.constant 0 : index
    %c0_0 = arith.constant 0 : index
    %0 = vector.load %arg2[%c0, %c0_0] : memref<8x4xf32, #tpu.memory_space<vmem>>, vector<8x4xf32>
    %c0_1 = arith.constant 0 : index
    %c0_2 = arith.constant 0 : index
    %1 = vector.load %arg3[%c0_1, %c0_2] : memref<8x1xf32, #tpu.memory_space<vmem>>, vector<8x1xf32>
    %c0_3 = arith.constant 0 : index
    %c0_4 = arith.constant 0 : index
    %2 = vector.load %arg4[%c0_3, %c0_4] : memref<4x8xf32, #tpu.memory_space<vmem>>, vector<4x8xf32>
    %c0_5 = arith.constant 0 : index
    %c0_6 = arith.constant 0 : index
    %3 = vector.load %arg5[%c0_5, %c0_6] : memref<4x1xf32, #tpu.memory_space<vmem>>, vector<4x1xf32>
    %c0_7 = arith.constant 0 : index
    %c0_8 = arith.constant 0 : index
    %4 = vector.load %arg6[%c0_7, %c0_8] : memref<4x8xf32, #tpu.memory_space<vmem>>, vector<4x8xf32>
    %c0_9 = arith.constant 0 : index
    %c0_10 = arith.constant 0 : index
    %5 = vector.load %arg7[%c0_9, %c0_10] : memref<4x1xf32, #tpu.memory_space<vmem>>, vector<4x1xf32>
    %c0_11 = arith.constant 0 : index
    %c0_12 = arith.constant 0 : index
    %6 = vector.load %arg8[%c0_11, %c0_12] : memref<256x16xf32, #tpu.memory_space<vmem>>, vector<256x16xf32>
    %c0_13 = arith.constant 0 : index
    %c0_14 = arith.constant 0 : index
    %7 = vector.load %arg9[%c0_13, %c0_14] : memref<256x16xf32, #tpu.memory_space<vmem>>, vector<256x16xf32>
    %c0_15 = arith.constant 0 : index
    %c0_16 = arith.constant 0 : index
    %8 = vector.load %arg10[%c0_15, %c0_16] : memref<16x256xf32, #tpu.memory_space<vmem>>, vector<16x256xf32>
    %c0_17 = arith.constant 0 : index
    %c0_18 = arith.constant 0 : index
    %9 = vector.load %arg11[%c0_17, %c0_18] : memref<16x256xf32, #tpu.memory_space<vmem>>, vector<16x256xf32>
    %c0_19 = arith.constant 0 : index
    %c0_20 = arith.constant 0 : index
    %c0_21 = arith.constant 0 : index
    %10 = vector.load %arg1[%c0_19, %c0_20, %c0_21] : memref<2x4x256xf32, #tpu.memory_space<vmem>>, vector<1x4x256xf32>
    %11 = vector.shape_cast %10 : vector<1x4x256xf32> to vector<4x256xf32>
    %cst = arith.constant dense<0.000000e+00> : vector<4x16xf32>
    %12 = tpu.matmul %11, %6, %cst {dimension_numbers = #tpu.dot_dimension_numbers<[1], [0], [0], [1], [0, 0, 1, 1], [], []>, precision = #tpu.contract_precision<fp32>} : vector<4x256xf32>, vector<256x16xf32>, vector<4x16xf32> -> vector<4x16xf32>
    %cst_22 = arith.constant dense<0.000000e+00> : vector<4x16xf32>
    %13 = tpu.matmul %11, %7, %cst_22 {dimension_numbers = #tpu.dot_dimension_numbers<[1], [0], [0], [1], [0, 0, 1, 1], [], []>, precision = #tpu.contract_precision<fp32>} : vector<4x256xf32>, vector<256x16xf32>, vector<4x16xf32> -> vector<4x16xf32>
    %cst_23 = arith.constant dense<0.000000e+00> : vector<8x16xf32>
    %14 = tpu.matmul %0, %12, %cst_23 {dimension_numbers = #tpu.dot_dimension_numbers<[1], [0], [0], [1], [0, 0, 1, 1], [], []>, precision = #tpu.contract_precision<fp32>} : vector<8x4xf32>, vector<4x16xf32>, vector<8x16xf32> -> vector<8x16xf32>
    %15 = vector.broadcast %1 : vector<8x1xf32> to vector<8x16xf32>
    %16 = arith.addf %14, %15 : vector<8x16xf32>
    %cst_24 = arith.constant dense<0.000000e+00> : vector<8x16xf32>
    %17 = tpu.matmul %0, %13, %cst_24 {dimension_numbers = #tpu.dot_dimension_numbers<[1], [0], [0], [1], [0, 0, 1, 1], [], []>, precision = #tpu.contract_precision<fp32>} : vector<8x4xf32>, vector<4x16xf32>, vector<8x16xf32> -> vector<8x16xf32>
    %18 = vector.broadcast %1 : vector<8x1xf32> to vector<8x16xf32>
    %19 = arith.addf %17, %18 : vector<8x16xf32>
    %cst_25 = arith.constant 3.000000e+00 : f32
    %20 = vector.broadcast %cst_25 : f32 to vector<8x16xf32>
    %21 = arith.addf %16, %20 : vector<8x16xf32>
    %cst_26 = arith.constant 0.000000e+00 : f32
    %cst_27 = arith.constant 6.000000e+00 : f32
    %22 = vector.broadcast %cst_26 : f32 to vector<8x16xf32>
    %23 = arith.maximumf %22, %21 : vector<8x16xf32>
    %24 = vector.broadcast %cst_27 : f32 to vector<8x16xf32>
    %25 = arith.minimumf %24, %23 : vector<8x16xf32>
    %26 = arith.mulf %16, %25 : vector<8x16xf32>
    %cst_28 = arith.constant 0.166666672 : f32
    %27 = vector.broadcast %cst_28 : f32 to vector<8x16xf32>
    %28 = arith.mulf %26, %27 : vector<8x16xf32>
    %cst_29 = arith.constant 3.000000e+00 : f32
    %29 = vector.broadcast %cst_29 : f32 to vector<8x16xf32>
    %30 = arith.addf %19, %29 : vector<8x16xf32>
    %cst_30 = arith.constant 0.000000e+00 : f32
    %cst_31 = arith.constant 6.000000e+00 : f32
    %31 = vector.broadcast %cst_30 : f32 to vector<8x16xf32>
    %32 = arith.maximumf %31, %30 : vector<8x16xf32>
    %33 = vector.broadcast %cst_31 : f32 to vector<8x16xf32>
    %34 = arith.minimumf %33, %32 : vector<8x16xf32>
    %35 = arith.mulf %19, %34 : vector<8x16xf32>
    %cst_32 = arith.constant 0.166666672 : f32
    %36 = vector.broadcast %cst_32 : f32 to vector<8x16xf32>
    %37 = arith.mulf %35, %36 : vector<8x16xf32>
    %cst_33 = arith.constant dense<0.000000e+00> : vector<4x16xf32>
    %38 = tpu.matmul %2, %28, %cst_33 {dimension_numbers = #tpu.dot_dimension_numbers<[1], [0], [0], [1], [0, 0, 1, 1], [], []>, precision = #tpu.contract_precision<fp32>} : vector<4x8xf32>, vector<8x16xf32>, vector<4x16xf32> -> vector<4x16xf32>
    %39 = vector.broadcast %3 : vector<4x1xf32> to vector<4x16xf32>
    %40 = arith.addf %38, %39 : vector<4x16xf32>
    %41 = arith.negf %40 : vector<4x16xf32>
    %42 = math.exp %41 : vector<4x16xf32>
    %cst_34 = arith.constant 1.000000e+00 : f32
    %43 = vector.broadcast %cst_34 : f32 to vector<4x16xf32>
    %44 = arith.addf %43, %42 : vector<4x16xf32>
    %45 = arith.divf %43, %44 : vector<4x16xf32>
    %cst_35 = arith.constant dense<0.000000e+00> : vector<4x16xf32>
    %46 = tpu.matmul %4, %37, %cst_35 {dimension_numbers = #tpu.dot_dimension_numbers<[1], [0], [0], [1], [0, 0, 1, 1], [], []>, precision = #tpu.contract_precision<fp32>} : vector<4x8xf32>, vector<8x16xf32>, vector<4x16xf32> -> vector<4x16xf32>
    %47 = vector.broadcast %5 : vector<4x1xf32> to vector<4x16xf32>
    %48 = arith.addf %46, %47 : vector<4x16xf32>
    %49 = arith.negf %48 : vector<4x16xf32>
    %50 = math.exp %49 : vector<4x16xf32>
    %cst_36 = arith.constant 1.000000e+00 : f32
    %51 = vector.broadcast %cst_36 : f32 to vector<4x16xf32>
    %52 = arith.addf %51, %50 : vector<4x16xf32>
    %53 = arith.divf %51, %52 : vector<4x16xf32>
    %cst_37 = arith.constant dense<0.000000e+00> : vector<4x256xf32>
    %54 = tpu.matmul %45, %8, %cst_37 {dimension_numbers = #tpu.dot_dimension_numbers<[1], [0], [0], [1], [0, 0, 1, 1], [], []>, precision = #tpu.contract_precision<fp32>} : vector<4x16xf32>, vector<16x256xf32>, vector<4x256xf32> -> vector<4x256xf32>
    %cst_38 = arith.constant dense<0.000000e+00> : vector<4x256xf32>
    %55 = tpu.matmul %53, %9, %cst_38 {dimension_numbers = #tpu.dot_dimension_numbers<[1], [0], [0], [1], [0, 0, 1, 1], [], []>, precision = #tpu.contract_precision<fp32>} : vector<4x16xf32>, vector<16x256xf32>, vector<4x256xf32> -> vector<4x256xf32>
    %56 = arith.mulf %54, %55 : vector<4x256xf32>
    %57 = arith.mulf %11, %56 : vector<4x256xf32>
    %c0_39 = arith.constant 0 : index
    %c0_40 = arith.constant 0 : index
    %c0_41 = arith.constant 0 : index
    %58 = vector.load %arg12[%c0_39, %c0_40, %c0_41] : memref<2x4x256xf32, #tpu.memory_space<vmem>>, vector<1x4x256xf32>
    %59 = vector.shape_cast %58 : vector<1x4x256xf32> to vector<4x256xf32>
    %60 = vector.shape_cast %57 : vector<4x256xf32> to vector<1x4x256xf32>
    tpu.vector_store %arg12[%c0_39, %c0_40, %c0_41], %60 {strides = array<i32>} : memref<2x4x256xf32, #tpu.memory_space<vmem>>, vector<1x4x256xf32>,
    %c1 = arith.constant 1 : index
    %c0_42 = arith.constant 0 : index
    %c0_43 = arith.constant 0 : index
    %61 = vector.load %arg1[%c1, %c0_42, %c0_43] : memref<2x4x256xf32, #tpu.memory_space<vmem>>, vector<1x4x256xf32>
    %62 = vector.shape_cast %61 : vector<1x4x256xf32> to vector<4x256xf32>
    %cst_44 = arith.constant dense<0.000000e+00> : vector<4x16xf32>
    %63 = tpu.matmul %62, %6, %cst_44 {dimension_numbers = #tpu.dot_dimension_numbers<[1], [0], [0], [1], [0, 0, 1, 1], [], []>, precision = #tpu.contract_precision<fp32>} : vector<4x256xf32>, vector<256x16xf32>, vector<4x16xf32> -> vector<4x16xf32>
    %cst_45 = arith.constant dense<0.000000e+00> : vector<4x16xf32>
    %64 = tpu.matmul %62, %7, %cst_45 {dimension_numbers = #tpu.dot_dimension_numbers<[1], [0], [0], [1], [0, 0, 1, 1], [], []>, precision = #tpu.contract_precision<fp32>} : vector<4x256xf32>, vector<256x16xf32>, vector<4x16xf32> -> vector<4x16xf32>
    %cst_46 = arith.constant dense<0.000000e+00> : vector<8x16xf32>
    %65 = tpu.matmul %0, %63, %cst_46 {dimension_numbers = #tpu.dot_dimension_numbers<[1], [0], [0], [1], [0, 0, 1, 1], [], []>, precision = #tpu.contract_precision<fp32>} : vector<8x4xf32>, vector<4x16xf32>, vector<8x16xf32> -> vector<8x16xf32>
    %66 = vector.broadcast %1 : vector<8x1xf32> to vector<8x16xf32>
    %67 = arith.addf %65, %66 : vector<8x16xf32>
    %cst_47 = arith.constant dense<0.000000e+00> : vector<8x16xf32>
    %68 = tpu.matmul %0, %64, %cst_47 {dimension_numbers = #tpu.dot_dimension_numbers<[1], [0], [0], [1], [0, 0, 1, 1], [], []>, precision = #tpu.contract_precision<fp32>} : vector<8x4xf32>, vector<4x16xf32>, vector<8x16xf32> -> vector<8x16xf32>
    %69 = vector.broadcast %1 : vector<8x1xf32> to vector<8x16xf32>
    %70 = arith.addf %68, %69 : vector<8x16xf32>
    %cst_48 = arith.constant 3.000000e+00 : f32
    %71 = vector.broadcast %cst_48 : f32 to vector<8x16xf32>
    %72 = arith.addf %67, %71 : vector<8x16xf32>
    %cst_49 = arith.constant 0.000000e+00 : f32
    %cst_50 = arith.constant 6.000000e+00 : f32
    %73 = vector.broadcast %cst_49 : f32 to vector<8x16xf32>
    %74 = arith.maximumf %73, %72 : vector<8x16xf32>
    %75 = vector.broadcast %cst_50 : f32 to vector<8x16xf32>
    %76 = arith.minimumf %75, %74 : vector<8x16xf32>
    %77 = arith.mulf %67, %76 : vector<8x16xf32>
    %cst_51 = arith.constant 0.166666672 : f32
    %78 = vector.broadcast %cst_51 : f32 to vector<8x16xf32>
    %79 = arith.mulf %77, %78 : vector<8x16xf32>
    %cst_52 = arith.constant 3.000000e+00 : f32
    %80 = vector.broadcast %cst_52 : f32 to vector<8x16xf32>
    %81 = arith.addf %70, %80 : vector<8x16xf32>
    %cst_53 = arith.constant 0.000000e+00 : f32
    %cst_54 = arith.constant 6.000000e+00 : f32
    %82 = vector.broadcast %cst_53 : f32 to vector<8x16xf32>
    %83 = arith.maximumf %82, %81 : vector<8x16xf32>
    %84 = vector.broadcast %cst_54 : f32 to vector<8x16xf32>
    %85 = arith.minimumf %84, %83 : vector<8x16xf32>
    %86 = arith.mulf %70, %85 : vector<8x16xf32>
    %cst_55 = arith.constant 0.166666672 : f32
    %87 = vector.broadcast %cst_55 : f32 to vector<8x16xf32>
    %88 = arith.mulf %86, %87 : vector<8x16xf32>
    %cst_56 = arith.constant dense<0.000000e+00> : vector<4x16xf32>
    %89 = tpu.matmul %2, %79, %cst_56 {dimension_numbers = #tpu.dot_dimension_numbers<[1], [0], [0], [1], [0, 0, 1, 1], [], []>, precision = #tpu.contract_precision<fp32>} : vector<4x8xf32>, vector<8x16xf32>, vector<4x16xf32> -> vector<4x16xf32>
    %90 = vector.broadcast %3 : vector<4x1xf32> to vector<4x16xf32>
    %91 = arith.addf %89, %90 : vector<4x16xf32>
    %92 = arith.negf %91 : vector<4x16xf32>
    %93 = math.exp %92 : vector<4x16xf32>
    %cst_57 = arith.constant 1.000000e+00 : f32
    %94 = vector.broadcast %cst_57 : f32 to vector<4x16xf32>
    %95 = arith.addf %94, %93 : vector<4x16xf32>
    %96 = arith.divf %94, %95 : vector<4x16xf32>
    %cst_58 = arith.constant dense<0.000000e+00> : vector<4x16xf32>
    %97 = tpu.matmul %4, %88, %cst_58 {dimension_numbers = #tpu.dot_dimension_numbers<[1], [0], [0], [1], [0, 0, 1, 1], [], []>, precision = #tpu.contract_precision<fp32>} : vector<4x8xf32>, vector<8x16xf32>, vector<4x16xf32> -> vector<4x16xf32>
    %98 = vector.broadcast %5 : vector<4x1xf32> to vector<4x16xf32>
    %99 = arith.addf %97, %98 : vector<4x16xf32>
    %100 = arith.negf %99 : vector<4x16xf32>
    %101 = math.exp %100 : vector<4x16xf32>
    %cst_59 = arith.constant 1.000000e+00 : f32
    %102 = vector.broadcast %cst_59 : f32 to vector<4x16xf32>
    %103 = arith.addf %102, %101 : vector<4x16xf32>
    %104 = arith.divf %102, %103 : vector<4x16xf32>
    %cst_60 = arith.constant dense<0.000000e+00> : vector<4x256xf32>
    %105 = tpu.matmul %96, %8, %cst_60 {dimension_numbers = #tpu.dot_dimension_numbers<[1], [0], [0], [1], [0, 0, 1, 1], [], []>, precision = #tpu.contract_precision<fp32>} : vector<4x16xf32>, vector<16x256xf32>, vector<4x256xf32> -> vector<4x256xf32>
    %cst_61 = arith.constant dense<0.000000e+00> : vector<4x256xf32>
    %106 = tpu.matmul %104, %9, %cst_61 {dimension_numbers = #tpu.dot_dimension_numbers<[1], [0], [0], [1], [0, 0, 1, 1], [], []>, precision = #tpu.contract_precision<fp32>} : vector<4x16xf32>, vector<16x256xf32>, vector<4x256xf32> -> vector<4x256xf32>
    %107 = arith.mulf %105, %106 : vector<4x256xf32>
    %108 = arith.mulf %62, %107 : vector<4x256xf32>
    %c1_62 = arith.constant 1 : index
    %c0_63 = arith.constant 0 : index
    %c0_64 = arith.constant 0 : index
    %109 = vector.load %arg12[%c1_62, %c0_63, %c0_64] : memref<2x4x256xf32, #tpu.memory_space<vmem>>, vector<1x4x256xf32>
    %110 = vector.shape_cast %109 : vector<1x4x256xf32> to vector<4x256xf32>
    %111 = vector.shape_cast %108 : vector<4x256xf32> to vector<1x4x256xf32>
    tpu.vector_store %arg12[%c1_62, %c0_63, %c0_64], %111 {strides = array<i32>} : memref<2x4x256xf32, #tpu.memory_space<vmem>>, vector<1x4x256xf32>,
    return
  }
  func.func @transform_0(%arg0: i32) -> (i32, i32, i32) {
    %c0_i32 = arith.constant 0 : i32
    %c0_i32_0 = arith.constant 0 : i32
    %c0_i32_1 = arith.constant 0 : i32
    return %arg0, %c0_i32, %c0_i32_0 : i32, i32, i32
  }
  func.func @transform_1(%arg0: i32) -> (i32, i32) {
    %c0_i32 = arith.constant 0 : i32
    %c0_i32_0 = arith.constant 0 : i32
    %c0_i32_1 = arith.constant 0 : i32
    return %c0_i32, %c0_i32_0 : i32, i32
  }
  func.func @transform_2(%arg0: i32) -> (i32, i32) {
    %c0_i32 = arith.constant 0 : i32
    %c0_i32_0 = arith.constant 0 : i32
    %c0_i32_1 = arith.constant 0 : i32
    return %c0_i32, %c0_i32_0 : i32, i32
  }
  func.func @transform_3(%arg0: i32) -> (i32, i32) {
    %c0_i32 = arith.constant 0 : i32
    %c0_i32_0 = arith.constant 0 : i32
    %c0_i32_1 = arith.constant 0 : i32
    return %c0_i32, %c0_i32_0 : i32, i32
  }
  func.func @transform_4(%arg0: i32) -> (i32, i32) {
    %c0_i32 = arith.constant 0 : i32
    %c0_i32_0 = arith.constant 0 : i32
    %c0_i32_1 = arith.constant 0 : i32
    return %c0_i32, %c0_i32_0 : i32, i32
  }
  func.func @transform_5(%arg0: i32) -> (i32, i32) {
    %c0_i32 = arith.constant 0 : i32
    %c0_i32_0 = arith.constant 0 : i32
    %c0_i32_1 = arith.constant 0 : i32
    return %c0_i32, %c0_i32_0 : i32, i32
  }
  func.func @transform_6(%arg0: i32) -> (i32, i32) {
    %c0_i32 = arith.constant 0 : i32
    %c0_i32_0 = arith.constant 0 : i32
    %c0_i32_1 = arith.constant 0 : i32
    return %c0_i32, %c0_i32_0 : i32, i32
  }
  func.func @transform_7(%arg0: i32) -> (i32, i32) {
    %c0_i32 = arith.constant 0 : i32
    %c0_i32_0 = arith.constant 0 : i32
    %c0_i32_1 = arith.constant 0 : i32
    return %c0_i32, %c0_i32_0 : i32, i32
  }
  func.func @transform_8(%arg0: i32) -> (i32, i32) {
    %c0_i32 = arith.constant 0 : i32
    %c0_i32_0 = arith.constant 0 : i32
    %c0_i32_1 = arith.constant 0 : i32
    return %c0_i32, %c0_i32_0 : i32, i32
  }
  func.func @transform_9(%arg0: i32) -> (i32, i32) {
    %c0_i32 = arith.constant 0 : i32
    %c0_i32_0 = arith.constant 0 : i32
    %c0_i32_1 = arith.constant 0 : i32
    return %c0_i32, %c0_i32_0 : i32, i32
  }
  func.func @transform_10(%arg0: i32) -> (i32, i32) {
    %c0_i32 = arith.constant 0 : i32
    %c0_i32_0 = arith.constant 0 : i32
    %c0_i32_1 = arith.constant 0 : i32
    return %c0_i32, %c0_i32_0 : i32, i32
  }
  func.func @transform_11(%arg0: i32) -> (i32, i32, i32) {
    %c0_i32 = arith.constant 0 : i32
    %c0_i32_0 = arith.constant 0 : i32
    %c0_i32_1 = arith.constant 0 : i32
    return %arg0, %c0_i32, %c0_i32_0 : i32, i32, i32
  }
}

</mosaic_0001>

<llo_original>
// kernel: tpu_custom_call.1
$region0: #{tpu_custom_call.1}
  #allocation0 [shape = 'u32[]', space=smem, size = 0x4, offset = 0x4, fixed_abs, tag = 'smem constant byte address 0x4 - core index']
  #allocation1 [shape = 'u32[144,128]{1,0:T(1,128)}', space=vmem, size = 0x12000, scoped, tag = 'internal scratch']
  %s0 = inlined_call_operand.vmem [shape: f32[2,4,256], index: 0, kind: input, shape index: {}]
  %s1 = inlined_call_operand.vmem [shape: f32[8,4], index: 1, kind: input, shape index: {}]
  %s2 = inlined_call_operand.vmem [shape: f32[8,1], index: 2, kind: input, shape index: {}]
  %s3 = inlined_call_operand.vmem [shape: f32[4,8], index: 3, kind: input, shape index: {}]
  %s4 = inlined_call_operand.vmem [shape: f32[4,1], index: 4, kind: input, shape index: {}]
  %s5 = inlined_call_operand.vmem [shape: f32[4,8], index: 5, kind: input, shape index: {}]
  %s6 = inlined_call_operand.vmem [shape: f32[4,1], index: 6, kind: input, shape index: {}]
  %s7 = inlined_call_operand.vmem [shape: f32[256,16], index: 7, kind: input, shape index: {}]
  %s8 = inlined_call_operand.vmem [shape: f32[256,16], index: 8, kind: input, shape index: {}]
  %s9 = inlined_call_operand.vmem [shape: f32[16,256], index: 9, kind: input, shape index: {}]
  %s10 = inlined_call_operand.vmem [shape: f32[16,256], index: 10, kind: input, shape index: {}]
  %s11 = inlined_call_operand.hbm [shape: f32[2,4,256], index: 11, kind: output, shape index: {}]
  %s12 = sld [smem:[#allocation0]]
  $region54: #{tpu_custom_call.1} parent=0
    _
  %s14 = ssub.s32 1, %s12
  %s15 = scalar_select 0, %s14, %s12
  $region1: #{tpu_custom_call.1} parent=0
    #allocation2 [shape = 'u8[8192]{0}', space=vmem, size = 0x2000, scoped, tag = 'output window, operand 0, single buffered']
    #allocation3 [shape = 's32[1]{0}', space=sflag, size = 0x4, scoped, tag = 'scoped memory for tpu_custom_call.1']
    %16 = vsyncpa [#allocation3], 0
    // Predicated region
    $region2: #{tpu_custom_call.1} parent=1 // pred_check
      _
    $region3: #{tpu_custom_call.1} parent=1 // pred_check_branch
      %18 = sbr.rel (0) target = $region5
    $region4: #{tpu_custom_call.1} parent=1 // pred_region
      _
    $region5: #{tpu_custom_call.1} parent=1 // pred_fallthru
      _
    // Predicated region
    $region6: #{tpu_custom_call.1} parent=1 // pred_check
      _
    $region7: #{tpu_custom_call.1} parent=1 // pred_check_branch
      %20 = sbr.rel (0) target = $region9
    $region8: #{tpu_custom_call.1} parent=1 // pred_region
      _
    $region9: #{tpu_custom_call.1} parent=1 // pred_fallthru
      _
    // Predicated region
    $region10: #{tpu_custom_call.1} parent=1 // pred_check
      _
    $region11: #{tpu_custom_call.1} parent=1 // pred_check_branch
      %22 = sbr.rel (0) target = $region13
    $region12: #{tpu_custom_call.1} parent=1 // pred_region
      _
    $region13: #{tpu_custom_call.1} parent=1 // pred_fallthru
      _
    // Predicated region
    $region14: #{tpu_custom_call.1} parent=1 // pred_check
      _
    $region15: #{tpu_custom_call.1} parent=1 // pred_check_branch
      %24 = sbr.rel (0) target = $region17
    $region16: #{tpu_custom_call.1} parent=1 // pred_region
      _
    $region17: #{tpu_custom_call.1} parent=1 // pred_fallthru
      _
    // Predicated region
    $region18: #{tpu_custom_call.1} parent=1 // pred_check
      _
    $region19: #{tpu_custom_call.1} parent=1 // pred_check_branch
      %26 = sbr.rel (0) target = $region21
    $region20: #{tpu_custom_call.1} parent=1 // pred_region
      _
    $region21: #{tpu_custom_call.1} parent=1 // pred_fallthru
      _
    // Predicated region
    $region22: #{tpu_custom_call.1} parent=1 // pred_check
      _
    $region23: #{tpu_custom_call.1} parent=1 // pred_check_branch
      %28 = sbr.rel (0) target = $region25
    $region24: #{tpu_custom_call.1} parent=1 // pred_region
      _
    $region25: #{tpu_custom_call.1} parent=1 // pred_fallthru
      _
    // Predicated region
    $region26: #{tpu_custom_call.1} parent=1 // pred_check
      _
    $region27: #{tpu_custom_call.1} parent=1 // pred_check_branch
      %30 = sbr.rel (0) target = $region29
    $region28: #{tpu_custom_call.1} parent=1 // pred_region
      _
    $region29: #{tpu_custom_call.1} parent=1 // pred_fallthru
      _
    // Predicated region
    $region30: #{tpu_custom_call.1} parent=1 // pred_check
      _
    $region31: #{tpu_custom_call.1} parent=1 // pred_check_branch
      %32 = sbr.rel (0) target = $region33
    $region32: #{tpu_custom_call.1} parent=1 // pred_region
      _
    $region33: #{tpu_custom_call.1} parent=1 // pred_fallthru
      _
    // Predicated region
    $region34: #{tpu_custom_call.1} parent=1 // pred_check
      _
    $region35: #{tpu_custom_call.1} parent=1 // pred_check_branch
      %34 = sbr.rel (0) target = $region37
    $region36: #{tpu_custom_call.1} parent=1 // pred_region
      _
    $region37: #{tpu_custom_call.1} parent=1 // pred_fallthru
      _
    // Predicated region
    $region38: #{tpu_custom_call.1} parent=1 // pred_check
      _
    $region39: #{tpu_custom_call.1} parent=1 // pred_check_branch
      %36 = sbr.rel (0) target = $region41
    $region40: #{tpu_custom_call.1} parent=1 // pred_region
      _
    $region41: #{tpu_custom_call.1} parent=1 // pred_fallthru
      _
    // Predicated region
    $region42: #{tpu_custom_call.1} parent=1 // pred_check
      _
    $region43: #{tpu_custom_call.1} parent=1 // pred_check_branch
      %38 = sbr.rel (0) target = $region45
    $region44: #{tpu_custom_call.1} parent=1 // pred_region
      _
    $region45: #{tpu_custom_call.1} parent=1 // pred_fallthru
      _
    %v39 = vld [vmem:[%s1] sm:$0xff]
    %v40 = vld [vmem:[%s2] sm:$0xff]
    %v41 = vld [vmem:[%s3] sm:$0xf]
    %v42 = vld [vmem:[%s4] sm:$0xf]
    %v43 = vld [vmem:[%s5] sm:$0xf]
    %v44 = vld [vmem:[%s6] sm:$0xf]
    %v45 = vld [vmem:[%s7] sm:$0xff]
    %v46 = vld [vmem:[%s7 + $0x8] sm:$0xff]
    %v47 = vld [vmem:[%s7 + $0x10] sm:$0xff]
    %v48 = vld [vmem:[%s7 + $0x18] sm:$0xff]
    %v49 = vld [vmem:[%s7 + $0x20] sm:$0xff]
    %v50 = vld [vmem:[%s7 + $0x28] sm:$0xff]
    %v51 = vld [vmem:[%s7 + $0x30] sm:$0xff]
    %v52 = vld [vmem:[%s7 + $0x38] sm:$0xff]
    %v53 = vld [vmem:[%s7 + $0x40] sm:$0xff]
    %v54 = vld [vmem:[%s7 + $0x48] sm:$0xff]
    %v55 = vld [vmem:[%s7 + $0x50] sm:$0xff]
    %v56 = vld [vmem:[%s7 + $0x58] sm:$0xff]
    %v57 = vld [vmem:[%s7 + $0x60] sm:$0xff]
    %v58 = vld [vmem:[%s7 + $0x68] sm:$0xff]
    %v59 = vld [vmem:[%s7 + $0x70] sm:$0xff]
    %v60 = vld [vmem:[%s7 + $0x78] sm:$0xff]
    %v61 = vld [vmem:[%s7 + $0x80] sm:$0xff]
    %v62 = vld [vmem:[%s7 + $0x88] sm:$0xff]
    %v63 = vld [vmem:[%s7 + $0x90] sm:$0xff]
    %v64 = vld [vmem:[%s7 + $0x98] sm:$0xff]
    %v65 = vld [vmem:[%s7 + $0xa0] sm:$0xff]
    %v66 = vld [vmem:[%s7 + $0xa8] sm:$0xff]
    %v67 = vld [vmem:[%s7 + $0xb0] sm:$0xff]
    %v68 = vld [vmem:[%s7 + $0xb8] sm:$0xff]
    %v69 = vld [vmem:[%s7 + $0xc0] sm:$0xff]
    %v70 = vld [vmem:[%s7 + $0xc8] sm:$0xff]
    %v71 = vld [vmem:[%s7 + $0xd0] sm:$0xff]
    %v72 = vld [vmem:[%s7 + $0xd8] sm:$0xff]
    %v73 = vld [vmem:[%s7 + $0xe0] sm:$0xff]
    %v74 = vld [vmem:[%s7 + $0xe8] sm:$0xff]
    %v75 = vld [vmem:[%s7 + $0xf0] sm:$0xff]
    %v76 = vld [vmem:[%s7 + $0xf8] sm:$0xff]
    %v77 = vld [vmem:[%s8] sm:$0xff]
    %v78 = vld [vmem:[%s8 + $0x8] sm:$0xff]
    %v79 = vld [vmem:[%s8 + $0x10] sm:$0xff]
    %v80 = vld [vmem:[%s8 + $0x18] sm:$0xff]
    %v81 = vld [vmem:[%s8 + $0x20] sm:$0xff]
    %v82 = vld [vmem:[%s8 + $0x28] sm:$0xff]
    %v83 = vld [vmem:[%s8 + $0x30] sm:$0xff]
    %v84 = vld [vmem:[%s8 + $0x38] sm:$0xff]
    %v85 = vld [vmem:[%s8 + $0x40] sm:$0xff]
    %v86 = vld [vmem:[%s8 + $0x48] sm:$0xff]
    %v87 = vld [vmem:[%s8 + $0x50] sm:$0xff]
    %v88 = vld [vmem:[%s8 + $0x58] sm:$0xff]
    %v89 = vld [vmem:[%s8 + $0x60] sm:$0xff]
    %v90 = vld [vmem:[%s8 + $0x68] sm:$0xff]
    %v91 = vld [vmem:[%s8 + $0x70] sm:$0xff]
    %v92 = vld [vmem:[%s8 + $0x78] sm:$0xff]
    %v93 = vld [vmem:[%s8 + $0x80] sm:$0xff]
    %v94 = vld [vmem:[%s8 + $0x88] sm:$0xff]
    %v95 = vld [vmem:[%s8 + $0x90] sm:$0xff]
    %v96 = vld [vmem:[%s8 + $0x98] sm:$0xff]
    %v97 = vld [vmem:[%s8 + $0xa0] sm:$0xff]
    %v98 = vld [vmem:[%s8 + $0xa8] sm:$0xff]
    %v99 = vld [vmem:[%s8 + $0xb0] sm:$0xff]
    %v100 = vld [vmem:[%s8 + $0xb8] sm:$0xff]
    %v101 = vld [vmem:[%s8 + $0xc0] sm:$0xff]
    %v102 = vld [vmem:[%s8 + $0xc8] sm:$0xff]
    %v103 = vld [vmem:[%s8 + $0xd0] sm:$0xff]
    %v104 = vld [vmem:[%s8 + $0xd8] sm:$0xff]
    %v105 = vld [vmem:[%s8 + $0xe0] sm:$0xff]
    %v106 = vld [vmem:[%s8 + $0xe8] sm:$0xff]
    %v107 = vld [vmem:[%s8 + $0xf0] sm:$0xff]
    %v108 = vld [vmem:[%s8 + $0xf8] sm:$0xff]
    %v109 = vld [vmem:[%s9] sm:$0xff]
    %v110 = vld [vmem:[%s9 + $0x8] sm:$0xff]
    %v111 = vld [vmem:[%s9 + $0x10] sm:$0xff]
    %v112 = vld [vmem:[%s9 + $0x18] sm:$0xff]
    %v113 = vld [vmem:[%s10] sm:$0xff]
    %v114 = vld [vmem:[%s10 + $0x8] sm:$0xff]
    %v115 = vld [vmem:[%s10 + $0x10] sm:$0xff]
    %v116 = vld [vmem:[%s10 + $0x18] sm:$0xff]
    %v117 = vld [vmem:[%s0] sm:$0xff]
    %v119 = vcombine.high %v117, %v117
    %121 = vmatprep.subr.mxu0 0.0
    %v122 = vand.u32 %v60, 4294901760
    %123 = vmatpush1.msra.mxu0 %v122
    %124 = vmatprep.subr.mxu0 0.0
    %v125 = vand.u32 %v59, 4294901760
    %126 = vmatpush1.msra.mxu0 %v125
    %127 = vmatprep.subr.mxu0 0.0
    %v128 = vand.u32 %v58, 4294901760
    %129 = vmatpush1.msra.mxu0 %v128
    %130 = vmatprep.subr.mxu0 0.0
    %v131 = vand.u32 %v57, 4294901760
    %132 = vmatpush1.msra.mxu0 %v131
    %133 = vmatprep.subr.mxu0 0.0
    %v134 = vand.u32 %v56, 4294901760
    %135 = vmatpush1.msra.mxu0 %v134
    %136 = vmatprep.subr.mxu0 0.0
    %v137 = vand.u32 %v55, 4294901760
    %138 = vmatpush1.msra.mxu0 %v137
    %139 = vmatprep.subr.mxu0 0.0
    %v140 = vand.u32 %v54, 4294901760
    %141 = vmatpush1.msra.mxu0 %v140
    %142 = vmatprep.subr.mxu0 0.0
    %v143 = vand.u32 %v53, 4294901760
    %144 = vmatpush1.msra.mxu0 %v143
    %145 = vmatprep.subr.mxu0 0.0
    %v146 = vand.u32 %v52, 4294901760
    %147 = vmatpush1.msra.mxu0 %v146
    %148 = vmatprep.subr.mxu0 0.0
    %v149 = vand.u32 %v51, 4294901760
    %150 = vmatpush1.msra.mxu0 %v149
    %151 = vmatprep.subr.mxu0 0.0
    %v152 = vand.u32 %v50, 4294901760
    %153 = vmatpush1.msra.mxu0 %v152
    %154 = vmatprep.subr.mxu0 0.0
    %v155 = vand.u32 %v49, 4294901760
    %156 = vmatpush1.msra.mxu0 %v155
    %157 = vmatprep.subr.mxu0 0.0
    %v158 = vand.u32 %v48, 4294901760
    %159 = vmatpush1.msra.mxu0 %v158
    %160 = vmatprep.subr.mxu0 0.0
    %v161 = vand.u32 %v47, 4294901760
    %162 = vmatpush1.msra.mxu0 %v161
    %163 = vmatprep.subr.mxu0 0.0
    %v164 = vand.u32 %v46, 4294901760
    %165 = vmatpush1.msra.mxu0 %v164
    %166 = vmatprep.subr.mxu0 0.0
    %v167 = vand.u32 %v45, 4294901760
    %168 = vmatpush1.msra.mxu0 %v167
    %169 = vmatprep.subr.mxu0 0.0
    %v170 = vand.u32 %v76, 4294901760
    %171 = vmatpush2.msra.mxu0 %v170
    %172 = vmatprep.subr.mxu0 0.0
    %v173 = vand.u32 %v75, 4294901760
    %174 = vmatpush2.msra.mxu0 %v173
    %175 = vmatprep.subr.mxu0 0.0
    %v176 = vand.u32 %v74, 4294901760
    %177 = vmatpush2.msra.mxu0 %v176
    %178 = vmatprep.subr.mxu0 0.0
    %v179 = vand.u32 %v73, 4294901760
    %180 = vmatpush2.msra.mxu0 %v179
    %181 = vmatprep.subr.mxu0 0.0
    %v182 = vand.u32 %v72, 4294901760
    %183 = vmatpush2.msra.mxu0 %v182
    %184 = vmatprep.subr.mxu0 0.0
    %v185 = vand.u32 %v71, 4294901760
    %186 = vmatpush2.msra.mxu0 %v185
    %187 = vmatprep.subr.mxu0 0.0
    %v188 = vand.u32 %v70, 4294901760
    %189 = vmatpush2.msra.mxu0 %v188
    %190 = vmatprep.subr.mxu0 0.0
    %v191 = vand.u32 %v69, 4294901760
    %192 = vmatpush2.msra.mxu0 %v191
    %193 = vmatprep.subr.mxu0 0.0
    %v194 = vand.u32 %v68, 4294901760
    %195 = vmatpush2.msra.mxu0 %v194
    %196 = vmatprep.subr.mxu0 0.0
    %v197 = vand.u32 %v67, 4294901760
    %198 = vmatpush2.msra.mxu0 %v197
    %199 = vmatprep.subr.mxu0 0.0
    %v200 = vand.u32 %v66, 4294901760
    %201 = vmatpush2.msra.mxu0 %v200
    %202 = vmatprep.subr.mxu0 0.0
    %v203 = vand.u32 %v65, 4294901760
    %204 = vmatpush2.msra.mxu0 %v203
    %205 = vmatprep.subr.mxu0 0.0
    %v206 = vand.u32 %v64, 4294901760
    %207 = vmatpush2.msra.mxu0 %v206
    %208 = vmatprep.subr.mxu0 0.0
    %v209 = vand.u32 %v63, 4294901760
    %210 = vmatpush2.msra.mxu0 %v209
    %211 = vmatprep.subr.mxu0 0.0
    %v212 = vand.u32 %v62, 4294901760
    %213 = vmatpush2.msra.mxu0 %v212
    %214 = vmatprep.subr.mxu0 0.0
    %v215 = vand.u32 %v61, 4294901760
    %216 = vmatpush2.msra.mxu0 %v215
    %v217 = vand.u32 %v119, 4294901760
    %v218 = vsub.f32 %v119, %v217
    %v219 = vand.u32 %v218, 4294901760
    %v220 = vsub.f32 %v218, %v219
    %v221 = vand.u32 %v220, 4294901760
    %222 = vmatprep.mubr.f32.mxu0 %v221
    %v223 = vand.u32 %v117, 4294901760
    %v224 = vsub.f32 %v117, %v223
    %v225 = vand.u32 %v224, 4294901760
    %v226 = vsub.f32 %v224, %v225
    %v227 = vand.u32 %v226, 4294901760
    %228 = vmatmul.mubr.f32.gmra.mxu0 %v227
    %v229 = vpop.f32.mrf.mxu0
    %v230 = vadd.f32 0.0, %v229
    %v231 = vpop.f32.mrf.mxu0
    %232 = vdwg.mxu0
    %233 = vmatprep.subr.mxu0 0.0
    %v234 = vand.u32 %v60, 4294901760
    %v235 = vsub.f32 %v60, %v234
    %v236 = vand.u32 %v235, 4294901760
    %v237 = vsub.f32 %v235, %v236
    %v238 = vand.u32 %v237, 4294901760
    %239 = vmatpush1.msra.mxu0 %v238
    %240 = vmatprep.subr.mxu0 0.0
    %v241 = vand.u32 %v59, 4294901760
    %v242 = vsub.f32 %v59, %v241
    %v243 = vand.u32 %v242, 4294901760
    %v244 = vsub.f32 %v242, %v243
    %v245 = vand.u32 %v244, 4294901760
    %246 = vmatpush1.msra.mxu0 %v245
    %247 = vmatprep.subr.mxu0 0.0
    %v248 = vand.u32 %v58, 4294901760
    %v249 = vsub.f32 %v58, %v248
    %v250 = vand.u32 %v249, 4294901760
    %v251 = vsub.f32 %v249, %v250
    %v252 = vand.u32 %v251, 4294901760
    %253 = vmatpush1.msra.mxu0 %v252
    %254 = vmatprep.subr.mxu0 0.0
    %v255 = vand.u32 %v57, 4294901760
    %v256 = vsub.f32 %v57, %v255
    %v257 = vand.u32 %v256, 4294901760
    %v258 = vsub.f32 %v256, %v257
    %v259 = vand.u32 %v258, 4294901760
    %260 = vmatpush1.msra.mxu0 %v259
    %261 = vmatprep.subr.mxu0 0.0
    %v262 = vand.u32 %v56, 4294901760
    %v263 = vsub.f32 %v56, %v262
    %v264 = vand.u32 %v263, 4294901760
    %v265 = vsub.f32 %v263, %v264
    %v266 = vand.u32 %v265, 4294901760
    %267 = vmatpush1.msra.mxu0 %v266
    %268 = vmatprep.subr.mxu0 0.0
    %v269 = vand.u32 %v55, 4294901760
    %v270 = vsub.f32 %v55, %v269
    %v271 = vand.u32 %v270, 4294901760
    %v272 = vsub.f32 %v270, %v271
    %v273 = vand.u32 %v272, 4294901760
    %274 = vmatpush1.msra.mxu0 %v273
    %275 = vmatprep.subr.mxu0 0.0
    %v276 = vand.u32 %v54, 4294901760
    %v277 = vsub.f32 %v54, %v276
    %v278 = vand.u32 %v277, 4294901760
    %v279 = vsub.f32 %v277, %v278
    %v280 = vand.u32 %v279, 4294901760
    %281 = vmatpush1.msra.mxu0 %v280
    %282 = vmatprep.subr.mxu0 0.0
    %v283 = vand.u32 %v53, 4294901760
    %v284 = vsub.f32 %v53, %v283
    %v285 = vand.u32 %v284, 4294901760
    %v286 = vsub.f32 %v284, %v285
    %v287 = vand.u32 %v286, 4294901760
    %288 = vmatpush1.msra.mxu0 %v287
    %289 = vmatprep.subr.mxu0 0.0
    %v290 = vand.u32 %v52, 4294901760
    %v291 = vsub.f32 %v52, %v290
    %v292 = vand.u32 %v291, 4294901760
    %v293 = vsub.f32 %v291, %v292
    %v294 = vand.u32 %v293, 4294901760
    %295 = vmatpush1.msra.mxu0 %v294
    %296 = vmatprep.subr.mxu0 0.0
    %v297 = vand.u32 %v51, 4294901760
    %v298 = vsub.f32 %v51, %v297
    %v299 = vand.u32 %v298, 4294901760
    %v300 = vsub.f32 %v298, %v299
    %v301 = vand.u32 %v300, 4294901760
    %302 = vmatpush1.msra.mxu0 %v301
    %303 = vmatprep.subr.mxu0 0.0
    %v304 = vand.u32 %v50, 4294901760
    %v305 = vsub.f32 %v50, %v304
    %v306 = vand.u32 %v305, 4294901760
    %v307 = vsub.f32 %v305, %v306
    %v308 = vand.u32 %v307, 4294901760
    %309 = vmatpush1.msra.mxu0 %v308
    %310 = vmatprep.subr.mxu0 0.0
    %v311 = vand.u32 %v49, 4294901760
    %v312 = vsub.f32 %v49, %v311
    %v313 = vand.u32 %v312, 4294901760
    %v314 = vsub.f32 %v312, %v313
    %v315 = vand.u32 %v314, 4294901760
    %316 = vmatpush1.msra.mxu0 %v315
    %317 = vmatprep.subr.mxu0 0.0
    %v318 = vand.u32 %v48, 4294901760
    %v319 = vsub.f32 %v48, %v318
    %v320 = vand.u32 %v319, 4294901760
    %v321 = vsub.f32 %v319, %v320
    %v322 = vand.u32 %v321, 4294901760
    %323 = vmatpush1.msra.mxu0 %v322
    %324 = vmatprep.subr.mxu0 0.0
    %v325 = vand.u32 %v47, 4294901760
    %v326 = vsub.f32 %v47, %v325
    %v327 = vand.u32 %v326, 4294901760
    %v328 = vsub.f32 %v326, %v327
    %v329 = vand.u32 %v328, 4294901760
    %330 = vmatpush1.msra.mxu0 %v329
    %331 = vmatprep.subr.mxu0 0.0
    %v332 = vand.u32 %v46, 4294901760
    %v333 = vsub.f32 %v46, %v332
    %v334 = vand.u32 %v333, 4294901760
    %v335 = vsub.f32 %v333, %v334
    %v336 = vand.u32 %v335, 4294901760
    %337 = vmatpush1.msra.mxu0 %v336
    %338 = vmatprep.subr.mxu0 0.0
    %v339 = vand.u32 %v45, 4294901760
    %v340 = vsub.f32 %v45, %v339
    %v341 = vand.u32 %v340, 4294901760
    %v342 = vsub.f32 %v340, %v341
    %v343 = vand.u32 %v342, 4294901760
    %344 = vmatpush1.msra.mxu0 %v343
    %345 = vmatprep.subr.mxu0 0.0
    %v346 = vand.u32 %v76, 4294901760
    %v347 = vsub.f32 %v76, %v346
    %v348 = vand.u32 %v347, 4294901760
    %v349 = vsub.f32 %v347, %v348
    %v350 = vand.u32 %v349, 4294901760
    %351 = vmatpush2.msra.mxu0 %v350
    %352 = vmatprep.subr.mxu0 0.0
    %v353 = vand.u32 %v75, 4294901760
    %v354 = vsub.f32 %v75, %v353
    %v355 = vand.u32 %v354, 4294901760
    %v356 = vsub.f32 %v354, %v355
    %v357 = vand.u32 %v356, 4294901760
    %358 = vmatpush2.msra.mxu0 %v357
    %359 = vmatprep.subr.mxu0 0.0
    %v360 = vand.u32 %v74, 4294901760
    %v361 = vsub.f32 %v74, %v360
    %v362 = vand.u32 %v361, 4294901760
    %v363 = vsub.f32 %v361, %v362
    %v364 = vand.u32 %v363, 4294901760
    %365 = vmatpush2.msra.mxu0 %v364
    %366 = vmatprep.subr.mxu0 0.0
    %v367 = vand.u32 %v73, 4294901760
    %v368 = vsub.f32 %v73, %v367
    %v369 = vand.u32 %v368, 4294901760
    %v370 = vsub.f32 %v368, %v369
    %v371 = vand.u32 %v370, 4294901760
    %372 = vmatpush2.msra.mxu0 %v371
    %373 = vmatprep.subr.mxu0 0.0
    %v374 = vand.u32 %v72, 4294901760
    %v375 = vsub.f32 %v72, %v374
    %v376 = vand.u32 %v375, 4294901760
    %v377 = vsub.f32 %v375, %v376
    %v378 = vand.u32 %v377, 4294901760
    %379 = vmatpush2.msra.mxu0 %v378
    %380 = vmatprep.subr.mxu0 0.0
    %v381 = vand.u32 %v71, 4294901760
    %v382 = vsub.f32 %v71, %v381
    %v383 = vand.u32 %v382, 4294901760
    %v384 = vsub.f32 %v382, %v383
    %v385 = vand.u32 %v384, 4294901760
    %386 = vmatpush2.msra.mxu0 %v385
    %387 = vmatprep.subr.mxu0 0.0
    %v388 = vand.u32 %v70, 4294901760
    %v389 = vsub.f32 %v70, %v388
    %v390 = vand.u32 %v389, 4294901760
    %v391 = vsub.f32 %v389, %v390
    %v392 = vand.u32 %v391, 4294901760
    %393 = vmatpush2.msra.mxu0 %v392
    %394 = vmatprep.subr.mxu0 0.0
    %v395 = vand.u32 %v69, 4294901760
    %v396 = vsub.f32 %v69, %v395
    %v397 = vand.u32 %v396, 4294901760
    %v398 = vsub.f32 %v396, %v397
    %v399 = vand.u32 %v398, 4294901760
    %400 = vmatpush2.msra.mxu0 %v399
    %401 = vmatprep.subr.mxu0 0.0
    %v402 = vand.u32 %v68, 4294901760
    %v403 = vsub.f32 %v68, %v402
    %v404 = vand.u32 %v403, 4294901760
    %v405 = vsub.f32 %v403, %v404
    %v406 = vand.u32 %v405, 4294901760
    %407 = vmatpush2.msra.mxu0 %v406
    %408 = vmatprep.subr.mxu0 0.0
    %v409 = vand.u32 %v67, 4294901760
    %v410 = vsub.f32 %v67, %v409
    %v411 = vand.u32 %v410, 4294901760
    %v412 = vsub.f32 %v410, %v411
    %v413 = vand.u32 %v412, 4294901760
    %414 = vmatpush2.msra.mxu0 %v413
    %415 = vmatprep.subr.mxu0 0.0
    %v416 = vand.u32 %v66, 4294901760
    %v417 = vsub.f32 %v66, %v416
    %v418 = vand.u32 %v417, 4294901760
    %v419 = vsub.f32 %v417, %v418
    %v420 = vand.u32 %v419, 4294901760
    %421 = vmatpush2.msra.mxu0 %v420
    %422 = vmatprep.subr.mxu0 0.0
    %v423 = vand.u32 %v65, 4294901760
    %v424 = vsub.f32 %v65, %v423
    %v425 = vand.u32 %v424, 4294901760
    %v426 = vsub.f32 %v424, %v425
    %v427 = vand.u32 %v426, 4294901760
    %428 = vmatpush2.msra.mxu0 %v427
    %429 = vmatprep.subr.mxu0 0.0
    %v430 = vand.u32 %v64, 4294901760
    %v431 = vsub.f32 %v64, %v430
    %v432 = vand.u32 %v431, 4294901760
    %v433 = vsub.f32 %v431, %v432
    %v434 = vand.u32 %v433, 4294901760
    %435 = vmatpush2.msra.mxu0 %v434
    %436 = vmatprep.subr.mxu0 0.0
    %v437 = vand.u32 %v63, 4294901760
    %v438 = vsub.f32 %v63, %v437
    %v439 = vand.u32 %v438, 4294901760
    %v440 = vsub.f32 %v438, %v439
    %v441 = vand.u32 %v440, 4294901760
    %442 = vmatpush2.msra.mxu0 %v441
    %443 = vmatprep.subr.mxu0 0.0
    %v444 = vand.u32 %v62, 4294901760
    %v445 = vsub.f32 %v62, %v444
    %v446 = vand.u32 %v445, 4294901760
    %v447 = vsub.f32 %v445, %v446
    %v448 = vand.u32 %v447, 4294901760
    %449 = vmatpush2.msra.mxu0 %v448
    %450 = vmatprep.subr.mxu0 0.0
    %v451 = vand.u32 %v61, 4294901760
    %v452 = vsub.f32 %v61, %v451
    %v453 = vand.u32 %v452, 4294901760
    %v454 = vsub.f32 %v452, %v453
    %v455 = vand.u32 %v454, 4294901760
    %456 = vmatpush2.msra.mxu0 %v455
    %v457 = vand.u32 %v119, 4294901760
    %458 = vmatprep.mubr.f32.mxu0 %v457
    %v459 = vand.u32 %v117, 4294901760
    %460 = vmatmul.mubr.f32.gmra.mxu0 %v459
    %v461 = vpop.f32.mrf.mxu0
    %v462 = vadd.f32 %v230, %v461
    %v463 = vpop.f32.mrf.mxu0
    %464 = vdwg.mxu0
    %465 = vmatprep.subr.mxu0 0.0
    %v466 = vand.u32 %v60, 4294901760
    %v467 = vsub.f32 %v60, %v466
    %468 = vmatpush1.msra.mxu0 %v467
    %469 = vmatprep.subr.mxu0 0.0
    %v470 = vand.u32 %v59, 4294901760
    %v471 = vsub.f32 %v59, %v470
    %472 = vmatpush1.msra.mxu0 %v471
    %473 = vmatprep.subr.mxu0 0.0
    %v474 = vand.u32 %v58, 4294901760
    %v475 = vsub.f32 %v58, %v474
    %476 = vmatpush1.msra.mxu0 %v475
    %477 = vmatprep.subr.mxu0 0.0
    %v478 = vand.u32 %v57, 4294901760
    %v479 = vsub.f32 %v57, %v478
    %480 = vmatpush1.msra.mxu0 %v479
    %481 = vmatprep.subr.mxu0 0.0
    %v482 = vand.u32 %v56, 4294901760
    %v483 = vsub.f32 %v56, %v482
    %484 = vmatpush1.msra.mxu0 %v483
    %485 = vmatprep.subr.mxu0 0.0
    %v486 = vand.u32 %v55, 4294901760
    %v487 = vsub.f32 %v55, %v486
    %488 = vmatpush1.msra.mxu0 %v487
    %489 = vmatprep.subr.mxu0 0.0
    %v490 = vand.u32 %v54, 4294901760
    %v491 = vsub.f32 %v54, %v490
    %492 = vmatpush1.msra.mxu0 %v491
    %493 = vmatprep.subr.mxu0 0.0
    %v494 = vand.u32 %v53, 4294901760
    %v495 = vsub.f32 %v53, %v494
    %496 = vmatpush1.msra.mxu0 %v495
    %497 = vmatprep.subr.mxu0 0.0
    %v498 = vand.u32 %v52, 4294901760
    %v499 = vsub.f32 %v52, %v498
    %500 = vmatpush1.msra.mxu0 %v499
    %501 = vmatprep.subr.mxu0 0.0
    %v502 = vand.u32 %v51, 4294901760
    %v503 = vsub.f32 %v51, %v502
    %504 = vmatpush1.msra.mxu0 %v503
    %505 = vmatprep.subr.mxu0 0.0
    %v506 = vand.u32 %v50, 4294901760
    %v507 = vsub.f32 %v50, %v506
    %508 = vmatpush1.msra.mxu0 %v507
    %509 = vmatprep.subr.mxu0 0.0
    %v510 = vand.u32 %v49, 4294901760
    %v511 = vsub.f32 %v49, %v510
    %512 = vmatpush1.msra.mxu0 %v511
    %513 = vmatprep.subr.mxu0 0.0
    %v514 = vand.u32 %v48, 4294901760
    %v515 = vsub.f32 %v48, %v514
    %516 = vmatpush1.msra.mxu0 %v515
    %517 = vmatprep.subr.mxu0 0.0
    %v518 = vand.u32 %v47, 4294901760
    %v519 = vsub.f32 %v47, %v518
    %520 = vmatpush1.msra.mxu0 %v519
    %521 = vmatprep.subr.mxu0 0.0
    %v522 = vand.u32 %v46, 4294901760
    %v523 = vsub.f32 %v46, %v522
    %524 = vmatpush1.msra.mxu0 %v523
    %525 = vmatprep.subr.mxu0 0.0
    %v526 = vand.u32 %v45, 4294901760
    %v527 = vsub.f32 %v45, %v526
    %528 = vmatpush1.msra.mxu0 %v527
    %529 = vmatprep.subr.mxu0 0.0
    %v530 = vand.u32 %v76, 4294901760
    %v531 = vsub.f32 %v76, %v530
    %532 = vmatpush2.msra.mxu0 %v531
    %533 = vmatprep.subr.mxu0 0.0
    %v534 = vand.u32 %v75, 4294901760
    %v535 = vsub.f32 %v75, %v534
    %536 = vmatpush2.msra.mxu0 %v535
    %537 = vmatprep.subr.mxu0 0.0
    %v538 = vand.u32 %v74, 4294901760
    %v539 = vsub.f32 %v74, %v538
    %540 = vmatpush2.msra.mxu0 %v539
    %541 = vmatprep.subr.mxu0 0.0
    %v542 = vand.u32 %v73, 4294901760
    %v543 = vsub.f32 %v73, %v542
    %544 = vmatpush2.msra.mxu0 %v543
    %545 = vmatprep.subr.mxu0 0.0
    %v546 = vand.u32 %v72, 4294901760
    %v547 = vsub.f32 %v72, %v546
    %548 = vmatpush2.msra.mxu0 %v547
    %549 = vmatprep.subr.mxu0 0.0
    %v550 = vand.u32 %v71, 4294901760
    %v551 = vsub.f32 %v71, %v550
    %552 = vmatpush2.msra.mxu0 %v551
    %553 = vmatprep.subr.mxu0 0.0
    %v554 = vand.u32 %v70, 4294901760
    %v555 = vsub.f32 %v70, %v554
    %556 = vmatpush2.msra.mxu0 %v555
    %557 = vmatprep.subr.mxu0 0.0
    %v558 = vand.u32 %v69, 4294901760
    %v559 = vsub.f32 %v69, %v558
    %560 = vmatpush2.msra.mxu0 %v559
    %561 = vmatprep.subr.mxu0 0.0
    %v562 = vand.u32 %v68, 4294901760
    %v563 = vsub.f32 %v68, %v562
    %564 = vmatpush2.msra.mxu0 %v563
    %565 = vmatprep.subr.mxu0 0.0
    %v566 = vand.u32 %v67, 4294901760
    %v567 = vsub.f32 %v67, %v566
    %568 = vmatpush2.msra.mxu0 %v567
    %569 = vmatprep.subr.mxu0 0.0
    %v570 = vand.u32 %v66, 4294901760
    %v571 = vsub.f32 %v66, %v570
    %572 = vmatpush2.msra.mxu0 %v571
    %573 = vmatprep.subr.mxu0 0.0
    %v574 = vand.u32 %v65, 4294901760
    %v575 = vsub.f32 %v65, %v574
    %576 = vmatpush2.msra.mxu0 %v575
    %577 = vmatprep.subr.mxu0 0.0
    %v578 = vand.u32 %v64, 4294901760
    %v579 = vsub.f32 %v64, %v578
    %580 = vmatpush2.msra.mxu0 %v579
    %581 = vmatprep.subr.mxu0 0.0
    %v582 = vand.u32 %v63, 4294901760
    %v583 = vsub.f32 %v63, %v582
    %584 = vmatpush2.msra.mxu0 %v583
    %585 = vmatprep.subr.mxu0 0.0
    %v586 = vand.u32 %v62, 4294901760
    %v587 = vsub.f32 %v62, %v586
    %588 = vmatpush2.msra.mxu0 %v587
    %589 = vmatprep.subr.mxu0 0.0
    %v590 = vand.u32 %v61, 4294901760
    %v591 = vsub.f32 %v61, %v590
    %592 = vmatpush2.msra.mxu0 %v591
    %v593 = vand.u32 %v119, 4294901760
    %v594 = vsub.f32 %v119, %v593
    %595 = vmatprep.mubr.f32.mxu0 %v594
    %v596 = vand.u32 %v117, 4294901760
    %v597 = vsub.f32 %v117, %v596
    %598 = vmatmul.mubr.f32.gmra.mxu0 %v597
    %v599 = vpop.f32.mrf.mxu0
    %v600 = vadd.f32 %v462, %v599
    %v601 = vpop.f32.mrf.mxu0
    %602 = vdwg.mxu0
    %603 = vmatprep.subr.mxu0 0.0
    %v604 = vand.u32 %v60, 4294901760
    %605 = vmatpush1.msra.mxu0 %v604
    %606 = vmatprep.subr.mxu0 0.0
    %v607 = vand.u32 %v59, 4294901760
    %608 = vmatpush1.msra.mxu0 %v607
    %609 = vmatprep.subr.mxu0 0.0
    %v610 = vand.u32 %v58, 4294901760
    %611 = vmatpush1.msra.mxu0 %v610
    %612 = vmatprep.subr.mxu0 0.0
    %v613 = vand.u32 %v57, 4294901760
    %614 = vmatpush1.msra.mxu0 %v613
    %615 = vmatprep.subr.mxu0 0.0
    %v616 = vand.u32 %v56, 4294901760
    %617 = vmatpush1.msra.mxu0 %v616
    %618 = vmatprep.subr.mxu0 0.0
    %v619 = vand.u32 %v55, 4294901760
    %620 = vmatpush1.msra.mxu0 %v619
    %621 = vmatprep.subr.mxu0 0.0
    %v622 = vand.u32 %v54, 4294901760
    %623 = vmatpush1.msra.mxu0 %v622
    %624 = vmatprep.subr.mxu0 0.0
    %v625 = vand.u32 %v53, 4294901760
    %626 = vmatpush1.msra.mxu0 %v625
    %627 = vmatprep.subr.mxu0 0.0
    %v628 = vand.u32 %v52, 4294901760
    %629 = vmatpush1.msra.mxu0 %v628
    %630 = vmatprep.subr.mxu0 0.0
    %v631 = vand.u32 %v51, 4294901760
    %632 = vmatpush1.msra.mxu0 %v631
    %633 = vmatprep.subr.mxu0 0.0
    %v634 = vand.u32 %v50, 4294901760
    %635 = vmatpush1.msra.mxu0 %v634
    %636 = vmatprep.subr.mxu0 0.0
    %v637 = vand.u32 %v49, 4294901760
    %638 = vmatpush1.msra.mxu0 %v637
    %639 = vmatprep.subr.mxu0 0.0
    %v640 = vand.u32 %v48, 4294901760
    %641 = vmatpush1.msra.mxu0 %v640
    %642 = vmatprep.subr.mxu0 0.0
    %v643 = vand.u32 %v47, 4294901760
    %644 = vmatpush1.msra.mxu0 %v643
    %645 = vmatprep.subr.mxu0 0.0
    %v646 = vand.u32 %v46, 4294901760
    %647 = vmatpush1.msra.mxu0 %v646
    %648 = vmatprep.subr.mxu0 0.0
    %v649 = vand.u32 %v45, 4294901760
    %650 = vmatpush1.msra.mxu0 %v649
    %651 = vmatprep.subr.mxu0 0.0
    %v652 = vand.u32 %v76, 4294901760
    %653 = vmatpush2.msra.mxu0 %v652
    %654 = vmatprep.subr.mxu0 0.0
    %v655 = vand.u32 %v75, 4294901760
    %656 = vmatpush2.msra.mxu0 %v655
    %657 = vmatprep.subr.mxu0 0.0
    %v658 = vand.u32 %v74, 4294901760
    %659 = vmatpush2.msra.mxu0 %v658
    %660 = vmatprep.subr.mxu0 0.0
    %v661 = vand.u32 %v73, 4294901760
    %662 = vmatpush2.msra.mxu0 %v661
    %663 = vmatprep.subr.mxu0 0.0
    %v664 = vand.u32 %v72, 4294901760
    %665 = vmatpush2.msra.mxu0 %v664
    %666 = vmatprep.subr.mxu0 0.0
    %v667 = vand.u32 %v71, 4294901760
    %668 = vmatpush2.msra.mxu0 %v667
    %669 = vmatprep.subr.mxu0 0.0
    %v670 = vand.u32 %v70, 4294901760
    %671 = vmatpush2.msra.mxu0 %v670
    %672 = vmatprep.subr.mxu0 0.0
    %v673 = vand.u32 %v69, 4294901760
    %674 = vmatpush2.msra.mxu0 %v673
    %675 = vmatprep.subr.mxu0 0.0
    %v676 = vand.u32 %v68, 4294901760
    %677 = vmatpush2.msra.mxu0 %v676
    %678 = vmatprep.subr.mxu0 0.0
    %v679 = vand.u32 %v67, 4294901760
    %680 = vmatpush2.msra.mxu0 %v679
    %681 = vmatprep.subr.mxu0 0.0
    %v682 = vand.u32 %v66, 4294901760
    %683 = vmatpush2.msra.mxu0 %v682
    %684 = vmatprep.subr.mxu0 0.0
    %v685 = vand.u32 %v65, 4294901760
    %686 = vmatpush2.msra.mxu0 %v685
    %687 = vmatprep.subr.mxu0 0.0
    %v688 = vand.u32 %v64, 4294901760
    %689 = vmatpush2.msra.mxu0 %v688
    %690 = vmatprep.subr.mxu0 0.0
    %v691 = vand.u32 %v63, 4294901760
    %692 = vmatpush2.msra.mxu0 %v691
    %693 = vmatprep.subr.mxu0 0.0
    %v694 = vand.u32 %v62, 4294901760
    %695 = vmatpush2.msra.mxu0 %v694
    %696 = vmatprep.subr.mxu0 0.0
    %v697 = vand.u32 %v61, 4294901760
    %698 = vmatpush2.msra.mxu0 %v697
    %v699 = vand.u32 %v119, 4294901760
    %v700 = vsub.f32 %v119, %v699
    %v701 = vand.u32 %v700, 4294901760
    %702 = vmatprep.mubr.f32.mxu0 %v701
    %v703 = vand.u32 %v117, 4294901760
    %v704 = vsub.f32 %v117, %v703
    %v705 = vand.u32 %v704, 4294901760
    %706 = vmatmul.mubr.f32.gmra.mxu0 %v705
    %v707 = vpop.f32.mrf.mxu0
    %v708 = vadd.f32 %v600, %v707
    %v709 = vpop.f32.mrf.mxu0
    %710 = vdwg.mxu0
    %711 = vmatprep.subr.mxu0 0.0
    %v712 = vand.u32 %v60, 4294901760
    %v713 = vsub.f32 %v60, %v712
    %v714 = vand.u32 %v713, 4294901760
    %715 = vmatpush1.msra.mxu0 %v714
    %716 = vmatprep.subr.mxu0 0.0
    %v717 = vand.u32 %v59, 4294901760
    %v718 = vsub.f32 %v59, %v717
    %v719 = vand.u32 %v718, 4294901760
    %720 = vmatpush1.msra.mxu0 %v719
    %721 = vmatprep.subr.mxu0 0.0
    %v722 = vand.u32 %v58, 4294901760
    %v723 = vsub.f32 %v58, %v722
    %v724 = vand.u32 %v723, 4294901760
    %725 = vmatpush1.msra.mxu0 %v724
    %726 = vmatprep.subr.mxu0 0.0
    %v727 = vand.u32 %v57, 4294901760
    %v728 = vsub.f32 %v57, %v727
    %v729 = vand.u32 %v728, 4294901760
    %730 = vmatpush1.msra.mxu0 %v729
    %731 = vmatprep.subr.mxu0 0.0
    %v732 = vand.u32 %v56, 4294901760
    %v733 = vsub.f32 %v56, %v732
    %v734 = vand.u32 %v733, 4294901760
    %735 = vmatpush1.msra.mxu0 %v734
    %736 = vmatprep.subr.mxu0 0.0
    %v737 = vand.u32 %v55, 4294901760
    %v738 = vsub.f32 %v55, %v737
    %v739 = vand.u32 %v738, 4294901760
    %740 = vmatpush1.msra.mxu0 %v739
    %741 = vmatprep.subr.mxu0 0.0
    %v742 = vand.u32 %v54, 4294901760
    %v743 = vsub.f32 %v54, %v742
    %v744 = vand.u32 %v743, 4294901760
    %745 = vmatpush1.msra.mxu0 %v744
    %746 = vmatprep.subr.mxu0 0.0
    %v747 = vand.u32 %v53, 4294901760
    %v748 = vsub.f32 %v53, %v747
    %v749 = vand.u32 %v748, 4294901760
    %750 = vmatpush1.msra.mxu0 %v749
    %751 = vmatprep.subr.mxu0 0.0
    %v752 = vand.u32 %v52, 4294901760
    %v753 = vsub.f32 %v52, %v752
    %v754 = vand.u32 %v753, 4294901760
    %755 = vmatpush1.msra.mxu0 %v754
    %756 = vmatprep.subr.mxu0 0.0
    %v757 = vand.u32 %v51, 4294901760
    %v758 = vsub.f32 %v51, %v757
    %v759 = vand.u32 %v758, 4294901760
    %760 = vmatpush1.msra.mxu0 %v759
    %761 = vmatprep.subr.mxu0 0.0
    %v762 = vand.u32 %v50, 4294901760
    %v763 = vsub.f32 %v50, %v762
    %v764 = vand.u32 %v763, 4294901760
    %765 = vmatpush1.msra.mxu0 %v764
    %766 = vmatprep.subr.mxu0 0.0
    %v767 = vand.u32 %v49, 4294901760
    %v768 = vsub.f32 %v49, %v767
    %v769 = vand.u32 %v768, 4294901760
    %770 = vmatpush1.msra.mxu0 %v769
    %771 = vmatprep.subr.mxu0 0.0
    %v772 = vand.u32 %v48, 4294901760
    %v773 = vsub.f32 %v48, %v772
    %v774 = vand.u32 %v773, 4294901760
    %775 = vmatpush1.msra.mxu0 %v774
    %776 = vmatprep.subr.mxu0 0.0
    %v777 = vand.u32 %v47, 4294901760
    %v778 = vsub.f32 %v47, %v777
    %v779 = vand.u32 %v778, 4294901760
    %780 = vmatpush1.msra.mxu0 %v779
    %781 = vmatprep.subr.mxu0 0.0
    %v782 = vand.u32 %v46, 4294901760
    %v783 = vsub.f32 %v46, %v782
    %v784 = vand.u32 %v783, 4294901760
    %785 = vmatpush1.msra.mxu0 %v784
    %786 = vmatprep.subr.mxu0 0.0
    %v787 = vand.u32 %v45, 4294901760
    %v788 = vsub.f32 %v45, %v787
    %v789 = vand.u32 %v788, 4294901760
    %790 = vmatpush1.msra.mxu0 %v789
    %791 = vmatprep.subr.mxu0 0.0
    %v792 = vand.u32 %v76, 4294901760
    %v793 = vsub.f32 %v76, %v792
    %v794 = vand.u32 %v793, 4294901760
    %795 = vmatpush2.msra.mxu0 %v794
    %796 = vmatprep.subr.mxu0 0.0
    %v797 = vand.u32 %v75, 4294901760
    %v798 = vsub.f32 %v75, %v797
    %v799 = vand.u32 %v798, 4294901760
    %800 = vmatpush2.msra.mxu0 %v799
    %801 = vmatprep.subr.mxu0 0.0
    %v802 = vand.u32 %v74, 4294901760
    %v803 = vsub.f32 %v74, %v802
    %v804 = vand.u32 %v803, 4294901760
    %805 = vmatpush2.msra.mxu0 %v804
    %806 = vmatprep.subr.mxu0 0.0
    %v807 = vand.u32 %v73, 4294901760
    %v808 = vsub.f32 %v73, %v807
    %v809 = vand.u32 %v808, 4294901760
    %810 = vmatpush2.msra.mxu0 %v809
    %811 = vmatprep.subr.mxu0 0.0
    %v812 = vand.u32 %v72, 4294901760
    %v813 = vsub.f32 %v72, %v812
    %v814 = vand.u32 %v813, 4294901760
    %815 = vmatpush2.msra.mxu0 %v814
    %816 = vmatprep.subr.mxu0 0.0
    %v817 = vand.u32 %v71, 4294901760
    %v818 = vsub.f32 %v71, %v817
    %v819 = vand.u32 %v818, 4294901760
    %820 = vmatpush2.msra.mxu0 %v819
    %821 = vmatprep.subr.mxu0 0.0
    %v822 = vand.u32 %v70, 4294901760
    %v823 = vsub.f32 %v70, %v822
    %v824 = vand.u32 %v823, 4294901760
    %825 = vmatpush2.msra.mxu0 %v824
    %826 = vmatprep.subr.mxu0 0.0
    %v827 = vand.u32 %v69, 4294901760
    %v828 = vsub.f32 %v69, %v827
    %v829 = vand.u32 %v828, 4294901760
    %830 = vmatpush2.msra.mxu0 %v829
    %831 = vmatprep.subr.mxu0 0.0
    %v832 = vand.u32 %v68, 4294901760
    %v833 = vsub.f32 %v68, %v832
    %v834 = vand.u32 %v833, 4294901760
    %835 = vmatpush2.msra.mxu0 %v834
    %836 = vmatprep.subr.mxu0 0.0
    %v837 = vand.u32 %v67, 4294901760
    %v838 = vsub.f32 %v67, %v837
    %v839 = vand.u32 %v838, 4294901760
    %840 = vmatpush2.msra.mxu0 %v839
    %841 = vmatprep.subr.mxu0 0.0
    %v842 = vand.u32 %v66, 4294901760
    %v843 = vsub.f32 %v66, %v842
    %v844 = vand.u32 %v843, 4294901760
    %845 = vmatpush2.msra.mxu0 %v844
    %846 = vmatprep.subr.mxu0 0.0
    %v847 = vand.u32 %v65, 4294901760
    %v848 = vsub.f32 %v65, %v847
    %v849 = vand.u32 %v848, 4294901760
    %850 = vmatpush2.msra.mxu0 %v849
    %851 = vmatprep.subr.mxu0 0.0
    %v852 = vand.u32 %v64, 4294901760
    %v853 = vsub.f32 %v64, %v852
    %v854 = vand.u32 %v853, 4294901760
    %855 = vmatpush2.msra.mxu0 %v854
    %856 = vmatprep.subr.mxu0 0.0
    %v857 = vand.u32 %v63, 4294901760
    %v858 = vsub.f32 %v63, %v857
    %v859 = vand.u32 %v858, 4294901760
    %860 = vmatpush2.msra.mxu0 %v859
    %861 = vmatprep.subr.mxu0 0.0
    %v862 = vand.u32 %v62, 4294901760
    %v863 = vsub.f32 %v62, %v862
    %v864 = vand.u32 %v863, 4294901760
    %865 = vmatpush2.msra.mxu0 %v864
    %866 = vmatprep.subr.mxu0 0.0
    %v867 = vand.u32 %v61, 4294901760
    %v868 = vsub.f32 %v61, %v867
    %v869 = vand.u32 %v868, 4294901760
    %870 = vmatpush2.msra.mxu0 %v869
    %v871 = vand.u32 %v119, 4294901760
    %872 = vmatprep.mubr.f32.mxu0 %v871
    %v873 = vand.u32 %v117, 4294901760
    %874 = vmatmul.mubr.f32.gmra.mxu0 %v873
    %v875 = vpop.f32.mrf.mxu0
    %v876 = vadd.f32 %v708, %v875
    %v877 = vpop.f32.mrf.mxu0
    %878 = vdwg.mxu0
    %879 = vmatprep.subr.mxu0 0.0
    %v880 = vand.u32 %v60, 4294901760
    %881 = vmatpush1.msra.mxu0 %v880
    %882 = vmatprep.subr.mxu0 0.0
    %v883 = vand.u32 %v59, 4294901760
    %884 = vmatpush1.msra.mxu0 %v883
    %885 = vmatprep.subr.mxu0 0.0
    %v886 = vand.u32 %v58, 4294901760
    %887 = vmatpush1.msra.mxu0 %v886
    %888 = vmatprep.subr.mxu0 0.0
    %v889 = vand.u32 %v57, 4294901760
    %890 = vmatpush1.msra.mxu0 %v889
    %891 = vmatprep.subr.mxu0 0.0
    %v892 = vand.u32 %v56, 4294901760
    %893 = vmatpush1.msra.mxu0 %v892
    %894 = vmatprep.subr.mxu0 0.0
    %v895 = vand.u32 %v55, 4294901760
    %896 = vmatpush1.msra.mxu0 %v895
    %897 = vmatprep.subr.mxu0 0.0
    %v898 = vand.u32 %v54, 4294901760
    %899 = vmatpush1.msra.mxu0 %v898
    %900 = vmatprep.subr.mxu0 0.0
    %v901 = vand.u32 %v53, 4294901760
    %902 = vmatpush1.msra.mxu0 %v901
    %903 = vmatprep.subr.mxu0 0.0
    %v904 = vand.u32 %v52, 4294901760
    %905 = vmatpush1.msra.mxu0 %v904
    %906 = vmatprep.subr.mxu0 0.0
    %v907 = vand.u32 %v51, 4294901760
    %908 = vmatpush1.msra.mxu0 %v907
    %909 = vmatprep.subr.mxu0 0.0
    %v910 = vand.u32 %v50, 4294901760
    %911 = vmatpush1.msra.mxu0 %v910
    %912 = vmatprep.subr.mxu0 0.0
    %v913 = vand.u32 %v49, 4294901760
    %914 = vmatpush1.msra.mxu0 %v913
    %915 = vmatprep.subr.mxu0 0.0
    %v916 = vand.u32 %v48, 4294901760
    %917 = vmatpush1.msra.mxu0 %v916
    %918 = vmatprep.subr.mxu0 0.0
    %v919 = vand.u32 %v47, 4294901760
    %920 = vmatpush1.msra.mxu0 %v919
    %921 = vmatprep.subr.mxu0 0.0
    %v922 = vand.u32 %v46, 4294901760
    %923 = vmatpush1.msra.mxu0 %v922
    %924 = vmatprep.subr.mxu0 0.0
    %v925 = vand.u32 %v45, 4294901760
    %926 = vmatpush1.msra.mxu0 %v925
    %927 = vmatprep.subr.mxu0 0.0
    %v928 = vand.u32 %v76, 4294901760
    %929 = vmatpush2.msra.mxu0 %v928
    %930 = vmatprep.subr.mxu0 0.0
    %v931 = vand.u32 %v75, 4294901760
    %932 = vmatpush2.msra.mxu0 %v931
    %933 = vmatprep.subr.mxu0 0.0
    %v934 = vand.u32 %v74, 4294901760
    %935 = vmatpush2.msra.mxu0 %v934
    %936 = vmatprep.subr.mxu0 0.0
    %v937 = vand.u32 %v73, 4294901760
    %938 = vmatpush2.msra.mxu0 %v937
    %939 = vmatprep.subr.mxu0 0.0
    %v940 = vand.u32 %v72, 4294901760
    %941 = vmatpush2.msra.mxu0 %v940
    %942 = vmatprep.subr.mxu0 0.0
    %v943 = vand.u32 %v71, 4294901760
    %944 = vmatpush2.msra.mxu0 %v943
    %945 = vmatprep.subr.mxu0 0.0
    %v946 = vand.u32 %v70, 4294901760
    %947 = vmatpush2.msra.mxu0 %v946
    %948 = vmatprep.subr.mxu0 0.0
    %v949 = vand.u32 %v69, 4294901760
    %950 = vmatpush2.msra.mxu0 %v949
    %951 = vmatprep.subr.mxu0 0.0
    %v952 = vand.u32 %v68, 4294901760
    %953 = vmatpush2.msra.mxu0 %v952
    %954 = vmatprep.subr.mxu0 0.0
    %v955 = vand.u32 %v67, 4294901760
    %956 = vmatpush2.msra.mxu0 %v955
    %957 = vmatprep.subr.mxu0 0.0
    %v958 = vand.u32 %v66, 4294901760
    %959 = vmatpush2.msra.mxu0 %v958
    %960 = vmatprep.subr.mxu0 0.0
    %v961 = vand.u32 %v65, 4294901760
    %962 = vmatpush2.msra.mxu0 %v961
    %963 = vmatprep.subr.mxu0 0.0
    %v964 = vand.u32 %v64, 4294901760
    %965 = vmatpush2.msra.mxu0 %v964
    %966 = vmatprep.subr.mxu0 0.0
    %v967 = vand.u32 %v63, 4294901760
    %968 = vmatpush2.msra.mxu0 %v967
    %969 = vmatprep.subr.mxu0 0.0
    %v970 = vand.u32 %v62, 4294901760
    %971 = vmatpush2.msra.mxu0 %v970
    %972 = vmatprep.subr.mxu0 0.0
    %v973 = vand.u32 %v61, 4294901760
    %974 = vmatpush2.msra.mxu0 %v973
    %v975 = vand.u32 %v119, 4294901760
    %976 = vmatprep.mubr.f32.mxu0 %v975
    %v977 = vand.u32 %v117, 4294901760
    %978 = vmatmul.mubr.f32.gmra.mxu0 %v977
    %v979 = vpop.f32.mrf.mxu0
    %v980 = vadd.f32 %v876, %v979
    %v981 = vpop.f32.mrf.mxu0
    %982 = vdwg.mxu0
    %983 = vmatprep.subr.mxu0 0.0
    %v984 = vand.u32 %v92, 4294901760
    %985 = vmatpush1.msra.mxu0 %v984
    %986 = vmatprep.subr.mxu0 0.0
    %v987 = vand.u32 %v91, 4294901760
    %988 = vmatpush1.msra.mxu0 %v987
    %989 = vmatprep.subr.mxu0 0.0
    %v990 = vand.u32 %v90, 4294901760
    %991 = vmatpush1.msra.mxu0 %v990
    %992 = vmatprep.subr.mxu0 0.0
    %v993 = vand.u32 %v89, 4294901760
    %994 = vmatpush1.msra.mxu0 %v993
    %995 = vmatprep.subr.mxu0 0.0
    %v996 = vand.u32 %v88, 4294901760
    %997 = vmatpush1.msra.mxu0 %v996
    %998 = vmatprep.subr.mxu0 0.0
    %v999 = vand.u32 %v87, 4294901760
    %1000 = vmatpush1.msra.mxu0 %v999
    %1001 = vmatprep.subr.mxu0 0.0
    %v1002 = vand.u32 %v86, 4294901760
    %1003 = vmatpush1.msra.mxu0 %v1002
    %1004 = vmatprep.subr.mxu0 0.0
    %v1005 = vand.u32 %v85, 4294901760
    %1006 = vmatpush1.msra.mxu0 %v1005
    %1007 = vmatprep.subr.mxu0 0.0
    %v1008 = vand.u32 %v84, 4294901760
    %1009 = vmatpush1.msra.mxu0 %v1008
    %1010 = vmatprep.subr.mxu0 0.0
    %v1011 = vand.u32 %v83, 4294901760
    %1012 = vmatpush1.msra.mxu0 %v1011
    %1013 = vmatprep.subr.mxu0 0.0
    %v1014 = vand.u32 %v82, 4294901760
    %1015 = vmatpush1.msra.mxu0 %v1014
    %1016 = vmatprep.subr.mxu0 0.0
    %v1017 = vand.u32 %v81, 4294901760
    %1018 = vmatpush1.msra.mxu0 %v1017
    %1019 = vmatprep.subr.mxu0 0.0
    %v1020 = vand.u32 %v80, 4294901760
    %1021 = vmatpush1.msra.mxu0 %v1020
    %1022 = vmatprep.subr.mxu0 0.0
    %v1023 = vand.u32 %v79, 4294901760
    %1024 = vmatpush1.msra.mxu0 %v1023
    %1025 = vmatprep.subr.mxu0 0.0
    %v1026 = vand.u32 %v78, 4294901760
    %1027 = vmatpush1.msra.mxu0 %v1026
    %1028 = vmatprep.subr.mxu0 0.0
    %v1029 = vand.u32 %v77, 4294901760
    %1030 = vmatpush1.msra.mxu0 %v1029
    %1031 = vmatprep.subr.mxu0 0.0
    %v1032 = vand.u32 %v108, 4294901760
    %1033 = vmatpush2.msra.mxu0 %v1032
    %1034 = vmatprep.subr.mxu0 0.0
    %v1035 = vand.u32 %v107, 4294901760
    %1036 = vmatpush2.msra.mxu0 %v1035
    %1037 = vmatprep.subr.mxu0 0.0
    %v1038 = vand.u32 %v106, 4294901760
    %1039 = vmatpush2.msra.mxu0 %v1038
    %1040 = vmatprep.subr.mxu0 0.0
    %v1041 = vand.u32 %v105, 4294901760
    %1042 = vmatpush2.msra.mxu0 %v1041
    %1043 = vmatprep.subr.mxu0 0.0
    %v1044 = vand.u32 %v104, 4294901760
    %1045 = vmatpush2.msra.mxu0 %v1044
    %1046 = vmatprep.subr.mxu0 0.0
    %v1047 = vand.u32 %v103, 4294901760
    %1048 = vmatpush2.msra.mxu0 %v1047
    %1049 = vmatprep.subr.mxu0 0.0
    %v1050 = vand.u32 %v102, 4294901760
    %1051 = vmatpush2.msra.mxu0 %v1050
    %1052 = vmatprep.subr.mxu0 0.0
    %v1053 = vand.u32 %v101, 4294901760
    %1054 = vmatpush2.msra.mxu0 %v1053
    %1055 = vmatprep.subr.mxu0 0.0
    %v1056 = vand.u32 %v100, 4294901760
    %1057 = vmatpush2.msra.mxu0 %v1056
    %1058 = vmatprep.subr.mxu0 0.0
    %v1059 = vand.u32 %v99, 4294901760
    %1060 = vmatpush2.msra.mxu0 %v1059
    %1061 = vmatprep.subr.mxu0 0.0
    %v1062 = vand.u32 %v98, 4294901760
    %1063 = vmatpush2.msra.mxu0 %v1062
    %1064 = vmatprep.subr.mxu0 0.0
    %v1065 = vand.u32 %v97, 4294901760
    %1066 = vmatpush2.msra.mxu0 %v1065
    %1067 = vmatprep.subr.mxu0 0.0
    %v1068 = vand.u32 %v96, 4294901760
    %1069 = vmatpush2.msra.mxu0 %v1068
    %1070 = vmatprep.subr.mxu0 0.0
    %v1071 = vand.u32 %v95, 4294901760
    %1072 = vmatpush2.msra.mxu0 %v1071
    %1073 = vmatprep.subr.mxu0 0.0
    %v1074 = vand.u32 %v94, 4294901760
    %1075 = vmatpush2.msra.mxu0 %v1074
    %1076 = vmatprep.subr.mxu0 0.0
    %v1077 = vand.u32 %v93, 4294901760
    %1078 = vmatpush2.msra.mxu0 %v1077
    %v1079 = vand.u32 %v119, 4294901760
    %v1080 = vsub.f32 %v119, %v1079
    %v1081 = vand.u32 %v1080, 4294901760
    %v1082 = vsub.f32 %v1080, %v1081
    %v1083 = vand.u32 %v1082, 4294901760
    %1084 = vmatprep.mubr.f32.mxu0 %v1083
    %v1085 = vand.u32 %v117, 4294901760
    %v1086 = vsub.f32 %v117, %v1085
    %v1087 = vand.u32 %v1086, 4294901760
    %v1088 = vsub.f32 %v1086, %v1087
    %v1089 = vand.u32 %v1088, 4294901760
    %1090 = vmatmul.mubr.f32.gmra.mxu0 %v1089
    %v1091 = vpop.f32.mrf.mxu0
    %v1092 = vadd.f32 0.0, %v1091
    %v1093 = vpop.f32.mrf.mxu0
    %1094 = vdwg.mxu0
    %1095 = vmatprep.subr.mxu0 0.0
    %v1096 = vand.u32 %v92, 4294901760
    %v1097 = vsub.f32 %v92, %v1096
    %v1098 = vand.u32 %v1097, 4294901760
    %v1099 = vsub.f32 %v1097, %v1098
    %v1100 = vand.u32 %v1099, 4294901760
    %1101 = vmatpush1.msra.mxu0 %v1100
    %1102 = vmatprep.subr.mxu0 0.0
    %v1103 = vand.u32 %v91, 4294901760
    %v1104 = vsub.f32 %v91, %v1103
    %v1105 = vand.u32 %v1104, 4294901760
    %v1106 = vsub.f32 %v1104, %v1105
    %v1107 = vand.u32 %v1106, 4294901760
    %1108 = vmatpush1.msra.mxu0 %v1107
    %1109 = vmatprep.subr.mxu0 0.0
    %v1110 = vand.u32 %v90, 4294901760
    %v1111 = vsub.f32 %v90, %v1110
    %v1112 = vand.u32 %v1111, 4294901760
    %v1113 = vsub.f32 %v1111, %v1112
    %v1114 = vand.u32 %v1113, 4294901760
    %1115 = vmatpush1.msra.mxu0 %v1114
    %1116 = vmatprep.subr.mxu0 0.0
    %v1117 = vand.u32 %v89, 4294901760
    %v1118 = vsub.f32 %v89, %v1117
    %v1119 = vand.u32 %v1118, 4294901760
    %v1120 = vsub.f32 %v1118, %v1119
    %v1121 = vand.u32 %v1120, 4294901760
    %1122 = vmatpush1.msra.mxu0 %v1121
    %1123 = vmatprep.subr.mxu0 0.0
    %v1124 = vand.u32 %v88, 4294901760
    %v1125 = vsub.f32 %v88, %v1124
    %v1126 = vand.u32 %v1125, 4294901760
    %v1127 = vsub.f32 %v1125, %v1126
    %v1128 = vand.u32 %v1127, 4294901760
    %1129 = vmatpush1.msra.mxu0 %v1128
    %1130 = vmatprep.subr.mxu0 0.0
    %v1131 = vand.u32 %v87, 4294901760
    %v1132 = vsub.f32 %v87, %v1131
    %v1133 = vand.u32 %v1132, 4294901760
    %v1134 = vsub.f32 %v1132, %v1133
    %v1135 = vand.u32 %v1134, 4294901760
    %1136 = vmatpush1.msra.mxu0 %v1135
    %1137 = vmatprep.subr.mxu0 0.0
    %v1138 = vand.u32 %v86, 4294901760
    %v1139 = vsub.f32 %v86, %v1138
    %v1140 = vand.u32 %v1139, 4294901760
    %v1141 = vsub.f32 %v1139, %v1140
    %v1142 = vand.u32 %v1141, 4294901760
    %1143 = vmatpush1.msra.mxu0 %v1142
    %1144 = vmatprep.subr.mxu0 0.0
    %v1145 = vand.u32 %v85, 4294901760
    %v1146 = vsub.f32 %v85, %v1145
    %v1147 = vand.u32 %v1146, 4294901760
    %v1148 = vsub.f32 %v1146, %v1147
    %v1149 = vand.u32 %v1148, 4294901760
    %1150 = vmatpush1.msra.mxu0 %v1149
    %1151 = vmatprep.subr.mxu0 0.0
    %v1152 = vand.u32 %v84, 4294901760
    %v1153 = vsub.f32 %v84, %v1152
    %v1154 = vand.u32 %v1153, 4294901760
    %v1155 = vsub.f32 %v1153, %v1154
    %v1156 = vand.u32 %v1155, 4294901760
    %1157 = vmatpush1.msra.mxu0 %v1156
    %1158 = vmatprep.subr.mxu0 0.0
    %v1159 = vand.u32 %v83, 4294901760
    %v1160 = vsub.f32 %v83, %v1159
    %v1161 = vand.u32 %v1160, 4294901760
    %v1162 = vsub.f32 %v1160, %v1161
    %v1163 = vand.u32 %v1162, 4294901760
    %1164 = vmatpush1.msra.mxu0 %v1163
    %1165 = vmatprep.subr.mxu0 0.0
    %v1166 = vand.u32 %v82, 4294901760
    %v1167 = vsub.f32 %v82, %v1166
    %v1168 = vand.u32 %v1167, 4294901760
    %v1169 = vsub.f32 %v1167, %v1168
    %v1170 = vand.u32 %v1169, 4294901760
    %1171 = vmatpush1.msra.mxu0 %v1170
    %1172 = vmatprep.subr.mxu0 0.0
    %v1173 = vand.u32 %v81, 4294901760
    %v1174 = vsub.f32 %v81, %v1173
    %v1175 = vand.u32 %v1174, 4294901760
    %v1176 = vsub.f32 %v1174, %v1175
    %v1177 = vand.u32 %v1176, 4294901760
    %1178 = vmatpush1.msra.mxu0 %v1177
    %1179 = vmatprep.subr.mxu0 0.0
    %v1180 = vand.u32 %v80, 4294901760
    %v1181 = vsub.f32 %v80, %v1180
    %v1182 = vand.u32 %v1181, 4294901760
    %v1183 = vsub.f32 %v1181, %v1182
    %v1184 = vand.u32 %v1183, 4294901760
    %1185 = vmatpush1.msra.mxu0 %v1184
    %1186 = vmatprep.subr.mxu0 0.0
    %v1187 = vand.u32 %v79, 4294901760
    %v1188 = vsub.f32 %v79, %v1187
    %v1189 = vand.u32 %v1188, 4294901760
    %v1190 = vsub.f32 %v1188, %v1189
    %v1191 = vand.u32 %v1190, 4294901760
    %1192 = vmatpush1.msra.mxu0 %v1191
    %1193 = vmatprep.subr.mxu0 0.0
    %v1194 = vand.u32 %v78, 4294901760
    %v1195 = vsub.f32 %v78, %v1194
    %v1196 = vand.u32 %v1195, 4294901760
    %v1197 = vsub.f32 %v1195, %v1196
    %v1198 = vand.u32 %v1197, 4294901760
    %1199 = vmatpush1.msra.mxu0 %v1198
    %1200 = vmatprep.subr.mxu0 0.0
    %v1201 = vand.u32 %v77, 4294901760
    %v1202 = vsub.f32 %v77, %v1201
    %v1203 = vand.u32 %v1202, 4294901760
    %v1204 = vsub.f32 %v1202, %v1203
    %v1205 = vand.u32 %v1204, 4294901760
    %1206 = vmatpush1.msra.mxu0 %v1205
    %1207 = vmatprep.subr.mxu0 0.0
    %v1208 = vand.u32 %v108, 4294901760
    %v1209 = vsub.f32 %v108, %v1208
    %v1210 = vand.u32 %v1209, 4294901760
    %v1211 = vsub.f32 %v1209, %v1210
    %v1212 = vand.u32 %v1211, 4294901760
    %1213 = vmatpush2.msra.mxu0 %v1212
    %1214 = vmatprep.subr.mxu0 0.0
    %v1215 = vand.u32 %v107, 4294901760
    %v1216 = vsub.f32 %v107, %v1215
    %v1217 = vand.u32 %v1216, 4294901760
    %v1218 = vsub.f32 %v1216, %v1217
    %v1219 = vand.u32 %v1218, 4294901760
    %1220 = vmatpush2.msra.mxu0 %v1219
    %1221 = vmatprep.subr.mxu0 0.0
    %v1222 = vand.u32 %v106, 4294901760
    %v1223 = vsub.f32 %v106, %v1222
    %v1224 = vand.u32 %v1223, 4294901760
    %v1225 = vsub.f32 %v1223, %v1224
    %v1226 = vand.u32 %v1225, 4294901760
    %1227 = vmatpush2.msra.mxu0 %v1226
    %1228 = vmatprep.subr.mxu0 0.0
    %v1229 = vand.u32 %v105, 4294901760
    %v1230 = vsub.f32 %v105, %v1229
    %v1231 = vand.u32 %v1230, 4294901760
    %v1232 = vsub.f32 %v1230, %v1231
    %v1233 = vand.u32 %v1232, 4294901760
    %1234 = vmatpush2.msra.mxu0 %v1233
    %1235 = vmatprep.subr.mxu0 0.0
    %v1236 = vand.u32 %v104, 4294901760
    %v1237 = vsub.f32 %v104, %v1236
    %v1238 = vand.u32 %v1237, 4294901760
    %v1239 = vsub.f32 %v1237, %v1238
    %v1240 = vand.u32 %v1239, 4294901760
    %1241 = vmatpush2.msra.mxu0 %v1240
    %1242 = vmatprep.subr.mxu0 0.0
    %v1243 = vand.u32 %v103, 4294901760
    %v1244 = vsub.f32 %v103, %v1243
    %v1245 = vand.u32 %v1244, 4294901760
    %v1246 = vsub.f32 %v1244, %v1245
    %v1247 = vand.u32 %v1246, 4294901760
    %1248 = vmatpush2.msra.mxu0 %v1247
    %1249 = vmatprep.subr.mxu0 0.0
    %v1250 = vand.u32 %v102, 4294901760
    %v1251 = vsub.f32 %v102, %v1250
    %v1252 = vand.u32 %v1251, 4294901760
    %v1253 = vsub.f32 %v1251, %v1252
    %v1254 = vand.u32 %v1253, 4294901760
    %1255 = vmatpush2.msra.mxu0 %v1254
    %1256 = vmatprep.subr.mxu0 0.0
    %v1257 = vand.u32 %v101, 4294901760
    %v1258 = vsub.f32 %v101, %v1257
    %v1259 = vand.u32 %v1258, 4294901760
    %v1260 = vsub.f32 %v1258, %v1259
    %v1261 = vand.u32 %v1260, 4294901760
    %1262 = vmatpush2.msra.mxu0 %v1261
    %1263 = vmatprep.subr.mxu0 0.0
    %v1264 = vand.u32 %v100, 4294901760
    %v1265 = vsub.f32 %v100, %v1264
    %v1266 = vand.u32 %v1265, 4294901760
    %v1267 = vsub.f32 %v1265, %v1266
    %v1268 = vand.u32 %v1267, 4294901760
    %1269 = vmatpush2.msra.mxu0 %v1268
    %1270 = vmatprep.subr.mxu0 0.0
    %v1271 = vand.u32 %v99, 4294901760
    %v1272 = vsub.f32 %v99, %v1271
    %v1273 = vand.u32 %v1272, 4294901760
    %v1274 = vsub.f32 %v1272, %v1273
    %v1275 = vand.u32 %v1274, 4294901760
    %1276 = vmatpush2.msra.mxu0 %v1275
    %1277 = vmatprep.subr.mxu0 0.0
    %v1278 = vand.u32 %v98, 4294901760
    %v1279 = vsub.f32 %v98, %v1278
    %v1280 = vand.u32 %v1279, 4294901760
    %v1281 = vsub.f32 %v1279, %v1280
    %v1282 = vand.u32 %v1281, 4294901760
    %1283 = vmatpush2.msra.mxu0 %v1282
    %1284 = vmatprep.subr.mxu0 0.0
    %v1285 = vand.u32 %v97, 4294901760
    %v1286 = vsub.f32 %v97, %v1285
    %v1287 = vand.u32 %v1286, 4294901760
    %v1288 = vsub.f32 %v1286, %v1287
    %v1289 = vand.u32 %v1288, 4294901760
    %1290 = vmatpush2.msra.mxu0 %v1289
    %1291 = vmatprep.subr.mxu0 0.0
    %v1292 = vand.u32 %v96, 4294901760
    %v1293 = vsub.f32 %v96, %v1292
    %v1294 = vand.u32 %v1293, 4294901760
    %v1295 = vsub.f32 %v1293, %v1294
    %v1296 = vand.u32 %v1295, 4294901760
    %1297 = vmatpush2.msra.mxu0 %v1296
    %1298 = vmatprep.subr.mxu0 0.0
    %v1299 = vand.u32 %v95, 4294901760
    %v1300 = vsub.f32 %v95, %v1299
    %v1301 = vand.u32 %v1300, 4294901760
    %v1302 = vsub.f32 %v1300, %v1301
    %v1303 = vand.u32 %v1302, 4294901760
    %1304 = vmatpush2.msra.mxu0 %v1303
    %1305 = vmatprep.subr.mxu0 0.0
    %v1306 = vand.u32 %v94, 4294901760
    %v1307 = vsub.f32 %v94, %v1306
    %v1308 = vand.u32 %v1307, 4294901760
    %v1309 = vsub.f32 %v1307, %v1308
    %v1310 = vand.u32 %v1309, 4294901760
    %1311 = vmatpush2.msra.mxu0 %v1310
    %1312 = vmatprep.subr.mxu0 0.0
    %v1313 = vand.u32 %v93, 4294901760
    %v1314 = vsub.f32 %v93, %v1313
    %v1315 = vand.u32 %v1314, 4294901760
    %v1316 = vsub.f32 %v1314, %v1315
    %v1317 = vand.u32 %v1316, 4294901760
    %1318 = vmatpush2.msra.mxu0 %v1317
    %v1319 = vand.u32 %v119, 4294901760
    %1320 = vmatprep.mubr.f32.mxu0 %v1319
    %v1321 = vand.u32 %v117, 4294901760
    %1322 = vmatmul.mubr.f32.gmra.mxu0 %v1321
    %v1323 = vpop.f32.mrf.mxu0
    %v1324 = vadd.f32 %v1092, %v1323
    %v1325 = vpop.f32.mrf.mxu0
    %1326 = vdwg.mxu0
    %1327 = vmatprep.subr.mxu0 0.0
    %v1328 = vand.u32 %v92, 4294901760
    %v1329 = vsub.f32 %v92, %v1328
    %1330 = vmatpush1.msra.mxu0 %v1329
    %1331 = vmatprep.subr.mxu0 0.0
    %v1332 = vand.u32 %v91, 4294901760
    %v1333 = vsub.f32 %v91, %v1332
    %1334 = vmatpush1.msra.mxu0 %v1333
    %1335 = vmatprep.subr.mxu0 0.0
    %v1336 = vand.u32 %v90, 4294901760
    %v1337 = vsub.f32 %v90, %v1336
    %1338 = vmatpush1.msra.mxu0 %v1337
    %1339 = vmatprep.subr.mxu0 0.0
    %v1340 = vand.u32 %v89, 4294901760
    %v1341 = vsub.f32 %v89, %v1340
    %1342 = vmatpush1.msra.mxu0 %v1341
    %1343 = vmatprep.subr.mxu0 0.0
    %v1344 = vand.u32 %v88, 4294901760
    %v1345 = vsub.f32 %v88, %v1344
    %1346 = vmatpush1.msra.mxu0 %v1345
    %1347 = vmatprep.subr.mxu0 0.0
    %v1348 = vand.u32 %v87, 4294901760
    %v1349 = vsub.f32 %v87, %v1348
    %1350 = vmatpush1.msra.mxu0 %v1349
    %1351 = vmatprep.subr.mxu0 0.0
    %v1352 = vand.u32 %v86, 4294901760
    %v1353 = vsub.f32 %v86, %v1352
    %1354 = vmatpush1.msra.mxu0 %v1353
    %1355 = vmatprep.subr.mxu0 0.0
    %v1356 = vand.u32 %v85, 4294901760
    %v1357 = vsub.f32 %v85, %v1356
    %1358 = vmatpush1.msra.mxu0 %v1357
    %1359 = vmatprep.subr.mxu0 0.0
    %v1360 = vand.u32 %v84, 4294901760
    %v1361 = vsub.f32 %v84, %v1360
    %1362 = vmatpush1.msra.mxu0 %v1361
    %1363 = vmatprep.subr.mxu0 0.0
    %v1364 = vand.u32 %v83, 4294901760
    %v1365 = vsub.f32 %v83, %v1364
    %1366 = vmatpush1.msra.mxu0 %v1365
    %1367 = vmatprep.subr.mxu0 0.0
    %v1368 = vand.u32 %v82, 4294901760
    %v1369 = vsub.f32 %v82, %v1368
    %1370 = vmatpush1.msra.mxu0 %v1369
    %1371 = vmatprep.subr.mxu0 0.0
    %v1372 = vand.u32 %v81, 4294901760
    %v1373 = vsub.f32 %v81, %v1372
    %1374 = vmatpush1.msra.mxu0 %v1373
    %1375 = vmatprep.subr.mxu0 0.0
    %v1376 = vand.u32 %v80, 4294901760
    %v1377 = vsub.f32 %v80, %v1376
    %1378 = vmatpush1.msra.mxu0 %v1377
    %1379 = vmatprep.subr.mxu0 0.0
    %v1380 = vand.u32 %v79, 4294901760
    %v1381 = vsub.f32 %v79, %v1380
    %1382 = vmatpush1.msra.mxu0 %v1381
    %1383 = vmatprep.subr.mxu0 0.0
    %v1384 = vand.u32 %v78, 4294901760
    %v1385 = vsub.f32 %v78, %v1384
    %1386 = vmatpush1.msra.mxu0 %v1385
    %1387 = vmatprep.subr.mxu0 0.0
    %v1388 = vand.u32 %v77, 4294901760
    %v1389 = vsub.f32 %v77, %v1388
    %1390 = vmatpush1.msra.mxu0 %v1389
    %1391 = vmatprep.subr.mxu0 0.0
    %v1392 = vand.u32 %v108, 4294901760
    %v1393 = vsub.f32 %v108, %v1392
    %1394 = vmatpush2.msra.mxu0 %v1393
    %1395 = vmatprep.subr.mxu0 0.0
    %v1396 = vand.u32 %v107, 4294901760
    %v1397 = vsub.f32 %v107, %v1396
    %1398 = vmatpush2.msra.mxu0 %v1397
    %1399 = vmatprep.subr.mxu0 0.0
    %v1400 = vand.u32 %v106, 4294901760
    %v1401 = vsub.f32 %v106, %v1400
    %1402 = vmatpush2.msra.mxu0 %v1401
    %1403 = vmatprep.subr.mxu0 0.0
    %v1404 = vand.u32 %v105, 4294901760
    %v1405 = vsub.f32 %v105, %v1404
    %1406 = vmatpush2.msra.mxu0 %v1405
    %1407 = vmatprep.subr.mxu0 0.0
    %v1408 = vand.u32 %v104, 4294901760
    %v1409 = vsub.f32 %v104, %v1408
    %1410 = vmatpush2.msra.mxu0 %v1409
    %1411 = vmatprep.subr.mxu0 0.0
    %v1412 = vand.u32 %v103, 4294901760
    %v1413 = vsub.f32 %v103, %v1412
    %1414 = vmatpush2.msra.mxu0 %v1413
    %1415 = vmatprep.subr.mxu0 0.0
    %v1416 = vand.u32 %v102, 4294901760
    %v1417 = vsub.f32 %v102, %v1416
    %1418 = vmatpush2.msra.mxu0 %v1417
    %1419 = vmatprep.subr.mxu0 0.0
    %v1420 = vand.u32 %v101, 4294901760
    %v1421 = vsub.f32 %v101, %v1420
    %1422 = vmatpush2.msra.mxu0 %v1421
    %1423 = vmatprep.subr.mxu0 0.0
    %v1424 = vand.u32 %v100, 4294901760
    %v1425 = vsub.f32 %v100, %v1424
    %1426 = vmatpush2.msra.mxu0 %v1425
    %1427 = vmatprep.subr.mxu0 0.0
    %v1428 = vand.u32 %v99, 4294901760
    %v1429 = vsub.f32 %v99, %v1428
    %1430 = vmatpush2.msra.mxu0 %v1429
    %1431 = vmatprep.subr.mxu0 0.0
    %v1432 = vand.u32 %v98, 4294901760
    %v1433 = vsub.f32 %v98, %v1432
    %1434 = vmatpush2.msra.mxu0 %v1433
    %1435 = vmatprep.subr.mxu0 0.0
    %v1436 = vand.u32 %v97, 4294901760
    %v1437 = vsub.f32 %v97, %v1436
    %1438 = vmatpush2.msra.mxu0 %v1437
    %1439 = vmatprep.subr.mxu0 0.0
    %v1440 = vand.u32 %v96, 4294901760
    %v1441 = vsub.f32 %v96, %v1440
    %1442 = vmatpush2.msra.mxu0 %v1441
    %1443 = vmatprep.subr.mxu0 0.0
    %v1444 = vand.u32 %v95, 4294901760
    %v1445 = vsub.f32 %v95, %v1444
    %1446 = vmatpush2.msra.mxu0 %v1445
    %1447 = vmatprep.subr.mxu0 0.0
    %v1448 = vand.u32 %v94, 4294901760
    %v1449 = vsub.f32 %v94, %v1448
    %1450 = vmatpush2.msra.mxu0 %v1449
    %1451 = vmatprep.subr.mxu0 0.0
    %v1452 = vand.u32 %v93, 4294901760
    %v1453 = vsub.f32 %v93, %v1452
    %1454 = vmatpush2.msra.mxu0 %v1453
    %v1455 = vand.u32 %v119, 4294901760
    %v1456 = vsub.f32 %v119, %v1455
    %1457 = vmatprep.mubr.f32.mxu0 %v1456
    %v1458 = vand.u32 %v117, 4294901760
    %v1459 = vsub.f32 %v117, %v1458
    %1460 = vmatmul.mubr.f32.gmra.mxu0 %v1459
    %v1461 = vpop.f32.mrf.mxu0
    %v1462 = vadd.f32 %v1324, %v1461
    %v1463 = vpop.f32.mrf.mxu0
    %1464 = vdwg.mxu0
    %1465 = vmatprep.subr.mxu0 0.0
    %v1466 = vand.u32 %v92, 4294901760
    %1467 = vmatpush1.msra.mxu0 %v1466
    %1468 = vmatprep.subr.mxu0 0.0
    %v1469 = vand.u32 %v91, 4294901760
    %1470 = vmatpush1.msra.mxu0 %v1469
    %1471 = vmatprep.subr.mxu0 0.0
    %v1472 = vand.u32 %v90, 4294901760
    %1473 = vmatpush1.msra.mxu0 %v1472
    %1474 = vmatprep.subr.mxu0 0.0
    %v1475 = vand.u32 %v89, 4294901760
    %1476 = vmatpush1.msra.mxu0 %v1475
    %1477 = vmatprep.subr.mxu0 0.0
    %v1478 = vand.u32 %v88, 4294901760
    %1479 = vmatpush1.msra.mxu0 %v1478
    %1480 = vmatprep.subr.mxu0 0.0
    %v1481 = vand.u32 %v87, 4294901760
    %1482 = vmatpush1.msra.mxu0 %v1481
    %1483 = vmatprep.subr.mxu0 0.0
    %v1484 = vand.u32 %v86, 4294901760
    %1485 = vmatpush1.msra.mxu0 %v1484
    %1486 = vmatprep.subr.mxu0 0.0
    %v1487 = vand.u32 %v85, 4294901760
    %1488 = vmatpush1.msra.mxu0 %v1487
    %1489 = vmatprep.subr.mxu0 0.0
    %v1490 = vand.u32 %v84, 4294901760
    %1491 = vmatpush1.msra.mxu0 %v1490
    %1492 = vmatprep.subr.mxu0 0.0
    %v1493 = vand.u32 %v83, 4294901760
    %1494 = vmatpush1.msra.mxu0 %v1493
    %1495 = vmatprep.subr.mxu0 0.0
    %v1496 = vand.u32 %v82, 4294901760
    %1497 = vmatpush1.msra.mxu0 %v1496
    %1498 = vmatprep.subr.mxu0 0.0
    %v1499 = vand.u32 %v81, 4294901760
    %1500 = vmatpush1.msra.mxu0 %v1499
    %1501 = vmatprep.subr.mxu0 0.0
    %v1502 = vand.u32 %v80, 4294901760
    %1503 = vmatpush1.msra.mxu0 %v1502
    %1504 = vmatprep.subr.mxu0 0.0
    %v1505 = vand.u32 %v79, 4294901760
    %1506 = vmatpush1.msra.mxu0 %v1505
    %1507 = vmatprep.subr.mxu0 0.0
    %v1508 = vand.u32 %v78, 4294901760
    %1509 = vmatpush1.msra.mxu0 %v1508
    %1510 = vmatprep.subr.mxu0 0.0
    %v1511 = vand.u32 %v77, 4294901760
    %1512 = vmatpush1.msra.mxu0 %v1511
    %1513 = vmatprep.subr.mxu0 0.0
    %v1514 = vand.u32 %v108, 4294901760
    %1515 = vmatpush2.msra.mxu0 %v1514
    %1516 = vmatprep.subr.mxu0 0.0
    %v1517 = vand.u32 %v107, 4294901760
    %1518 = vmatpush2.msra.mxu0 %v1517
    %1519 = vmatprep.subr.mxu0 0.0
    %v1520 = vand.u32 %v106, 4294901760
    %1521 = vmatpush2.msra.mxu0 %v1520
    %1522 = vmatprep.subr.mxu0 0.0
    %v1523 = vand.u32 %v105, 4294901760
    %1524 = vmatpush2.msra.mxu0 %v1523
    %1525 = vmatprep.subr.mxu0 0.0
    %v1526 = vand.u32 %v104, 4294901760
    %1527 = vmatpush2.msra.mxu0 %v1526
    %1528 = vmatprep.subr.mxu0 0.0
    %v1529 = vand.u32 %v103, 4294901760
    %1530 = vmatpush2.msra.mxu0 %v1529
    %1531 = vmatprep.subr.mxu0 0.0
    %v1532 = vand.u32 %v102, 4294901760
    %1533 = vmatpush2.msra.mxu0 %v1532
    %1534 = vmatprep.subr.mxu0 0.0
    %v1535 = vand.u32 %v101, 4294901760
    %1536 = vmatpush2.msra.mxu0 %v1535
    %1537 = vmatprep.subr.mxu0 0.0
    %v1538 = vand.u32 %v100, 4294901760
    %1539 = vmatpush2.msra.mxu0 %v1538
    %1540 = vmatprep.subr.mxu0 0.0
    %v1541 = vand.u32 %v99, 4294901760
    %1542 = vmatpush2.msra.mxu0 %v1541
    %1543 = vmatprep.subr.mxu0 0.0
    %v1544 = vand.u32 %v98, 4294901760
    %1545 = vmatpush2.msra.mxu0 %v1544
    %1546 = vmatprep.subr.mxu0 0.0
    %v1547 = vand.u32 %v97, 4294901760
    %1548 = vmatpush2.msra.mxu0 %v1547
    %1549 = vmatprep.subr.mxu0 0.0
    %v1550 = vand.u32 %v96, 4294901760
    %1551 = vmatpush2.msra.mxu0 %v1550
    %1552 = vmatprep.subr.mxu0 0.0
    %v1553 = vand.u32 %v95, 4294901760
    %1554 = vmatpush2.msra.mxu0 %v1553
    %1555 = vmatprep.subr.mxu0 0.0
    %v1556 = vand.u32 %v94, 4294901760
    %1557 = vmatpush2.msra.mxu0 %v1556
    %1558 = vmatprep.subr.mxu0 0.0
    %v1559 = vand.u32 %v93, 4294901760
    %1560 = vmatpush2.msra.mxu0 %v1559
    %v1561 = vand.u32 %v119, 4294901760
    %v1562 = vsub.f32 %v119, %v1561
    %v1563 = vand.u32 %v1562, 4294901760
    %1564 = vmatprep.mubr.f32.mxu0 %v1563
    %v1565 = vand.u32 %v117, 4294901760
    %v1566 = vsub.f32 %v117, %v1565
    %v1567 = vand.u32 %v1566, 4294901760
    %1568 = vmatmul.mubr.f32.gmra.mxu0 %v1567
    %v1569 = vpop.f32.mrf.mxu0
    %v1570 = vadd.f32 %v1462, %v1569
    %v1571 = vpop.f32.mrf.mxu0
    %1572 = vdwg.mxu0
    %1573 = vmatprep.subr.mxu0 0.0
    %v1574 = vand.u32 %v92, 4294901760
    %v1575 = vsub.f32 %v92, %v1574
    %v1576 = vand.u32 %v1575, 4294901760
    %1577 = vmatpush1.msra.mxu0 %v1576
    %1578 = vmatprep.subr.mxu0 0.0
    %v1579 = vand.u32 %v91, 4294901760
    %v1580 = vsub.f32 %v91, %v1579
    %v1581 = vand.u32 %v1580, 4294901760
    %1582 = vmatpush1.msra.mxu0 %v1581
    %1583 = vmatprep.subr.mxu0 0.0
    %v1584 = vand.u32 %v90, 4294901760
    %v1585 = vsub.f32 %v90, %v1584
    %v1586 = vand.u32 %v1585, 4294901760
    %1587 = vmatpush1.msra.mxu0 %v1586
    %1588 = vmatprep.subr.mxu0 0.0
    %v1589 = vand.u32 %v89, 4294901760
    %v1590 = vsub.f32 %v89, %v1589
    %v1591 = vand.u32 %v1590, 4294901760
    %1592 = vmatpush1.msra.mxu0 %v1591
    %1593 = vmatprep.subr.mxu0 0.0
    %v1594 = vand.u32 %v88, 4294901760
    %v1595 = vsub.f32 %v88, %v1594
    %v1596 = vand.u32 %v1595, 4294901760
    %1597 = vmatpush1.msra.mxu0 %v1596
    %1598 = vmatprep.subr.mxu0 0.0
    %v1599 = vand.u32 %v87, 4294901760
    %v1600 = vsub.f32 %v87, %v1599
    %v1601 = vand.u32 %v1600, 4294901760
    %1602 = vmatpush1.msra.mxu0 %v1601
    %1603 = vmatprep.subr.mxu0 0.0
    %v1604 = vand.u32 %v86, 4294901760
    %v1605 = vsub.f32 %v86, %v1604
    %v1606 = vand.u32 %v1605, 4294901760
    %1607 = vmatpush1.msra.mxu0 %v1606
    %1608 = vmatprep.subr.mxu0 0.0
    %v1609 = vand.u32 %v85, 4294901760
    %v1610 = vsub.f32 %v85, %v1609
    %v1611 = vand.u32 %v1610, 4294901760
    %1612 = vmatpush1.msra.mxu0 %v1611
    %1613 = vmatprep.subr.mxu0 0.0
    %v1614 = vand.u32 %v84, 4294901760
    %v1615 = vsub.f32 %v84, %v1614
    %v1616 = vand.u32 %v1615, 4294901760
    %1617 = vmatpush1.msra.mxu0 %v1616
    %1618 = vmatprep.subr.mxu0 0.0
    %v1619 = vand.u32 %v83, 4294901760
    %v1620 = vsub.f32 %v83, %v1619
    %v1621 = vand.u32 %v1620, 4294901760
    %1622 = vmatpush1.msra.mxu0 %v1621
    %1623 = vmatprep.subr.mxu0 0.0
    %v1624 = vand.u32 %v82, 4294901760
    %v1625 = vsub.f32 %v82, %v1624
    %v1626 = vand.u32 %v1625, 4294901760
    %1627 = vmatpush1.msra.mxu0 %v1626
    %1628 = vmatprep.subr.mxu0 0.0
    %v1629 = vand.u32 %v81, 4294901760
    %v1630 = vsub.f32 %v81, %v1629
    %v1631 = vand.u32 %v1630, 4294901760
    %1632 = vmatpush1.msra.mxu0 %v1631
    %1633 = vmatprep.subr.mxu0 0.0
    %v1634 = vand.u32 %v80, 4294901760
    %v1635 = vsub.f32 %v80, %v1634
    %v1636 = vand.u32 %v1635, 4294901760
    %1637 = vmatpush1.msra.mxu0 %v1636
    %1638 = vmatprep.subr.mxu0 0.0
    %v1639 = vand.u32 %v79, 4294901760
    %v1640 = vsub.f32 %v79, %v1639
    %v1641 = vand.u32 %v1640, 4294901760
    %1642 = vmatpush1.msra.mxu0 %v1641
    %1643 = vmatprep.subr.mxu0 0.0
    %v1644 = vand.u32 %v78, 4294901760
    %v1645 = vsub.f32 %v78, %v1644
    %v1646 = vand.u32 %v1645, 4294901760
    %1647 = vmatpush1.msra.mxu0 %v1646
    %1648 = vmatprep.subr.mxu0 0.0
    %v1649 = vand.u32 %v77, 4294901760
    %v1650 = vsub.f32 %v77, %v1649
    %v1651 = vand.u32 %v1650, 4294901760
    %1652 = vmatpush1.msra.mxu0 %v1651
    %1653 = vmatprep.subr.mxu0 0.0
    %v1654 = vand.u32 %v108, 4294901760
    %v1655 = vsub.f32 %v108, %v1654
    %v1656 = vand.u32 %v1655, 4294901760
    %1657 = vmatpush2.msra.mxu0 %v1656
    %1658 = vmatprep.subr.mxu0 0.0
    %v1659 = vand.u32 %v107, 4294901760
    %v1660 = vsub.f32 %v107, %v1659
    %v1661 = vand.u32 %v1660, 4294901760
    %1662 = vmatpush2.msra.mxu0 %v1661
    %1663 = vmatprep.subr.mxu0 0.0
    %v1664 = vand.u32 %v106, 4294901760
    %v1665 = vsub.f32 %v106, %v1664
    %v1666 = vand.u32 %v1665, 4294901760
    %1667 = vmatpush2.msra.mxu0 %v1666
    %1668 = vmatprep.subr.mxu0 0.0
    %v1669 = vand.u32 %v105, 4294901760
    %v1670 = vsub.f32 %v105, %v1669
    %v1671 = vand.u32 %v1670, 4294901760
    %1672 = vmatpush2.msra.mxu0 %v1671
    %1673 = vmatprep.subr.mxu0 0.0
    %v1674 = vand.u32 %v104, 4294901760
    %v1675 = vsub.f32 %v104, %v1674
    %v1676 = vand.u32 %v1675, 4294901760
    %1677 = vmatpush2.msra.mxu0 %v1676
    %1678 = vmatprep.subr.mxu0 0.0
    %v1679 = vand.u32 %v103, 4294901760
    %v1680 = vsub.f32 %v103, %v1679
    %v1681 = vand.u32 %v1680, 4294901760
    %1682 = vmatpush2.msra.mxu0 %v1681
    %1683 = vmatprep.subr.mxu0 0.0
    %v1684 = vand.u32 %v102, 4294901760
    %v1685 = vsub.f32 %v102, %v1684
    %v1686 = vand.u32 %v1685, 4294901760
    %1687 = vmatpush2.msra.mxu0 %v1686
    %1688 = vmatprep.subr.mxu0 0.0
    %v1689 = vand.u32 %v101, 4294901760
    %v1690 = vsub.f32 %v101, %v1689
    %v1691 = vand.u32 %v1690, 4294901760
    %1692 = vmatpush2.msra.mxu0 %v1691
    %1693 = vmatprep.subr.mxu0 0.0
    %v1694 = vand.u32 %v100, 4294901760
    %v1695 = vsub.f32 %v100, %v1694
    %v1696 = vand.u32 %v1695, 4294901760
    %1697 = vmatpush2.msra.mxu0 %v1696
    %1698 = vmatprep.subr.mxu0 0.0
    %v1699 = vand.u32 %v99, 4294901760
    %v1700 = vsub.f32 %v99, %v1699
    %v1701 = vand.u32 %v1700, 4294901760
    %1702 = vmatpush2.msra.mxu0 %v1701
    %1703 = vmatprep.subr.mxu0 0.0
    %v1704 = vand.u32 %v98, 4294901760
    %v1705 = vsub.f32 %v98, %v1704
    %v1706 = vand.u32 %v1705, 4294901760
    %1707 = vmatpush2.msra.mxu0 %v1706
    %1708 = vmatprep.subr.mxu0 0.0
    %v1709 = vand.u32 %v97, 4294901760
    %v1710 = vsub.f32 %v97, %v1709
    %v1711 = vand.u32 %v1710, 4294901760
    %1712 = vmatpush2.msra.mxu0 %v1711
    %1713 = vmatprep.subr.mxu0 0.0
    %v1714 = vand.u32 %v96, 4294901760
    %v1715 = vsub.f32 %v96, %v1714
    %v1716 = vand.u32 %v1715, 4294901760
    %1717 = vmatpush2.msra.mxu0 %v1716
    %1718 = vmatprep.subr.mxu0 0.0
    %v1719 = vand.u32 %v95, 4294901760
    %v1720 = vsub.f32 %v95, %v1719
    %v1721 = vand.u32 %v1720, 4294901760
    %1722 = vmatpush2.msra.mxu0 %v1721
    %1723 = vmatprep.subr.mxu0 0.0
    %v1724 = vand.u32 %v94, 4294901760
    %v1725 = vsub.f32 %v94, %v1724
    %v1726 = vand.u32 %v1725, 4294901760
    %1727 = vmatpush2.msra.mxu0 %v1726
    %1728 = vmatprep.subr.mxu0 0.0
    %v1729 = vand.u32 %v93, 4294901760
    %v1730 = vsub.f32 %v93, %v1729
    %v1731 = vand.u32 %v1730, 4294901760
    %1732 = vmatpush2.msra.mxu0 %v1731
    %v1733 = vand.u32 %v119, 4294901760
    %1734 = vmatprep.mubr.f32.mxu0 %v1733
    %v1735 = vand.u32 %v117, 4294901760
    %1736 = vmatmul.mubr.f32.gmra.mxu0 %v1735
    %v1737 = vpop.f32.mrf.mxu0
    %v1738 = vadd.f32 %v1570, %v1737
    %v1739 = vpop.f32.mrf.mxu0
    %1740 = vdwg.mxu0
    %1741 = vmatprep.subr.mxu0 0.0
    %v1742 = vand.u32 %v92, 4294901760
    %1743 = vmatpush1.msra.mxu0 %v1742
    %1744 = vmatprep.subr.mxu0 0.0
    %v1745 = vand.u32 %v91, 4294901760
    %1746 = vmatpush1.msra.mxu0 %v1745
    %1747 = vmatprep.subr.mxu0 0.0
    %v1748 = vand.u32 %v90, 4294901760
    %1749 = vmatpush1.msra.mxu0 %v1748
    %1750 = vmatprep.subr.mxu0 0.0
    %v1751 = vand.u32 %v89, 4294901760
    %1752 = vmatpush1.msra.mxu0 %v1751
    %1753 = vmatprep.subr.mxu0 0.0
    %v1754 = vand.u32 %v88, 4294901760
    %1755 = vmatpush1.msra.mxu0 %v1754
    %1756 = vmatprep.subr.mxu0 0.0
    %v1757 = vand.u32 %v87, 4294901760
    %1758 = vmatpush1.msra.mxu0 %v1757
    %1759 = vmatprep.subr.mxu0 0.0
    %v1760 = vand.u32 %v86, 4294901760
    %1761 = vmatpush1.msra.mxu0 %v1760
    %1762 = vmatprep.subr.mxu0 0.0
    %v1763 = vand.u32 %v85, 4294901760
    %1764 = vmatpush1.msra.mxu0 %v1763
    %1765 = vmatprep.subr.mxu0 0.0
    %v1766 = vand.u32 %v84, 4294901760
    %1767 = vmatpush1.msra.mxu0 %v1766
    %1768 = vmatprep.subr.mxu0 0.0
    %v1769 = vand.u32 %v83, 4294901760
    %1770 = vmatpush1.msra.mxu0 %v1769
    %1771 = vmatprep.subr.mxu0 0.0
    %v1772 = vand.u32 %v82, 4294901760
    %1773 = vmatpush1.msra.mxu0 %v1772
    %1774 = vmatprep.subr.mxu0 0.0
    %v1775 = vand.u32 %v81, 4294901760
    %1776 = vmatpush1.msra.mxu0 %v1775
    %1777 = vmatprep.subr.mxu0 0.0
    %v1778 = vand.u32 %v80, 4294901760
    %1779 = vmatpush1.msra.mxu0 %v1778
    %1780 = vmatprep.subr.mxu0 0.0
    %v1781 = vand.u32 %v79, 4294901760
    %1782 = vmatpush1.msra.mxu0 %v1781
    %1783 = vmatprep.subr.mxu0 0.0
    %v1784 = vand.u32 %v78, 4294901760
    %1785 = vmatpush1.msra.mxu0 %v1784
    %1786 = vmatprep.subr.mxu0 0.0
    %v1787 = vand.u32 %v77, 4294901760
    %1788 = vmatpush1.msra.mxu0 %v1787
    %1789 = vmatprep.subr.mxu0 0.0
    %v1790 = vand.u32 %v108, 4294901760
    %1791 = vmatpush2.msra.mxu0 %v1790
    %1792 = vmatprep.subr.mxu0 0.0
    %v1793 = vand.u32 %v107, 4294901760
    %1794 = vmatpush2.msra.mxu0 %v1793
    %1795 = vmatprep.subr.mxu0 0.0
    %v1796 = vand.u32 %v106, 4294901760
    %1797 = vmatpush2.msra.mxu0 %v1796
    %1798 = vmatprep.subr.mxu0 0.0
    %v1799 = vand.u32 %v105, 4294901760
    %1800 = vmatpush2.msra.mxu0 %v1799
    %1801 = vmatprep.subr.mxu0 0.0
    %v1802 = vand.u32 %v104, 4294901760
    %1803 = vmatpush2.msra.mxu0 %v1802
    %1804 = vmatprep.subr.mxu0 0.0
    %v1805 = vand.u32 %v103, 4294901760
    %1806 = vmatpush2.msra.mxu0 %v1805
    %1807 = vmatprep.subr.mxu0 0.0
    %v1808 = vand.u32 %v102, 4294901760
    %1809 = vmatpush2.msra.mxu0 %v1808
    %1810 = vmatprep.subr.mxu0 0.0
    %v1811 = vand.u32 %v101, 4294901760
    %1812 = vmatpush2.msra.mxu0 %v1811
    %1813 = vmatprep.subr.mxu0 0.0
    %v1814 = vand.u32 %v100, 4294901760
    %1815 = vmatpush2.msra.mxu0 %v1814
    %1816 = vmatprep.subr.mxu0 0.0
    %v1817 = vand.u32 %v99, 4294901760
    %1818 = vmatpush2.msra.mxu0 %v1817
    %1819 = vmatprep.subr.mxu0 0.0
    %v1820 = vand.u32 %v98, 4294901760
    %1821 = vmatpush2.msra.mxu0 %v1820
    %1822 = vmatprep.subr.mxu0 0.0
    %v1823 = vand.u32 %v97, 4294901760
    %1824 = vmatpush2.msra.mxu0 %v1823
    %1825 = vmatprep.subr.mxu0 0.0
    %v1826 = vand.u32 %v96, 4294901760
    %1827 = vmatpush2.msra.mxu0 %v1826
    %1828 = vmatprep.subr.mxu0 0.0
    %v1829 = vand.u32 %v95, 4294901760
    %1830 = vmatpush2.msra.mxu0 %v1829
    %1831 = vmatprep.subr.mxu0 0.0
    %v1832 = vand.u32 %v94, 4294901760
    %1833 = vmatpush2.msra.mxu0 %v1832
    %1834 = vmatprep.subr.mxu0 0.0
    %v1835 = vand.u32 %v93, 4294901760
    %1836 = vmatpush2.msra.mxu0 %v1835
    %v1837 = vand.u32 %v119, 4294901760
    %1838 = vmatprep.mubr.f32.mxu0 %v1837
    %v1839 = vand.u32 %v117, 4294901760
    %1840 = vmatmul.mubr.f32.gmra.mxu0 %v1839
    %v1841 = vpop.f32.mrf.mxu0
    %v1842 = vadd.f32 %v1738, %v1841
    %v1843 = vpop.f32.mrf.mxu0
    %1844 = vdwg.mxu0
    %1846 = vset.pattern.permute.xlu0 0
    %1847 = vperm.xlu0 %1846, %v40
    %v1848 = vpop.permute.xlu0 %1847
    %vm1850 = vcmask 31744
    %v1852 = vsel %vm1850, %v39, 0
    %vm1854 = vcmask 1043456
    %v1856 = vsel %vm1854, %v980, 0
    %1858 = vmatprep.subr.mxu0 0.0
    %1859 = vmatpush1.msra.mxu0 0.0
    %1860 = vmatprep.subr.mxu0 0.0
    %1861 = vmatpush1.msra.mxu0 0.0
    %1862 = vmatprep.subr.mxu0 0.0
    %1863 = vmatpush1.msra.mxu0 0.0
    %1864 = vmatprep.subr.mxu0 0.0
    %1865 = vmatpush1.msra.mxu0 0.0
    %1866 = vmatprep.subr.mxu0 0.0
    %1867 = vmatpush1.msra.mxu0 0.0
    %1868 = vmatprep.subr.mxu0 0.0
    %1869 = vmatpush1.msra.mxu0 0.0
    %1870 = vmatprep.subr.mxu0 0.0
    %1871 = vmatpush1.msra.mxu0 0.0
    %1872 = vmatprep.subr.mxu0 0.0
    %1873 = vmatpush1.msra.mxu0 0.0
    %1874 = vmatprep.subr.mxu0 0.0
    %1875 = vmatpush1.msra.mxu0 0.0
    %1876 = vmatprep.subr.mxu0 0.0
    %1877 = vmatpush1.msra.mxu0 0.0
    %1878 = vmatprep.subr.mxu0 0.0
    %1879 = vmatpush1.msra.mxu0 0.0
    %1880 = vmatprep.subr.mxu0 0.0
    %1881 = vmatpush1.msra.mxu0 0.0
    %1882 = vmatprep.subr.mxu0 0.0
    %1883 = vmatpush1.msra.mxu0 0.0
    %1884 = vmatprep.subr.mxu0 0.0
    %1885 = vmatpush1.msra.mxu0 0.0
    %1886 = vmatprep.subr.mxu0 0.0
    %1887 = vmatpush1.msra.mxu0 0.0
    %1888 = vmatprep.subr.mxu0 0.0
    %v1889 = vand.u32 %v1856, 4294901760
    %1890 = vmatpush1.msra.mxu0 %v1889
    %1891 = vmatprep.subr.mxu0 0.0
    %1892 = vmatpush2.msra.mxu0 0.0
    %1893 = vmatprep.subr.mxu0 0.0
    %1894 = vmatpush2.msra.mxu0 0.0
    %1895 = vmatprep.subr.mxu0 0.0
    %1896 = vmatpush2.msra.mxu0 0.0
    %1897 = vmatprep.subr.mxu0 0.0
    %1898 = vmatpush2.msra.mxu0 0.0
    %1899 = vmatprep.subr.mxu0 0.0
    %1900 = vmatpush2.msra.mxu0 0.0
    %1901 = vmatprep.subr.mxu0 0.0
    %1902 = vmatpush2.msra.mxu0 0.0
    %1903 = vmatprep.subr.mxu0 0.0
    %1904 = vmatpush2.msra.mxu0 0.0
    %1905 = vmatprep.subr.mxu0 0.0
    %1906 = vmatpush2.msra.mxu0 0.0
    %1907 = vmatprep.subr.mxu0 0.0
    %1908 = vmatpush2.msra.mxu0 0.0
    %1909 = vmatprep.subr.mxu0 0.0
    %1910 = vmatpush2.msra.mxu0 0.0
    %1911 = vmatprep.subr.mxu0 0.0
    %1912 = vmatpush2.msra.mxu0 0.0
    %1913 = vmatprep.subr.mxu0 0.0
    %1914 = vmatpush2.msra.mxu0 0.0
    %1915 = vmatprep.subr.mxu0 0.0
    %1916 = vmatpush2.msra.mxu0 0.0
    %1917 = vmatprep.subr.mxu0 0.0
    %1918 = vmatpush2.msra.mxu0 0.0
    %1919 = vmatprep.subr.mxu0 0.0
    %1920 = vmatpush2.msra.mxu0 0.0
    %1921 = vmatprep.subr.mxu0 0.0
    %1922 = vmatpush2.msra.mxu0 0.0
    %1923 = vmatprep.mubr.f32.mxu0 0.0
    %v1924 = vand.u32 %v1852, 4294901760
    %v1925 = vsub.f32 %v1852, %v1924
    %v1926 = vand.u32 %v1925, 4294901760
    %v1927 = vsub.f32 %v1925, %v1926
    %v1928 = vand.u32 %v1927, 4294901760
    %1929 = vmatmul.mubr.f32.gmra.mxu0 %v1928
    %v1930 = vpop.f32.mrf.mxu0
    %v1931 = vadd.f32 %v1848, %v1930
    %v1932 = vpop.f32.mrf.mxu0
    %1933 = vdwg.mxu0
    %1934 = vmatprep.subr.mxu0 0.0
    %1935 = vmatpush1.msra.mxu0 0.0
    %1936 = vmatprep.subr.mxu0 0.0
    %1937 = vmatpush1.msra.mxu0 0.0
    %1938 = vmatprep.subr.mxu0 0.0
    %1939 = vmatpush1.msra.mxu0 0.0
    %1940 = vmatprep.subr.mxu0 0.0
    %1941 = vmatpush1.msra.mxu0 0.0
    %1942 = vmatprep.subr.mxu0 0.0
    %1943 = vmatpush1.msra.mxu0 0.0
    %1944 = vmatprep.subr.mxu0 0.0
    %1945 = vmatpush1.msra.mxu0 0.0
    %1946 = vmatprep.subr.mxu0 0.0
    %1947 = vmatpush1.msra.mxu0 0.0
    %1948 = vmatprep.subr.mxu0 0.0
    %1949 = vmatpush1.msra.mxu0 0.0
    %1950 = vmatprep.subr.mxu0 0.0
    %1951 = vmatpush1.msra.mxu0 0.0
    %1952 = vmatprep.subr.mxu0 0.0
    %1953 = vmatpush1.msra.mxu0 0.0
    %1954 = vmatprep.subr.mxu0 0.0
    %1955 = vmatpush1.msra.mxu0 0.0
    %1956 = vmatprep.subr.mxu0 0.0
    %1957 = vmatpush1.msra.mxu0 0.0
    %1958 = vmatprep.subr.mxu0 0.0
    %1959 = vmatpush1.msra.mxu0 0.0
    %1960 = vmatprep.subr.mxu0 0.0
    %1961 = vmatpush1.msra.mxu0 0.0
    %1962 = vmatprep.subr.mxu0 0.0
    %1963 = vmatpush1.msra.mxu0 0.0
    %1964 = vmatprep.subr.mxu0 0.0
    %v1965 = vand.u32 %v1856, 4294901760
    %v1966 = vsub.f32 %v1856, %v1965
    %v1967 = vand.u32 %v1966, 4294901760
    %v1968 = vsub.f32 %v1966, %v1967
    %v1969 = vand.u32 %v1968, 4294901760
    %1970 = vmatpush1.msra.mxu0 %v1969
    %1971 = vmatprep.subr.mxu0 0.0
    %1972 = vmatpush2.msra.mxu0 0.0
    %1973 = vmatprep.subr.mxu0 0.0
    %1974 = vmatpush2.msra.mxu0 0.0
    %1975 = vmatprep.subr.mxu0 0.0
    %1976 = vmatpush2.msra.mxu0 0.0
    %1977 = vmatprep.subr.mxu0 0.0
    %1978 = vmatpush2.msra.mxu0 0.0
    %1979 = vmatprep.subr.mxu0 0.0
    %1980 = vmatpush2.msra.mxu0 0.0
    %1981 = vmatprep.subr.mxu0 0.0
    %1982 = vmatpush2.msra.mxu0 0.0
    %1983 = vmatprep.subr.mxu0 0.0
    %1984 = vmatpush2.msra.mxu0 0.0
    %1985 = vmatprep.subr.mxu0 0.0
    %1986 = vmatpush2.msra.mxu0 0.0
    %1987 = vmatprep.subr.mxu0 0.0
    %1988 = vmatpush2.msra.mxu0 0.0
    %1989 = vmatprep.subr.mxu0 0.0
    %1990 = vmatpush2.msra.mxu0 0.0
    %1991 = vmatprep.subr.mxu0 0.0
    %1992 = vmatpush2.msra.mxu0 0.0
    %1993 = vmatprep.subr.mxu0 0.0
    %1994 = vmatpush2.msra.mxu0 0.0
    %1995 = vmatprep.subr.mxu0 0.0
    %1996 = vmatpush2.msra.mxu0 0.0
    %1997 = vmatprep.subr.mxu0 0.0
    %1998 = vmatpush2.msra.mxu0 0.0
    %1999 = vmatprep.subr.mxu0 0.0
    %2000 = vmatpush2.msra.mxu0 0.0
    %2001 = vmatprep.subr.mxu0 0.0
    %2002 = vmatpush2.msra.mxu0 0.0
    %2003 = vmatprep.mubr.f32.mxu0 0.0
    %v2004 = vand.u32 %v1852, 4294901760
    %2005 = vmatmul.mubr.f32.gmra.mxu0 %v2004
    %v2006 = vpop.f32.mrf.mxu0
    %v2007 = vadd.f32 %v1931, %v2006
    %v2008 = vpop.f32.mrf.mxu0
    %2009 = vdwg.mxu0
    %2010 = vmatprep.subr.mxu0 0.0
    %2011 = vmatpush1.msra.mxu0 0.0
    %2012 = vmatprep.subr.mxu0 0.0
    %2013 = vmatpush1.msra.mxu0 0.0
    %2014 = vmatprep.subr.mxu0 0.0
    %2015 = vmatpush1.msra.mxu0 0.0
    %2016 = vmatprep.subr.mxu0 0.0
    %2017 = vmatpush1.msra.mxu0 0.0
    %2018 = vmatprep.subr.mxu0 0.0
    %2019 = vmatpush1.msra.mxu0 0.0
    %2020 = vmatprep.subr.mxu0 0.0
    %2021 = vmatpush1.msra.mxu0 0.0
    %2022 = vmatprep.subr.mxu0 0.0
    %2023 = vmatpush1.msra.mxu0 0.0
    %2024 = vmatprep.subr.mxu0 0.0
    %2025 = vmatpush1.msra.mxu0 0.0
    %2026 = vmatprep.subr.mxu0 0.0
    %2027 = vmatpush1.msra.mxu0 0.0
    %2028 = vmatprep.subr.mxu0 0.0
    %2029 = vmatpush1.msra.mxu0 0.0
    %2030 = vmatprep.subr.mxu0 0.0
    %2031 = vmatpush1.msra.mxu0 0.0
    %2032 = vmatprep.subr.mxu0 0.0
    %2033 = vmatpush1.msra.mxu0 0.0
    %2034 = vmatprep.subr.mxu0 0.0
    %2035 = vmatpush1.msra.mxu0 0.0
    %2036 = vmatprep.subr.mxu0 0.0
    %2037 = vmatpush1.msra.mxu0 0.0
    %2038 = vmatprep.subr.mxu0 0.0
    %2039 = vmatpush1.msra.mxu0 0.0
    %2040 = vmatprep.subr.mxu0 0.0
    %v2041 = vand.u32 %v1856, 4294901760
    %v2042 = vsub.f32 %v1856, %v2041
    %2043 = vmatpush1.msra.mxu0 %v2042
    %2044 = vmatprep.subr.mxu0 0.0
    %2045 = vmatpush2.msra.mxu0 0.0
    %2046 = vmatprep.subr.mxu0 0.0
    %2047 = vmatpush2.msra.mxu0 0.0
    %2048 = vmatprep.subr.mxu0 0.0
    %2049 = vmatpush2.msra.mxu0 0.0
    %2050 = vmatprep.subr.mxu0 0.0
    %2051 = vmatpush2.msra.mxu0 0.0
    %2052 = vmatprep.subr.mxu0 0.0
    %2053 = vmatpush2.msra.mxu0 0.0
    %2054 = vmatprep.subr.mxu0 0.0
    %2055 = vmatpush2.msra.mxu0 0.0
    %2056 = vmatprep.subr.mxu0 0.0
    %2057 = vmatpush2.msra.mxu0 0.0
    %2058 = vmatprep.subr.mxu0 0.0
    %2059 = vmatpush2.msra.mxu0 0.0
    %2060 = vmatprep.subr.mxu0 0.0
    %2061 = vmatpush2.msra.mxu0 0.0
    %2062 = vmatprep.subr.mxu0 0.0
    %2063 = vmatpush2.msra.mxu0 0.0
    %2064 = vmatprep.subr.mxu0 0.0
    %2065 = vmatpush2.msra.mxu0 0.0
    %2066 = vmatprep.subr.mxu0 0.0
    %2067 = vmatpush2.msra.mxu0 0.0
    %2068 = vmatprep.subr.mxu0 0.0
    %2069 = vmatpush2.msra.mxu0 0.0
    %2070 = vmatprep.subr.mxu0 0.0
    %2071 = vmatpush2.msra.mxu0 0.0
    %2072 = vmatprep.subr.mxu0 0.0
    %2073 = vmatpush2.msra.mxu0 0.0
    %2074 = vmatprep.subr.mxu0 0.0
    %2075 = vmatpush2.msra.mxu0 0.0
    %2076 = vmatprep.mubr.f32.mxu0 0.0
    %v2077 = vand.u32 %v1852, 4294901760
    %v2078 = vsub.f32 %v1852, %v2077
    %2079 = vmatmul.mubr.f32.gmra.mxu0 %v2078
    %v2080 = vpop.f32.mrf.mxu0
    %v2081 = vadd.f32 %v2007, %v2080
    %v2082 = vpop.f32.mrf.mxu0
    %2083 = vdwg.mxu0
    %2084 = vmatprep.subr.mxu0 0.0
    %2085 = vmatpush1.msra.mxu0 0.0
    %2086 = vmatprep.subr.mxu0 0.0
    %2087 = vmatpush1.msra.mxu0 0.0
    %2088 = vmatprep.subr.mxu0 0.0
    %2089 = vmatpush1.msra.mxu0 0.0
    %2090 = vmatprep.subr.mxu0 0.0
    %2091 = vmatpush1.msra.mxu0 0.0
    %2092 = vmatprep.subr.mxu0 0.0
    %2093 = vmatpush1.msra.mxu0 0.0
    %2094 = vmatprep.subr.mxu0 0.0
    %2095 = vmatpush1.msra.mxu0 0.0
    %2096 = vmatprep.subr.mxu0 0.0
    %2097 = vmatpush1.msra.mxu0 0.0
    %2098 = vmatprep.subr.mxu0 0.0
    %2099 = vmatpush1.msra.mxu0 0.0
    %2100 = vmatprep.subr.mxu0 0.0
    %2101 = vmatpush1.msra.mxu0 0.0
    %2102 = vmatprep.subr.mxu0 0.0
    %2103 = vmatpush1.msra.mxu0 0.0
    %2104 = vmatprep.subr.mxu0 0.0
    %2105 = vmatpush1.msra.mxu0 0.0
    %2106 = vmatprep.subr.mxu0 0.0
    %2107 = vmatpush1.msra.mxu0 0.0
    %2108 = vmatprep.subr.mxu0 0.0
    %2109 = vmatpush1.msra.mxu0 0.0
    %2110 = vmatprep.subr.mxu0 0.0
    %2111 = vmatpush1.msra.mxu0 0.0
    %2112 = vmatprep.subr.mxu0 0.0
    %2113 = vmatpush1.msra.mxu0 0.0
    %2114 = vmatprep.subr.mxu0 0.0
    %v2115 = vand.u32 %v1856, 4294901760
    %2116 = vmatpush1.msra.mxu0 %v2115
    %2117 = vmatprep.subr.mxu0 0.0
    %2118 = vmatpush2.msra.mxu0 0.0
    %2119 = vmatprep.subr.mxu0 0.0
    %2120 = vmatpush2.msra.mxu0 0.0
    %2121 = vmatprep.subr.mxu0 0.0
    %2122 = vmatpush2.msra.mxu0 0.0
    %2123 = vmatprep.subr.mxu0 0.0
    %2124 = vmatpush2.msra.mxu0 0.0
    %2125 = vmatprep.subr.mxu0 0.0
    %2126 = vmatpush2.msra.mxu0 0.0
    %2127 = vmatprep.subr.mxu0 0.0
    %2128 = vmatpush2.msra.mxu0 0.0
    %2129 = vmatprep.subr.mxu0 0.0
    %2130 = vmatpush2.msra.mxu0 0.0
    %2131 = vmatprep.subr.mxu0 0.0
    %2132 = vmatpush2.msra.mxu0 0.0
    %2133 = vmatprep.subr.mxu0 0.0
    %2134 = vmatpush2.msra.mxu0 0.0
    %2135 = vmatprep.subr.mxu0 0.0
    %2136 = vmatpush2.msra.mxu0 0.0
    %2137 = vmatprep.subr.mxu0 0.0
    %2138 = vmatpush2.msra.mxu0 0.0
    %2139 = vmatprep.subr.mxu0 0.0
    %2140 = vmatpush2.msra.mxu0 0.0
    %2141 = vmatprep.subr.mxu0 0.0
    %2142 = vmatpush2.msra.mxu0 0.0
    %2143 = vmatprep.subr.mxu0 0.0
    %2144 = vmatpush2.msra.mxu0 0.0
    %2145 = vmatprep.subr.mxu0 0.0
    %2146 = vmatpush2.msra.mxu0 0.0
    %2147 = vmatprep.subr.mxu0 0.0
    %2148 = vmatpush2.msra.mxu0 0.0
    %2149 = vmatprep.mubr.f32.mxu0 0.0
    %v2150 = vand.u32 %v1852, 4294901760
    %v2151 = vsub.f32 %v1852, %v2150
    %v2152 = vand.u32 %v2151, 4294901760
    %2153 = vmatmul.mubr.f32.gmra.mxu0 %v2152
    %v2154 = vpop.f32.mrf.mxu0
    %v2155 = vadd.f32 %v2081, %v2154
    %v2156 = vpop.f32.mrf.mxu0
    %2157 = vdwg.mxu0
    %2158 = vmatprep.subr.mxu0 0.0
    %2159 = vmatpush1.msra.mxu0 0.0
    %2160 = vmatprep.subr.mxu0 0.0
    %2161 = vmatpush1.msra.mxu0 0.0
    %2162 = vmatprep.subr.mxu0 0.0
    %2163 = vmatpush1.msra.mxu0 0.0
    %2164 = vmatprep.subr.mxu0 0.0
    %2165 = vmatpush1.msra.mxu0 0.0
    %2166 = vmatprep.subr.mxu0 0.0
    %2167 = vmatpush1.msra.mxu0 0.0
    %2168 = vmatprep.subr.mxu0 0.0
    %2169 = vmatpush1.msra.mxu0 0.0
    %2170 = vmatprep.subr.mxu0 0.0
    %2171 = vmatpush1.msra.mxu0 0.0
    %2172 = vmatprep.subr.mxu0 0.0
    %2173 = vmatpush1.msra.mxu0 0.0
    %2174 = vmatprep.subr.mxu0 0.0
    %2175 = vmatpush1.msra.mxu0 0.0
    %2176 = vmatprep.subr.mxu0 0.0
    %2177 = vmatpush1.msra.mxu0 0.0
    %2178 = vmatprep.subr.mxu0 0.0
    %2179 = vmatpush1.msra.mxu0 0.0
    %2180 = vmatprep.subr.mxu0 0.0
    %2181 = vmatpush1.msra.mxu0 0.0
    %2182 = vmatprep.subr.mxu0 0.0
    %2183 = vmatpush1.msra.mxu0 0.0
    %2184 = vmatprep.subr.mxu0 0.0
    %2185 = vmatpush1.msra.mxu0 0.0
    %2186 = vmatprep.subr.mxu0 0.0
    %2187 = vmatpush1.msra.mxu0 0.0
    %2188 = vmatprep.subr.mxu0 0.0
    %v2189 = vand.u32 %v1856, 4294901760
    %v2190 = vsub.f32 %v1856, %v2189
    %v2191 = vand.u32 %v2190, 4294901760
    %2192 = vmatpush1.msra.mxu0 %v2191
    %2193 = vmatprep.subr.mxu0 0.0
    %2194 = vmatpush2.msra.mxu0 0.0
    %2195 = vmatprep.subr.mxu0 0.0
    %2196 = vmatpush2.msra.mxu0 0.0
    %2197 = vmatprep.subr.mxu0 0.0
    %2198 = vmatpush2.msra.mxu0 0.0
    %2199 = vmatprep.subr.mxu0 0.0
    %2200 = vmatpush2.msra.mxu0 0.0
    %2201 = vmatprep.subr.mxu0 0.0
    %2202 = vmatpush2.msra.mxu0 0.0
    %2203 = vmatprep.subr.mxu0 0.0
    %2204 = vmatpush2.msra.mxu0 0.0
    %2205 = vmatprep.subr.mxu0 0.0
    %2206 = vmatpush2.msra.mxu0 0.0
    %2207 = vmatprep.subr.mxu0 0.0
    %2208 = vmatpush2.msra.mxu0 0.0
    %2209 = vmatprep.subr.mxu0 0.0
    %2210 = vmatpush2.msra.mxu0 0.0
    %2211 = vmatprep.subr.mxu0 0.0
    %2212 = vmatpush2.msra.mxu0 0.0
    %2213 = vmatprep.subr.mxu0 0.0
    %2214 = vmatpush2.msra.mxu0 0.0
    %2215 = vmatprep.subr.mxu0 0.0
    %2216 = vmatpush2.msra.mxu0 0.0
    %2217 = vmatprep.subr.mxu0 0.0
    %2218 = vmatpush2.msra.mxu0 0.0
    %2219 = vmatprep.subr.mxu0 0.0
    %2220 = vmatpush2.msra.mxu0 0.0
    %2221 = vmatprep.subr.mxu0 0.0
    %2222 = vmatpush2.msra.mxu0 0.0
    %2223 = vmatprep.subr.mxu0 0.0
    %2224 = vmatpush2.msra.mxu0 0.0
    %2225 = vmatprep.mubr.f32.mxu0 0.0
    %v2226 = vand.u32 %v1852, 4294901760
    %2227 = vmatmul.mubr.f32.gmra.mxu0 %v2226
    %v2228 = vpop.f32.mrf.mxu0
    %v2229 = vadd.f32 %v2155, %v2228
    %v2230 = vpop.f32.mrf.mxu0
    %2231 = vdwg.mxu0
    %2232 = vmatprep.subr.mxu0 0.0
    %2233 = vmatpush1.msra.mxu0 0.0
    %2234 = vmatprep.subr.mxu0 0.0
    %2235 = vmatpush1.msra.mxu0 0.0
    %2236 = vmatprep.subr.mxu0 0.0
    %2237 = vmatpush1.msra.mxu0 0.0
    %2238 = vmatprep.subr.mxu0 0.0
    %2239 = vmatpush1.msra.mxu0 0.0
    %2240 = vmatprep.subr.mxu0 0.0
    %2241 = vmatpush1.msra.mxu0 0.0
    %2242 = vmatprep.subr.mxu0 0.0
    %2243 = vmatpush1.msra.mxu0 0.0
    %2244 = vmatprep.subr.mxu0 0.0
    %2245 = vmatpush1.msra.mxu0 0.0
    %2246 = vmatprep.subr.mxu0 0.0
    %2247 = vmatpush1.msra.mxu0 0.0
    %2248 = vmatprep.subr.mxu0 0.0
    %2249 = vmatpush1.msra.mxu0 0.0
    %2250 = vmatprep.subr.mxu0 0.0
    %2251 = vmatpush1.msra.mxu0 0.0
    %2252 = vmatprep.subr.mxu0 0.0
    %2253 = vmatpush1.msra.mxu0 0.0
    %2254 = vmatprep.subr.mxu0 0.0
    %2255 = vmatpush1.msra.mxu0 0.0
    %2256 = vmatprep.subr.mxu0 0.0
    %2257 = vmatpush1.msra.mxu0 0.0
    %2258 = vmatprep.subr.mxu0 0.0
    %2259 = vmatpush1.msra.mxu0 0.0
    %2260 = vmatprep.subr.mxu0 0.0
    %2261 = vmatpush1.msra.mxu0 0.0
    %2262 = vmatprep.subr.mxu0 0.0
    %v2263 = vand.u32 %v1856, 4294901760
    %2264 = vmatpush1.msra.mxu0 %v2263
    %2265 = vmatprep.subr.mxu0 0.0
    %2266 = vmatpush2.msra.mxu0 0.0
    %2267 = vmatprep.subr.mxu0 0.0
    %2268 = vmatpush2.msra.mxu0 0.0
    %2269 = vmatprep.subr.mxu0 0.0
    %2270 = vmatpush2.msra.mxu0 0.0
    %2271 = vmatprep.subr.mxu0 0.0
    %2272 = vmatpush2.msra.mxu0 0.0
    %2273 = vmatprep.subr.mxu0 0.0
    %2274 = vmatpush2.msra.mxu0 0.0
    %2275 = vmatprep.subr.mxu0 0.0
    %2276 = vmatpush2.msra.mxu0 0.0
    %2277 = vmatprep.subr.mxu0 0.0
    %2278 = vmatpush2.msra.mxu0 0.0
    %2279 = vmatprep.subr.mxu0 0.0
    %2280 = vmatpush2.msra.mxu0 0.0
    %2281 = vmatprep.subr.mxu0 0.0
    %2282 = vmatpush2.msra.mxu0 0.0
    %2283 = vmatprep.subr.mxu0 0.0
    %2284 = vmatpush2.msra.mxu0 0.0
    %2285 = vmatprep.subr.mxu0 0.0
    %2286 = vmatpush2.msra.mxu0 0.0
    %2287 = vmatprep.subr.mxu0 0.0
    %2288 = vmatpush2.msra.mxu0 0.0
    %2289 = vmatprep.subr.mxu0 0.0
    %2290 = vmatpush2.msra.mxu0 0.0
    %2291 = vmatprep.subr.mxu0 0.0
    %2292 = vmatpush2.msra.mxu0 0.0
    %2293 = vmatprep.subr.mxu0 0.0
    %2294 = vmatpush2.msra.mxu0 0.0
    %2295 = vmatprep.subr.mxu0 0.0
    %2296 = vmatpush2.msra.mxu0 0.0
    %2297 = vmatprep.mubr.f32.mxu0 0.0
    %v2298 = vand.u32 %v1852, 4294901760
    %2299 = vmatmul.mubr.f32.gmra.mxu0 %v2298
    %v2300 = vpop.f32.mrf.mxu0
    %v2301 = vadd.f32 %v2229, %v2300
    %v2302 = vpop.f32.mrf.mxu0
    %2303 = vdwg.mxu0
    %v2305 = vsel %vm1854, %v1842, 0
    %2307 = vmatprep.subr.mxu0 0.0
    %2308 = vmatpush1.msra.mxu0 0.0
    %2309 = vmatprep.subr.mxu0 0.0
    %2310 = vmatpush1.msra.mxu0 0.0
    %2311 = vmatprep.subr.mxu0 0.0
    %2312 = vmatpush1.msra.mxu0 0.0
    %2313 = vmatprep.subr.mxu0 0.0
    %2314 = vmatpush1.msra.mxu0 0.0
    %2315 = vmatprep.subr.mxu0 0.0
    %2316 = vmatpush1.msra.mxu0 0.0
    %2317 = vmatprep.subr.mxu0 0.0
    %2318 = vmatpush1.msra.mxu0 0.0
    %2319 = vmatprep.subr.mxu0 0.0
    %2320 = vmatpush1.msra.mxu0 0.0
    %2321 = vmatprep.subr.mxu0 0.0
    %2322 = vmatpush1.msra.mxu0 0.0
    %2323 = vmatprep.subr.mxu0 0.0
    %2324 = vmatpush1.msra.mxu0 0.0
    %2325 = vmatprep.subr.mxu0 0.0
    %2326 = vmatpush1.msra.mxu0 0.0
    %2327 = vmatprep.subr.mxu0 0.0
    %2328 = vmatpush1.msra.mxu0 0.0
    %2329 = vmatprep.subr.mxu0 0.0
    %2330 = vmatpush1.msra.mxu0 0.0
    %2331 = vmatprep.subr.mxu0 0.0
    %2332 = vmatpush1.msra.mxu0 0.0
    %2333 = vmatprep.subr.mxu0 0.0
    %2334 = vmatpush1.msra.mxu0 0.0
    %2335 = vmatprep.subr.mxu0 0.0
    %2336 = vmatpush1.msra.mxu0 0.0
    %2337 = vmatprep.subr.mxu0 0.0
    %v2338 = vand.u32 %v2305, 4294901760
    %2339 = vmatpush1.msra.mxu0 %v2338
    %2340 = vmatprep.subr.mxu0 0.0
    %2341 = vmatpush2.msra.mxu0 0.0
    %2342 = vmatprep.subr.mxu0 0.0
    %2343 = vmatpush2.msra.mxu0 0.0
    %2344 = vmatprep.subr.mxu0 0.0
    %2345 = vmatpush2.msra.mxu0 0.0
    %2346 = vmatprep.subr.mxu0 0.0
    %2347 = vmatpush2.msra.mxu0 0.0
    %2348 = vmatprep.subr.mxu0 0.0
    %2349 = vmatpush2.msra.mxu0 0.0
    %2350 = vmatprep.subr.mxu0 0.0
    %2351 = vmatpush2.msra.mxu0 0.0
    %2352 = vmatprep.subr.mxu0 0.0
    %2353 = vmatpush2.msra.mxu0 0.0
    %2354 = vmatprep.subr.mxu0 0.0
    %2355 = vmatpush2.msra.mxu0 0.0
    %2356 = vmatprep.subr.mxu0 0.0
    %2357 = vmatpush2.msra.mxu0 0.0
    %2358 = vmatprep.subr.mxu0 0.0
    %2359 = vmatpush2.msra.mxu0 0.0
    %2360 = vmatprep.subr.mxu0 0.0
    %2361 = vmatpush2.msra.mxu0 0.0
    %2362 = vmatprep.subr.mxu0 0.0
    %2363 = vmatpush2.msra.mxu0 0.0
    %2364 = vmatprep.subr.mxu0 0.0
    %2365 = vmatpush2.msra.mxu0 0.0
    %2366 = vmatprep.subr.mxu0 0.0
    %2367 = vmatpush2.msra.mxu0 0.0
    %2368 = vmatprep.subr.mxu0 0.0
    %2369 = vmatpush2.msra.mxu0 0.0
    %2370 = vmatprep.subr.mxu0 0.0
    %2371 = vmatpush2.msra.mxu0 0.0
    %2372 = vmatprep.mubr.f32.mxu0 0.0
    %v2373 = vand.u32 %v1852, 4294901760
    %v2374 = vsub.f32 %v1852, %v2373
    %v2375 = vand.u32 %v2374, 4294901760
    %v2376 = vsub.f32 %v2374, %v2375
    %v2377 = vand.u32 %v2376, 4294901760
    %2378 = vmatmul.mubr.f32.gmra.mxu0 %v2377
    %v2379 = vpop.f32.mrf.mxu0
    %v2380 = vadd.f32 %v1848, %v2379
    %v2381 = vpop.f32.mrf.mxu0
    %2382 = vdwg.mxu0
    %2383 = vmatprep.subr.mxu0 0.0
    %2384 = vmatpush1.msra.mxu0 0.0
    %2385 = vmatprep.subr.mxu0 0.0
    %2386 = vmatpush1.msra.mxu0 0.0
    %2387 = vmatprep.subr.mxu0 0.0
    %2388 = vmatpush1.msra.mxu0 0.0
    %2389 = vmatprep.subr.mxu0 0.0
    %2390 = vmatpush1.msra.mxu0 0.0
    %2391 = vmatprep.subr.mxu0 0.0
    %2392 = vmatpush1.msra.mxu0 0.0
    %2393 = vmatprep.subr.mxu0 0.0
    %2394 = vmatpush1.msra.mxu0 0.0
    %2395 = vmatprep.subr.mxu0 0.0
    %2396 = vmatpush1.msra.mxu0 0.0
    %2397 = vmatprep.subr.mxu0 0.0
    %2398 = vmatpush1.msra.mxu0 0.0
    %2399 = vmatprep.subr.mxu0 0.0
    %2400 = vmatpush1.msra.mxu0 0.0
    %2401 = vmatprep.subr.mxu0 0.0
    %2402 = vmatpush1.msra.mxu0 0.0
    %2403 = vmatprep.subr.mxu0 0.0
    %2404 = vmatpush1.msra.mxu0 0.0
    %2405 = vmatprep.subr.mxu0 0.0
    %2406 = vmatpush1.msra.mxu0 0.0
    %2407 = vmatprep.subr.mxu0 0.0
    %2408 = vmatpush1.msra.mxu0 0.0
    %2409 = vmatprep.subr.mxu0 0.0
    %2410 = vmatpush1.msra.mxu0 0.0
    %2411 = vmatprep.subr.mxu0 0.0
    %2412 = vmatpush1.msra.mxu0 0.0
    %2413 = vmatprep.subr.mxu0 0.0
    %v2414 = vand.u32 %v2305, 4294901760
    %v2415 = vsub.f32 %v2305, %v2414
    %v2416 = vand.u32 %v2415, 4294901760
    %v2417 = vsub.f32 %v2415, %v2416
    %v2418 = vand.u32 %v2417, 4294901760
    %2419 = vmatpush1.msra.mxu0 %v2418
    %2420 = vmatprep.subr.mxu0 0.0
    %2421 = vmatpush2.msra.mxu0 0.0
    %2422 = vmatprep.subr.mxu0 0.0
    %2423 = vmatpush2.msra.mxu0 0.0
    %2424 = vmatprep.subr.mxu0 0.0
    %2425 = vmatpush2.msra.mxu0 0.0
    %2426 = vmatprep.subr.mxu0 0.0
    %2427 = vmatpush2.msra.mxu0 0.0
    %2428 = vmatprep.subr.mxu0 0.0
    %2429 = vmatpush2.msra.mxu0 0.0
    %2430 = vmatprep.subr.mxu0 0.0
    %2431 = vmatpush2.msra.mxu0 0.0
    %2432 = vmatprep.subr.mxu0 0.0
    %2433 = vmatpush2.msra.mxu0 0.0
    %2434 = vmatprep.subr.mxu0 0.0
    %2435 = vmatpush2.msra.mxu0 0.0
    %2436 = vmatprep.subr.mxu0 0.0
    %2437 = vmatpush2.msra.mxu0 0.0
    %2438 = vmatprep.subr.mxu0 0.0
    %2439 = vmatpush2.msra.mxu0 0.0
    %2440 = vmatprep.subr.mxu0 0.0
    %2441 = vmatpush2.msra.mxu0 0.0
    %2442 = vmatprep.subr.mxu0 0.0
    %2443 = vmatpush2.msra.mxu0 0.0
    %2444 = vmatprep.subr.mxu0 0.0
    %2445 = vmatpush2.msra.mxu0 0.0
    %2446 = vmatprep.subr.mxu0 0.0
    %2447 = vmatpush2.msra.mxu0 0.0
    %2448 = vmatprep.subr.mxu0 0.0
    %2449 = vmatpush2.msra.mxu0 0.0
    %2450 = vmatprep.subr.mxu0 0.0
    %2451 = vmatpush2.msra.mxu0 0.0
    %2452 = vmatprep.mubr.f32.mxu0 0.0
    %v2453 = vand.u32 %v1852, 4294901760
    %2454 = vmatmul.mubr.f32.gmra.mxu0 %v2453
    %v2455 = vpop.f32.mrf.mxu0
    %v2456 = vadd.f32 %v2380, %v2455
    %v2457 = vpop.f32.mrf.mxu0
    %2458 = vdwg.mxu0
    %2459 = vmatprep.subr.mxu0 0.0
    %2460 = vmatpush1.msra.mxu0 0.0
    %2461 = vmatprep.subr.mxu0 0.0
    %2462 = vmatpush1.msra.mxu0 0.0
    %2463 = vmatprep.subr.mxu0 0.0
    %2464 = vmatpush1.msra.mxu0 0.0
    %2465 = vmatprep.subr.mxu0 0.0
    %2466 = vmatpush1.msra.mxu0 0.0
    %2467 = vmatprep.subr.mxu0 0.0
    %2468 = vmatpush1.msra.mxu0 0.0
    %2469 = vmatprep.subr.mxu0 0.0
    %2470 = vmatpush1.msra.mxu0 0.0
    %2471 = vmatprep.subr.mxu0 0.0
    %2472 = vmatpush1.msra.mxu0 0.0
    %2473 = vmatprep.subr.mxu0 0.0
    %2474 = vmatpush1.msra.mxu0 0.0
    %2475 = vmatprep.subr.mxu0 0.0
    %2476 = vmatpush1.msra.mxu0 0.0
    %2477 = vmatprep.subr.mxu0 0.0
    %2478 = vmatpush1.msra.mxu0 0.0
    %2479 = vmatprep.subr.mxu0 0.0
    %2480 = vmatpush1.msra.mxu0 0.0
    %2481 = vmatprep.subr.mxu0 0.0
    %2482 = vmatpush1.msra.mxu0 0.0
    %2483 = vmatprep.subr.mxu0 0.0
    %2484 = vmatpush1.msra.mxu0 0.0
    %2485 = vmatprep.subr.mxu0 0.0
    %2486 = vmatpush1.msra.mxu0 0.0
    %2487 = vmatprep.subr.mxu0 0.0
    %2488 = vmatpush1.msra.mxu0 0.0
    %2489 = vmatprep.subr.mxu0 0.0
    %v2490 = vand.u32 %v2305, 4294901760
    %v2491 = vsub.f32 %v2305, %v2490
    %2492 = vmatpush1.msra.mxu0 %v2491
    %2493 = vmatprep.subr.mxu0 0.0
    %2494 = vmatpush2.msra.mxu0 0.0
    %2495 = vmatprep.subr.mxu0 0.0
    %2496 = vmatpush2.msra.mxu0 0.0
    %2497 = vmatprep.subr.mxu0 0.0
    %2498 = vmatpush2.msra.mxu0 0.0
    %2499 = vmatprep.subr.mxu0 0.0
    %2500 = vmatpush2.msra.mxu0 0.0
    %2501 = vmatprep.subr.mxu0 0.0
    %2502 = vmatpush2.msra.mxu0 0.0
    %2503 = vmatprep.subr.mxu0 0.0
    %2504 = vmatpush2.msra.mxu0 0.0
    %2505 = vmatprep.subr.mxu0 0.0
    %2506 = vmatpush2.msra.mxu0 0.0
    %2507 = vmatprep.subr.mxu0 0.0
    %2508 = vmatpush2.msra.mxu0 0.0
    %2509 = vmatprep.subr.mxu0 0.0
    %2510 = vmatpush2.msra.mxu0 0.0
    %2511 = vmatprep.subr.mxu0 0.0
    %2512 = vmatpush2.msra.mxu0 0.0
    %2513 = vmatprep.subr.mxu0 0.0
    %2514 = vmatpush2.msra.mxu0 0.0
    %2515 = vmatprep.subr.mxu0 0.0
    %2516 = vmatpush2.msra.mxu0 0.0
    %2517 = vmatprep.subr.mxu0 0.0
    %2518 = vmatpush2.msra.mxu0 0.0
    %2519 = vmatprep.subr.mxu0 0.0
    %2520 = vmatpush2.msra.mxu0 0.0
    %2521 = vmatprep.subr.mxu0 0.0
    %2522 = vmatpush2.msra.mxu0 0.0
    %2523 = vmatprep.subr.mxu0 0.0
    %2524 = vmatpush2.msra.mxu0 0.0
    %2525 = vmatprep.mubr.f32.mxu0 0.0
    %v2526 = vand.u32 %v1852, 4294901760
    %v2527 = vsub.f32 %v1852, %v2526
    %2528 = vmatmul.mubr.f32.gmra.mxu0 %v2527
    %v2529 = vpop.f32.mrf.mxu0
    %v2530 = vadd.f32 %v2456, %v2529
    %v2531 = vpop.f32.mrf.mxu0
    %2532 = vdwg.mxu0
    %2533 = vmatprep.subr.mxu0 0.0
    %2534 = vmatpush1.msra.mxu0 0.0
    %2535 = vmatprep.subr.mxu0 0.0
    %2536 = vmatpush1.msra.mxu0 0.0
    %2537 = vmatprep.subr.mxu0 0.0
    %2538 = vmatpush1.msra.mxu0 0.0
    %2539 = vmatprep.subr.mxu0 0.0
    %2540 = vmatpush1.msra.mxu0 0.0
    %2541 = vmatprep.subr.mxu0 0.0
    %2542 = vmatpush1.msra.mxu0 0.0
    %2543 = vmatprep.subr.mxu0 0.0
    %2544 = vmatpush1.msra.mxu0 0.0
    %2545 = vmatprep.subr.mxu0 0.0
    %2546 = vmatpush1.msra.mxu0 0.0
    %2547 = vmatprep.subr.mxu0 0.0
    %2548 = vmatpush1.msra.mxu0 0.0
    %2549 = vmatprep.subr.mxu0 0.0
    %2550 = vmatpush1.msra.mxu0 0.0
    %2551 = vmatprep.subr.mxu0 0.0
    %2552 = vmatpush1.msra.mxu0 0.0
    %2553 = vmatprep.subr.mxu0 0.0
    %2554 = vmatpush1.msra.mxu0 0.0
    %2555 = vmatprep.subr.mxu0 0.0
    %2556 = vmatpush1.msra.mxu0 0.0
    %2557 = vmatprep.subr.mxu0 0.0
    %2558 = vmatpush1.msra.mxu0 0.0
    %2559 = vmatprep.subr.mxu0 0.0
    %2560 = vmatpush1.msra.mxu0 0.0
    %2561 = vmatprep.subr.mxu0 0.0
    %2562 = vmatpush1.msra.mxu0 0.0
    %2563 = vmatprep.subr.mxu0 0.0
    %v2564 = vand.u32 %v2305, 4294901760
    %2565 = vmatpush1.msra.mxu0 %v2564
    %2566 = vmatprep.subr.mxu0 0.0
    %2567 = vmatpush2.msra.mxu0 0.0
    %2568 = vmatprep.subr.mxu0 0.0
    %2569 = vmatpush2.msra.mxu0 0.0
    %2570 = vmatprep.subr.mxu0 0.0
    %2571 = vmatpush2.msra.mxu0 0.0
    %2572 = vmatprep.subr.mxu0 0.0
    %2573 = vmatpush2.msra.mxu0 0.0
    %2574 = vmatprep.subr.mxu0 0.0
    %2575 = vmatpush2.msra.mxu0 0.0
    %2576 = vmatprep.subr.mxu0 0.0
    %2577 = vmatpush2.msra.mxu0 0.0
    %2578 = vmatprep.subr.mxu0 0.0
    %2579 = vmatpush2.msra.mxu0 0.0
    %2580 = vmatprep.subr.mxu0 0.0
    %2581 = vmatpush2.msra.mxu0 0.0
    %2582 = vmatprep.subr.mxu0 0.0
    %2583 = vmatpush2.msra.mxu0 0.0
    %2584 = vmatprep.subr.mxu0 0.0
    %2585 = vmatpush2.msra.mxu0 0.0
    %2586 = vmatprep.subr.mxu0 0.0
    %2587 = vmatpush2.msra.mxu0 0.0
    %2588 = vmatprep.subr.mxu0 0.0
    %2589 = vmatpush2.msra.mxu0 0.0
    %2590 = vmatprep.subr.mxu0 0.0
    %2591 = vmatpush2.msra.mxu0 0.0
    %2592 = vmatprep.subr.mxu0 0.0
    %2593 = vmatpush2.msra.mxu0 0.0
    %2594 = vmatprep.subr.mxu0 0.0
    %2595 = vmatpush2.msra.mxu0 0.0
    %2596 = vmatprep.subr.mxu0 0.0
    %2597 = vmatpush2.msra.mxu0 0.0
    %2598 = vmatprep.mubr.f32.mxu0 0.0
    %v2599 = vand.u32 %v1852, 4294901760
    %v2600 = vsub.f32 %v1852, %v2599
    %v2601 = vand.u32 %v2600, 4294901760
    %2602 = vmatmul.mubr.f32.gmra.mxu0 %v2601
    %v2603 = vpop.f32.mrf.mxu0
    %v2604 = vadd.f32 %v2530, %v2603
    %v2605 = vpop.f32.mrf.mxu0
    %2606 = vdwg.mxu0
    %2607 = vmatprep.subr.mxu0 0.0
    %2608 = vmatpush1.msra.mxu0 0.0
    %2609 = vmatprep.subr.mxu0 0.0
    %2610 = vmatpush1.msra.mxu0 0.0
    %2611 = vmatprep.subr.mxu0 0.0
    %2612 = vmatpush1.msra.mxu0 0.0
    %2613 = vmatprep.subr.mxu0 0.0
    %2614 = vmatpush1.msra.mxu0 0.0
    %2615 = vmatprep.subr.mxu0 0.0
    %2616 = vmatpush1.msra.mxu0 0.0
    %2617 = vmatprep.subr.mxu0 0.0
    %2618 = vmatpush1.msra.mxu0 0.0
    %2619 = vmatprep.subr.mxu0 0.0
    %2620 = vmatpush1.msra.mxu0 0.0
    %2621 = vmatprep.subr.mxu0 0.0
    %2622 = vmatpush1.msra.mxu0 0.0
    %2623 = vmatprep.subr.mxu0 0.0
    %2624 = vmatpush1.msra.mxu0 0.0
    %2625 = vmatprep.subr.mxu0 0.0
    %2626 = vmatpush1.msra.mxu0 0.0
    %2627 = vmatprep.subr.mxu0 0.0
    %2628 = vmatpush1.msra.mxu0 0.0
    %2629 = vmatprep.subr.mxu0 0.0
    %2630 = vmatpush1.msra.mxu0 0.0
    %2631 = vmatprep.subr.mxu0 0.0
    %2632 = vmatpush1.msra.mxu0 0.0
    %2633 = vmatprep.subr.mxu0 0.0
    %2634 = vmatpush1.msra.mxu0 0.0
    %2635 = vmatprep.subr.mxu0 0.0
    %2636 = vmatpush1.msra.mxu0 0.0
    %2637 = vmatprep.subr.mxu0 0.0
    %v2638 = vand.u32 %v2305, 4294901760
    %v2639 = vsub.f32 %v2305, %v2638
    %v2640 = vand.u32 %v2639, 4294901760
    %2641 = vmatpush1.msra.mxu0 %v2640
    %2642 = vmatprep.subr.mxu0 0.0
    %2643 = vmatpush2.msra.mxu0 0.0
    %2644 = vmatprep.subr.mxu0 0.0
    %2645 = vmatpush2.msra.mxu0 0.0
    %2646 = vmatprep.subr.mxu0 0.0
    %2647 = vmatpush2.msra.mxu0 0.0
    %2648 = vmatprep.subr.mxu0 0.0
    %2649 = vmatpush2.msra.mxu0 0.0
    %2650 = vmatprep.subr.mxu0 0.0
    %2651 = vmatpush2.msra.mxu0 0.0
    %2652 = vmatprep.subr.mxu0 0.0
    %2653 = vmatpush2.msra.mxu0 0.0
    %2654 = vmatprep.subr.mxu0 0.0
    %2655 = vmatpush2.msra.mxu0 0.0
    %2656 = vmatprep.subr.mxu0 0.0
    %2657 = vmatpush2.msra.mxu0 0.0
    %2658 = vmatprep.subr.mxu0 0.0
    %2659 = vmatpush2.msra.mxu0 0.0
    %2660 = vmatprep.subr.mxu0 0.0
    %2661 = vmatpush2.msra.mxu0 0.0
    %2662 = vmatprep.subr.mxu0 0.0
    %2663 = vmatpush2.msra.mxu0 0.0
    %2664 = vmatprep.subr.mxu0 0.0
    %2665 = vmatpush2.msra.mxu0 0.0
    %2666 = vmatprep.subr.mxu0 0.0
    %2667 = vmatpush2.msra.mxu0 0.0
    %2668 = vmatprep.subr.mxu0 0.0
    %2669 = vmatpush2.msra.mxu0 0.0
    %2670 = vmatprep.subr.mxu0 0.0
    %2671 = vmatpush2.msra.mxu0 0.0
    %2672 = vmatprep.subr.mxu0 0.0
    %2673 = vmatpush2.msra.mxu0 0.0
    %2674 = vmatprep.mubr.f32.mxu0 0.0
    %v2675 = vand.u32 %v1852, 4294901760
    %2676 = vmatmul.mubr.f32.gmra.mxu0 %v2675
    %v2677 = vpop.f32.mrf.mxu0
    %v2678 = vadd.f32 %v2604, %v2677
    %v2679 = vpop.f32.mrf.mxu0
    %2680 = vdwg.mxu0
    %2681 = vmatprep.subr.mxu0 0.0
    %2682 = vmatpush1.msra.mxu0 0.0
    %2683 = vmatprep.subr.mxu0 0.0
    %2684 = vmatpush1.msra.mxu0 0.0
    %2685 = vmatprep.subr.mxu0 0.0
    %2686 = vmatpush1.msra.mxu0 0.0
    %2687 = vmatprep.subr.mxu0 0.0
    %2688 = vmatpush1.msra.mxu0 0.0
    %2689 = vmatprep.subr.mxu0 0.0
    %2690 = vmatpush1.msra.mxu0 0.0
    %2691 = vmatprep.subr.mxu0 0.0
    %2692 = vmatpush1.msra.mxu0 0.0
    %2693 = vmatprep.subr.mxu0 0.0
    %2694 = vmatpush1.msra.mxu0 0.0
    %2695 = vmatprep.subr.mxu0 0.0
    %2696 = vmatpush1.msra.mxu0 0.0
    %2697 = vmatprep.subr.mxu0 0.0
    %2698 = vmatpush1.msra.mxu0 0.0
    %2699 = vmatprep.subr.mxu0 0.0
    %2700 = vmatpush1.msra.mxu0 0.0
    %2701 = vmatprep.subr.mxu0 0.0
    %2702 = vmatpush1.msra.mxu0 0.0
    %2703 = vmatprep.subr.mxu0 0.0
    %2704 = vmatpush1.msra.mxu0 0.0
    %2705 = vmatprep.subr.mxu0 0.0
    %2706 = vmatpush1.msra.mxu0 0.0
    %2707 = vmatprep.subr.mxu0 0.0
    %2708 = vmatpush1.msra.mxu0 0.0
    %2709 = vmatprep.subr.mxu0 0.0
    %2710 = vmatpush1.msra.mxu0 0.0
    %2711 = vmatprep.subr.mxu0 0.0
    %v2712 = vand.u32 %v2305, 4294901760
    %2713 = vmatpush1.msra.mxu0 %v2712
    %2714 = vmatprep.subr.mxu0 0.0
    %2715 = vmatpush2.msra.mxu0 0.0
    %2716 = vmatprep.subr.mxu0 0.0
    %2717 = vmatpush2.msra.mxu0 0.0
    %2718 = vmatprep.subr.mxu0 0.0
    %2719 = vmatpush2.msra.mxu0 0.0
    %2720 = vmatprep.subr.mxu0 0.0
    %2721 = vmatpush2.msra.mxu0 0.0
    %2722 = vmatprep.subr.mxu0 0.0
    %2723 = vmatpush2.msra.mxu0 0.0
    %2724 = vmatprep.subr.mxu0 0.0
    %2725 = vmatpush2.msra.mxu0 0.0
    %2726 = vmatprep.subr.mxu0 0.0
    %2727 = vmatpush2.msra.mxu0 0.0
    %2728 = vmatprep.subr.mxu0 0.0
    %2729 = vmatpush2.msra.mxu0 0.0
    %2730 = vmatprep.subr.mxu0 0.0
    %2731 = vmatpush2.msra.mxu0 0.0
    %2732 = vmatprep.subr.mxu0 0.0
    %2733 = vmatpush2.msra.mxu0 0.0
    %2734 = vmatprep.subr.mxu0 0.0
    %2735 = vmatpush2.msra.mxu0 0.0
    %2736 = vmatprep.subr.mxu0 0.0
    %2737 = vmatpush2.msra.mxu0 0.0
    %2738 = vmatprep.subr.mxu0 0.0
    %2739 = vmatpush2.msra.mxu0 0.0
    %2740 = vmatprep.subr.mxu0 0.0
    %2741 = vmatpush2.msra.mxu0 0.0
    %2742 = vmatprep.subr.mxu0 0.0
    %2743 = vmatpush2.msra.mxu0 0.0
    %2744 = vmatprep.subr.mxu0 0.0
    %2745 = vmatpush2.msra.mxu0 0.0
    %2746 = vmatprep.mubr.f32.mxu0 0.0
    %v2747 = vand.u32 %v1852, 4294901760
    %2748 = vmatmul.mubr.f32.gmra.mxu0 %v2747
    %v2749 = vpop.f32.mrf.mxu0
    %v2750 = vadd.f32 %v2678, %v2749
    %v2751 = vpop.f32.mrf.mxu0
    %2752 = vdwg.mxu0
    %v2753 = vadd.f32 %v2301, 3.0
    %v2754 = vmax.f32 %v2753, 0.0
    %v2755 = vmin.f32 %v2754, 6.0
    %v2756 = vmul.f32 %v2301, %v2755
    %v2757 = vmul.f32 %v2756, 0.16666667
    %v2758 = vadd.f32 %v2750, 3.0
    %v2759 = vmax.f32 %v2758, 0.0
    %v2760 = vmin.f32 %v2759, 6.0
    %v2761 = vmul.f32 %v2750, %v2760
    %v2762 = vmul.f32 %v2761, 0.16666667
    %2764 = vset.pattern.permute.xlu0 0
    %2765 = vperm.xlu0 %2764, %v42
    %v2766 = vpop.permute.xlu0 %2765
    %vm2768 = vcmask 64512
    %v2770 = vsel %vm2768, %v41, 0
    %2772 = vmatprep.subr.mxu0 0.0
    %2773 = vmatpush1.msra.mxu0 0.0
    %2774 = vmatprep.subr.mxu0 0.0
    %2775 = vmatpush1.msra.mxu0 0.0
    %2776 = vmatprep.subr.mxu0 0.0
    %2777 = vmatpush1.msra.mxu0 0.0
    %2778 = vmatprep.subr.mxu0 0.0
    %2779 = vmatpush1.msra.mxu0 0.0
    %2780 = vmatprep.subr.mxu0 0.0
    %2781 = vmatpush1.msra.mxu0 0.0
    %2782 = vmatprep.subr.mxu0 0.0
    %2783 = vmatpush1.msra.mxu0 0.0
    %2784 = vmatprep.subr.mxu0 0.0
    %2785 = vmatpush1.msra.mxu0 0.0
    %2786 = vmatprep.subr.mxu0 0.0
    %2787 = vmatpush1.msra.mxu0 0.0
    %2788 = vmatprep.subr.mxu0 0.0
    %2789 = vmatpush1.msra.mxu0 0.0
    %2790 = vmatprep.subr.mxu0 0.0
    %2791 = vmatpush1.msra.mxu0 0.0
    %2792 = vmatprep.subr.mxu0 0.0
    %2793 = vmatpush1.msra.mxu0 0.0
    %2794 = vmatprep.subr.mxu0 0.0
    %2795 = vmatpush1.msra.mxu0 0.0
    %2796 = vmatprep.subr.mxu0 0.0
    %2797 = vmatpush1.msra.mxu0 0.0
    %2798 = vmatprep.subr.mxu0 0.0
    %2799 = vmatpush1.msra.mxu0 0.0
    %2800 = vmatprep.subr.mxu0 0.0
    %2801 = vmatpush1.msra.mxu0 0.0
    %2802 = vmatprep.subr.mxu0 0.0
    %v2803 = vand.u32 %v2757, 4294901760
    %2804 = vmatpush1.msra.mxu0 %v2803
    %2805 = vmatprep.subr.mxu0 0.0
    %2806 = vmatpush2.msra.mxu0 0.0
    %2807 = vmatprep.subr.mxu0 0.0
    %2808 = vmatpush2.msra.mxu0 0.0
    %2809 = vmatprep.subr.mxu0 0.0
    %2810 = vmatpush2.msra.mxu0 0.0
    %2811 = vmatprep.subr.mxu0 0.0
    %2812 = vmatpush2.msra.mxu0 0.0
    %2813 = vmatprep.subr.mxu0 0.0
    %2814 = vmatpush2.msra.mxu0 0.0
    %2815 = vmatprep.subr.mxu0 0.0
    %2816 = vmatpush2.msra.mxu0 0.0
    %2817 = vmatprep.subr.mxu0 0.0
    %2818 = vmatpush2.msra.mxu0 0.0
    %2819 = vmatprep.subr.mxu0 0.0
    %2820 = vmatpush2.msra.mxu0 0.0
    %2821 = vmatprep.subr.mxu0 0.0
    %2822 = vmatpush2.msra.mxu0 0.0
    %2823 = vmatprep.subr.mxu0 0.0
    %2824 = vmatpush2.msra.mxu0 0.0
    %2825 = vmatprep.subr.mxu0 0.0
    %2826 = vmatpush2.msra.mxu0 0.0
    %2827 = vmatprep.subr.mxu0 0.0
    %2828 = vmatpush2.msra.mxu0 0.0
    %2829 = vmatprep.subr.mxu0 0.0
    %2830 = vmatpush2.msra.mxu0 0.0
    %2831 = vmatprep.subr.mxu0 0.0
    %2832 = vmatpush2.msra.mxu0 0.0
    %2833 = vmatprep.subr.mxu0 0.0
    %2834 = vmatpush2.msra.mxu0 0.0
    %2835 = vmatprep.subr.mxu0 0.0
    %2836 = vmatpush2.msra.mxu0 0.0
    %2837 = vmatprep.mubr.f32.mxu0 0.0
    %v2838 = vand.u32 %v2770, 4294901760
    %v2839 = vsub.f32 %v2770, %v2838
    %v2840 = vand.u32 %v2839, 4294901760
    %v2841 = vsub.f32 %v2839, %v2840
    %v2842 = vand.u32 %v2841, 4294901760
    %2843 = vmatmul.mubr.f32.gmra.mxu0 %v2842
    %v2844 = vpop.f32.mrf.mxu0
    %v2845 = vadd.f32 %v2766, %v2844
    %v2846 = vpop.f32.mrf.mxu0
    %2847 = vdwg.mxu0
    %2848 = vmatprep.subr.mxu0 0.0
    %2849 = vmatpush1.msra.mxu0 0.0
    %2850 = vmatprep.subr.mxu0 0.0
    %2851 = vmatpush1.msra.mxu0 0.0
    %2852 = vmatprep.subr.mxu0 0.0
    %2853 = vmatpush1.msra.mxu0 0.0
    %2854 = vmatprep.subr.mxu0 0.0
    %2855 = vmatpush1.msra.mxu0 0.0
    %2856 = vmatprep.subr.mxu0 0.0
    %2857 = vmatpush1.msra.mxu0 0.0
    %2858 = vmatprep.subr.mxu0 0.0
    %2859 = vmatpush1.msra.mxu0 0.0
    %2860 = vmatprep.subr.mxu0 0.0
    %2861 = vmatpush1.msra.mxu0 0.0
    %2862 = vmatprep.subr.mxu0 0.0
    %2863 = vmatpush1.msra.mxu0 0.0
    %2864 = vmatprep.subr.mxu0 0.0
    %2865 = vmatpush1.msra.mxu0 0.0
    %2866 = vmatprep.subr.mxu0 0.0
    %2867 = vmatpush1.msra.mxu0 0.0
    %2868 = vmatprep.subr.mxu0 0.0
    %2869 = vmatpush1.msra.mxu0 0.0
    %2870 = vmatprep.subr.mxu0 0.0
    %2871 = vmatpush1.msra.mxu0 0.0
    %2872 = vmatprep.subr.mxu0 0.0
    %2873 = vmatpush1.msra.mxu0 0.0
    %2874 = vmatprep.subr.mxu0 0.0
    %2875 = vmatpush1.msra.mxu0 0.0
    %2876 = vmatprep.subr.mxu0 0.0
    %2877 = vmatpush1.msra.mxu0 0.0
    %2878 = vmatprep.subr.mxu0 0.0
    %v2879 = vand.u32 %v2757, 4294901760
    %v2880 = vsub.f32 %v2757, %v2879
    %v2881 = vand.u32 %v2880, 4294901760
    %v2882 = vsub.f32 %v2880, %v2881
    %v2883 = vand.u32 %v2882, 4294901760
    %2884 = vmatpush1.msra.mxu0 %v2883
    %2885 = vmatprep.subr.mxu0 0.0
    %2886 = vmatpush2.msra.mxu0 0.0
    %2887 = vmatprep.subr.mxu0 0.0
    %2888 = vmatpush2.msra.mxu0 0.0
    %2889 = vmatprep.subr.mxu0 0.0
    %2890 = vmatpush2.msra.mxu0 0.0
    %2891 = vmatprep.subr.mxu0 0.0
    %2892 = vmatpush2.msra.mxu0 0.0
    %2893 = vmatprep.subr.mxu0 0.0
    %2894 = vmatpush2.msra.mxu0 0.0
    %2895 = vmatprep.subr.mxu0 0.0
    %2896 = vmatpush2.msra.mxu0 0.0
    %2897 = vmatprep.subr.mxu0 0.0
    %2898 = vmatpush2.msra.mxu0 0.0
    %2899 = vmatprep.subr.mxu0 0.0
    %2900 = vmatpush2.msra.mxu0 0.0
    %2901 = vmatprep.subr.mxu0 0.0
    %2902 = vmatpush2.msra.mxu0 0.0
    %2903 = vmatprep.subr.mxu0 0.0
    %2904 = vmatpush2.msra.mxu0 0.0
    %2905 = vmatprep.subr.mxu0 0.0
    %2906 = vmatpush2.msra.mxu0 0.0
    %2907 = vmatprep.subr.mxu0 0.0
    %2908 = vmatpush2.msra.mxu0 0.0
    %2909 = vmatprep.subr.mxu0 0.0
    %2910 = vmatpush2.msra.mxu0 0.0
    %2911 = vmatprep.subr.mxu0 0.0
    %2912 = vmatpush2.msra.mxu0 0.0
    %2913 = vmatprep.subr.mxu0 0.0
    %2914 = vmatpush2.msra.mxu0 0.0
    %2915 = vmatprep.subr.mxu0 0.0
    %2916 = vmatpush2.msra.mxu0 0.0
    %2917 = vmatprep.mubr.f32.mxu0 0.0
    %v2918 = vand.u32 %v2770, 4294901760
    %2919 = vmatmul.mubr.f32.gmra.mxu0 %v2918
    %v2920 = vpop.f32.mrf.mxu0
    %v2921 = vadd.f32 %v2845, %v2920
    %v2922 = vpop.f32.mrf.mxu0
    %2923 = vdwg.mxu0
    %2924 = vmatprep.subr.mxu0 0.0
    %2925 = vmatpush1.msra.mxu0 0.0
    %2926 = vmatprep.subr.mxu0 0.0
    %2927 = vmatpush1.msra.mxu0 0.0
    %2928 = vmatprep.subr.mxu0 0.0
    %2929 = vmatpush1.msra.mxu0 0.0
    %2930 = vmatprep.subr.mxu0 0.0
    %2931 = vmatpush1.msra.mxu0 0.0
    %2932 = vmatprep.subr.mxu0 0.0
    %2933 = vmatpush1.msra.mxu0 0.0
    %2934 = vmatprep.subr.mxu0 0.0
    %2935 = vmatpush1.msra.mxu0 0.0
    %2936 = vmatprep.subr.mxu0 0.0
    %2937 = vmatpush1.msra.mxu0 0.0
    %2938 = vmatprep.subr.mxu0 0.0
    %2939 = vmatpush1.msra.mxu0 0.0
    %2940 = vmatprep.subr.mxu0 0.0
    %2941 = vmatpush1.msra.mxu0 0.0
    %2942 = vmatprep.subr.mxu0 0.0
    %2943 = vmatpush1.msra.mxu0 0.0
    %2944 = vmatprep.subr.mxu0 0.0
    %2945 = vmatpush1.msra.mxu0 0.0
    %2946 = vmatprep.subr.mxu0 0.0
    %2947 = vmatpush1.msra.mxu0 0.0
    %2948 = vmatprep.subr.mxu0 0.0
    %2949 = vmatpush1.msra.mxu0 0.0
    %2950 = vmatprep.subr.mxu0 0.0
    %2951 = vmatpush1.msra.mxu0 0.0
    %2952 = vmatprep.subr.mxu0 0.0
    %2953 = vmatpush1.msra.mxu0 0.0
    %2954 = vmatprep.subr.mxu0 0.0
    %v2955 = vand.u32 %v2757, 4294901760
    %v2956 = vsub.f32 %v2757, %v2955
    %2957 = vmatpush1.msra.mxu0 %v2956
    %2958 = vmatprep.subr.mxu0 0.0
    %2959 = vmatpush2.msra.mxu0 0.0
    %2960 = vmatprep.subr.mxu0 0.0
    %2961 = vmatpush2.msra.mxu0 0.0
    %2962 = vmatprep.subr.mxu0 0.0
    %2963 = vmatpush2.msra.mxu0 0.0
    %2964 = vmatprep.subr.mxu0 0.0
    %2965 = vmatpush2.msra.mxu0 0.0
    %2966 = vmatprep.subr.mxu0 0.0
    %2967 = vmatpush2.msra.mxu0 0.0
    %2968 = vmatprep.subr.mxu0 0.0
    %2969 = vmatpush2.msra.mxu0 0.0
    %2970 = vmatprep.subr.mxu0 0.0
    %2971 = vmatpush2.msra.mxu0 0.0
    %2972 = vmatprep.subr.mxu0 0.0
    %2973 = vmatpush2.msra.mxu0 0.0
    %2974 = vmatprep.subr.mxu0 0.0
    %2975 = vmatpush2.msra.mxu0 0.0
    %2976 = vmatprep.subr.mxu0 0.0
    %2977 = vmatpush2.msra.mxu0 0.0
    %2978 = vmatprep.subr.mxu0 0.0
    %2979 = vmatpush2.msra.mxu0 0.0
    %2980 = vmatprep.subr.mxu0 0.0
    %2981 = vmatpush2.msra.mxu0 0.0
    %2982 = vmatprep.subr.mxu0 0.0
    %2983 = vmatpush2.msra.mxu0 0.0
    %2984 = vmatprep.subr.mxu0 0.0
    %2985 = vmatpush2.msra.mxu0 0.0
    %2986 = vmatprep.subr.mxu0 0.0
    %2987 = vmatpush2.msra.mxu0 0.0
    %2988 = vmatprep.subr.mxu0 0.0
    %2989 = vmatpush2.msra.mxu0 0.0
    %2990 = vmatprep.mubr.f32.mxu0 0.0
    %v2991 = vand.u32 %v2770, 4294901760
    %v2992 = vsub.f32 %v2770, %v2991
    %2993 = vmatmul.mubr.f32.gmra.mxu0 %v2992
    %v2994 = vpop.f32.mrf.mxu0
    %v2995 = vadd.f32 %v2921, %v2994
    %v2996 = vpop.f32.mrf.mxu0
    %2997 = vdwg.mxu0
    %2998 = vmatprep.subr.mxu0 0.0
    %2999 = vmatpush1.msra.mxu0 0.0
    %3000 = vmatprep.subr.mxu0 0.0
    %3001 = vmatpush1.msra.mxu0 0.0
    %3002 = vmatprep.subr.mxu0 0.0
    %3003 = vmatpush1.msra.mxu0 0.0
    %3004 = vmatprep.subr.mxu0 0.0
    %3005 = vmatpush1.msra.mxu0 0.0
    %3006 = vmatprep.subr.mxu0 0.0
    %3007 = vmatpush1.msra.mxu0 0.0
    %3008 = vmatprep.subr.mxu0 0.0
    %3009 = vmatpush1.msra.mxu0 0.0
    %3010 = vmatprep.subr.mxu0 0.0
    %3011 = vmatpush1.msra.mxu0 0.0
    %3012 = vmatprep.subr.mxu0 0.0
    %3013 = vmatpush1.msra.mxu0 0.0
    %3014 = vmatprep.subr.mxu0 0.0
    %3015 = vmatpush1.msra.mxu0 0.0
    %3016 = vmatprep.subr.mxu0 0.0
    %3017 = vmatpush1.msra.mxu0 0.0
    %3018 = vmatprep.subr.mxu0 0.0
    %3019 = vmatpush1.msra.mxu0 0.0
    %3020 = vmatprep.subr.mxu0 0.0
    %3021 = vmatpush1.msra.mxu0 0.0
    %3022 = vmatprep.subr.mxu0 0.0
    %3023 = vmatpush1.msra.mxu0 0.0
    %3024 = vmatprep.subr.mxu0 0.0
    %3025 = vmatpush1.msra.mxu0 0.0
    %3026 = vmatprep.subr.mxu0 0.0
    %3027 = vmatpush1.msra.mxu0 0.0
    %3028 = vmatprep.subr.mxu0 0.0
    %v3029 = vand.u32 %v2757, 4294901760
    %3030 = vmatpush1.msra.mxu0 %v3029
    %3031 = vmatprep.subr.mxu0 0.0
    %3032 = vmatpush2.msra.mxu0 0.0
    %3033 = vmatprep.subr.mxu0 0.0
    %3034 = vmatpush2.msra.mxu0 0.0
    %3035 = vmatprep.subr.mxu0 0.0
    %3036 = vmatpush2.msra.mxu0 0.0
    %3037 = vmatprep.subr.mxu0 0.0
    %3038 = vmatpush2.msra.mxu0 0.0
    %3039 = vmatprep.subr.mxu0 0.0
    %3040 = vmatpush2.msra.mxu0 0.0
    %3041 = vmatprep.subr.mxu0 0.0
    %3042 = vmatpush2.msra.mxu0 0.0
    %3043 = vmatprep.subr.mxu0 0.0
    %3044 = vmatpush2.msra.mxu0 0.0
    %3045 = vmatprep.subr.mxu0 0.0
    %3046 = vmatpush2.msra.mxu0 0.0
    %3047 = vmatprep.subr.mxu0 0.0
    %3048 = vmatpush2.msra.mxu0 0.0
    %3049 = vmatprep.subr.mxu0 0.0
    %3050 = vmatpush2.msra.mxu0 0.0
    %3051 = vmatprep.subr.mxu0 0.0
    %3052 = vmatpush2.msra.mxu0 0.0
    %3053 = vmatprep.subr.mxu0 0.0
    %3054 = vmatpush2.msra.mxu0 0.0
    %3055 = vmatprep.subr.mxu0 0.0
    %3056 = vmatpush2.msra.mxu0 0.0
    %3057 = vmatprep.subr.mxu0 0.0
    %3058 = vmatpush2.msra.mxu0 0.0
    %3059 = vmatprep.subr.mxu0 0.0
    %3060 = vmatpush2.msra.mxu0 0.0
    %3061 = vmatprep.subr.mxu0 0.0
    %3062 = vmatpush2.msra.mxu0 0.0
    %3063 = vmatprep.mubr.f32.mxu0 0.0
    %v3064 = vand.u32 %v2770, 4294901760
    %v3065 = vsub.f32 %v2770, %v3064
    %v3066 = vand.u32 %v3065, 4294901760
    %3067 = vmatmul.mubr.f32.gmra.mxu0 %v3066
    %v3068 = vpop.f32.mrf.mxu0
    %v3069 = vadd.f32 %v2995, %v3068
    %v3070 = vpop.f32.mrf.mxu0
    %3071 = vdwg.mxu0
    %3072 = vmatprep.subr.mxu0 0.0
    %3073 = vmatpush1.msra.mxu0 0.0
    %3074 = vmatprep.subr.mxu0 0.0
    %3075 = vmatpush1.msra.mxu0 0.0
    %3076 = vmatprep.subr.mxu0 0.0
    %3077 = vmatpush1.msra.mxu0 0.0
    %3078 = vmatprep.subr.mxu0 0.0
    %3079 = vmatpush1.msra.mxu0 0.0
    %3080 = vmatprep.subr.mxu0 0.0
    %3081 = vmatpush1.msra.mxu0 0.0
    %3082 = vmatprep.subr.mxu0 0.0
    %3083 = vmatpush1.msra.mxu0 0.0
    %3084 = vmatprep.subr.mxu0 0.0
    %3085 = vmatpush1.msra.mxu0 0.0
    %3086 = vmatprep.subr.mxu0 0.0
    %3087 = vmatpush1.msra.mxu0 0.0
    %3088 = vmatprep.subr.mxu0 0.0
    %3089 = vmatpush1.msra.mxu0 0.0
    %3090 = vmatprep.subr.mxu0 0.0
    %3091 = vmatpush1.msra.mxu0 0.0
    %3092 = vmatprep.subr.mxu0 0.0
    %3093 = vmatpush1.msra.mxu0 0.0
    %3094 = vmatprep.subr.mxu0 0.0
    %3095 = vmatpush1.msra.mxu0 0.0
    %3096 = vmatprep.subr.mxu0 0.0
    %3097 = vmatpush1.msra.mxu0 0.0
    %3098 = vmatprep.subr.mxu0 0.0
    %3099 = vmatpush1.msra.mxu0 0.0
    %3100 = vmatprep.subr.mxu0 0.0
    %3101 = vmatpush1.msra.mxu0 0.0
    %3102 = vmatprep.subr.mxu0 0.0
    %v3103 = vand.u32 %v2757, 4294901760
    %v3104 = vsub.f32 %v2757, %v3103
    %v3105 = vand.u32 %v3104, 4294901760
    %3106 = vmatpush1.msra.mxu0 %v3105
    %3107 = vmatprep.subr.mxu0 0.0
    %3108 = vmatpush2.msra.mxu0 0.0
    %3109 = vmatprep.subr.mxu0 0.0
    %3110 = vmatpush2.msra.mxu0 0.0
    %3111 = vmatprep.subr.mxu0 0.0
    %3112 = vmatpush2.msra.mxu0 0.0
    %3113 = vmatprep.subr.mxu0 0.0
    %3114 = vmatpush2.msra.mxu0 0.0
    %3115 = vmatprep.subr.mxu0 0.0
    %3116 = vmatpush2.msra.mxu0 0.0
    %3117 = vmatprep.subr.mxu0 0.0
    %3118 = vmatpush2.msra.mxu0 0.0
    %3119 = vmatprep.subr.mxu0 0.0
    %3120 = vmatpush2.msra.mxu0 0.0
    %3121 = vmatprep.subr.mxu0 0.0
    %3122 = vmatpush2.msra.mxu0 0.0
    %3123 = vmatprep.subr.mxu0 0.0
    %3124 = vmatpush2.msra.mxu0 0.0
    %3125 = vmatprep.subr.mxu0 0.0
    %3126 = vmatpush2.msra.mxu0 0.0
    %3127 = vmatprep.subr.mxu0 0.0
    %3128 = vmatpush2.msra.mxu0 0.0
    %3129 = vmatprep.subr.mxu0 0.0
    %3130 = vmatpush2.msra.mxu0 0.0
    %3131 = vmatprep.subr.mxu0 0.0
    %3132 = vmatpush2.msra.mxu0 0.0
    %3133 = vmatprep.subr.mxu0 0.0
    %3134 = vmatpush2.msra.mxu0 0.0
    %3135 = vmatprep.subr.mxu0 0.0
    %3136 = vmatpush2.msra.mxu0 0.0
    %3137 = vmatprep.subr.mxu0 0.0
    %3138 = vmatpush2.msra.mxu0 0.0
    %3139 = vmatprep.mubr.f32.mxu0 0.0
    %v3140 = vand.u32 %v2770, 4294901760
    %3141 = vmatmul.mubr.f32.gmra.mxu0 %v3140
    %v3142 = vpop.f32.mrf.mxu0
    %v3143 = vadd.f32 %v3069, %v3142
    %v3144 = vpop.f32.mrf.mxu0
    %3145 = vdwg.mxu0
    %3146 = vmatprep.subr.mxu0 0.0
    %3147 = vmatpush1.msra.mxu0 0.0
    %3148 = vmatprep.subr.mxu0 0.0
    %3149 = vmatpush1.msra.mxu0 0.0
    %3150 = vmatprep.subr.mxu0 0.0
    %3151 = vmatpush1.msra.mxu0 0.0
    %3152 = vmatprep.subr.mxu0 0.0
    %3153 = vmatpush1.msra.mxu0 0.0
    %3154 = vmatprep.subr.mxu0 0.0
    %3155 = vmatpush1.msra.mxu0 0.0
    %3156 = vmatprep.subr.mxu0 0.0
    %3157 = vmatpush1.msra.mxu0 0.0
    %3158 = vmatprep.subr.mxu0 0.0
    %3159 = vmatpush1.msra.mxu0 0.0
    %3160 = vmatprep.subr.mxu0 0.0
    %3161 = vmatpush1.msra.mxu0 0.0
    %3162 = vmatprep.subr.mxu0 0.0
    %3163 = vmatpush1.msra.mxu0 0.0
    %3164 = vmatprep.subr.mxu0 0.0
    %3165 = vmatpush1.msra.mxu0 0.0
    %3166 = vmatprep.subr.mxu0 0.0
    %3167 = vmatpush1.msra.mxu0 0.0
    %3168 = vmatprep.subr.mxu0 0.0
    %3169 = vmatpush1.msra.mxu0 0.0
    %3170 = vmatprep.subr.mxu0 0.0
    %3171 = vmatpush1.msra.mxu0 0.0
    %3172 = vmatprep.subr.mxu0 0.0
    %3173 = vmatpush1.msra.mxu0 0.0
    %3174 = vmatprep.subr.mxu0 0.0
    %3175 = vmatpush1.msra.mxu0 0.0
    %3176 = vmatprep.subr.mxu0 0.0
    %v3177 = vand.u32 %v2757, 4294901760
    %3178 = vmatpush1.msra.mxu0 %v3177
    %3179 = vmatprep.subr.mxu0 0.0
    %3180 = vmatpush2.msra.mxu0 0.0
    %3181 = vmatprep.subr.mxu0 0.0
    %3182 = vmatpush2.msra.mxu0 0.0
    %3183 = vmatprep.subr.mxu0 0.0
    %3184 = vmatpush2.msra.mxu0 0.0
    %3185 = vmatprep.subr.mxu0 0.0
    %3186 = vmatpush2.msra.mxu0 0.0
    %3187 = vmatprep.subr.mxu0 0.0
    %3188 = vmatpush2.msra.mxu0 0.0
    %3189 = vmatprep.subr.mxu0 0.0
    %3190 = vmatpush2.msra.mxu0 0.0
    %3191 = vmatprep.subr.mxu0 0.0
    %3192 = vmatpush2.msra.mxu0 0.0
    %3193 = vmatprep.subr.mxu0 0.0
    %3194 = vmatpush2.msra.mxu0 0.0
    %3195 = vmatprep.subr.mxu0 0.0
    %3196 = vmatpush2.msra.mxu0 0.0
    %3197 = vmatprep.subr.mxu0 0.0
    %3198 = vmatpush2.msra.mxu0 0.0
    %3199 = vmatprep.subr.mxu0 0.0
    %3200 = vmatpush2.msra.mxu0 0.0
    %3201 = vmatprep.subr.mxu0 0.0
    %3202 = vmatpush2.msra.mxu0 0.0
    %3203 = vmatprep.subr.mxu0 0.0
    %3204 = vmatpush2.msra.mxu0 0.0
    %3205 = vmatprep.subr.mxu0 0.0
    %3206 = vmatpush2.msra.mxu0 0.0
    %3207 = vmatprep.subr.mxu0 0.0
    %3208 = vmatpush2.msra.mxu0 0.0
    %3209 = vmatprep.subr.mxu0 0.0
    %3210 = vmatpush2.msra.mxu0 0.0
    %3211 = vmatprep.mubr.f32.mxu0 0.0
    %v3212 = vand.u32 %v2770, 4294901760
    %3213 = vmatmul.mubr.f32.gmra.mxu0 %v3212
    %v3214 = vpop.f32.mrf.mxu0
    %v3215 = vadd.f32 %v3143, %v3214
    %v3216 = vpop.f32.mrf.mxu0
    %3217 = vdwg.mxu0
    %v3218 = vxor.u32 %v3215, 2147483648
    %v3219 = vmul.f32 %v3218, 1.442695
    %v3220 = vpow.pop %v3219
    %v3221 = vadd.f32 %v3220, 1.0
    %v3222 = vrcp.pop %v3221
    %v3223 = vmul.f32 1.0, %v3222
    %3225 = vset.pattern.permute.xlu0 0
    %3226 = vperm.xlu0 %3225, %v44
    %v3227 = vpop.permute.xlu0 %3226
    %v3230 = vsel %vm2768, %v43, 0
    %3232 = vmatprep.subr.mxu0 0.0
    %3233 = vmatpush1.msra.mxu0 0.0
    %3234 = vmatprep.subr.mxu0 0.0
    %3235 = vmatpush1.msra.mxu0 0.0
    %3236 = vmatprep.subr.mxu0 0.0
    %3237 = vmatpush1.msra.mxu0 0.0
    %3238 = vmatprep.subr.mxu0 0.0
    %3239 = vmatpush1.msra.mxu0 0.0
    %3240 = vmatprep.subr.mxu0 0.0
    %3241 = vmatpush1.msra.mxu0 0.0
    %3242 = vmatprep.subr.mxu0 0.0
    %3243 = vmatpush1.msra.mxu0 0.0
    %3244 = vmatprep.subr.mxu0 0.0
    %3245 = vmatpush1.msra.mxu0 0.0
    %3246 = vmatprep.subr.mxu0 0.0
    %3247 = vmatpush1.msra.mxu0 0.0
    %3248 = vmatprep.subr.mxu0 0.0
    %3249 = vmatpush1.msra.mxu0 0.0
    %3250 = vmatprep.subr.mxu0 0.0
    %3251 = vmatpush1.msra.mxu0 0.0
    %3252 = vmatprep.subr.mxu0 0.0
    %3253 = vmatpush1.msra.mxu0 0.0
    %3254 = vmatprep.subr.mxu0 0.0
    %3255 = vmatpush1.msra.mxu0 0.0
    %3256 = vmatprep.subr.mxu0 0.0
    %3257 = vmatpush1.msra.mxu0 0.0
    %3258 = vmatprep.subr.mxu0 0.0
    %3259 = vmatpush1.msra.mxu0 0.0
    %3260 = vmatprep.subr.mxu0 0.0
    %3261 = vmatpush1.msra.mxu0 0.0
    %3262 = vmatprep.subr.mxu0 0.0
    %v3263 = vand.u32 %v2762, 4294901760
    %3264 = vmatpush1.msra.mxu0 %v3263
    %3265 = vmatprep.subr.mxu0 0.0
    %3266 = vmatpush2.msra.mxu0 0.0
    %3267 = vmatprep.subr.mxu0 0.0
    %3268 = vmatpush2.msra.mxu0 0.0
    %3269 = vmatprep.subr.mxu0 0.0
    %3270 = vmatpush2.msra.mxu0 0.0
    %3271 = vmatprep.subr.mxu0 0.0
    %3272 = vmatpush2.msra.mxu0 0.0
    %3273 = vmatprep.subr.mxu0 0.0
    %3274 = vmatpush2.msra.mxu0 0.0
    %3275 = vmatprep.subr.mxu0 0.0
    %3276 = vmatpush2.msra.mxu0 0.0
    %3277 = vmatprep.subr.mxu0 0.0
    %3278 = vmatpush2.msra.mxu0 0.0
    %3279 = vmatprep.subr.mxu0 0.0
    %3280 = vmatpush2.msra.mxu0 0.0
    %3281 = vmatprep.subr.mxu0 0.0
    %3282 = vmatpush2.msra.mxu0 0.0
    %3283 = vmatprep.subr.mxu0 0.0
    %3284 = vmatpush2.msra.mxu0 0.0
    %3285 = vmatprep.subr.mxu0 0.0
    %3286 = vmatpush2.msra.mxu0 0.0
    %3287 = vmatprep.subr.mxu0 0.0
    %3288 = vmatpush2.msra.mxu0 0.0
    %3289 = vmatprep.subr.mxu0 0.0
    %3290 = vmatpush2.msra.mxu0 0.0
    %3291 = vmatprep.subr.mxu0 0.0
    %3292 = vmatpush2.msra.mxu0 0.0
    %3293 = vmatprep.subr.mxu0 0.0
    %3294 = vmatpush2.msra.mxu0 0.0
    %3295 = vmatprep.subr.mxu0 0.0
    %3296 = vmatpush2.msra.mxu0 0.0
    %3297 = vmatprep.mubr.f32.mxu0 0.0
    %v3298 = vand.u32 %v3230, 4294901760
    %v3299 = vsub.f32 %v3230, %v3298
    %v3300 = vand.u32 %v3299, 4294901760
    %v3301 = vsub.f32 %v3299, %v3300
    %v3302 = vand.u32 %v3301, 4294901760
    %3303 = vmatmul.mubr.f32.gmra.mxu0 %v3302
    %v3304 = vpop.f32.mrf.mxu0
    %v3305 = vadd.f32 %v3227, %v3304
    %v3306 = vpop.f32.mrf.mxu0
    %3307 = vdwg.mxu0
    %3308 = vmatprep.subr.mxu0 0.0
    %3309 = vmatpush1.msra.mxu0 0.0
    %3310 = vmatprep.subr.mxu0 0.0
    %3311 = vmatpush1.msra.mxu0 0.0
    %3312 = vmatprep.subr.mxu0 0.0
    %3313 = vmatpush1.msra.mxu0 0.0
    %3314 = vmatprep.subr.mxu0 0.0
    %3315 = vmatpush1.msra.mxu0 0.0
    %3316 = vmatprep.subr.mxu0 0.0
    %3317 = vmatpush1.msra.mxu0 0.0
    %3318 = vmatprep.subr.mxu0 0.0
    %3319 = vmatpush1.msra.mxu0 0.0
    %3320 = vmatprep.subr.mxu0 0.0
    %3321 = vmatpush1.msra.mxu0 0.0
    %3322 = vmatprep.subr.mxu0 0.0
    %3323 = vmatpush1.msra.mxu0 0.0
    %3324 = vmatprep.subr.mxu0 0.0
    %3325 = vmatpush1.msra.mxu0 0.0
    %3326 = vmatprep.subr.mxu0 0.0
    %3327 = vmatpush1.msra.mxu0 0.0
    %3328 = vmatprep.subr.mxu0 0.0
    %3329 = vmatpush1.msra.mxu0 0.0
    %3330 = vmatprep.subr.mxu0 0.0
    %3331 = vmatpush1.msra.mxu0 0.0
    %3332 = vmatprep.subr.mxu0 0.0
    %3333 = vmatpush1.msra.mxu0 0.0
    %3334 = vmatprep.subr.mxu0 0.0
    %3335 = vmatpush1.msra.mxu0 0.0
    %3336 = vmatprep.subr.mxu0 0.0
    %3337 = vmatpush1.msra.mxu0 0.0
    %3338 = vmatprep.subr.mxu0 0.0
    %v3339 = vand.u32 %v2762, 4294901760
    %v3340 = vsub.f32 %v2762, %v3339
    %v3341 = vand.u32 %v3340, 4294901760
    %v3342 = vsub.f32 %v3340, %v3341
    %v3343 = vand.u32 %v3342, 4294901760
    %3344 = vmatpush1.msra.mxu0 %v3343
    %3345 = vmatprep.subr.mxu0 0.0
    %3346 = vmatpush2.msra.mxu0 0.0
    %3347 = vmatprep.subr.mxu0 0.0
    %3348 = vmatpush2.msra.mxu0 0.0
    %3349 = vmatprep.subr.mxu0 0.0
    %3350 = vmatpush2.msra.mxu0 0.0
    %3351 = vmatprep.subr.mxu0 0.0
    %3352 = vmatpush2.msra.mxu0 0.0
    %3353 = vmatprep.subr.mxu0 0.0
    %3354 = vmatpush2.msra.mxu0 0.0
    %3355 = vmatprep.subr.mxu0 0.0
    %3356 = vmatpush2.msra.mxu0 0.0
    %3357 = vmatprep.subr.mxu0 0.0
    %3358 = vmatpush2.msra.mxu0 0.0
    %3359 = vmatprep.subr.mxu0 0.0
    %3360 = vmatpush2.msra.mxu0 0.0
    %3361 = vmatprep.subr.mxu0 0.0
    %3362 = vmatpush2.msra.mxu0 0.0
    %3363 = vmatprep.subr.mxu0 0.0
    %3364 = vmatpush2.msra.mxu0 0.0
    %3365 = vmatprep.subr.mxu0 0.0
    %3366 = vmatpush2.msra.mxu0 0.0
    %3367 = vmatprep.subr.mxu0 0.0
    %3368 = vmatpush2.msra.mxu0 0.0
    %3369 = vmatprep.subr.mxu0 0.0
    %3370 = vmatpush2.msra.mxu0 0.0
    %3371 = vmatprep.subr.mxu0 0.0
    %3372 = vmatpush2.msra.mxu0 0.0
    %3373 = vmatprep.subr.mxu0 0.0
    %3374 = vmatpush2.msra.mxu0 0.0
    %3375 = vmatprep.subr.mxu0 0.0
    %3376 = vmatpush2.msra.mxu0 0.0
    %3377 = vmatprep.mubr.f32.mxu0 0.0
    %v3378 = vand.u32 %v3230, 4294901760
    %3379 = vmatmul.mubr.f32.gmra.mxu0 %v3378
    %v3380 = vpop.f32.mrf.mxu0
    %v3381 = vadd.f32 %v3305, %v3380
    %v3382 = vpop.f32.mrf.mxu0
    %3383 = vdwg.mxu0
    %3384 = vmatprep.subr.mxu0 0.0
    %3385 = vmatpush1.msra.mxu0 0.0
    %3386 = vmatprep.subr.mxu0 0.0
    %3387 = vmatpush1.msra.mxu0 0.0
    %3388 = vmatprep.subr.mxu0 0.0
    %3389 = vmatpush1.msra.mxu0 0.0
    %3390 = vmatprep.subr.mxu0 0.0
    %3391 = vmatpush1.msra.mxu0 0.0
    %3392 = vmatprep.subr.mxu0 0.0
    %3393 = vmatpush1.msra.mxu0 0.0
    %3394 = vmatprep.subr.mxu0 0.0
    %3395 = vmatpush1.msra.mxu0 0.0
    %3396 = vmatprep.subr.mxu0 0.0
    %3397 = vmatpush1.msra.mxu0 0.0
    %3398 = vmatprep.subr.mxu0 0.0
    %3399 = vmatpush1.msra.mxu0 0.0
    %3400 = vmatprep.subr.mxu0 0.0
    %3401 = vmatpush1.msra.mxu0 0.0
    %3402 = vmatprep.subr.mxu0 0.0
    %3403 = vmatpush1.msra.mxu0 0.0
    %3404 = vmatprep.subr.mxu0 0.0
    %3405 = vmatpush1.msra.mxu0 0.0
    %3406 = vmatprep.subr.mxu0 0.0
    %3407 = vmatpush1.msra.mxu0 0.0
    %3408 = vmatprep.subr.mxu0 0.0
    %3409 = vmatpush1.msra.mxu0 0.0
    %3410 = vmatprep.subr.mxu0 0.0
    %3411 = vmatpush1.msra.mxu0 0.0
    %3412 = vmatprep.subr.mxu0 0.0
    %3413 = vmatpush1.msra.mxu0 0.0
    %3414 = vmatprep.subr.mxu0 0.0
    %v3415 = vand.u32 %v2762, 4294901760
    %v3416 = vsub.f32 %v2762, %v3415
    %3417 = vmatpush1.msra.mxu0 %v3416
    %3418 = vmatprep.subr.mxu0 0.0
    %3419 = vmatpush2.msra.mxu0 0.0
    %3420 = vmatprep.subr.mxu0 0.0
    %3421 = vmatpush2.msra.mxu0 0.0
    %3422 = vmatprep.subr.mxu0 0.0
    %3423 = vmatpush2.msra.mxu0 0.0
    %3424 = vmatprep.subr.mxu0 0.0
    %3425 = vmatpush2.msra.mxu0 0.0
    %3426 = vmatprep.subr.mxu0 0.0
    %3427 = vmatpush2.msra.mxu0 0.0
    %3428 = vmatprep.subr.mxu0 0.0
    %3429 = vmatpush2.msra.mxu0 0.0
    %3430 = vmatprep.subr.mxu0 0.0
    %3431 = vmatpush2.msra.mxu0 0.0
    %3432 = vmatprep.subr.mxu0 0.0
    %3433 = vmatpush2.msra.mxu0 0.0
    %3434 = vmatprep.subr.mxu0 0.0
    %3435 = vmatpush2.msra.mxu0 0.0
    %3436 = vmatprep.subr.mxu0 0.0
    %3437 = vmatpush2.msra.mxu0 0.0
    %3438 = vmatprep.subr.mxu0 0.0
    %3439 = vmatpush2.msra.mxu0 0.0
    %3440 = vmatprep.subr.mxu0 0.0
    %3441 = vmatpush2.msra.mxu0 0.0
    %3442 = vmatprep.subr.mxu0 0.0
    %3443 = vmatpush2.msra.mxu0 0.0
    %3444 = vmatprep.subr.mxu0 0.0
    %3445 = vmatpush2.msra.mxu0 0.0
    %3446 = vmatprep.subr.mxu0 0.0
    %3447 = vmatpush2.msra.mxu0 0.0
    %3448 = vmatprep.subr.mxu0 0.0
    %3449 = vmatpush2.msra.mxu0 0.0
    %3450 = vmatprep.mubr.f32.mxu0 0.0
    %v3451 = vand.u32 %v3230, 4294901760
    %v3452 = vsub.f32 %v3230, %v3451
    %3453 = vmatmul.mubr.f32.gmra.mxu0 %v3452
    %v3454 = vpop.f32.mrf.mxu0
    %v3455 = vadd.f32 %v3381, %v3454
    %v3456 = vpop.f32.mrf.mxu0
    %3457 = vdwg.mxu0
    %3458 = vmatprep.subr.mxu0 0.0
    %3459 = vmatpush1.msra.mxu0 0.0
    %3460 = vmatprep.subr.mxu0 0.0
    %3461 = vmatpush1.msra.mxu0 0.0
    %3462 = vmatprep.subr.mxu0 0.0
    %3463 = vmatpush1.msra.mxu0 0.0
    %3464 = vmatprep.subr.mxu0 0.0
    %3465 = vmatpush1.msra.mxu0 0.0
    %3466 = vmatprep.subr.mxu0 0.0
    %3467 = vmatpush1.msra.mxu0 0.0
    %3468 = vmatprep.subr.mxu0 0.0
    %3469 = vmatpush1.msra.mxu0 0.0
    %3470 = vmatprep.subr.mxu0 0.0
    %3471 = vmatpush1.msra.mxu0 0.0
    %3472 = vmatprep.subr.mxu0 0.0
    %3473 = vmatpush1.msra.mxu0 0.0
    %3474 = vmatprep.subr.mxu0 0.0
    %3475 = vmatpush1.msra.mxu0 0.0
    %3476 = vmatprep.subr.mxu0 0.0
    %3477 = vmatpush1.msra.mxu0 0.0
    %3478 = vmatprep.subr.mxu0 0.0
    %3479 = vmatpush1.msra.mxu0 0.0
    %3480 = vmatprep.subr.mxu0 0.0
    %3481 = vmatpush1.msra.mxu0 0.0
    %3482 = vmatprep.subr.mxu0 0.0
    %3483 = vmatpush1.msra.mxu0 0.0
    %3484 = vmatprep.subr.mxu0 0.0
    %3485 = vmatpush1.msra.mxu0 0.0
    %3486 = vmatprep.subr.mxu0 0.0
    %3487 = vmatpush1.msra.mxu0 0.0
    %3488 = vmatprep.subr.mxu0 0.0
    %v3489 = vand.u32 %v2762, 4294901760
    %3490 = vmatpush1.msra.mxu0 %v3489
    %3491 = vmatprep.subr.mxu0 0.0
    %3492 = vmatpush2.msra.mxu0 0.0
    %3493 = vmatprep.subr.mxu0 0.0
    %3494 = vmatpush2.msra.mxu0 0.0
    %3495 = vmatprep.subr.mxu0 0.0
    %3496 = vmatpush2.msra.mxu0 0.0
    %3497 = vmatprep.subr.mxu0 0.0
    %3498 = vmatpush2.msra.mxu0 0.0
    %3499 = vmatprep.subr.mxu0 0.0
    %3500 = vmatpush2.msra.mxu0 0.0
    %3501 = vmatprep.subr.mxu0 0.0
    %3502 = vmatpush2.msra.mxu0 0.0
    %3503 = vmatprep.subr.mxu0 0.0
    %3504 = vmatpush2.msra.mxu0 0.0
    %3505 = vmatprep.subr.mxu0 0.0
    %3506 = vmatpush2.msra.mxu0 0.0
    %3507 = vmatprep.subr.mxu0 0.0
    %3508 = vmatpush2.msra.mxu0 0.0
    %3509 = vmatprep.subr.mxu0 0.0
    %3510 = vmatpush2.msra.mxu0 0.0
    %3511 = vmatprep.subr.mxu0 0.0
    %3512 = vmatpush2.msra.mxu0 0.0
    %3513 = vmatprep.subr.mxu0 0.0
    %3514 = vmatpush2.msra.mxu0 0.0
    %3515 = vmatprep.subr.mxu0 0.0
    %3516 = vmatpush2.msra.mxu0 0.0
    %3517 = vmatprep.subr.mxu0 0.0
    %3518 = vmatpush2.msra.mxu0 0.0
    %3519 = vmatprep.subr.mxu0 0.0
    %3520 = vmatpush2.msra.mxu0 0.0
    %3521 = vmatprep.subr.mxu0 0.0
    %3522 = vmatpush2.msra.mxu0 0.0
    %3523 = vmatprep.mubr.f32.mxu0 0.0
    %v3524 = vand.u32 %v3230, 4294901760
    %v3525 = vsub.f32 %v3230, %v3524
    %v3526 = vand.u32 %v3525, 4294901760
    %3527 = vmatmul.mubr.f32.gmra.mxu0 %v3526
    %v3528 = vpop.f32.mrf.mxu0
    %v3529 = vadd.f32 %v3455, %v3528
    %v3530 = vpop.f32.mrf.mxu0
    %3531 = vdwg.mxu0
    %3532 = vmatprep.subr.mxu0 0.0
    %3533 = vmatpush1.msra.mxu0 0.0
    %3534 = vmatprep.subr.mxu0 0.0
    %3535 = vmatpush1.msra.mxu0 0.0
    %3536 = vmatprep.subr.mxu0 0.0
    %3537 = vmatpush1.msra.mxu0 0.0
    %3538 = vmatprep.subr.mxu0 0.0
    %3539 = vmatpush1.msra.mxu0 0.0
    %3540 = vmatprep.subr.mxu0 0.0
    %3541 = vmatpush1.msra.mxu0 0.0
    %3542 = vmatprep.subr.mxu0 0.0
    %3543 = vmatpush1.msra.mxu0 0.0
    %3544 = vmatprep.subr.mxu0 0.0
    %3545 = vmatpush1.msra.mxu0 0.0
    %3546 = vmatprep.subr.mxu0 0.0
    %3547 = vmatpush1.msra.mxu0 0.0
    %3548 = vmatprep.subr.mxu0 0.0
    %3549 = vmatpush1.msra.mxu0 0.0
    %3550 = vmatprep.subr.mxu0 0.0
    %3551 = vmatpush1.msra.mxu0 0.0
    %3552 = vmatprep.subr.mxu0 0.0
    %3553 = vmatpush1.msra.mxu0 0.0
    %3554 = vmatprep.subr.mxu0 0.0
    %3555 = vmatpush1.msra.mxu0 0.0
    %3556 = vmatprep.subr.mxu0 0.0
    %3557 = vmatpush1.msra.mxu0 0.0
    %3558 = vmatprep.subr.mxu0 0.0
    %3559 = vmatpush1.msra.mxu0 0.0
    %3560 = vmatprep.subr.mxu0 0.0
    %3561 = vmatpush1.msra.mxu0 0.0
    %3562 = vmatprep.subr.mxu0 0.0
    %v3563 = vand.u32 %v2762, 4294901760
    %v3564 = vsub.f32 %v2762, %v3563
    %v3565 = vand.u32 %v3564, 4294901760
    %3566 = vmatpush1.msra.mxu0 %v3565
    %3567 = vmatprep.subr.mxu0 0.0
    %3568 = vmatpush2.msra.mxu0 0.0
    %3569 = vmatprep.subr.mxu0 0.0
    %3570 = vmatpush2.msra.mxu0 0.0
    %3571 = vmatprep.subr.mxu0 0.0
    %3572 = vmatpush2.msra.mxu0 0.0
    %3573 = vmatprep.subr.mxu0 0.0
    %3574 = vmatpush2.msra.mxu0 0.0
    %3575 = vmatprep.subr.mxu0 0.0
    %3576 = vmatpush2.msra.mxu0 0.0
    %3577 = vmatprep.subr.mxu0 0.0
    %3578 = vmatpush2.msra.mxu0 0.0
    %3579 = vmatprep.subr.mxu0 0.0
    %3580 = vmatpush2.msra.mxu0 0.0
    %3581 = vmatprep.subr.mxu0 0.0
    %3582 = vmatpush2.msra.mxu0 0.0
    %3583 = vmatprep.subr.mxu0 0.0
    %3584 = vmatpush2.msra.mxu0 0.0
    %3585 = vmatprep.subr.mxu0 0.0
    %3586 = vmatpush2.msra.mxu0 0.0
    %3587 = vmatprep.subr.mxu0 0.0
    %3588 = vmatpush2.msra.mxu0 0.0
    %3589 = vmatprep.subr.mxu0 0.0
    %3590 = vmatpush2.msra.mxu0 0.0
    %3591 = vmatprep.subr.mxu0 0.0
    %3592 = vmatpush2.msra.mxu0 0.0
    %3593 = vmatprep.subr.mxu0 0.0
    %3594 = vmatpush2.msra.mxu0 0.0
    %3595 = vmatprep.subr.mxu0 0.0
    %3596 = vmatpush2.msra.mxu0 0.0
    %3597 = vmatprep.subr.mxu0 0.0
    %3598 = vmatpush2.msra.mxu0 0.0
    %3599 = vmatprep.mubr.f32.mxu0 0.0
    %v3600 = vand.u32 %v3230, 4294901760
    %3601 = vmatmul.mubr.f32.gmra.mxu0 %v3600
    %v3602 = vpop.f32.mrf.mxu0
    %v3603 = vadd.f32 %v3529, %v3602
    %v3604 = vpop.f32.mrf.mxu0
    %3605 = vdwg.mxu0
    %3606 = vmatprep.subr.mxu0 0.0
    %3607 = vmatpush1.msra.mxu0 0.0
    %3608 = vmatprep.subr.mxu0 0.0
    %3609 = vmatpush1.msra.mxu0 0.0
    %3610 = vmatprep.subr.mxu0 0.0
    %3611 = vmatpush1.msra.mxu0 0.0
    %3612 = vmatprep.subr.mxu0 0.0
    %3613 = vmatpush1.msra.mxu0 0.0
    %3614 = vmatprep.subr.mxu0 0.0
    %3615 = vmatpush1.msra.mxu0 0.0
    %3616 = vmatprep.subr.mxu0 0.0
    %3617 = vmatpush1.msra.mxu0 0.0
    %3618 = vmatprep.subr.mxu0 0.0
    %3619 = vmatpush1.msra.mxu0 0.0
    %3620 = vmatprep.subr.mxu0 0.0
    %3621 = vmatpush1.msra.mxu0 0.0
    %3622 = vmatprep.subr.mxu0 0.0
    %3623 = vmatpush1.msra.mxu0 0.0
    %3624 = vmatprep.subr.mxu0 0.0
    %3625 = vmatpush1.msra.mxu0 0.0
    %3626 = vmatprep.subr.mxu0 0.0
    %3627 = vmatpush1.msra.mxu0 0.0
    %3628 = vmatprep.subr.mxu0 0.0
    %3629 = vmatpush1.msra.mxu0 0.0
    %3630 = vmatprep.subr.mxu0 0.0
    %3631 = vmatpush1.msra.mxu0 0.0
    %3632 = vmatprep.subr.mxu0 0.0
    %3633 = vmatpush1.msra.mxu0 0.0
    %3634 = vmatprep.subr.mxu0 0.0
    %3635 = vmatpush1.msra.mxu0 0.0
    %3636 = vmatprep.subr.mxu0 0.0
    %v3637 = vand.u32 %v2762, 4294901760
    %3638 = vmatpush1.msra.mxu0 %v3637
    %3639 = vmatprep.subr.mxu0 0.0
    %3640 = vmatpush2.msra.mxu0 0.0
    %3641 = vmatprep.subr.mxu0 0.0
    %3642 = vmatpush2.msra.mxu0 0.0
    %3643 = vmatprep.subr.mxu0 0.0
    %3644 = vmatpush2.msra.mxu0 0.0
    %3645 = vmatprep.subr.mxu0 0.0
    %3646 = vmatpush2.msra.mxu0 0.0
    %3647 = vmatprep.subr.mxu0 0.0
    %3648 = vmatpush2.msra.mxu0 0.0
    %3649 = vmatprep.subr.mxu0 0.0
    %3650 = vmatpush2.msra.mxu0 0.0
    %3651 = vmatprep.subr.mxu0 0.0
    %3652 = vmatpush2.msra.mxu0 0.0
    %3653 = vmatprep.subr.mxu0 0.0
    %3654 = vmatpush2.msra.mxu0 0.0
    %3655 = vmatprep.subr.mxu0 0.0
    %3656 = vmatpush2.msra.mxu0 0.0
    %3657 = vmatprep.subr.mxu0 0.0
    %3658 = vmatpush2.msra.mxu0 0.0
    %3659 = vmatprep.subr.mxu0 0.0
    %3660 = vmatpush2.msra.mxu0 0.0
    %3661 = vmatprep.subr.mxu0 0.0
    %3662 = vmatpush2.msra.mxu0 0.0
    %3663 = vmatprep.subr.mxu0 0.0
    %3664 = vmatpush2.msra.mxu0 0.0
    %3665 = vmatprep.subr.mxu0 0.0
    %3666 = vmatpush2.msra.mxu0 0.0
    %3667 = vmatprep.subr.mxu0 0.0
    %3668 = vmatpush2.msra.mxu0 0.0
    %3669 = vmatprep.subr.mxu0 0.0
    %3670 = vmatpush2.msra.mxu0 0.0
    %3671 = vmatprep.mubr.f32.mxu0 0.0
    %v3672 = vand.u32 %v3230, 4294901760
    %3673 = vmatmul.mubr.f32.gmra.mxu0 %v3672
    %v3674 = vpop.f32.mrf.mxu0
    %v3675 = vadd.f32 %v3603, %v3674
    %v3676 = vpop.f32.mrf.mxu0
    %3677 = vdwg.mxu0
    %v3678 = vxor.u32 %v3675, 2147483648
    %v3679 = vmul.f32 %v3678, 1.442695
    %v3680 = vpow.pop %v3679
    %v3681 = vadd.f32 %v3680, 1.0
    %v3682 = vrcp.pop %v3681
    %v3683 = vmul.f32 1.0, %v3682
    %vm3684 = vcmask 130048
    %v3686 = vsel %vm3684, %v3223, 0
    %3688 = vmatprep.subr.mxu0 0.0
    %3689 = vmatpush1.msra.mxu0 0.0
    %3690 = vmatprep.subr.mxu0 0.0
    %3691 = vmatpush1.msra.mxu0 0.0
    %3692 = vmatprep.subr.mxu0 0.0
    %3693 = vmatpush1.msra.mxu0 0.0
    %3694 = vmatprep.subr.mxu0 0.0
    %3695 = vmatpush1.msra.mxu0 0.0
    %3696 = vmatprep.subr.mxu0 0.0
    %3697 = vmatpush1.msra.mxu0 0.0
    %3698 = vmatprep.subr.mxu0 0.0
    %3699 = vmatpush1.msra.mxu0 0.0
    %3700 = vmatprep.subr.mxu0 0.0
    %3701 = vmatpush1.msra.mxu0 0.0
    %3702 = vmatprep.subr.mxu0 0.0
    %3703 = vmatpush1.msra.mxu0 0.0
    %3704 = vmatprep.subr.mxu0 0.0
    %3705 = vmatpush1.msra.mxu0 0.0
    %3706 = vmatprep.subr.mxu0 0.0
    %3707 = vmatpush1.msra.mxu0 0.0
    %3708 = vmatprep.subr.mxu0 0.0
    %3709 = vmatpush1.msra.mxu0 0.0
    %3710 = vmatprep.subr.mxu0 0.0
    %3711 = vmatpush1.msra.mxu0 0.0
    %3712 = vmatprep.subr.mxu0 0.0
    %3713 = vmatpush1.msra.mxu0 0.0
    %3714 = vmatprep.subr.mxu0 0.0
    %3715 = vmatpush1.msra.mxu0 0.0
    %v3716 = vand.u32 %v112, 4294901760
    %3717 = vmatprep.subr.mxu0 %v3716
    %v3718 = vand.u32 %v111, 4294901760
    %3719 = vmatpush1.msra.mxu0 %v3718
    %v3720 = vand.u32 %v110, 4294901760
    %3721 = vmatprep.subr.mxu0 %v3720
    %v3722 = vand.u32 %v109, 4294901760
    %3723 = vmatpush1.msra.mxu0 %v3722
    %3724 = vmatprep.subr.mxu0 0.0
    %3725 = vmatpush2.msra.mxu0 0.0
    %3726 = vmatprep.subr.mxu0 0.0
    %3727 = vmatpush2.msra.mxu0 0.0
    %3728 = vmatprep.subr.mxu0 0.0
    %3729 = vmatpush2.msra.mxu0 0.0
    %3730 = vmatprep.subr.mxu0 0.0
    %3731 = vmatpush2.msra.mxu0 0.0
    %3732 = vmatprep.subr.mxu0 0.0
    %3733 = vmatpush2.msra.mxu0 0.0
    %3734 = vmatprep.subr.mxu0 0.0
    %3735 = vmatpush2.msra.mxu0 0.0
    %3736 = vmatprep.subr.mxu0 0.0
    %3737 = vmatpush2.msra.mxu0 0.0
    %3738 = vmatprep.subr.mxu0 0.0
    %3739 = vmatpush2.msra.mxu0 0.0
    %3740 = vmatprep.subr.mxu0 0.0
    %3741 = vmatpush2.msra.mxu0 0.0
    %3742 = vmatprep.subr.mxu0 0.0
    %3743 = vmatpush2.msra.mxu0 0.0
    %3744 = vmatprep.subr.mxu0 0.0
    %3745 = vmatpush2.msra.mxu0 0.0
    %3746 = vmatprep.subr.mxu0 0.0
    %3747 = vmatpush2.msra.mxu0 0.0
    %3748 = vmatprep.subr.mxu0 0.0
    %3749 = vmatpush2.msra.mxu0 0.0
    %3750 = vmatprep.subr.mxu0 0.0
    %3751 = vmatpush2.msra.mxu0 0.0
    %3752 = vmatprep.subr.mxu0 0.0
    %3753 = vmatpush2.msra.mxu0 0.0
    %3754 = vmatprep.subr.mxu0 0.0
    %3755 = vmatpush2.msra.mxu0 0.0
    %3756 = vmatprep.mubr.f32.mxu0 0.0
    %v3757 = vand.u32 %v3686, 4294901760
    %v3758 = vsub.f32 %v3686, %v3757
    %v3759 = vand.u32 %v3758, 4294901760
    %v3760 = vsub.f32 %v3758, %v3759
    %v3761 = vand.u32 %v3760, 4294901760
    %3762 = vmatmul.mubr.f32.gmra.mxu0 %v3761
    %v3763 = vpop.f32.mrf.mxu0
    %v3764 = vadd.f32 0.0, %v3763
    %v3765 = vpop.f32.mrf.mxu0
    %v3766 = vadd.f32 0.0, %v3765
    %3767 = vdwg.mxu0
    %3768 = vmatprep.subr.mxu0 0.0
    %3769 = vmatpush1.msra.mxu0 0.0
    %3770 = vmatprep.subr.mxu0 0.0
    %3771 = vmatpush1.msra.mxu0 0.0
    %3772 = vmatprep.subr.mxu0 0.0
    %3773 = vmatpush1.msra.mxu0 0.0
    %3774 = vmatprep.subr.mxu0 0.0
    %3775 = vmatpush1.msra.mxu0 0.0
    %3776 = vmatprep.subr.mxu0 0.0
    %3777 = vmatpush1.msra.mxu0 0.0
    %3778 = vmatprep.subr.mxu0 0.0
    %3779 = vmatpush1.msra.mxu0 0.0
    %3780 = vmatprep.subr.mxu0 0.0
    %3781 = vmatpush1.msra.mxu0 0.0
    %3782 = vmatprep.subr.mxu0 0.0
    %3783 = vmatpush1.msra.mxu0 0.0
    %3784 = vmatprep.subr.mxu0 0.0
    %3785 = vmatpush1.msra.mxu0 0.0
    %3786 = vmatprep.subr.mxu0 0.0
    %3787 = vmatpush1.msra.mxu0 0.0
    %3788 = vmatprep.subr.mxu0 0.0
    %3789 = vmatpush1.msra.mxu0 0.0
    %3790 = vmatprep.subr.mxu0 0.0
    %3791 = vmatpush1.msra.mxu0 0.0
    %3792 = vmatprep.subr.mxu0 0.0
    %3793 = vmatpush1.msra.mxu0 0.0
    %3794 = vmatprep.subr.mxu0 0.0
    %3795 = vmatpush1.msra.mxu0 0.0
    %v3796 = vand.u32 %v112, 4294901760
    %v3797 = vsub.f32 %v112, %v3796
    %v3798 = vand.u32 %v3797, 4294901760
    %v3799 = vsub.f32 %v3797, %v3798
    %v3800 = vand.u32 %v3799, 4294901760
    %3801 = vmatprep.subr.mxu0 %v3800
    %v3802 = vand.u32 %v111, 4294901760
    %v3803 = vsub.f32 %v111, %v3802
    %v3804 = vand.u32 %v3803, 4294901760
    %v3805 = vsub.f32 %v3803, %v3804
    %v3806 = vand.u32 %v3805, 4294901760
    %3807 = vmatpush1.msra.mxu0 %v3806
    %v3808 = vand.u32 %v110, 4294901760
    %v3809 = vsub.f32 %v110, %v3808
    %v3810 = vand.u32 %v3809, 4294901760
    %v3811 = vsub.f32 %v3809, %v3810
    %v3812 = vand.u32 %v3811, 4294901760
    %3813 = vmatprep.subr.mxu0 %v3812
    %v3814 = vand.u32 %v109, 4294901760
    %v3815 = vsub.f32 %v109, %v3814
    %v3816 = vand.u32 %v3815, 4294901760
    %v3817 = vsub.f32 %v3815, %v3816
    %v3818 = vand.u32 %v3817, 4294901760
    %3819 = vmatpush1.msra.mxu0 %v3818
    %3820 = vmatprep.subr.mxu0 0.0
    %3821 = vmatpush2.msra.mxu0 0.0
    %3822 = vmatprep.subr.mxu0 0.0
    %3823 = vmatpush2.msra.mxu0 0.0
    %3824 = vmatprep.subr.mxu0 0.0
    %3825 = vmatpush2.msra.mxu0 0.0
    %3826 = vmatprep.subr.mxu0 0.0
    %3827 = vmatpush2.msra.mxu0 0.0
    %3828 = vmatprep.subr.mxu0 0.0
    %3829 = vmatpush2.msra.mxu0 0.0
    %3830 = vmatprep.subr.mxu0 0.0
    %3831 = vmatpush2.msra.mxu0 0.0
    %3832 = vmatprep.subr.mxu0 0.0
    %3833 = vmatpush2.msra.mxu0 0.0
    %3834 = vmatprep.subr.mxu0 0.0
    %3835 = vmatpush2.msra.mxu0 0.0
    %3836 = vmatprep.subr.mxu0 0.0
    %3837 = vmatpush2.msra.mxu0 0.0
    %3838 = vmatprep.subr.mxu0 0.0
    %3839 = vmatpush2.msra.mxu0 0.0
    %3840 = vmatprep.subr.mxu0 0.0
    %3841 = vmatpush2.msra.mxu0 0.0
    %3842 = vmatprep.subr.mxu0 0.0
    %3843 = vmatpush2.msra.mxu0 0.0
    %3844 = vmatprep.subr.mxu0 0.0
    %3845 = vmatpush2.msra.mxu0 0.0
    %3846 = vmatprep.subr.mxu0 0.0
    %3847 = vmatpush2.msra.mxu0 0.0
    %3848 = vmatprep.subr.mxu0 0.0
    %3849 = vmatpush2.msra.mxu0 0.0
    %3850 = vmatprep.subr.mxu0 0.0
    %3851 = vmatpush2.msra.mxu0 0.0
    %3852 = vmatprep.mubr.f32.mxu0 0.0
    %v3853 = vand.u32 %v3686, 4294901760
    %3854 = vmatmul.mubr.f32.gmra.mxu0 %v3853
    %v3855 = vpop.f32.mrf.mxu0
    %v3856 = vadd.f32 %v3764, %v3855
    %v3857 = vpop.f32.mrf.mxu0
    %v3858 = vadd.f32 %v3766, %v3857
    %3859 = vdwg.mxu0
    %3860 = vmatprep.subr.mxu0 0.0
    %3861 = vmatpush1.msra.mxu0 0.0
    %3862 = vmatprep.subr.mxu0 0.0
    %3863 = vmatpush1.msra.mxu0 0.0
    %3864 = vmatprep.subr.mxu0 0.0
    %3865 = vmatpush1.msra.mxu0 0.0
    %3866 = vmatprep.subr.mxu0 0.0
    %3867 = vmatpush1.msra.mxu0 0.0
    %3868 = vmatprep.subr.mxu0 0.0
    %3869 = vmatpush1.msra.mxu0 0.0
    %3870 = vmatprep.subr.mxu0 0.0
    %3871 = vmatpush1.msra.mxu0 0.0
    %3872 = vmatprep.subr.mxu0 0.0
    %3873 = vmatpush1.msra.mxu0 0.0
    %3874 = vmatprep.subr.mxu0 0.0
    %3875 = vmatpush1.msra.mxu0 0.0
    %3876 = vmatprep.subr.mxu0 0.0
    %3877 = vmatpush1.msra.mxu0 0.0
    %3878 = vmatprep.subr.mxu0 0.0
    %3879 = vmatpush1.msra.mxu0 0.0
    %3880 = vmatprep.subr.mxu0 0.0
    %3881 = vmatpush1.msra.mxu0 0.0
    %3882 = vmatprep.subr.mxu0 0.0
    %3883 = vmatpush1.msra.mxu0 0.0
    %3884 = vmatprep.subr.mxu0 0.0
    %3885 = vmatpush1.msra.mxu0 0.0
    %3886 = vmatprep.subr.mxu0 0.0
    %3887 = vmatpush1.msra.mxu0 0.0
    %v3888 = vand.u32 %v112, 4294901760
    %v3889 = vsub.f32 %v112, %v3888
    %3890 = vmatprep.subr.mxu0 %v3889
    %v3891 = vand.u32 %v111, 4294901760
    %v3892 = vsub.f32 %v111, %v3891
    %3893 = vmatpush1.msra.mxu0 %v3892
    %v3894 = vand.u32 %v110, 4294901760
    %v3895 = vsub.f32 %v110, %v3894
    %3896 = vmatprep.subr.mxu0 %v3895
    %v3897 = vand.u32 %v109, 4294901760
    %v3898 = vsub.f32 %v109, %v3897
    %3899 = vmatpush1.msra.mxu0 %v3898
    %3900 = vmatprep.subr.mxu0 0.0
    %3901 = vmatpush2.msra.mxu0 0.0
    %3902 = vmatprep.subr.mxu0 0.0
    %3903 = vmatpush2.msra.mxu0 0.0
    %3904 = vmatprep.subr.mxu0 0.0
    %3905 = vmatpush2.msra.mxu0 0.0
    %3906 = vmatprep.subr.mxu0 0.0
    %3907 = vmatpush2.msra.mxu0 0.0
    %3908 = vmatprep.subr.mxu0 0.0
    %3909 = vmatpush2.msra.mxu0 0.0
    %3910 = vmatprep.subr.mxu0 0.0
    %3911 = vmatpush2.msra.mxu0 0.0
    %3912 = vmatprep.subr.mxu0 0.0
    %3913 = vmatpush2.msra.mxu0 0.0
    %3914 = vmatprep.subr.mxu0 0.0
    %3915 = vmatpush2.msra.mxu0 0.0
    %3916 = vmatprep.subr.mxu0 0.0
    %3917 = vmatpush2.msra.mxu0 0.0
    %3918 = vmatprep.subr.mxu0 0.0
    %3919 = vmatpush2.msra.mxu0 0.0
    %3920 = vmatprep.subr.mxu0 0.0
    %3921 = vmatpush2.msra.mxu0 0.0
    %3922 = vmatprep.subr.mxu0 0.0
    %3923 = vmatpush2.msra.mxu0 0.0
    %3924 = vmatprep.subr.mxu0 0.0
    %3925 = vmatpush2.msra.mxu0 0.0
    %3926 = vmatprep.subr.mxu0 0.0
    %3927 = vmatpush2.msra.mxu0 0.0
    %3928 = vmatprep.subr.mxu0 0.0
    %3929 = vmatpush2.msra.mxu0 0.0
    %3930 = vmatprep.subr.mxu0 0.0
    %3931 = vmatpush2.msra.mxu0 0.0
    %3932 = vmatprep.mubr.f32.mxu0 0.0
    %v3933 = vand.u32 %v3686, 4294901760
    %v3934 = vsub.f32 %v3686, %v3933
    %3935 = vmatmul.mubr.f32.gmra.mxu0 %v3934
    %v3936 = vpop.f32.mrf.mxu0
    %v3937 = vadd.f32 %v3856, %v3936
    %v3938 = vpop.f32.mrf.mxu0
    %v3939 = vadd.f32 %v3858, %v3938
    %3940 = vdwg.mxu0
    %3941 = vmatprep.subr.mxu0 0.0
    %3942 = vmatpush1.msra.mxu0 0.0
    %3943 = vmatprep.subr.mxu0 0.0
    %3944 = vmatpush1.msra.mxu0 0.0
    %3945 = vmatprep.subr.mxu0 0.0
    %3946 = vmatpush1.msra.mxu0 0.0
    %3947 = vmatprep.subr.mxu0 0.0
    %3948 = vmatpush1.msra.mxu0 0.0
    %3949 = vmatprep.subr.mxu0 0.0
    %3950 = vmatpush1.msra.mxu0 0.0
    %3951 = vmatprep.subr.mxu0 0.0
    %3952 = vmatpush1.msra.mxu0 0.0
    %3953 = vmatprep.subr.mxu0 0.0
    %3954 = vmatpush1.msra.mxu0 0.0
    %3955 = vmatprep.subr.mxu0 0.0
    %3956 = vmatpush1.msra.mxu0 0.0
    %3957 = vmatprep.subr.mxu0 0.0
    %3958 = vmatpush1.msra.mxu0 0.0
    %3959 = vmatprep.subr.mxu0 0.0
    %3960 = vmatpush1.msra.mxu0 0.0
    %3961 = vmatprep.subr.mxu0 0.0
    %3962 = vmatpush1.msra.mxu0 0.0
    %3963 = vmatprep.subr.mxu0 0.0
    %3964 = vmatpush1.msra.mxu0 0.0
    %3965 = vmatprep.subr.mxu0 0.0
    %3966 = vmatpush1.msra.mxu0 0.0
    %3967 = vmatprep.subr.mxu0 0.0
    %3968 = vmatpush1.msra.mxu0 0.0
    %v3969 = vand.u32 %v112, 4294901760
    %3970 = vmatprep.subr.mxu0 %v3969
    %v3971 = vand.u32 %v111, 4294901760
    %3972 = vmatpush1.msra.mxu0 %v3971
    %v3973 = vand.u32 %v110, 4294901760
    %3974 = vmatprep.subr.mxu0 %v3973
    %v3975 = vand.u32 %v109, 4294901760
    %3976 = vmatpush1.msra.mxu0 %v3975
    %3977 = vmatprep.subr.mxu0 0.0
    %3978 = vmatpush2.msra.mxu0 0.0
    %3979 = vmatprep.subr.mxu0 0.0
    %3980 = vmatpush2.msra.mxu0 0.0
    %3981 = vmatprep.subr.mxu0 0.0
    %3982 = vmatpush2.msra.mxu0 0.0
    %3983 = vmatprep.subr.mxu0 0.0
    %3984 = vmatpush2.msra.mxu0 0.0
    %3985 = vmatprep.subr.mxu0 0.0
    %3986 = vmatpush2.msra.mxu0 0.0
    %3987 = vmatprep.subr.mxu0 0.0
    %3988 = vmatpush2.msra.mxu0 0.0
    %3989 = vmatprep.subr.mxu0 0.0
    %3990 = vmatpush2.msra.mxu0 0.0
    %3991 = vmatprep.subr.mxu0 0.0
    %3992 = vmatpush2.msra.mxu0 0.0
    %3993 = vmatprep.subr.mxu0 0.0
    %3994 = vmatpush2.msra.mxu0 0.0
    %3995 = vmatprep.subr.mxu0 0.0
    %3996 = vmatpush2.msra.mxu0 0.0
    %3997 = vmatprep.subr.mxu0 0.0
    %3998 = vmatpush2.msra.mxu0 0.0
    %3999 = vmatprep.subr.mxu0 0.0
    %4000 = vmatpush2.msra.mxu0 0.0
    %4001 = vmatprep.subr.mxu0 0.0
    %4002 = vmatpush2.msra.mxu0 0.0
    %4003 = vmatprep.subr.mxu0 0.0
    %4004 = vmatpush2.msra.mxu0 0.0
    %4005 = vmatprep.subr.mxu0 0.0
    %4006 = vmatpush2.msra.mxu0 0.0
    %4007 = vmatprep.subr.mxu0 0.0
    %4008 = vmatpush2.msra.mxu0 0.0
    %4009 = vmatprep.mubr.f32.mxu0 0.0
    %v4010 = vand.u32 %v3686, 4294901760
    %v4011 = vsub.f32 %v3686, %v4010
    %v4012 = vand.u32 %v4011, 4294901760
    %4013 = vmatmul.mubr.f32.gmra.mxu0 %v4012
    %v4014 = vpop.f32.mrf.mxu0
    %v4015 = vadd.f32 %v3937, %v4014
    %v4016 = vpop.f32.mrf.mxu0
    %v4017 = vadd.f32 %v3939, %v4016
    %4018 = vdwg.mxu0
    %4019 = vmatprep.subr.mxu0 0.0
    %4020 = vmatpush1.msra.mxu0 0.0
    %4021 = vmatprep.subr.mxu0 0.0
    %4022 = vmatpush1.msra.mxu0 0.0
    %4023 = vmatprep.subr.mxu0 0.0
    %4024 = vmatpush1.msra.mxu0 0.0
    %4025 = vmatprep.subr.mxu0 0.0
    %4026 = vmatpush1.msra.mxu0 0.0
    %4027 = vmatprep.subr.mxu0 0.0
    %4028 = vmatpush1.msra.mxu0 0.0
    %4029 = vmatprep.subr.mxu0 0.0
    %4030 = vmatpush1.msra.mxu0 0.0
    %4031 = vmatprep.subr.mxu0 0.0
    %4032 = vmatpush1.msra.mxu0 0.0
    %4033 = vmatprep.subr.mxu0 0.0
    %4034 = vmatpush1.msra.mxu0 0.0
    %4035 = vmatprep.subr.mxu0 0.0
    %4036 = vmatpush1.msra.mxu0 0.0
    %4037 = vmatprep.subr.mxu0 0.0
    %4038 = vmatpush1.msra.mxu0 0.0
    %4039 = vmatprep.subr.mxu0 0.0
    %4040 = vmatpush1.msra.mxu0 0.0
    %4041 = vmatprep.subr.mxu0 0.0
    %4042 = vmatpush1.msra.mxu0 0.0
    %4043 = vmatprep.subr.mxu0 0.0
    %4044 = vmatpush1.msra.mxu0 0.0
    %4045 = vmatprep.subr.mxu0 0.0
    %4046 = vmatpush1.msra.mxu0 0.0
    %v4047 = vand.u32 %v112, 4294901760
    %v4048 = vsub.f32 %v112, %v4047
    %v4049 = vand.u32 %v4048, 4294901760
    %4050 = vmatprep.subr.mxu0 %v4049
    %v4051 = vand.u32 %v111, 4294901760
    %v4052 = vsub.f32 %v111, %v4051
    %v4053 = vand.u32 %v4052, 4294901760
    %4054 = vmatpush1.msra.mxu0 %v4053
    %v4055 = vand.u32 %v110, 4294901760
    %v4056 = vsub.f32 %v110, %v4055
    %v4057 = vand.u32 %v4056, 4294901760
    %4058 = vmatprep.subr.mxu0 %v4057
    %v4059 = vand.u32 %v109, 4294901760
    %v4060 = vsub.f32 %v109, %v4059
    %v4061 = vand.u32 %v4060, 4294901760
    %4062 = vmatpush1.msra.mxu0 %v4061
    %4063 = vmatprep.subr.mxu0 0.0
    %4064 = vmatpush2.msra.mxu0 0.0
    %4065 = vmatprep.subr.mxu0 0.0
    %4066 = vmatpush2.msra.mxu0 0.0
    %4067 = vmatprep.subr.mxu0 0.0
    %4068 = vmatpush2.msra.mxu0 0.0
    %4069 = vmatprep.subr.mxu0 0.0
    %4070 = vmatpush2.msra.mxu0 0.0
    %4071 = vmatprep.subr.mxu0 0.0
    %4072 = vmatpush2.msra.mxu0 0.0
    %4073 = vmatprep.subr.mxu0 0.0
    %4074 = vmatpush2.msra.mxu0 0.0
    %4075 = vmatprep.subr.mxu0 0.0
    %4076 = vmatpush2.msra.mxu0 0.0
    %4077 = vmatprep.subr.mxu0 0.0
    %4078 = vmatpush2.msra.mxu0 0.0
    %4079 = vmatprep.subr.mxu0 0.0
    %4080 = vmatpush2.msra.mxu0 0.0
    %4081 = vmatprep.subr.mxu0 0.0
    %4082 = vmatpush2.msra.mxu0 0.0
    %4083 = vmatprep.subr.mxu0 0.0
    %4084 = vmatpush2.msra.mxu0 0.0
    %4085 = vmatprep.subr.mxu0 0.0
    %4086 = vmatpush2.msra.mxu0 0.0
    %4087 = vmatprep.subr.mxu0 0.0
    %4088 = vmatpush2.msra.mxu0 0.0
    %4089 = vmatprep.subr.mxu0 0.0
    %4090 = vmatpush2.msra.mxu0 0.0
    %4091 = vmatprep.subr.mxu0 0.0
    %4092 = vmatpush2.msra.mxu0 0.0
    %4093 = vmatprep.subr.mxu0 0.0
    %4094 = vmatpush2.msra.mxu0 0.0
    %4095 = vmatprep.mubr.f32.mxu0 0.0
    %v4096 = vand.u32 %v3686, 4294901760
    %4097 = vmatmul.mubr.f32.gmra.mxu0 %v4096
    %v4098 = vpop.f32.mrf.mxu0
    %v4099 = vadd.f32 %v4015, %v4098
    %v4100 = vpop.f32.mrf.mxu0
    %v4101 = vadd.f32 %v4017, %v4100
    %4102 = vdwg.mxu0
    %4103 = vmatprep.subr.mxu0 0.0
    %4104 = vmatpush1.msra.mxu0 0.0
    %4105 = vmatprep.subr.mxu0 0.0
    %4106 = vmatpush1.msra.mxu0 0.0
    %4107 = vmatprep.subr.mxu0 0.0
    %4108 = vmatpush1.msra.mxu0 0.0
    %4109 = vmatprep.subr.mxu0 0.0
    %4110 = vmatpush1.msra.mxu0 0.0
    %4111 = vmatprep.subr.mxu0 0.0
    %4112 = vmatpush1.msra.mxu0 0.0
    %4113 = vmatprep.subr.mxu0 0.0
    %4114 = vmatpush1.msra.mxu0 0.0
    %4115 = vmatprep.subr.mxu0 0.0
    %4116 = vmatpush1.msra.mxu0 0.0
    %4117 = vmatprep.subr.mxu0 0.0
    %4118 = vmatpush1.msra.mxu0 0.0
    %4119 = vmatprep.subr.mxu0 0.0
    %4120 = vmatpush1.msra.mxu0 0.0
    %4121 = vmatprep.subr.mxu0 0.0
    %4122 = vmatpush1.msra.mxu0 0.0
    %4123 = vmatprep.subr.mxu0 0.0
    %4124 = vmatpush1.msra.mxu0 0.0
    %4125 = vmatprep.subr.mxu0 0.0
    %4126 = vmatpush1.msra.mxu0 0.0
    %4127 = vmatprep.subr.mxu0 0.0
    %4128 = vmatpush1.msra.mxu0 0.0
    %4129 = vmatprep.subr.mxu0 0.0
    %4130 = vmatpush1.msra.mxu0 0.0
    %v4131 = vand.u32 %v112, 4294901760
    %4132 = vmatprep.subr.mxu0 %v4131
    %v4133 = vand.u32 %v111, 4294901760
    %4134 = vmatpush1.msra.mxu0 %v4133
    %v4135 = vand.u32 %v110, 4294901760
    %4136 = vmatprep.subr.mxu0 %v4135
    %v4137 = vand.u32 %v109, 4294901760
    %4138 = vmatpush1.msra.mxu0 %v4137
    %4139 = vmatprep.subr.mxu0 0.0
    %4140 = vmatpush2.msra.mxu0 0.0
    %4141 = vmatprep.subr.mxu0 0.0
    %4142 = vmatpush2.msra.mxu0 0.0
    %4143 = vmatprep.subr.mxu0 0.0
    %4144 = vmatpush2.msra.mxu0 0.0
    %4145 = vmatprep.subr.mxu0 0.0
    %4146 = vmatpush2.msra.mxu0 0.0
    %4147 = vmatprep.subr.mxu0 0.0
    %4148 = vmatpush2.msra.mxu0 0.0
    %4149 = vmatprep.subr.mxu0 0.0
    %4150 = vmatpush2.msra.mxu0 0.0
    %4151 = vmatprep.subr.mxu0 0.0
    %4152 = vmatpush2.msra.mxu0 0.0
    %4153 = vmatprep.subr.mxu0 0.0
    %4154 = vmatpush2.msra.mxu0 0.0
    %4155 = vmatprep.subr.mxu0 0.0
    %4156 = vmatpush2.msra.mxu0 0.0
    %4157 = vmatprep.subr.mxu0 0.0
    %4158 = vmatpush2.msra.mxu0 0.0
    %4159 = vmatprep.subr.mxu0 0.0
    %4160 = vmatpush2.msra.mxu0 0.0
    %4161 = vmatprep.subr.mxu0 0.0
    %4162 = vmatpush2.msra.mxu0 0.0
    %4163 = vmatprep.subr.mxu0 0.0
    %4164 = vmatpush2.msra.mxu0 0.0
    %4165 = vmatprep.subr.mxu0 0.0
    %4166 = vmatpush2.msra.mxu0 0.0
    %4167 = vmatprep.subr.mxu0 0.0
    %4168 = vmatpush2.msra.mxu0 0.0
    %4169 = vmatprep.subr.mxu0 0.0
    %4170 = vmatpush2.msra.mxu0 0.0
    %4171 = vmatprep.mubr.f32.mxu0 0.0
    %v4172 = vand.u32 %v3686, 4294901760
    %4173 = vmatmul.mubr.f32.gmra.mxu0 %v4172
    %v4174 = vpop.f32.mrf.mxu0
    %v4175 = vadd.f32 %v4099, %v4174
    %v4176 = vpop.f32.mrf.mxu0
    %v4177 = vadd.f32 %v4101, %v4176
    %4178 = vdwg.mxu0
    %v4180 = vsel %vm3684, %v3683, 0
    %4182 = vmatprep.subr.mxu0 0.0
    %4183 = vmatpush1.msra.mxu0 0.0
    %4184 = vmatprep.subr.mxu0 0.0
    %4185 = vmatpush1.msra.mxu0 0.0
    %4186 = vmatprep.subr.mxu0 0.0
    %4187 = vmatpush1.msra.mxu0 0.0
    %4188 = vmatprep.subr.mxu0 0.0
    %4189 = vmatpush1.msra.mxu0 0.0
    %4190 = vmatprep.subr.mxu0 0.0
    %4191 = vmatpush1.msra.mxu0 0.0
    %4192 = vmatprep.subr.mxu0 0.0
    %4193 = vmatpush1.msra.mxu0 0.0
    %4194 = vmatprep.subr.mxu0 0.0
    %4195 = vmatpush1.msra.mxu0 0.0
    %4196 = vmatprep.subr.mxu0 0.0
    %4197 = vmatpush1.msra.mxu0 0.0
    %4198 = vmatprep.subr.mxu0 0.0
    %4199 = vmatpush1.msra.mxu0 0.0
    %4200 = vmatprep.subr.mxu0 0.0
    %4201 = vmatpush1.msra.mxu0 0.0
    %4202 = vmatprep.subr.mxu0 0.0
    %4203 = vmatpush1.msra.mxu0 0.0
    %4204 = vmatprep.subr.mxu0 0.0
    %4205 = vmatpush1.msra.mxu0 0.0
    %4206 = vmatprep.subr.mxu0 0.0
    %4207 = vmatpush1.msra.mxu0 0.0
    %4208 = vmatprep.subr.mxu0 0.0
    %4209 = vmatpush1.msra.mxu0 0.0
    %v4210 = vand.u32 %v116, 4294901760
    %4211 = vmatprep.subr.mxu0 %v4210
    %v4212 = vand.u32 %v115, 4294901760
    %4213 = vmatpush1.msra.mxu0 %v4212
    %v4214 = vand.u32 %v114, 4294901760
    %4215 = vmatprep.subr.mxu0 %v4214
    %v4216 = vand.u32 %v113, 4294901760
    %4217 = vmatpush1.msra.mxu0 %v4216
    %4218 = vmatprep.subr.mxu0 0.0
    %4219 = vmatpush2.msra.mxu0 0.0
    %4220 = vmatprep.subr.mxu0 0.0
    %4221 = vmatpush2.msra.mxu0 0.0
    %4222 = vmatprep.subr.mxu0 0.0
    %4223 = vmatpush2.msra.mxu0 0.0
    %4224 = vmatprep.subr.mxu0 0.0
    %4225 = vmatpush2.msra.mxu0 0.0
    %4226 = vmatprep.subr.mxu0 0.0
    %4227 = vmatpush2.msra.mxu0 0.0
    %4228 = vmatprep.subr.mxu0 0.0
    %4229 = vmatpush2.msra.mxu0 0.0
    %4230 = vmatprep.subr.mxu0 0.0
    %4231 = vmatpush2.msra.mxu0 0.0
    %4232 = vmatprep.subr.mxu0 0.0
    %4233 = vmatpush2.msra.mxu0 0.0
    %4234 = vmatprep.subr.mxu0 0.0
    %4235 = vmatpush2.msra.mxu0 0.0
    %4236 = vmatprep.subr.mxu0 0.0
    %4237 = vmatpush2.msra.mxu0 0.0
    %4238 = vmatprep.subr.mxu0 0.0
    %4239 = vmatpush2.msra.mxu0 0.0
    %4240 = vmatprep.subr.mxu0 0.0
    %4241 = vmatpush2.msra.mxu0 0.0
    %4242 = vmatprep.subr.mxu0 0.0
    %4243 = vmatpush2.msra.mxu0 0.0
    %4244 = vmatprep.subr.mxu0 0.0
    %4245 = vmatpush2.msra.mxu0 0.0
    %4246 = vmatprep.subr.mxu0 0.0
    %4247 = vmatpush2.msra.mxu0 0.0
    %4248 = vmatprep.subr.mxu0 0.0
    %4249 = vmatpush2.msra.mxu0 0.0
    %4250 = vmatprep.mubr.f32.mxu0 0.0
    %v4251 = vand.u32 %v4180, 4294901760
    %v4252 = vsub.f32 %v4180, %v4251
    %v4253 = vand.u32 %v4252, 4294901760
    %v4254 = vsub.f32 %v4252, %v4253
    %v4255 = vand.u32 %v4254, 4294901760
    %4256 = vmatmul.mubr.f32.gmra.mxu0 %v4255
    %v4257 = vpop.f32.mrf.mxu0
    %v4258 = vadd.f32 0.0, %v4257
    %v4259 = vpop.f32.mrf.mxu0
    %v4260 = vadd.f32 0.0, %v4259
    %4261 = vdwg.mxu0
    %4262 = vmatprep.subr.mxu0 0.0
    %4263 = vmatpush1.msra.mxu0 0.0
    %4264 = vmatprep.subr.mxu0 0.0
    %4265 = vmatpush1.msra.mxu0 0.0
    %4266 = vmatprep.subr.mxu0 0.0
    %4267 = vmatpush1.msra.mxu0 0.0
    %4268 = vmatprep.subr.mxu0 0.0
    %4269 = vmatpush1.msra.mxu0 0.0
    %4270 = vmatprep.subr.mxu0 0.0
    %4271 = vmatpush1.msra.mxu0 0.0
    %4272 = vmatprep.subr.mxu0 0.0
    %4273 = vmatpush1.msra.mxu0 0.0
    %4274 = vmatprep.subr.mxu0 0.0
    %4275 = vmatpush1.msra.mxu0 0.0
    %4276 = vmatprep.subr.mxu0 0.0
    %4277 = vmatpush1.msra.mxu0 0.0
    %4278 = vmatprep.subr.mxu0 0.0
    %4279 = vmatpush1.msra.mxu0 0.0
    %4280 = vmatprep.subr.mxu0 0.0
    %4281 = vmatpush1.msra.mxu0 0.0
    %4282 = vmatprep.subr.mxu0 0.0
    %4283 = vmatpush1.msra.mxu0 0.0
    %4284 = vmatprep.subr.mxu0 0.0
    %4285 = vmatpush1.msra.mxu0 0.0
    %4286 = vmatprep.subr.mxu0 0.0
    %4287 = vmatpush1.msra.mxu0 0.0
    %4288 = vmatprep.subr.mxu0 0.0
    %4289 = vmatpush1.msra.mxu0 0.0
    %v4290 = vand.u32 %v116, 4294901760
    %v4291 = vsub.f32 %v116, %v4290
    %v4292 = vand.u32 %v4291, 4294901760
    %v4293 = vsub.f32 %v4291, %v4292
    %v4294 = vand.u32 %v4293, 4294901760
    %4295 = vmatprep.subr.mxu0 %v4294
    %v4296 = vand.u32 %v115, 4294901760
    %v4297 = vsub.f32 %v115, %v4296
    %v4298 = vand.u32 %v4297, 4294901760
    %v4299 = vsub.f32 %v4297, %v4298
    %v4300 = vand.u32 %v4299, 4294901760
    %4301 = vmatpush1.msra.mxu0 %v4300
    %v4302 = vand.u32 %v114, 4294901760
    %v4303 = vsub.f32 %v114, %v4302
    %v4304 = vand.u32 %v4303, 4294901760
    %v4305 = vsub.f32 %v4303, %v4304
    %v4306 = vand.u32 %v4305, 4294901760
    %4307 = vmatprep.subr.mxu0 %v4306
    %v4308 = vand.u32 %v113, 4294901760
    %v4309 = vsub.f32 %v113, %v4308
    %v4310 = vand.u32 %v4309, 4294901760
    %v4311 = vsub.f32 %v4309, %v4310
    %v4312 = vand.u32 %v4311, 4294901760
    %4313 = vmatpush1.msra.mxu0 %v4312
    %4314 = vmatprep.subr.mxu0 0.0
    %4315 = vmatpush2.msra.mxu0 0.0
    %4316 = vmatprep.subr.mxu0 0.0
    %4317 = vmatpush2.msra.mxu0 0.0
    %4318 = vmatprep.subr.mxu0 0.0
    %4319 = vmatpush2.msra.mxu0 0.0
    %4320 = vmatprep.subr.mxu0 0.0
    %4321 = vmatpush2.msra.mxu0 0.0
    %4322 = vmatprep.subr.mxu0 0.0
    %4323 = vmatpush2.msra.mxu0 0.0
    %4324 = vmatprep.subr.mxu0 0.0
    %4325 = vmatpush2.msra.mxu0 0.0
    %4326 = vmatprep.subr.mxu0 0.0
    %4327 = vmatpush2.msra.mxu0 0.0
    %4328 = vmatprep.subr.mxu0 0.0
    %4329 = vmatpush2.msra.mxu0 0.0
    %4330 = vmatprep.subr.mxu0 0.0
    %4331 = vmatpush2.msra.mxu0 0.0
    %4332 = vmatprep.subr.mxu0 0.0
    %4333 = vmatpush2.msra.mxu0 0.0
    %4334 = vmatprep.subr.mxu0 0.0
    %4335 = vmatpush2.msra.mxu0 0.0
    %4336 = vmatprep.subr.mxu0 0.0
    %4337 = vmatpush2.msra.mxu0 0.0
    %4338 = vmatprep.subr.mxu0 0.0
    %4339 = vmatpush2.msra.mxu0 0.0
    %4340 = vmatprep.subr.mxu0 0.0
    %4341 = vmatpush2.msra.mxu0 0.0
    %4342 = vmatprep.subr.mxu0 0.0
    %4343 = vmatpush2.msra.mxu0 0.0
    %4344 = vmatprep.subr.mxu0 0.0
    %4345 = vmatpush2.msra.mxu0 0.0
    %4346 = vmatprep.mubr.f32.mxu0 0.0
    %v4347 = vand.u32 %v4180, 4294901760
    %4348 = vmatmul.mubr.f32.gmra.mxu0 %v4347
    %v4349 = vpop.f32.mrf.mxu0
    %v4350 = vadd.f32 %v4258, %v4349
    %v4351 = vpop.f32.mrf.mxu0
    %v4352 = vadd.f32 %v4260, %v4351
    %4353 = vdwg.mxu0
    %4354 = vmatprep.subr.mxu0 0.0
    %4355 = vmatpush1.msra.mxu0 0.0
    %4356 = vmatprep.subr.mxu0 0.0
    %4357 = vmatpush1.msra.mxu0 0.0
    %4358 = vmatprep.subr.mxu0 0.0
    %4359 = vmatpush1.msra.mxu0 0.0
    %4360 = vmatprep.subr.mxu0 0.0
    %4361 = vmatpush1.msra.mxu0 0.0
    %4362 = vmatprep.subr.mxu0 0.0
    %4363 = vmatpush1.msra.mxu0 0.0
    %4364 = vmatprep.subr.mxu0 0.0
    %4365 = vmatpush1.msra.mxu0 0.0
    %4366 = vmatprep.subr.mxu0 0.0
    %4367 = vmatpush1.msra.mxu0 0.0
    %4368 = vmatprep.subr.mxu0 0.0
    %4369 = vmatpush1.msra.mxu0 0.0
    %4370 = vmatprep.subr.mxu0 0.0
    %4371 = vmatpush1.msra.mxu0 0.0
    %4372 = vmatprep.subr.mxu0 0.0
    %4373 = vmatpush1.msra.mxu0 0.0
    %4374 = vmatprep.subr.mxu0 0.0
    %4375 = vmatpush1.msra.mxu0 0.0
    %4376 = vmatprep.subr.mxu0 0.0
    %4377 = vmatpush1.msra.mxu0 0.0
    %4378 = vmatprep.subr.mxu0 0.0
    %4379 = vmatpush1.msra.mxu0 0.0
    %4380 = vmatprep.subr.mxu0 0.0
    %4381 = vmatpush1.msra.mxu0 0.0
    %v4382 = vand.u32 %v116, 4294901760
    %v4383 = vsub.f32 %v116, %v4382
    %4384 = vmatprep.subr.mxu0 %v4383
    %v4385 = vand.u32 %v115, 4294901760
    %v4386 = vsub.f32 %v115, %v4385
    %4387 = vmatpush1.msra.mxu0 %v4386
    %v4388 = vand.u32 %v114, 4294901760
    %v4389 = vsub.f32 %v114, %v4388
    %4390 = vmatprep.subr.mxu0 %v4389
    %v4391 = vand.u32 %v113, 4294901760
    %v4392 = vsub.f32 %v113, %v4391
    %4393 = vmatpush1.msra.mxu0 %v4392
    %4394 = vmatprep.subr.mxu0 0.0
    %4395 = vmatpush2.msra.mxu0 0.0
    %4396 = vmatprep.subr.mxu0 0.0
    %4397 = vmatpush2.msra.mxu0 0.0
    %4398 = vmatprep.subr.mxu0 0.0
    %4399 = vmatpush2.msra.mxu0 0.0
    %4400 = vmatprep.subr.mxu0 0.0
    %4401 = vmatpush2.msra.mxu0 0.0
    %4402 = vmatprep.subr.mxu0 0.0
    %4403 = vmatpush2.msra.mxu0 0.0
    %4404 = vmatprep.subr.mxu0 0.0
    %4405 = vmatpush2.msra.mxu0 0.0
    %4406 = vmatprep.subr.mxu0 0.0
    %4407 = vmatpush2.msra.mxu0 0.0
    %4408 = vmatprep.subr.mxu0 0.0
    %4409 = vmatpush2.msra.mxu0 0.0
    %4410 = vmatprep.subr.mxu0 0.0
    %4411 = vmatpush2.msra.mxu0 0.0
    %4412 = vmatprep.subr.mxu0 0.0
    %4413 = vmatpush2.msra.mxu0 0.0
    %4414 = vmatprep.subr.mxu0 0.0
    %4415 = vmatpush2.msra.mxu0 0.0
    %4416 = vmatprep.subr.mxu0 0.0
    %4417 = vmatpush2.msra.mxu0 0.0
    %4418 = vmatprep.subr.mxu0 0.0
    %4419 = vmatpush2.msra.mxu0 0.0
    %4420 = vmatprep.subr.mxu0 0.0
    %4421 = vmatpush2.msra.mxu0 0.0
    %4422 = vmatprep.subr.mxu0 0.0
    %4423 = vmatpush2.msra.mxu0 0.0
    %4424 = vmatprep.subr.mxu0 0.0
    %4425 = vmatpush2.msra.mxu0 0.0
    %4426 = vmatprep.mubr.f32.mxu0 0.0
    %v4427 = vand.u32 %v4180, 4294901760
    %v4428 = vsub.f32 %v4180, %v4427
    %4429 = vmatmul.mubr.f32.gmra.mxu0 %v4428
    %v4430 = vpop.f32.mrf.mxu0
    %v4431 = vadd.f32 %v4350, %v4430
    %v4432 = vpop.f32.mrf.mxu0
    %v4433 = vadd.f32 %v4352, %v4432
    %4434 = vdwg.mxu0
    %4435 = vmatprep.subr.mxu0 0.0
    %4436 = vmatpush1.msra.mxu0 0.0
    %4437 = vmatprep.subr.mxu0 0.0
    %4438 = vmatpush1.msra.mxu0 0.0
    %4439 = vmatprep.subr.mxu0 0.0
    %4440 = vmatpush1.msra.mxu0 0.0
    %4441 = vmatprep.subr.mxu0 0.0
    %4442 = vmatpush1.msra.mxu0 0.0
    %4443 = vmatprep.subr.mxu0 0.0
    %4444 = vmatpush1.msra.mxu0 0.0
    %4445 = vmatprep.subr.mxu0 0.0
    %4446 = vmatpush1.msra.mxu0 0.0
    %4447 = vmatprep.subr.mxu0 0.0
    %4448 = vmatpush1.msra.mxu0 0.0
    %4449 = vmatprep.subr.mxu0 0.0
    %4450 = vmatpush1.msra.mxu0 0.0
    %4451 = vmatprep.subr.mxu0 0.0
    %4452 = vmatpush1.msra.mxu0 0.0
    %4453 = vmatprep.subr.mxu0 0.0
    %4454 = vmatpush1.msra.mxu0 0.0
    %4455 = vmatprep.subr.mxu0 0.0
    %4456 = vmatpush1.msra.mxu0 0.0
    %4457 = vmatprep.subr.mxu0 0.0
    %4458 = vmatpush1.msra.mxu0 0.0
    %4459 = vmatprep.subr.mxu0 0.0
    %4460 = vmatpush1.msra.mxu0 0.0
    %4461 = vmatprep.subr.mxu0 0.0
    %4462 = vmatpush1.msra.mxu0 0.0
    %v4463 = vand.u32 %v116, 4294901760
    %4464 = vmatprep.subr.mxu0 %v4463
    %v4465 = vand.u32 %v115, 4294901760
    %4466 = vmatpush1.msra.mxu0 %v4465
    %v4467 = vand.u32 %v114, 4294901760
    %4468 = vmatprep.subr.mxu0 %v4467
    %v4469 = vand.u32 %v113, 4294901760
    %4470 = vmatpush1.msra.mxu0 %v4469
    %4471 = vmatprep.subr.mxu0 0.0
    %4472 = vmatpush2.msra.mxu0 0.0
    %4473 = vmatprep.subr.mxu0 0.0
    %4474 = vmatpush2.msra.mxu0 0.0
    %4475 = vmatprep.subr.mxu0 0.0
    %4476 = vmatpush2.msra.mxu0 0.0
    %4477 = vmatprep.subr.mxu0 0.0
    %4478 = vmatpush2.msra.mxu0 0.0
    %4479 = vmatprep.subr.mxu0 0.0
    %4480 = vmatpush2.msra.mxu0 0.0
    %4481 = vmatprep.subr.mxu0 0.0
    %4482 = vmatpush2.msra.mxu0 0.0
    %4483 = vmatprep.subr.mxu0 0.0
    %4484 = vmatpush2.msra.mxu0 0.0
    %4485 = vmatprep.subr.mxu0 0.0
    %4486 = vmatpush2.msra.mxu0 0.0
    %4487 = vmatprep.subr.mxu0 0.0
    %4488 = vmatpush2.msra.mxu0 0.0
    %4489 = vmatprep.subr.mxu0 0.0
    %4490 = vmatpush2.msra.mxu0 0.0
    %4491 = vmatprep.subr.mxu0 0.0
    %4492 = vmatpush2.msra.mxu0 0.0
    %4493 = vmatprep.subr.mxu0 0.0
    %4494 = vmatpush2.msra.mxu0 0.0
    %4495 = vmatprep.subr.mxu0 0.0
    %4496 = vmatpush2.msra.mxu0 0.0
    %4497 = vmatprep.subr.mxu0 0.0
    %4498 = vmatpush2.msra.mxu0 0.0
    %4499 = vmatprep.subr.mxu0 0.0
    %4500 = vmatpush2.msra.mxu0 0.0
    %4501 = vmatprep.subr.mxu0 0.0
    %4502 = vmatpush2.msra.mxu0 0.0
    %4503 = vmatprep.mubr.f32.mxu0 0.0
    %v4504 = vand.u32 %v4180, 4294901760
    %v4505 = vsub.f32 %v4180, %v4504
    %v4506 = vand.u32 %v4505, 4294901760
    %4507 = vmatmul.mubr.f32.gmra.mxu0 %v4506
    %v4508 = vpop.f32.mrf.mxu0
    %v4509 = vadd.f32 %v4431, %v4508
    %v4510 = vpop.f32.mrf.mxu0
    %v4511 = vadd.f32 %v4433, %v4510
    %4512 = vdwg.mxu0
    %4513 = vmatprep.subr.mxu0 0.0
    %4514 = vmatpush1.msra.mxu0 0.0
    %4515 = vmatprep.subr.mxu0 0.0
    %4516 = vmatpush1.msra.mxu0 0.0
    %4517 = vmatprep.subr.mxu0 0.0
    %4518 = vmatpush1.msra.mxu0 0.0
    %4519 = vmatprep.subr.mxu0 0.0
    %4520 = vmatpush1.msra.mxu0 0.0
    %4521 = vmatprep.subr.mxu0 0.0
    %4522 = vmatpush1.msra.mxu0 0.0
    %4523 = vmatprep.subr.mxu0 0.0
    %4524 = vmatpush1.msra.mxu0 0.0
    %4525 = vmatprep.subr.mxu0 0.0
    %4526 = vmatpush1.msra.mxu0 0.0
    %4527 = vmatprep.subr.mxu0 0.0
    %4528 = vmatpush1.msra.mxu0 0.0
    %4529 = vmatprep.subr.mxu0 0.0
    %4530 = vmatpush1.msra.mxu0 0.0
    %4531 = vmatprep.subr.mxu0 0.0
    %4532 = vmatpush1.msra.mxu0 0.0
    %4533 = vmatprep.subr.mxu0 0.0
    %4534 = vmatpush1.msra.mxu0 0.0
    %4535 = vmatprep.subr.mxu0 0.0
    %4536 = vmatpush1.msra.mxu0 0.0
    %4537 = vmatprep.subr.mxu0 0.0
    %4538 = vmatpush1.msra.mxu0 0.0
    %4539 = vmatprep.subr.mxu0 0.0
    %4540 = vmatpush1.msra.mxu0 0.0
    %v4541 = vand.u32 %v116, 4294901760
    %v4542 = vsub.f32 %v116, %v4541
    %v4543 = vand.u32 %v4542, 4294901760
    %4544 = vmatprep.subr.mxu0 %v4543
    %v4545 = vand.u32 %v115, 4294901760
    %v4546 = vsub.f32 %v115, %v4545
    %v4547 = vand.u32 %v4546, 4294901760
    %4548 = vmatpush1.msra.mxu0 %v4547
    %v4549 = vand.u32 %v114, 4294901760
    %v4550 = vsub.f32 %v114, %v4549
    %v4551 = vand.u32 %v4550, 4294901760
    %4552 = vmatprep.subr.mxu0 %v4551
    %v4553 = vand.u32 %v113, 4294901760
    %v4554 = vsub.f32 %v113, %v4553
    %v4555 = vand.u32 %v4554, 4294901760
    %4556 = vmatpush1.msra.mxu0 %v4555
    %4557 = vmatprep.subr.mxu0 0.0
    %4558 = vmatpush2.msra.mxu0 0.0
    %4559 = vmatprep.subr.mxu0 0.0
    %4560 = vmatpush2.msra.mxu0 0.0
    %4561 = vmatprep.subr.mxu0 0.0
    %4562 = vmatpush2.msra.mxu0 0.0
    %4563 = vmatprep.subr.mxu0 0.0
    %4564 = vmatpush2.msra.mxu0 0.0
    %4565 = vmatprep.subr.mxu0 0.0
    %4566 = vmatpush2.msra.mxu0 0.0
    %4567 = vmatprep.subr.mxu0 0.0
    %4568 = vmatpush2.msra.mxu0 0.0
    %4569 = vmatprep.subr.mxu0 0.0
    %4570 = vmatpush2.msra.mxu0 0.0
    %4571 = vmatprep.subr.mxu0 0.0
    %4572 = vmatpush2.msra.mxu0 0.0
    %4573 = vmatprep.subr.mxu0 0.0
    %4574 = vmatpush2.msra.mxu0 0.0
    %4575 = vmatprep.subr.mxu0 0.0
    %4576 = vmatpush2.msra.mxu0 0.0
    %4577 = vmatprep.subr.mxu0 0.0
    %4578 = vmatpush2.msra.mxu0 0.0
    %4579 = vmatprep.subr.mxu0 0.0
    %4580 = vmatpush2.msra.mxu0 0.0
    %4581 = vmatprep.subr.mxu0 0.0
    %4582 = vmatpush2.msra.mxu0 0.0
    %4583 = vmatprep.subr.mxu0 0.0
    %4584 = vmatpush2.msra.mxu0 0.0
    %4585 = vmatprep.subr.mxu0 0.0
    %4586 = vmatpush2.msra.mxu0 0.0
    %4587 = vmatprep.subr.mxu0 0.0
    %4588 = vmatpush2.msra.mxu0 0.0
    %4589 = vmatprep.mubr.f32.mxu0 0.0
    %v4590 = vand.u32 %v4180, 4294901760
    %4591 = vmatmul.mubr.f32.gmra.mxu0 %v4590
    %v4592 = vpop.f32.mrf.mxu0
    %v4593 = vadd.f32 %v4509, %v4592
    %v4594 = vpop.f32.mrf.mxu0
    %v4595 = vadd.f32 %v4511, %v4594
    %4596 = vdwg.mxu0
    %4597 = vmatprep.subr.mxu0 0.0
    %4598 = vmatpush1.msra.mxu0 0.0
    %4599 = vmatprep.subr.mxu0 0.0
    %4600 = vmatpush1.msra.mxu0 0.0
    %4601 = vmatprep.subr.mxu0 0.0
    %4602 = vmatpush1.msra.mxu0 0.0
    %4603 = vmatprep.subr.mxu0 0.0
    %4604 = vmatpush1.msra.mxu0 0.0
    %4605 = vmatprep.subr.mxu0 0.0
    %4606 = vmatpush1.msra.mxu0 0.0
    %4607 = vmatprep.subr.mxu0 0.0
    %4608 = vmatpush1.msra.mxu0 0.0
    %4609 = vmatprep.subr.mxu0 0.0
    %4610 = vmatpush1.msra.mxu0 0.0
    %4611 = vmatprep.subr.mxu0 0.0
    %4612 = vmatpush1.msra.mxu0 0.0
    %4613 = vmatprep.subr.mxu0 0.0
    %4614 = vmatpush1.msra.mxu0 0.0
    %4615 = vmatprep.subr.mxu0 0.0
    %4616 = vmatpush1.msra.mxu0 0.0
    %4617 = vmatprep.subr.mxu0 0.0
    %4618 = vmatpush1.msra.mxu0 0.0
    %4619 = vmatprep.subr.mxu0 0.0
    %4620 = vmatpush1.msra.mxu0 0.0
    %4621 = vmatprep.subr.mxu0 0.0
    %4622 = vmatpush1.msra.mxu0 0.0
    %4623 = vmatprep.subr.mxu0 0.0
    %4624 = vmatpush1.msra.mxu0 0.0
    %v4625 = vand.u32 %v116, 4294901760
    %4626 = vmatprep.subr.mxu0 %v4625
    %v4627 = vand.u32 %v115, 4294901760
    %4628 = vmatpush1.msra.mxu0 %v4627
    %v4629 = vand.u32 %v114, 4294901760
    %4630 = vmatprep.subr.mxu0 %v4629
    %v4631 = vand.u32 %v113, 4294901760
    %4632 = vmatpush1.msra.mxu0 %v4631
    %4633 = vmatprep.subr.mxu0 0.0
    %4634 = vmatpush2.msra.mxu0 0.0
    %4635 = vmatprep.subr.mxu0 0.0
    %4636 = vmatpush2.msra.mxu0 0.0
    %4637 = vmatprep.subr.mxu0 0.0
    %4638 = vmatpush2.msra.mxu0 0.0
    %4639 = vmatprep.subr.mxu0 0.0
    %4640 = vmatpush2.msra.mxu0 0.0
    %4641 = vmatprep.subr.mxu0 0.0
    %4642 = vmatpush2.msra.mxu0 0.0
    %4643 = vmatprep.subr.mxu0 0.0
    %4644 = vmatpush2.msra.mxu0 0.0
    %4645 = vmatprep.subr.mxu0 0.0
    %4646 = vmatpush2.msra.mxu0 0.0
    %4647 = vmatprep.subr.mxu0 0.0
    %4648 = vmatpush2.msra.mxu0 0.0
    %4649 = vmatprep.subr.mxu0 0.0
    %4650 = vmatpush2.msra.mxu0 0.0
    %4651 = vmatprep.subr.mxu0 0.0
    %4652 = vmatpush2.msra.mxu0 0.0
    %4653 = vmatprep.subr.mxu0 0.0
    %4654 = vmatpush2.msra.mxu0 0.0
    %4655 = vmatprep.subr.mxu0 0.0
    %4656 = vmatpush2.msra.mxu0 0.0
    %4657 = vmatprep.subr.mxu0 0.0
    %4658 = vmatpush2.msra.mxu0 0.0
    %4659 = vmatprep.subr.mxu0 0.0
    %4660 = vmatpush2.msra.mxu0 0.0
    %4661 = vmatprep.subr.mxu0 0.0
    %4662 = vmatpush2.msra.mxu0 0.0
    %4663 = vmatprep.subr.mxu0 0.0
    %4664 = vmatpush2.msra.mxu0 0.0
    %4665 = vmatprep.mubr.f32.mxu0 0.0
    %v4666 = vand.u32 %v4180, 4294901760
    %4667 = vmatmul.mubr.f32.gmra.mxu0 %v4666
    %v4668 = vpop.f32.mrf.mxu0
    %v4669 = vadd.f32 %v4593, %v4668
    %v4670 = vpop.f32.mrf.mxu0
    %v4671 = vadd.f32 %v4595, %v4670
    %4672 = vdwg.mxu0
    %v4673 = vmul.f32 %v4175, %v4669
    %v4674 = vmul.f32 %v4177, %v4671
    %v4677 = vcombine.low %v4673, %v4674
    %v4679 = vmul.f32 %v117, %v4677
    %4680 = vst [vmem:[#allocation2] sm:$0xff] %v4679
    %s4681 = scalar_lea.vmem %s0, 8
    %v4682 = vld [vmem:[%s4681] sm:$0xff]
    %v4684 = vcombine.high %v4682, %v4682
    %4686 = vmatprep.subr.mxu0 0.0
    %v4687 = vand.u32 %v60, 4294901760
    %4688 = vmatpush1.msra.mxu0 %v4687
    %4689 = vmatprep.subr.mxu0 0.0
    %v4690 = vand.u32 %v59, 4294901760
    %4691 = vmatpush1.msra.mxu0 %v4690
    %4692 = vmatprep.subr.mxu0 0.0
    %v4693 = vand.u32 %v58, 4294901760
    %4694 = vmatpush1.msra.mxu0 %v4693
    %4695 = vmatprep.subr.mxu0 0.0
    %v4696 = vand.u32 %v57, 4294901760
    %4697 = vmatpush1.msra.mxu0 %v4696
    %4698 = vmatprep.subr.mxu0 0.0
    %v4699 = vand.u32 %v56, 4294901760
    %4700 = vmatpush1.msra.mxu0 %v4699
    %4701 = vmatprep.subr.mxu0 0.0
    %v4702 = vand.u32 %v55, 4294901760
    %4703 = vmatpush1.msra.mxu0 %v4702
    %4704 = vmatprep.subr.mxu0 0.0
    %v4705 = vand.u32 %v54, 4294901760
    %4706 = vmatpush1.msra.mxu0 %v4705
    %4707 = vmatprep.subr.mxu0 0.0
    %v4708 = vand.u32 %v53, 4294901760
    %4709 = vmatpush1.msra.mxu0 %v4708
    %4710 = vmatprep.subr.mxu0 0.0
    %v4711 = vand.u32 %v52, 4294901760
    %4712 = vmatpush1.msra.mxu0 %v4711
    %4713 = vmatprep.subr.mxu0 0.0
    %v4714 = vand.u32 %v51, 4294901760
    %4715 = vmatpush1.msra.mxu0 %v4714
    %4716 = vmatprep.subr.mxu0 0.0
    %v4717 = vand.u32 %v50, 4294901760
    %4718 = vmatpush1.msra.mxu0 %v4717
    %4719 = vmatprep.subr.mxu0 0.0
    %v4720 = vand.u32 %v49, 4294901760
    %4721 = vmatpush1.msra.mxu0 %v4720
    %4722 = vmatprep.subr.mxu0 0.0
    %v4723 = vand.u32 %v48, 4294901760
    %4724 = vmatpush1.msra.mxu0 %v4723
    %4725 = vmatprep.subr.mxu0 0.0
    %v4726 = vand.u32 %v47, 4294901760
    %4727 = vmatpush1.msra.mxu0 %v4726
    %4728 = vmatprep.subr.mxu0 0.0
    %v4729 = vand.u32 %v46, 4294901760
    %4730 = vmatpush1.msra.mxu0 %v4729
    %4731 = vmatprep.subr.mxu0 0.0
    %v4732 = vand.u32 %v45, 4294901760
    %4733 = vmatpush1.msra.mxu0 %v4732
    %4734 = vmatprep.subr.mxu0 0.0
    %v4735 = vand.u32 %v76, 4294901760
    %4736 = vmatpush2.msra.mxu0 %v4735
    %4737 = vmatprep.subr.mxu0 0.0
    %v4738 = vand.u32 %v75, 4294901760
    %4739 = vmatpush2.msra.mxu0 %v4738
    %4740 = vmatprep.subr.mxu0 0.0
    %v4741 = vand.u32 %v74, 4294901760
    %4742 = vmatpush2.msra.mxu0 %v4741
    %4743 = vmatprep.subr.mxu0 0.0
    %v4744 = vand.u32 %v73, 4294901760
    %4745 = vmatpush2.msra.mxu0 %v4744
    %4746 = vmatprep.subr.mxu0 0.0
    %v4747 = vand.u32 %v72, 4294901760
    %4748 = vmatpush2.msra.mxu0 %v4747
    %4749 = vmatprep.subr.mxu0 0.0
    %v4750 = vand.u32 %v71, 4294901760
    %4751 = vmatpush2.msra.mxu0 %v4750
    %4752 = vmatprep.subr.mxu0 0.0
    %v4753 = vand.u32 %v70, 4294901760
    %4754 = vmatpush2.msra.mxu0 %v4753
    %4755 = vmatprep.subr.mxu0 0.0
    %v4756 = vand.u32 %v69, 4294901760
    %4757 = vmatpush2.msra.mxu0 %v4756
    %4758 = vmatprep.subr.mxu0 0.0
    %v4759 = vand.u32 %v68, 4294901760
    %4760 = vmatpush2.msra.mxu0 %v4759
    %4761 = vmatprep.subr.mxu0 0.0
    %v4762 = vand.u32 %v67, 4294901760
    %4763 = vmatpush2.msra.mxu0 %v4762
    %4764 = vmatprep.subr.mxu0 0.0
    %v4765 = vand.u32 %v66, 4294901760
    %4766 = vmatpush2.msra.mxu0 %v4765
    %4767 = vmatprep.subr.mxu0 0.0
    %v4768 = vand.u32 %v65, 4294901760
    %4769 = vmatpush2.msra.mxu0 %v4768
    %4770 = vmatprep.subr.mxu0 0.0
    %v4771 = vand.u32 %v64, 4294901760
    %4772 = vmatpush2.msra.mxu0 %v4771
    %4773 = vmatprep.subr.mxu0 0.0
    %v4774 = vand.u32 %v63, 4294901760
    %4775 = vmatpush2.msra.mxu0 %v4774
    %4776 = vmatprep.subr.mxu0 0.0
    %v4777 = vand.u32 %v62, 4294901760
    %4778 = vmatpush2.msra.mxu0 %v4777
    %4779 = vmatprep.subr.mxu0 0.0
    %v4780 = vand.u32 %v61, 4294901760
    %4781 = vmatpush2.msra.mxu0 %v4780
    %v4782 = vand.u32 %v4684, 4294901760
    %v4783 = vsub.f32 %v4684, %v4782
    %v4784 = vand.u32 %v4783, 4294901760
    %v4785 = vsub.f32 %v4783, %v4784
    %v4786 = vand.u32 %v4785, 4294901760
    %4787 = vmatprep.mubr.f32.mxu0 %v4786
    %v4788 = vand.u32 %v4682, 4294901760
    %v4789 = vsub.f32 %v4682, %v4788
    %v4790 = vand.u32 %v4789, 4294901760
    %v4791 = vsub.f32 %v4789, %v4790
    %v4792 = vand.u32 %v4791, 4294901760
    %4793 = vmatmul.mubr.f32.gmra.mxu0 %v4792
    %v4794 = vpop.f32.mrf.mxu0
    %v4795 = vadd.f32 0.0, %v4794
    %v4796 = vpop.f32.mrf.mxu0
    %4797 = vdwg.mxu0
    %4798 = vmatprep.subr.mxu0 0.0
    %v4799 = vand.u32 %v60, 4294901760
    %v4800 = vsub.f32 %v60, %v4799
    %v4801 = vand.u32 %v4800, 4294901760
    %v4802 = vsub.f32 %v4800, %v4801
    %v4803 = vand.u32 %v4802, 4294901760
    %4804 = vmatpush1.msra.mxu0 %v4803
    %4805 = vmatprep.subr.mxu0 0.0
    %v4806 = vand.u32 %v59, 4294901760
    %v4807 = vsub.f32 %v59, %v4806
    %v4808 = vand.u32 %v4807, 4294901760
    %v4809 = vsub.f32 %v4807, %v4808
    %v4810 = vand.u32 %v4809, 4294901760
    %4811 = vmatpush1.msra.mxu0 %v4810
    %4812 = vmatprep.subr.mxu0 0.0
    %v4813 = vand.u32 %v58, 4294901760
    %v4814 = vsub.f32 %v58, %v4813
    %v4815 = vand.u32 %v4814, 4294901760
    %v4816 = vsub.f32 %v4814, %v4815
    %v4817 = vand.u32 %v4816, 4294901760
    %4818 = vmatpush1.msra.mxu0 %v4817
    %4819 = vmatprep.subr.mxu0 0.0
    %v4820 = vand.u32 %v57, 4294901760
    %v4821 = vsub.f32 %v57, %v4820
    %v4822 = vand.u32 %v4821, 4294901760
    %v4823 = vsub.f32 %v4821, %v4822
    %v4824 = vand.u32 %v4823, 4294901760
    %4825 = vmatpush1.msra.mxu0 %v4824
    %4826 = vmatprep.subr.mxu0 0.0
    %v4827 = vand.u32 %v56, 4294901760
    %v4828 = vsub.f32 %v56, %v4827
    %v4829 = vand.u32 %v4828, 4294901760
    %v4830 = vsub.f32 %v4828, %v4829
    %v4831 = vand.u32 %v4830, 4294901760
    %4832 = vmatpush1.msra.mxu0 %v4831
    %4833 = vmatprep.subr.mxu0 0.0
    %v4834 = vand.u32 %v55, 4294901760
    %v4835 = vsub.f32 %v55, %v4834
    %v4836 = vand.u32 %v4835, 4294901760
    %v4837 = vsub.f32 %v4835, %v4836
    %v4838 = vand.u32 %v4837, 4294901760
    %4839 = vmatpush1.msra.mxu0 %v4838
    %4840 = vmatprep.subr.mxu0 0.0
    %v4841 = vand.u32 %v54, 4294901760
    %v4842 = vsub.f32 %v54, %v4841
    %v4843 = vand.u32 %v4842, 4294901760
    %v4844 = vsub.f32 %v4842, %v4843
    %v4845 = vand.u32 %v4844, 4294901760
    %4846 = vmatpush1.msra.mxu0 %v4845
    %4847 = vmatprep.subr.mxu0 0.0
    %v4848 = vand.u32 %v53, 4294901760
    %v4849 = vsub.f32 %v53, %v4848
    %v4850 = vand.u32 %v4849, 4294901760
    %v4851 = vsub.f32 %v4849, %v4850
    %v4852 = vand.u32 %v4851, 4294901760
    %4853 = vmatpush1.msra.mxu0 %v4852
    %4854 = vmatprep.subr.mxu0 0.0
    %v4855 = vand.u32 %v52, 4294901760
    %v4856 = vsub.f32 %v52, %v4855
    %v4857 = vand.u32 %v4856, 4294901760
    %v4858 = vsub.f32 %v4856, %v4857
    %v4859 = vand.u32 %v4858, 4294901760
    %4860 = vmatpush1.msra.mxu0 %v4859
    %4861 = vmatprep.subr.mxu0 0.0
    %v4862 = vand.u32 %v51, 4294901760
    %v4863 = vsub.f32 %v51, %v4862
    %v4864 = vand.u32 %v4863, 4294901760
    %v4865 = vsub.f32 %v4863, %v4864
    %v4866 = vand.u32 %v4865, 4294901760
    %4867 = vmatpush1.msra.mxu0 %v4866
    %4868 = vmatprep.subr.mxu0 0.0
    %v4869 = vand.u32 %v50, 4294901760
    %v4870 = vsub.f32 %v50, %v4869
    %v4871 = vand.u32 %v4870, 4294901760
    %v4872 = vsub.f32 %v4870, %v4871
    %v4873 = vand.u32 %v4872, 4294901760
    %4874 = vmatpush1.msra.mxu0 %v4873
    %4875 = vmatprep.subr.mxu0 0.0
    %v4876 = vand.u32 %v49, 4294901760
    %v4877 = vsub.f32 %v49, %v4876
    %v4878 = vand.u32 %v4877, 4294901760
    %v4879 = vsub.f32 %v4877, %v4878
    %v4880 = vand.u32 %v4879, 4294901760
    %4881 = vmatpush1.msra.mxu0 %v4880
    %4882 = vmatprep.subr.mxu0 0.0
    %v4883 = vand.u32 %v48, 4294901760
    %v4884 = vsub.f32 %v48, %v4883
    %v4885 = vand.u32 %v4884, 4294901760
    %v4886 = vsub.f32 %v4884, %v4885
    %v4887 = vand.u32 %v4886, 4294901760
    %4888 = vmatpush1.msra.mxu0 %v4887
    %4889 = vmatprep.subr.mxu0 0.0
    %v4890 = vand.u32 %v47, 4294901760
    %v4891 = vsub.f32 %v47, %v4890
    %v4892 = vand.u32 %v4891, 4294901760
    %v4893 = vsub.f32 %v4891, %v4892
    %v4894 = vand.u32 %v4893, 4294901760
    %4895 = vmatpush1.msra.mxu0 %v4894
    %4896 = vmatprep.subr.mxu0 0.0
    %v4897 = vand.u32 %v46, 4294901760
    %v4898 = vsub.f32 %v46, %v4897
    %v4899 = vand.u32 %v4898, 4294901760
    %v4900 = vsub.f32 %v4898, %v4899
    %v4901 = vand.u32 %v4900, 4294901760
    %4902 = vmatpush1.msra.mxu0 %v4901
    %4903 = vmatprep.subr.mxu0 0.0
    %v4904 = vand.u32 %v45, 4294901760
    %v4905 = vsub.f32 %v45, %v4904
    %v4906 = vand.u32 %v4905, 4294901760
    %v4907 = vsub.f32 %v4905, %v4906
    %v4908 = vand.u32 %v4907, 4294901760
    %4909 = vmatpush1.msra.mxu0 %v4908
    %4910 = vmatprep.subr.mxu0 0.0
    %v4911 = vand.u32 %v76, 4294901760
    %v4912 = vsub.f32 %v76, %v4911
    %v4913 = vand.u32 %v4912, 4294901760
    %v4914 = vsub.f32 %v4912, %v4913
    %v4915 = vand.u32 %v4914, 4294901760
    %4916 = vmatpush2.msra.mxu0 %v4915
    %4917 = vmatprep.subr.mxu0 0.0
    %v4918 = vand.u32 %v75, 4294901760
    %v4919 = vsub.f32 %v75, %v4918
    %v4920 = vand.u32 %v4919, 4294901760
    %v4921 = vsub.f32 %v4919, %v4920
    %v4922 = vand.u32 %v4921, 4294901760
    %4923 = vmatpush2.msra.mxu0 %v4922
    %4924 = vmatprep.subr.mxu0 0.0
    %v4925 = vand.u32 %v74, 4294901760
    %v4926 = vsub.f32 %v74, %v4925
    %v4927 = vand.u32 %v4926, 4294901760
    %v4928 = vsub.f32 %v4926, %v4927
    %v4929 = vand.u32 %v4928, 4294901760
    %4930 = vmatpush2.msra.mxu0 %v4929
    %4931 = vmatprep.subr.mxu0 0.0
    %v4932 = vand.u32 %v73, 4294901760
    %v4933 = vsub.f32 %v73, %v4932
    %v4934 = vand.u32 %v4933, 4294901760
    %v4935 = vsub.f32 %v4933, %v4934
    %v4936 = vand.u32 %v4935, 4294901760
    %4937 = vmatpush2.msra.mxu0 %v4936
    %4938 = vmatprep.subr.mxu0 0.0
    %v4939 = vand.u32 %v72, 4294901760
    %v4940 = vsub.f32 %v72, %v4939
    %v4941 = vand.u32 %v4940, 4294901760
    %v4942 = vsub.f32 %v4940, %v4941
    %v4943 = vand.u32 %v4942, 4294901760
    %4944 = vmatpush2.msra.mxu0 %v4943
    %4945 = vmatprep.subr.mxu0 0.0
    %v4946 = vand.u32 %v71, 4294901760
    %v4947 = vsub.f32 %v71, %v4946
    %v4948 = vand.u32 %v4947, 4294901760
    %v4949 = vsub.f32 %v4947, %v4948
    %v4950 = vand.u32 %v4949, 4294901760
    %4951 = vmatpush2.msra.mxu0 %v4950
    %4952 = vmatprep.subr.mxu0 0.0
    %v4953 = vand.u32 %v70, 4294901760
    %v4954 = vsub.f32 %v70, %v4953
    %v4955 = vand.u32 %v4954, 4294901760
    %v4956 = vsub.f32 %v4954, %v4955
    %v4957 = vand.u32 %v4956, 4294901760
    %4958 = vmatpush2.msra.mxu0 %v4957
    %4959 = vmatprep.subr.mxu0 0.0
    %v4960 = vand.u32 %v69, 4294901760
    %v4961 = vsub.f32 %v69, %v4960
    %v4962 = vand.u32 %v4961, 4294901760
    %v4963 = vsub.f32 %v4961, %v4962
    %v4964 = vand.u32 %v4963, 4294901760
    %4965 = vmatpush2.msra.mxu0 %v4964
    %4966 = vmatprep.subr.mxu0 0.0
    %v4967 = vand.u32 %v68, 4294901760
    %v4968 = vsub.f32 %v68, %v4967
    %v4969 = vand.u32 %v4968, 4294901760
    %v4970 = vsub.f32 %v4968, %v4969
    %v4971 = vand.u32 %v4970, 4294901760
    %4972 = vmatpush2.msra.mxu0 %v4971
    %4973 = vmatprep.subr.mxu0 0.0
    %v4974 = vand.u32 %v67, 4294901760
    %v4975 = vsub.f32 %v67, %v4974
    %v4976 = vand.u32 %v4975, 4294901760
    %v4977 = vsub.f32 %v4975, %v4976
    %v4978 = vand.u32 %v4977, 4294901760
    %4979 = vmatpush2.msra.mxu0 %v4978
    %4980 = vmatprep.subr.mxu0 0.0
    %v4981 = vand.u32 %v66, 4294901760
    %v4982 = vsub.f32 %v66, %v4981
    %v4983 = vand.u32 %v4982, 4294901760
    %v4984 = vsub.f32 %v4982, %v4983
    %v4985 = vand.u32 %v4984, 4294901760
    %4986 = vmatpush2.msra.mxu0 %v4985
    %4987 = vmatprep.subr.mxu0 0.0
    %v4988 = vand.u32 %v65, 4294901760
    %v4989 = vsub.f32 %v65, %v4988
    %v4990 = vand.u32 %v4989, 4294901760
    %v4991 = vsub.f32 %v4989, %v4990
    %v4992 = vand.u32 %v4991, 4294901760
    %4993 = vmatpush2.msra.mxu0 %v4992
    %4994 = vmatprep.subr.mxu0 0.0
    %v4995 = vand.u32 %v64, 4294901760
    %v4996 = vsub.f32 %v64, %v4995
    %v4997 = vand.u32 %v4996, 4294901760
    %v4998 = vsub.f32 %v4996, %v4997
    %v4999 = vand.u32 %v4998, 4294901760
    %5000 = vmatpush2.msra.mxu0 %v4999
    %5001 = vmatprep.subr.mxu0 0.0
    %v5002 = vand.u32 %v63, 4294901760
    %v5003 = vsub.f32 %v63, %v5002
    %v5004 = vand.u32 %v5003, 4294901760
    %v5005 = vsub.f32 %v5003, %v5004
    %v5006 = vand.u32 %v5005, 4294901760
    %5007 = vmatpush2.msra.mxu0 %v5006
    %5008 = vmatprep.subr.mxu0 0.0
    %v5009 = vand.u32 %v62, 4294901760
    %v5010 = vsub.f32 %v62, %v5009
    %v5011 = vand.u32 %v5010, 4294901760
    %v5012 = vsub.f32 %v5010, %v5011
    %v5013 = vand.u32 %v5012, 4294901760
    %5014 = vmatpush2.msra.mxu0 %v5013
    %5015 = vmatprep.subr.mxu0 0.0
    %v5016 = vand.u32 %v61, 4294901760
    %v5017 = vsub.f32 %v61, %v5016
    %v5018 = vand.u32 %v5017, 4294901760
    %v5019 = vsub.f32 %v5017, %v5018
    %v5020 = vand.u32 %v5019, 4294901760
    %5021 = vmatpush2.msra.mxu0 %v5020
    %v5022 = vand.u32 %v4684, 4294901760
    %5023 = vmatprep.mubr.f32.mxu0 %v5022
    %v5024 = vand.u32 %v4682, 4294901760
    %5025 = vmatmul.mubr.f32.gmra.mxu0 %v5024
    %v5026 = vpop.f32.mrf.mxu0
    %v5027 = vadd.f32 %v4795, %v5026
    %v5028 = vpop.f32.mrf.mxu0
    %5029 = vdwg.mxu0
    %5030 = vmatprep.subr.mxu0 0.0
    %v5031 = vand.u32 %v60, 4294901760
    %v5032 = vsub.f32 %v60, %v5031
    %5033 = vmatpush1.msra.mxu0 %v5032
    %5034 = vmatprep.subr.mxu0 0.0
    %v5035 = vand.u32 %v59, 4294901760
    %v5036 = vsub.f32 %v59, %v5035
    %5037 = vmatpush1.msra.mxu0 %v5036
    %5038 = vmatprep.subr.mxu0 0.0
    %v5039 = vand.u32 %v58, 4294901760
    %v5040 = vsub.f32 %v58, %v5039
    %5041 = vmatpush1.msra.mxu0 %v5040
    %5042 = vmatprep.subr.mxu0 0.0
    %v5043 = vand.u32 %v57, 4294901760
    %v5044 = vsub.f32 %v57, %v5043
    %5045 = vmatpush1.msra.mxu0 %v5044
    %5046 = vmatprep.subr.mxu0 0.0
    %v5047 = vand.u32 %v56, 4294901760
    %v5048 = vsub.f32 %v56, %v5047
    %5049 = vmatpush1.msra.mxu0 %v5048
    %5050 = vmatprep.subr.mxu0 0.0
    %v5051 = vand.u32 %v55, 4294901760
    %v5052 = vsub.f32 %v55, %v5051
    %5053 = vmatpush1.msra.mxu0 %v5052
    %5054 = vmatprep.subr.mxu0 0.0
    %v5055 = vand.u32 %v54, 4294901760
    %v5056 = vsub.f32 %v54, %v5055
    %5057 = vmatpush1.msra.mxu0 %v5056
    %5058 = vmatprep.subr.mxu0 0.0
    %v5059 = vand.u32 %v53, 4294901760
    %v5060 = vsub.f32 %v53, %v5059
    %5061 = vmatpush1.msra.mxu0 %v5060
    %5062 = vmatprep.subr.mxu0 0.0
    %v5063 = vand.u32 %v52, 4294901760
    %v5064 = vsub.f32 %v52, %v5063
    %5065 = vmatpush1.msra.mxu0 %v5064
    %5066 = vmatprep.subr.mxu0 0.0
    %v5067 = vand.u32 %v51, 4294901760
    %v5068 = vsub.f32 %v51, %v5067
    %5069 = vmatpush1.msra.mxu0 %v5068
    %5070 = vmatprep.subr.mxu0 0.0
    %v5071 = vand.u32 %v50, 4294901760
    %v5072 = vsub.f32 %v50, %v5071
    %5073 = vmatpush1.msra.mxu0 %v5072
    %5074 = vmatprep.subr.mxu0 0.0
    %v5075 = vand.u32 %v49, 4294901760
    %v5076 = vsub.f32 %v49, %v5075
    %5077 = vmatpush1.msra.mxu0 %v5076
    %5078 = vmatprep.subr.mxu0 0.0
    %v5079 = vand.u32 %v48, 4294901760
    %v5080 = vsub.f32 %v48, %v5079
    %5081 = vmatpush1.msra.mxu0 %v5080
    %5082 = vmatprep.subr.mxu0 0.0
    %v5083 = vand.u32 %v47, 4294901760
    %v5084 = vsub.f32 %v47, %v5083
    %5085 = vmatpush1.msra.mxu0 %v5084
    %5086 = vmatprep.subr.mxu0 0.0
    %v5087 = vand.u32 %v46, 4294901760
    %v5088 = vsub.f32 %v46, %v5087
    %5089 = vmatpush1.msra.mxu0 %v5088
    %5090 = vmatprep.subr.mxu0 0.0
    %v5091 = vand.u32 %v45, 4294901760
    %v5092 = vsub.f32 %v45, %v5091
    %5093 = vmatpush1.msra.mxu0 %v5092
    %5094 = vmatprep.subr.mxu0 0.0
    %v5095 = vand.u32 %v76, 4294901760
    %v5096 = vsub.f32 %v76, %v5095
    %5097 = vmatpush2.msra.mxu0 %v5096
    %5098 = vmatprep.subr.mxu0 0.0
    %v5099 = vand.u32 %v75, 4294901760
    %v5100 = vsub.f32 %v75, %v5099
    %5101 = vmatpush2.msra.mxu0 %v5100
    %5102 = vmatprep.subr.mxu0 0.0
    %v5103 = vand.u32 %v74, 4294901760
    %v5104 = vsub.f32 %v74, %v5103
    %5105 = vmatpush2.msra.mxu0 %v5104
    %5106 = vmatprep.subr.mxu0 0.0
    %v5107 = vand.u32 %v73, 4294901760
    %v5108 = vsub.f32 %v73, %v5107
    %5109 = vmatpush2.msra.mxu0 %v5108
    %5110 = vmatprep.subr.mxu0 0.0
    %v5111 = vand.u32 %v72, 4294901760
    %v5112 = vsub.f32 %v72, %v5111
    %5113 = vmatpush2.msra.mxu0 %v5112
    %5114 = vmatprep.subr.mxu0 0.0
    %v5115 = vand.u32 %v71, 4294901760
    %v5116 = vsub.f32 %v71, %v5115
    %5117 = vmatpush2.msra.mxu0 %v5116
    %5118 = vmatprep.subr.mxu0 0.0
    %v5119 = vand.u32 %v70, 4294901760
    %v5120 = vsub.f32 %v70, %v5119
    %5121 = vmatpush2.msra.mxu0 %v5120
    %5122 = vmatprep.subr.mxu0 0.0
    %v5123 = vand.u32 %v69, 4294901760
    %v5124 = vsub.f32 %v69, %v5123
    %5125 = vmatpush2.msra.mxu0 %v5124
    %5126 = vmatprep.subr.mxu0 0.0
    %v5127 = vand.u32 %v68, 4294901760
    %v5128 = vsub.f32 %v68, %v5127
    %5129 = vmatpush2.msra.mxu0 %v5128
    %5130 = vmatprep.subr.mxu0 0.0
    %v5131 = vand.u32 %v67, 4294901760
    %v5132 = vsub.f32 %v67, %v5131
    %5133 = vmatpush2.msra.mxu0 %v5132
    %5134 = vmatprep.subr.mxu0 0.0
    %v5135 = vand.u32 %v66, 4294901760
    %v5136 = vsub.f32 %v66, %v5135
    %5137 = vmatpush2.msra.mxu0 %v5136
    %5138 = vmatprep.subr.mxu0 0.0
    %v5139 = vand.u32 %v65, 4294901760
    %v5140 = vsub.f32 %v65, %v5139
    %5141 = vmatpush2.msra.mxu0 %v5140
    %5142 = vmatprep.subr.mxu0 0.0
    %v5143 = vand.u32 %v64, 4294901760
    %v5144 = vsub.f32 %v64, %v5143
    %5145 = vmatpush2.msra.mxu0 %v5144
    %5146 = vmatprep.subr.mxu0 0.0
    %v5147 = vand.u32 %v63, 4294901760
    %v5148 = vsub.f32 %v63, %v5147
    %5149 = vmatpush2.msra.mxu0 %v5148
    %5150 = vmatprep.subr.mxu0 0.0
    %v5151 = vand.u32 %v62, 4294901760
    %v5152 = vsub.f32 %v62, %v5151
    %5153 = vmatpush2.msra.mxu0 %v5152
    %5154 = vmatprep.subr.mxu0 0.0
    %v5155 = vand.u32 %v61, 4294901760
    %v5156 = vsub.f32 %v61, %v5155
    %5157 = vmatpush2.msra.mxu0 %v5156
    %v5158 = vand.u32 %v4684, 4294901760
    %v5159 = vsub.f32 %v4684, %v5158
    %5160 = vmatprep.mubr.f32.mxu0 %v5159
    %v5161 = vand.u32 %v4682, 4294901760
    %v5162 = vsub.f32 %v4682, %v5161
    %5163 = vmatmul.mubr.f32.gmra.mxu0 %v5162
    %v5164 = vpop.f32.mrf.mxu0
    %v5165 = vadd.f32 %v5027, %v5164
    %v5166 = vpop.f32.mrf.mxu0
    %5167 = vdwg.mxu0
    %5168 = vmatprep.subr.mxu0 0.0
    %v5169 = vand.u32 %v60, 4294901760
    %5170 = vmatpush1.msra.mxu0 %v5169
    %5171 = vmatprep.subr.mxu0 0.0
    %v5172 = vand.u32 %v59, 4294901760
    %5173 = vmatpush1.msra.mxu0 %v5172
    %5174 = vmatprep.subr.mxu0 0.0
    %v5175 = vand.u32 %v58, 4294901760
    %5176 = vmatpush1.msra.mxu0 %v5175
    %5177 = vmatprep.subr.mxu0 0.0
    %v5178 = vand.u32 %v57, 4294901760
    %5179 = vmatpush1.msra.mxu0 %v5178
    %5180 = vmatprep.subr.mxu0 0.0
    %v5181 = vand.u32 %v56, 4294901760
    %5182 = vmatpush1.msra.mxu0 %v5181
    %5183 = vmatprep.subr.mxu0 0.0
    %v5184 = vand.u32 %v55, 4294901760
    %5185 = vmatpush1.msra.mxu0 %v5184
    %5186 = vmatprep.subr.mxu0 0.0
    %v5187 = vand.u32 %v54, 4294901760
    %5188 = vmatpush1.msra.mxu0 %v5187
    %5189 = vmatprep.subr.mxu0 0.0
    %v5190 = vand.u32 %v53, 4294901760
    %5191 = vmatpush1.msra.mxu0 %v5190
    %5192 = vmatprep.subr.mxu0 0.0
    %v5193 = vand.u32 %v52, 4294901760
    %5194 = vmatpush1.msra.mxu0 %v5193
    %5195 = vmatprep.subr.mxu0 0.0
    %v5196 = vand.u32 %v51, 4294901760
    %5197 = vmatpush1.msra.mxu0 %v5196
    %5198 = vmatprep.subr.mxu0 0.0
    %v5199 = vand.u32 %v50, 4294901760
    %5200 = vmatpush1.msra.mxu0 %v5199
    %5201 = vmatprep.subr.mxu0 0.0
    %v5202 = vand.u32 %v49, 4294901760
    %5203 = vmatpush1.msra.mxu0 %v5202
    %5204 = vmatprep.subr.mxu0 0.0
    %v5205 = vand.u32 %v48, 4294901760
    %5206 = vmatpush1.msra.mxu0 %v5205
    %5207 = vmatprep.subr.mxu0 0.0
    %v5208 = vand.u32 %v47, 4294901760
    %5209 = vmatpush1.msra.mxu0 %v5208
    %5210 = vmatprep.subr.mxu0 0.0
    %v5211 = vand.u32 %v46, 4294901760
    %5212 = vmatpush1.msra.mxu0 %v5211
    %5213 = vmatprep.subr.mxu0 0.0
    %v5214 = vand.u32 %v45, 4294901760
    %5215 = vmatpush1.msra.mxu0 %v5214
    %5216 = vmatprep.subr.mxu0 0.0
    %v5217 = vand.u32 %v76, 4294901760
    %5218 = vmatpush2.msra.mxu0 %v5217
    %5219 = vmatprep.subr.mxu0 0.0
    %v5220 = vand.u32 %v75, 4294901760
    %5221 = vmatpush2.msra.mxu0 %v5220
    %5222 = vmatprep.subr.mxu0 0.0
    %v5223 = vand.u32 %v74, 4294901760
    %5224 = vmatpush2.msra.mxu0 %v5223
    %5225 = vmatprep.subr.mxu0 0.0
    %v5226 = vand.u32 %v73, 4294901760
    %5227 = vmatpush2.msra.mxu0 %v5226
    %5228 = vmatprep.subr.mxu0 0.0
    %v5229 = vand.u32 %v72, 4294901760
    %5230 = vmatpush2.msra.mxu0 %v5229
    %5231 = vmatprep.subr.mxu0 0.0
    %v5232 = vand.u32 %v71, 4294901760
    %5233 = vmatpush2.msra.mxu0 %v5232
    %5234 = vmatprep.subr.mxu0 0.0
    %v5235 = vand.u32 %v70, 4294901760
    %5236 = vmatpush2.msra.mxu0 %v5235
    %5237 = vmatprep.subr.mxu0 0.0
    %v5238 = vand.u32 %v69, 4294901760
    %5239 = vmatpush2.msra.mxu0 %v5238
    %5240 = vmatprep.subr.mxu0 0.0
    %v5241 = vand.u32 %v68, 4294901760
    %5242 = vmatpush2.msra.mxu0 %v5241
    %5243 = vmatprep.subr.mxu0 0.0
    %v5244 = vand.u32 %v67, 4294901760
    %5245 = vmatpush2.msra.mxu0 %v5244
    %5246 = vmatprep.subr.mxu0 0.0
    %v5247 = vand.u32 %v66, 4294901760
    %5248 = vmatpush2.msra.mxu0 %v5247
    %5249 = vmatprep.subr.mxu0 0.0
    %v5250 = vand.u32 %v65, 4294901760
    %5251 = vmatpush2.msra.mxu0 %v5250
    %5252 = vmatprep.subr.mxu0 0.0
    %v5253 = vand.u32 %v64, 4294901760
    %5254 = vmatpush2.msra.mxu0 %v5253
    %5255 = vmatprep.subr.mxu0 0.0
    %v5256 = vand.u32 %v63, 4294901760
    %5257 = vmatpush2.msra.mxu0 %v5256
    %5258 = vmatprep.subr.mxu0 0.0
    %v5259 = vand.u32 %v62, 4294901760
    %5260 = vmatpush2.msra.mxu0 %v5259
    %5261 = vmatprep.subr.mxu0 0.0
    %v5262 = vand.u32 %v61, 4294901760
    %5263 = vmatpush2.msra.mxu0 %v5262
    %v5264 = vand.u32 %v4684, 4294901760
    %v5265 = vsub.f32 %v4684, %v5264
    %v5266 = vand.u32 %v5265, 4294901760
    %5267 = vmatprep.mubr.f32.mxu0 %v5266
    %v5268 = vand.u32 %v4682, 4294901760
    %v5269 = vsub.f32 %v4682, %v5268
    %v5270 = vand.u32 %v5269, 4294901760
    %5271 = vmatmul.mubr.f32.gmra.mxu0 %v5270
    %v5272 = vpop.f32.mrf.mxu0
    %v5273 = vadd.f32 %v5165, %v5272
    %v5274 = vpop.f32.mrf.mxu0
    %5275 = vdwg.mxu0
    %5276 = vmatprep.subr.mxu0 0.0
    %v5277 = vand.u32 %v60, 4294901760
    %v5278 = vsub.f32 %v60, %v5277
    %v5279 = vand.u32 %v5278, 4294901760
    %5280 = vmatpush1.msra.mxu0 %v5279
    %5281 = vmatprep.subr.mxu0 0.0
    %v5282 = vand.u32 %v59, 4294901760
    %v5283 = vsub.f32 %v59, %v5282
    %v5284 = vand.u32 %v5283, 4294901760
    %5285 = vmatpush1.msra.mxu0 %v5284
    %5286 = vmatprep.subr.mxu0 0.0
    %v5287 = vand.u32 %v58, 4294901760
    %v5288 = vsub.f32 %v58, %v5287
    %v5289 = vand.u32 %v5288, 4294901760
    %5290 = vmatpush1.msra.mxu0 %v5289
    %5291 = vmatprep.subr.mxu0 0.0
    %v5292 = vand.u32 %v57, 4294901760
    %v5293 = vsub.f32 %v57, %v5292
    %v5294 = vand.u32 %v5293, 4294901760
    %5295 = vmatpush1.msra.mxu0 %v5294
    %5296 = vmatprep.subr.mxu0 0.0
    %v5297 = vand.u32 %v56, 4294901760
    %v5298 = vsub.f32 %v56, %v5297
    %v5299 = vand.u32 %v5298, 4294901760
    %5300 = vmatpush1.msra.mxu0 %v5299
    %5301 = vmatprep.subr.mxu0 0.0
    %v5302 = vand.u32 %v55, 4294901760
    %v5303 = vsub.f32 %v55, %v5302
    %v5304 = vand.u32 %v5303, 4294901760
    %5305 = vmatpush1.msra.mxu0 %v5304
    %5306 = vmatprep.subr.mxu0 0.0
    %v5307 = vand.u32 %v54, 4294901760
    %v5308 = vsub.f32 %v54, %v5307
    %v5309 = vand.u32 %v5308, 4294901760
    %5310 = vmatpush1.msra.mxu0 %v5309
    %5311 = vmatprep.subr.mxu0 0.0
    %v5312 = vand.u32 %v53, 4294901760
    %v5313 = vsub.f32 %v53, %v5312
    %v5314 = vand.u32 %v5313, 4294901760
    %5315 = vmatpush1.msra.mxu0 %v5314
    %5316 = vmatprep.subr.mxu0 0.0
    %v5317 = vand.u32 %v52, 4294901760
    %v5318 = vsub.f32 %v52, %v5317
    %v5319 = vand.u32 %v5318, 4294901760
    %5320 = vmatpush1.msra.mxu0 %v5319
    %5321 = vmatprep.subr.mxu0 0.0
    %v5322 = vand.u32 %v51, 4294901760
    %v5323 = vsub.f32 %v51, %v5322
    %v5324 = vand.u32 %v5323, 4294901760
    %5325 = vmatpush1.msra.mxu0 %v5324
    %5326 = vmatprep.subr.mxu0 0.0
    %v5327 = vand.u32 %v50, 4294901760
    %v5328 = vsub.f32 %v50, %v5327
    %v5329 = vand.u32 %v5328, 4294901760
    %5330 = vmatpush1.msra.mxu0 %v5329
    %5331 = vmatprep.subr.mxu0 0.0
    %v5332 = vand.u32 %v49, 4294901760
    %v5333 = vsub.f32 %v49, %v5332
    %v5334 = vand.u32 %v5333, 4294901760
    %5335 = vmatpush1.msra.mxu0 %v5334
    %5336 = vmatprep.subr.mxu0 0.0
    %v5337 = vand.u32 %v48, 4294901760
    %v5338 = vsub.f32 %v48, %v5337
    %v5339 = vand.u32 %v5338, 4294901760
    %5340 = vmatpush1.msra.mxu0 %v5339
    %5341 = vmatprep.subr.mxu0 0.0
    %v5342 = vand.u32 %v47, 4294901760
    %v5343 = vsub.f32 %v47, %v5342
    %v5344 = vand.u32 %v5343, 4294901760
    %5345 = vmatpush1.msra.mxu0 %v5344
    %5346 = vmatprep.subr.mxu0 0.0
    %v5347 = vand.u32 %v46, 4294901760
    %v5348 = vsub.f32 %v46, %v5347
    %v5349 = vand.u32 %v5348, 4294901760
    %5350 = vmatpush1.msra.mxu0 %v5349
    %5351 = vmatprep.subr.mxu0 0.0
    %v5352 = vand.u32 %v45, 4294901760
    %v5353 = vsub.f32 %v45, %v5352
    %v5354 = vand.u32 %v5353, 4294901760
    %5355 = vmatpush1.msra.mxu0 %v5354
    %5356 = vmatprep.subr.mxu0 0.0
    %v5357 = vand.u32 %v76, 4294901760
    %v5358 = vsub.f32 %v76, %v5357
    %v5359 = vand.u32 %v5358, 4294901760
    %5360 = vmatpush2.msra.mxu0 %v5359
    %5361 = vmatprep.subr.mxu0 0.0
    %v5362 = vand.u32 %v75, 4294901760
    %v5363 = vsub.f32 %v75, %v5362
    %v5364 = vand.u32 %v5363, 4294901760
    %5365 = vmatpush2.msra.mxu0 %v5364
    %5366 = vmatprep.subr.mxu0 0.0
    %v5367 = vand.u32 %v74, 4294901760
    %v5368 = vsub.f32 %v74, %v5367
    %v5369 = vand.u32 %v5368, 4294901760
    %5370 = vmatpush2.msra.mxu0 %v5369
    %5371 = vmatprep.subr.mxu0 0.0
    %v5372 = vand.u32 %v73, 4294901760
    %v5373 = vsub.f32 %v73, %v5372
    %v5374 = vand.u32 %v5373, 4294901760
    %5375 = vmatpush2.msra.mxu0 %v5374
    %5376 = vmatprep.subr.mxu0 0.0
    %v5377 = vand.u32 %v72, 4294901760
    %v5378 = vsub.f32 %v72, %v5377
    %v5379 = vand.u32 %v5378, 4294901760
    %5380 = vmatpush2.msra.mxu0 %v5379
    %5381 = vmatprep.subr.mxu0 0.0
    %v5382 = vand.u32 %v71, 4294901760
    %v5383 = vsub.f32 %v71, %v5382
    %v5384 = vand.u32 %v5383, 4294901760
    %5385 = vmatpush2.msra.mxu0 %v5384
    %5386 = vmatprep.subr.mxu0 0.0
    %v5387 = vand.u32 %v70, 4294901760
    %v5388 = vsub.f32 %v70, %v5387
    %v5389 = vand.u32 %v5388, 4294901760
    %5390 = vmatpush2.msra.mxu0 %v5389
    %5391 = vmatprep.subr.mxu0 0.0
    %v5392 = vand.u32 %v69, 4294901760
    %v5393 = vsub.f32 %v69, %v5392
    %v5394 = vand.u32 %v5393, 4294901760
    %5395 = vmatpush2.msra.mxu0 %v5394
    %5396 = vmatprep.subr.mxu0 0.0
    %v5397 = vand.u32 %v68, 4294901760
    %v5398 = vsub.f32 %v68, %v5397
    %v5399 = vand.u32 %v5398, 4294901760
    %5400 = vmatpush2.msra.mxu0 %v5399
    %5401 = vmatprep.subr.mxu0 0.0
    %v5402 = vand.u32 %v67, 4294901760
    %v5403 = vsub.f32 %v67, %v5402
    %v5404 = vand.u32 %v5403, 4294901760
    %5405 = vmatpush2.msra.mxu0 %v5404
    %5406 = vmatprep.subr.mxu0 0.0
    %v5407 = vand.u32 %v66, 4294901760
    %v5408 = vsub.f32 %v66, %v5407
    %v5409 = vand.u32 %v5408, 4294901760
    %5410 = vmatpush2.msra.mxu0 %v5409
    %5411 = vmatprep.subr.mxu0 0.0
    %v5412 = vand.u32 %v65, 4294901760
    %v5413 = vsub.f32 %v65, %v5412
    %v5414 = vand.u32 %v5413, 4294901760
    %5415 = vmatpush2.msra.mxu0 %v5414
    %5416 = vmatprep.subr.mxu0 0.0
    %v5417 = vand.u32 %v64, 4294901760
    %v5418 = vsub.f32 %v64, %v5417
    %v5419 = vand.u32 %v5418, 4294901760
    %5420 = vmatpush2.msra.mxu0 %v5419
    %5421 = vmatprep.subr.mxu0 0.0
    %v5422 = vand.u32 %v63, 4294901760
    %v5423 = vsub.f32 %v63, %v5422
    %v5424 = vand.u32 %v5423, 4294901760
    %5425 = vmatpush2.msra.mxu0 %v5424
    %5426 = vmatprep.subr.mxu0 0.0
    %v5427 = vand.u32 %v62, 4294901760
    %v5428 = vsub.f32 %v62, %v5427
    %v5429 = vand.u32 %v5428, 4294901760
    %5430 = vmatpush2.msra.mxu0 %v5429
    %5431 = vmatprep.subr.mxu0 0.0
    %v5432 = vand.u32 %v61, 4294901760
    %v5433 = vsub.f32 %v61, %v5432
    %v5434 = vand.u32 %v5433, 4294901760
    %5435 = vmatpush2.msra.mxu0 %v5434
    %v5436 = vand.u32 %v4684, 4294901760
    %5437 = vmatprep.mubr.f32.mxu0 %v5436
    %v5438 = vand.u32 %v4682, 4294901760
    %5439 = vmatmul.mubr.f32.gmra.mxu0 %v5438
    %v5440 = vpop.f32.mrf.mxu0
    %v5441 = vadd.f32 %v5273, %v5440
    %v5442 = vpop.f32.mrf.mxu0
    %5443 = vdwg.mxu0
    %5444 = vmatprep.subr.mxu0 0.0
    %v5445 = vand.u32 %v60, 4294901760
    %5446 = vmatpush1.msra.mxu0 %v5445
    %5447 = vmatprep.subr.mxu0 0.0
    %v5448 = vand.u32 %v59, 4294901760
    %5449 = vmatpush1.msra.mxu0 %v5448
    %5450 = vmatprep.subr.mxu0 0.0
    %v5451 = vand.u32 %v58, 4294901760
    %5452 = vmatpush1.msra.mxu0 %v5451
    %5453 = vmatprep.subr.mxu0 0.0
    %v5454 = vand.u32 %v57, 4294901760
    %5455 = vmatpush1.msra.mxu0 %v5454
    %5456 = vmatprep.subr.mxu0 0.0
    %v5457 = vand.u32 %v56, 4294901760
    %5458 = vmatpush1.msra.mxu0 %v5457
    %5459 = vmatprep.subr.mxu0 0.0
    %v5460 = vand.u32 %v55, 4294901760
    %5461 = vmatpush1.msra.mxu0 %v5460
    %5462 = vmatprep.subr.mxu0 0.0
    %v5463 = vand.u32 %v54, 4294901760
    %5464 = vmatpush1.msra.mxu0 %v5463
    %5465 = vmatprep.subr.mxu0 0.0
    %v5466 = vand.u32 %v53, 4294901760
    %5467 = vmatpush1.msra.mxu0 %v5466
    %5468 = vmatprep.subr.mxu0 0.0
    %v5469 = vand.u32 %v52, 4294901760
    %5470 = vmatpush1.msra.mxu0 %v5469
    %5471 = vmatprep.subr.mxu0 0.0
    %v5472 = vand.u32 %v51, 4294901760
    %5473 = vmatpush1.msra.mxu0 %v5472
    %5474 = vmatprep.subr.mxu0 0.0
    %v5475 = vand.u32 %v50, 4294901760
    %5476 = vmatpush1.msra.mxu0 %v5475
    %5477 = vmatprep.subr.mxu0 0.0
    %v5478 = vand.u32 %v49, 4294901760
    %5479 = vmatpush1.msra.mxu0 %v5478
    %5480 = vmatprep.subr.mxu0 0.0
    %v5481 = vand.u32 %v48, 4294901760
    %5482 = vmatpush1.msra.mxu0 %v5481
    %5483 = vmatprep.subr.mxu0 0.0
    %v5484 = vand.u32 %v47, 4294901760
    %5485 = vmatpush1.msra.mxu0 %v5484
    %5486 = vmatprep.subr.mxu0 0.0
    %v5487 = vand.u32 %v46, 4294901760
    %5488 = vmatpush1.msra.mxu0 %v5487
    %5489 = vmatprep.subr.mxu0 0.0
    %v5490 = vand.u32 %v45, 4294901760
    %5491 = vmatpush1.msra.mxu0 %v5490
    %5492 = vmatprep.subr.mxu0 0.0
    %v5493 = vand.u32 %v76, 4294901760
    %5494 = vmatpush2.msra.mxu0 %v5493
    %5495 = vmatprep.subr.mxu0 0.0
    %v5496 = vand.u32 %v75, 4294901760
    %5497 = vmatpush2.msra.mxu0 %v5496
    %5498 = vmatprep.subr.mxu0 0.0
    %v5499 = vand.u32 %v74, 4294901760
    %5500 = vmatpush2.msra.mxu0 %v5499
    %5501 = vmatprep.subr.mxu0 0.0
    %v5502 = vand.u32 %v73, 4294901760
    %5503 = vmatpush2.msra.mxu0 %v5502
    %5504 = vmatprep.subr.mxu0 0.0
    %v5505 = vand.u32 %v72, 4294901760
    %5506 = vmatpush2.msra.mxu0 %v5505
    %5507 = vmatprep.subr.mxu0 0.0
    %v5508 = vand.u32 %v71, 4294901760
    %5509 = vmatpush2.msra.mxu0 %v5508
    %5510 = vmatprep.subr.mxu0 0.0
    %v5511 = vand.u32 %v70, 4294901760
    %5512 = vmatpush2.msra.mxu0 %v5511
    %5513 = vmatprep.subr.mxu0 0.0
    %v5514 = vand.u32 %v69, 4294901760
    %5515 = vmatpush2.msra.mxu0 %v5514
    %5516 = vmatprep.subr.mxu0 0.0
    %v5517 = vand.u32 %v68, 4294901760
    %5518 = vmatpush2.msra.mxu0 %v5517
    %5519 = vmatprep.subr.mxu0 0.0
    %v5520 = vand.u32 %v67, 4294901760
    %5521 = vmatpush2.msra.mxu0 %v5520
    %5522 = vmatprep.subr.mxu0 0.0
    %v5523 = vand.u32 %v66, 4294901760
    %5524 = vmatpush2.msra.mxu0 %v5523
    %5525 = vmatprep.subr.mxu0 0.0
    %v5526 = vand.u32 %v65, 4294901760
    %5527 = vmatpush2.msra.mxu0 %v5526
    %5528 = vmatprep.subr.mxu0 0.0
    %v5529 = vand.u32 %v64, 4294901760
    %5530 = vmatpush2.msra.mxu0 %v5529
    %5531 = vmatprep.subr.mxu0 0.0
    %v5532 = vand.u32 %v63, 4294901760
    %5533 = vmatpush2.msra.mxu0 %v5532
    %5534 = vmatprep.subr.mxu0 0.0
    %v5535 = vand.u32 %v62, 4294901760
    %5536 = vmatpush2.msra.mxu0 %v5535
    %5537 = vmatprep.subr.mxu0 0.0
    %v5538 = vand.u32 %v61, 4294901760
    %5539 = vmatpush2.msra.mxu0 %v5538
    %v5540 = vand.u32 %v4684, 4294901760
    %5541 = vmatprep.mubr.f32.mxu0 %v5540
    %v5542 = vand.u32 %v4682, 4294901760
    %5543 = vmatmul.mubr.f32.gmra.mxu0 %v5542
    %v5544 = vpop.f32.mrf.mxu0
    %v5545 = vadd.f32 %v5441, %v5544
    %v5546 = vpop.f32.mrf.mxu0
    %5547 = vdwg.mxu0
    %5548 = vmatprep.subr.mxu0 0.0
    %v5549 = vand.u32 %v92, 4294901760
    %5550 = vmatpush1.msra.mxu0 %v5549
    %5551 = vmatprep.subr.mxu0 0.0
    %v5552 = vand.u32 %v91, 4294901760
    %5553 = vmatpush1.msra.mxu0 %v5552
    %5554 = vmatprep.subr.mxu0 0.0
    %v5555 = vand.u32 %v90, 4294901760
    %5556 = vmatpush1.msra.mxu0 %v5555
    %5557 = vmatprep.subr.mxu0 0.0
    %v5558 = vand.u32 %v89, 4294901760
    %5559 = vmatpush1.msra.mxu0 %v5558
    %5560 = vmatprep.subr.mxu0 0.0
    %v5561 = vand.u32 %v88, 4294901760
    %5562 = vmatpush1.msra.mxu0 %v5561
    %5563 = vmatprep.subr.mxu0 0.0
    %v5564 = vand.u32 %v87, 4294901760
    %5565 = vmatpush1.msra.mxu0 %v5564
    %5566 = vmatprep.subr.mxu0 0.0
    %v5567 = vand.u32 %v86, 4294901760
    %5568 = vmatpush1.msra.mxu0 %v5567
    %5569 = vmatprep.subr.mxu0 0.0
    %v5570 = vand.u32 %v85, 4294901760
    %5571 = vmatpush1.msra.mxu0 %v5570
    %5572 = vmatprep.subr.mxu0 0.0
    %v5573 = vand.u32 %v84, 4294901760
    %5574 = vmatpush1.msra.mxu0 %v5573
    %5575 = vmatprep.subr.mxu0 0.0
    %v5576 = vand.u32 %v83, 4294901760
    %5577 = vmatpush1.msra.mxu0 %v5576
    %5578 = vmatprep.subr.mxu0 0.0
    %v5579 = vand.u32 %v82, 4294901760
    %5580 = vmatpush1.msra.mxu0 %v5579
    %5581 = vmatprep.subr.mxu0 0.0
    %v5582 = vand.u32 %v81, 4294901760
    %5583 = vmatpush1.msra.mxu0 %v5582
    %5584 = vmatprep.subr.mxu0 0.0
    %v5585 = vand.u32 %v80, 4294901760
    %5586 = vmatpush1.msra.mxu0 %v5585
    %5587 = vmatprep.subr.mxu0 0.0
    %v5588 = vand.u32 %v79, 4294901760
    %5589 = vmatpush1.msra.mxu0 %v5588
    %5590 = vmatprep.subr.mxu0 0.0
    %v5591 = vand.u32 %v78, 4294901760
    %5592 = vmatpush1.msra.mxu0 %v5591
    %5593 = vmatprep.subr.mxu0 0.0
    %v5594 = vand.u32 %v77, 4294901760
    %5595 = vmatpush1.msra.mxu0 %v5594
    %5596 = vmatprep.subr.mxu0 0.0
    %v5597 = vand.u32 %v108, 4294901760
    %5598 = vmatpush2.msra.mxu0 %v5597
    %5599 = vmatprep.subr.mxu0 0.0
    %v5600 = vand.u32 %v107, 4294901760
    %5601 = vmatpush2.msra.mxu0 %v5600
    %5602 = vmatprep.subr.mxu0 0.0
    %v5603 = vand.u32 %v106, 4294901760
    %5604 = vmatpush2.msra.mxu0 %v5603
    %5605 = vmatprep.subr.mxu0 0.0
    %v5606 = vand.u32 %v105, 4294901760
    %5607 = vmatpush2.msra.mxu0 %v5606
    %5608 = vmatprep.subr.mxu0 0.0
    %v5609 = vand.u32 %v104, 4294901760
    %5610 = vmatpush2.msra.mxu0 %v5609
    %5611 = vmatprep.subr.mxu0 0.0
    %v5612 = vand.u32 %v103, 4294901760
    %5613 = vmatpush2.msra.mxu0 %v5612
    %5614 = vmatprep.subr.mxu0 0.0
    %v5615 = vand.u32 %v102, 4294901760
    %5616 = vmatpush2.msra.mxu0 %v5615
    %5617 = vmatprep.subr.mxu0 0.0
    %v5618 = vand.u32 %v101, 4294901760
    %5619 = vmatpush2.msra.mxu0 %v5618
    %5620 = vmatprep.subr.mxu0 0.0
    %v5621 = vand.u32 %v100, 4294901760
    %5622 = vmatpush2.msra.mxu0 %v5621
    %5623 = vmatprep.subr.mxu0 0.0
    %v5624 = vand.u32 %v99, 4294901760
    %5625 = vmatpush2.msra.mxu0 %v5624
    %5626 = vmatprep.subr.mxu0 0.0
    %v5627 = vand.u32 %v98, 4294901760
    %5628 = vmatpush2.msra.mxu0 %v5627
    %5629 = vmatprep.subr.mxu0 0.0
    %v5630 = vand.u32 %v97, 4294901760
    %5631 = vmatpush2.msra.mxu0 %v5630
    %5632 = vmatprep.subr.mxu0 0.0
    %v5633 = vand.u32 %v96, 4294901760
    %5634 = vmatpush2.msra.mxu0 %v5633
    %5635 = vmatprep.subr.mxu0 0.0
    %v5636 = vand.u32 %v95, 4294901760
    %5637 = vmatpush2.msra.mxu0 %v5636
    %5638 = vmatprep.subr.mxu0 0.0
    %v5639 = vand.u32 %v94, 4294901760
    %5640 = vmatpush2.msra.mxu0 %v5639
    %5641 = vmatprep.subr.mxu0 0.0
    %v5642 = vand.u32 %v93, 4294901760
    %5643 = vmatpush2.msra.mxu0 %v5642
    %v5644 = vand.u32 %v4684, 4294901760
    %v5645 = vsub.f32 %v4684, %v5644
    %v5646 = vand.u32 %v5645, 4294901760
    %v5647 = vsub.f32 %v5645, %v5646
    %v5648 = vand.u32 %v5647, 4294901760
    %5649 = vmatprep.mubr.f32.mxu0 %v5648
    %v5650 = vand.u32 %v4682, 4294901760
    %v5651 = vsub.f32 %v4682, %v5650
    %v5652 = vand.u32 %v5651, 4294901760
    %v5653 = vsub.f32 %v5651, %v5652
    %v5654 = vand.u32 %v5653, 4294901760
    %5655 = vmatmul.mubr.f32.gmra.mxu0 %v5654
    %v5656 = vpop.f32.mrf.mxu0
    %v5657 = vadd.f32 0.0, %v5656
    %v5658 = vpop.f32.mrf.mxu0
    %5659 = vdwg.mxu0
    %5660 = vmatprep.subr.mxu0 0.0
    %v5661 = vand.u32 %v92, 4294901760
    %v5662 = vsub.f32 %v92, %v5661
    %v5663 = vand.u32 %v5662, 4294901760
    %v5664 = vsub.f32 %v5662, %v5663
    %v5665 = vand.u32 %v5664, 4294901760
    %5666 = vmatpush1.msra.mxu0 %v5665
    %5667 = vmatprep.subr.mxu0 0.0
    %v5668 = vand.u32 %v91, 4294901760
    %v5669 = vsub.f32 %v91, %v5668
    %v5670 = vand.u32 %v5669, 4294901760
    %v5671 = vsub.f32 %v5669, %v5670
    %v5672 = vand.u32 %v5671, 4294901760
    %5673 = vmatpush1.msra.mxu0 %v5672
    %5674 = vmatprep.subr.mxu0 0.0
    %v5675 = vand.u32 %v90, 4294901760
    %v5676 = vsub.f32 %v90, %v5675
    %v5677 = vand.u32 %v5676, 4294901760
    %v5678 = vsub.f32 %v5676, %v5677
    %v5679 = vand.u32 %v5678, 4294901760
    %5680 = vmatpush1.msra.mxu0 %v5679
    %5681 = vmatprep.subr.mxu0 0.0
    %v5682 = vand.u32 %v89, 4294901760
    %v5683 = vsub.f32 %v89, %v5682
    %v5684 = vand.u32 %v5683, 4294901760
    %v5685 = vsub.f32 %v5683, %v5684
    %v5686 = vand.u32 %v5685, 4294901760
    %5687 = vmatpush1.msra.mxu0 %v5686
    %5688 = vmatprep.subr.mxu0 0.0
    %v5689 = vand.u32 %v88, 4294901760
    %v5690 = vsub.f32 %v88, %v5689
    %v5691 = vand.u32 %v5690, 4294901760
    %v5692 = vsub.f32 %v5690, %v5691
    %v5693 = vand.u32 %v5692, 4294901760
    %5694 = vmatpush1.msra.mxu0 %v5693
    %5695 = vmatprep.subr.mxu0 0.0
    %v5696 = vand.u32 %v87, 4294901760
    %v5697 = vsub.f32 %v87, %v5696
    %v5698 = vand.u32 %v5697, 4294901760
    %v5699 = vsub.f32 %v5697, %v5698
    %v5700 = vand.u32 %v5699, 4294901760
    %5701 = vmatpush1.msra.mxu0 %v5700
    %5702 = vmatprep.subr.mxu0 0.0
    %v5703 = vand.u32 %v86, 4294901760
    %v5704 = vsub.f32 %v86, %v5703
    %v5705 = vand.u32 %v5704, 4294901760
    %v5706 = vsub.f32 %v5704, %v5705
    %v5707 = vand.u32 %v5706, 4294901760
    %5708 = vmatpush1.msra.mxu0 %v5707
    %5709 = vmatprep.subr.mxu0 0.0
    %v5710 = vand.u32 %v85, 4294901760
    %v5711 = vsub.f32 %v85, %v5710
    %v5712 = vand.u32 %v5711, 4294901760
    %v5713 = vsub.f32 %v5711, %v5712
    %v5714 = vand.u32 %v5713, 4294901760
    %5715 = vmatpush1.msra.mxu0 %v5714
    %5716 = vmatprep.subr.mxu0 0.0
    %v5717 = vand.u32 %v84, 4294901760
    %v5718 = vsub.f32 %v84, %v5717
    %v5719 = vand.u32 %v5718, 4294901760
    %v5720 = vsub.f32 %v5718, %v5719
    %v5721 = vand.u32 %v5720, 4294901760
    %5722 = vmatpush1.msra.mxu0 %v5721
    %5723 = vmatprep.subr.mxu0 0.0
    %v5724 = vand.u32 %v83, 4294901760
    %v5725 = vsub.f32 %v83, %v5724
    %v5726 = vand.u32 %v5725, 4294901760
    %v5727 = vsub.f32 %v5725, %v5726
    %v5728 = vand.u32 %v5727, 4294901760
    %5729 = vmatpush1.msra.mxu0 %v5728
    %5730 = vmatprep.subr.mxu0 0.0
    %v5731 = vand.u32 %v82, 4294901760
    %v5732 = vsub.f32 %v82, %v5731
    %v5733 = vand.u32 %v5732, 4294901760
    %v5734 = vsub.f32 %v5732, %v5733
    %v5735 = vand.u32 %v5734, 4294901760
    %5736 = vmatpush1.msra.mxu0 %v5735
    %5737 = vmatprep.subr.mxu0 0.0
    %v5738 = vand.u32 %v81, 4294901760
    %v5739 = vsub.f32 %v81, %v5738
    %v5740 = vand.u32 %v5739, 4294901760
    %v5741 = vsub.f32 %v5739, %v5740
    %v5742 = vand.u32 %v5741, 4294901760
    %5743 = vmatpush1.msra.mxu0 %v5742
    %5744 = vmatprep.subr.mxu0 0.0
    %v5745 = vand.u32 %v80, 4294901760
    %v5746 = vsub.f32 %v80, %v5745
    %v5747 = vand.u32 %v5746, 4294901760
    %v5748 = vsub.f32 %v5746, %v5747
    %v5749 = vand.u32 %v5748, 4294901760
    %5750 = vmatpush1.msra.mxu0 %v5749
    %5751 = vmatprep.subr.mxu0 0.0
    %v5752 = vand.u32 %v79, 4294901760
    %v5753 = vsub.f32 %v79, %v5752
    %v5754 = vand.u32 %v5753, 4294901760
    %v5755 = vsub.f32 %v5753, %v5754
    %v5756 = vand.u32 %v5755, 4294901760
    %5757 = vmatpush1.msra.mxu0 %v5756
    %5758 = vmatprep.subr.mxu0 0.0
    %v5759 = vand.u32 %v78, 4294901760
    %v5760 = vsub.f32 %v78, %v5759
    %v5761 = vand.u32 %v5760, 4294901760
    %v5762 = vsub.f32 %v5760, %v5761
    %v5763 = vand.u32 %v5762, 4294901760
    %5764 = vmatpush1.msra.mxu0 %v5763
    %5765 = vmatprep.subr.mxu0 0.0
    %v5766 = vand.u32 %v77, 4294901760
    %v5767 = vsub.f32 %v77, %v5766
    %v5768 = vand.u32 %v5767, 4294901760
    %v5769 = vsub.f32 %v5767, %v5768
    %v5770 = vand.u32 %v5769, 4294901760
    %5771 = vmatpush1.msra.mxu0 %v5770
    %5772 = vmatprep.subr.mxu0 0.0
    %v5773 = vand.u32 %v108, 4294901760
    %v5774 = vsub.f32 %v108, %v5773
    %v5775 = vand.u32 %v5774, 4294901760
    %v5776 = vsub.f32 %v5774, %v5775
    %v5777 = vand.u32 %v5776, 4294901760
    %5778 = vmatpush2.msra.mxu0 %v5777
    %5779 = vmatprep.subr.mxu0 0.0
    %v5780 = vand.u32 %v107, 4294901760
    %v5781 = vsub.f32 %v107, %v5780
    %v5782 = vand.u32 %v5781, 4294901760
    %v5783 = vsub.f32 %v5781, %v5782
    %v5784 = vand.u32 %v5783, 4294901760
    %5785 = vmatpush2.msra.mxu0 %v5784
    %5786 = vmatprep.subr.mxu0 0.0
    %v5787 = vand.u32 %v106, 4294901760
    %v5788 = vsub.f32 %v106, %v5787
    %v5789 = vand.u32 %v5788, 4294901760
    %v5790 = vsub.f32 %v5788, %v5789
    %v5791 = vand.u32 %v5790, 4294901760
    %5792 = vmatpush2.msra.mxu0 %v5791
    %5793 = vmatprep.subr.mxu0 0.0
    %v5794 = vand.u32 %v105, 4294901760
    %v5795 = vsub.f32 %v105, %v5794
    %v5796 = vand.u32 %v5795, 4294901760
    %v5797 = vsub.f32 %v5795, %v5796
    %v5798 = vand.u32 %v5797, 4294901760
    %5799 = vmatpush2.msra.mxu0 %v5798
    %5800 = vmatprep.subr.mxu0 0.0
    %v5801 = vand.u32 %v104, 4294901760
    %v5802 = vsub.f32 %v104, %v5801
    %v5803 = vand.u32 %v5802, 4294901760
    %v5804 = vsub.f32 %v5802, %v5803
    %v5805 = vand.u32 %v5804, 4294901760
    %5806 = vmatpush2.msra.mxu0 %v5805
    %5807 = vmatprep.subr.mxu0 0.0
    %v5808 = vand.u32 %v103, 4294901760
    %v5809 = vsub.f32 %v103, %v5808
    %v5810 = vand.u32 %v5809, 4294901760
    %v5811 = vsub.f32 %v5809, %v5810
    %v5812 = vand.u32 %v5811, 4294901760
    %5813 = vmatpush2.msra.mxu0 %v5812
    %5814 = vmatprep.subr.mxu0 0.0
    %v5815 = vand.u32 %v102, 4294901760
    %v5816 = vsub.f32 %v102, %v5815
    %v5817 = vand.u32 %v5816, 4294901760
    %v5818 = vsub.f32 %v5816, %v5817
    %v5819 = vand.u32 %v5818, 4294901760
    %5820 = vmatpush2.msra.mxu0 %v5819
    %5821 = vmatprep.subr.mxu0 0.0
    %v5822 = vand.u32 %v101, 4294901760
    %v5823 = vsub.f32 %v101, %v5822
    %v5824 = vand.u32 %v5823, 4294901760
    %v5825 = vsub.f32 %v5823, %v5824
    %v5826 = vand.u32 %v5825, 4294901760
    %5827 = vmatpush2.msra.mxu0 %v5826
    %5828 = vmatprep.subr.mxu0 0.0
    %v5829 = vand.u32 %v100, 4294901760
    %v5830 = vsub.f32 %v100, %v5829
    %v5831 = vand.u32 %v5830, 4294901760
    %v5832 = vsub.f32 %v5830, %v5831
    %v5833 = vand.u32 %v5832, 4294901760
    %5834 = vmatpush2.msra.mxu0 %v5833
    %5835 = vmatprep.subr.mxu0 0.0
    %v5836 = vand.u32 %v99, 4294901760
    %v5837 = vsub.f32 %v99, %v5836
    %v5838 = vand.u32 %v5837, 4294901760
    %v5839 = vsub.f32 %v5837, %v5838
    %v5840 = vand.u32 %v5839, 4294901760
    %5841 = vmatpush2.msra.mxu0 %v5840
    %5842 = vmatprep.subr.mxu0 0.0
    %v5843 = vand.u32 %v98, 4294901760
    %v5844 = vsub.f32 %v98, %v5843
    %v5845 = vand.u32 %v5844, 4294901760
    %v5846 = vsub.f32 %v5844, %v5845
    %v5847 = vand.u32 %v5846, 4294901760
    %5848 = vmatpush2.msra.mxu0 %v5847
    %5849 = vmatprep.subr.mxu0 0.0
    %v5850 = vand.u32 %v97, 4294901760
    %v5851 = vsub.f32 %v97, %v5850
    %v5852 = vand.u32 %v5851, 4294901760
    %v5853 = vsub.f32 %v5851, %v5852
    %v5854 = vand.u32 %v5853, 4294901760
    %5855 = vmatpush2.msra.mxu0 %v5854
    %5856 = vmatprep.subr.mxu0 0.0
    %v5857 = vand.u32 %v96, 4294901760
    %v5858 = vsub.f32 %v96, %v5857
    %v5859 = vand.u32 %v5858, 4294901760
    %v5860 = vsub.f32 %v5858, %v5859
    %v5861 = vand.u32 %v5860, 4294901760
    %5862 = vmatpush2.msra.mxu0 %v5861
    %5863 = vmatprep.subr.mxu0 0.0
    %v5864 = vand.u32 %v95, 4294901760
    %v5865 = vsub.f32 %v95, %v5864
    %v5866 = vand.u32 %v5865, 4294901760
    %v5867 = vsub.f32 %v5865, %v5866
    %v5868 = vand.u32 %v5867, 4294901760
    %5869 = vmatpush2.msra.mxu0 %v5868
    %5870 = vmatprep.subr.mxu0 0.0
    %v5871 = vand.u32 %v94, 4294901760
    %v5872 = vsub.f32 %v94, %v5871
    %v5873 = vand.u32 %v5872, 4294901760
    %v5874 = vsub.f32 %v5872, %v5873
    %v5875 = vand.u32 %v5874, 4294901760
    %5876 = vmatpush2.msra.mxu0 %v5875
    %5877 = vmatprep.subr.mxu0 0.0
    %v5878 = vand.u32 %v93, 4294901760
    %v5879 = vsub.f32 %v93, %v5878
    %v5880 = vand.u32 %v5879, 4294901760
    %v5881 = vsub.f32 %v5879, %v5880
    %v5882 = vand.u32 %v5881, 4294901760
    %5883 = vmatpush2.msra.mxu0 %v5882
    %v5884 = vand.u32 %v4684, 4294901760
    %5885 = vmatprep.mubr.f32.mxu0 %v5884
    %v5886 = vand.u32 %v4682, 4294901760
    %5887 = vmatmul.mubr.f32.gmra.mxu0 %v5886
    %v5888 = vpop.f32.mrf.mxu0
    %v5889 = vadd.f32 %v5657, %v5888
    %v5890 = vpop.f32.mrf.mxu0
    %5891 = vdwg.mxu0
    %5892 = vmatprep.subr.mxu0 0.0
    %v5893 = vand.u32 %v92, 4294901760
    %v5894 = vsub.f32 %v92, %v5893
    %5895 = vmatpush1.msra.mxu0 %v5894
    %5896 = vmatprep.subr.mxu0 0.0
    %v5897 = vand.u32 %v91, 4294901760
    %v5898 = vsub.f32 %v91, %v5897
    %5899 = vmatpush1.msra.mxu0 %v5898
    %5900 = vmatprep.subr.mxu0 0.0
    %v5901 = vand.u32 %v90, 4294901760
    %v5902 = vsub.f32 %v90, %v5901
    %5903 = vmatpush1.msra.mxu0 %v5902
    %5904 = vmatprep.subr.mxu0 0.0
    %v5905 = vand.u32 %v89, 4294901760
    %v5906 = vsub.f32 %v89, %v5905
    %5907 = vmatpush1.msra.mxu0 %v5906
    %5908 = vmatprep.subr.mxu0 0.0
    %v5909 = vand.u32 %v88, 4294901760
    %v5910 = vsub.f32 %v88, %v5909
    %5911 = vmatpush1.msra.mxu0 %v5910
    %5912 = vmatprep.subr.mxu0 0.0
    %v5913 = vand.u32 %v87, 4294901760
    %v5914 = vsub.f32 %v87, %v5913
    %5915 = vmatpush1.msra.mxu0 %v5914
    %5916 = vmatprep.subr.mxu0 0.0
    %v5917 = vand.u32 %v86, 4294901760
    %v5918 = vsub.f32 %v86, %v5917
    %5919 = vmatpush1.msra.mxu0 %v5918
    %5920 = vmatprep.subr.mxu0 0.0
    %v5921 = vand.u32 %v85, 4294901760
    %v5922 = vsub.f32 %v85, %v5921
    %5923 = vmatpush1.msra.mxu0 %v5922
    %5924 = vmatprep.subr.mxu0 0.0
    %v5925 = vand.u32 %v84, 4294901760
    %v5926 = vsub.f32 %v84, %v5925
    %5927 = vmatpush1.msra.mxu0 %v5926
    %5928 = vmatprep.subr.mxu0 0.0
    %v5929 = vand.u32 %v83, 4294901760
    %v5930 = vsub.f32 %v83, %v5929
    %5931 = vmatpush1.msra.mxu0 %v5930
    %5932 = vmatprep.subr.mxu0 0.0
    %v5933 = vand.u32 %v82, 4294901760
    %v5934 = vsub.f32 %v82, %v5933
    %5935 = vmatpush1.msra.mxu0 %v5934
    %5936 = vmatprep.subr.mxu0 0.0
    %v5937 = vand.u32 %v81, 4294901760
    %v5938 = vsub.f32 %v81, %v5937
    %5939 = vmatpush1.msra.mxu0 %v5938
    %5940 = vmatprep.subr.mxu0 0.0
    %v5941 = vand.u32 %v80, 4294901760
    %v5942 = vsub.f32 %v80, %v5941
    %5943 = vmatpush1.msra.mxu0 %v5942
    %5944 = vmatprep.subr.mxu0 0.0
    %v5945 = vand.u32 %v79, 4294901760
    %v5946 = vsub.f32 %v79, %v5945
    %5947 = vmatpush1.msra.mxu0 %v5946
    %5948 = vmatprep.subr.mxu0 0.0
    %v5949 = vand.u32 %v78, 4294901760
    %v5950 = vsub.f32 %v78, %v5949
    %5951 = vmatpush1.msra.mxu0 %v5950
    %5952 = vmatprep.subr.mxu0 0.0
    %v5953 = vand.u32 %v77, 4294901760
    %v5954 = vsub.f32 %v77, %v5953
    %5955 = vmatpush1.msra.mxu0 %v5954
    %5956 = vmatprep.subr.mxu0 0.0
    %v5957 = vand.u32 %v108, 4294901760
    %v5958 = vsub.f32 %v108, %v5957
    %5959 = vmatpush2.msra.mxu0 %v5958
    %5960 = vmatprep.subr.mxu0 0.0
    %v5961 = vand.u32 %v107, 4294901760
    %v5962 = vsub.f32 %v107, %v5961
    %5963 = vmatpush2.msra.mxu0 %v5962
    %5964 = vmatprep.subr.mxu0 0.0
    %v5965 = vand.u32 %v106, 4294901760
    %v5966 = vsub.f32 %v106, %v5965
    %5967 = vmatpush2.msra.mxu0 %v5966
    %5968 = vmatprep.subr.mxu0 0.0
    %v5969 = vand.u32 %v105, 4294901760
    %v5970 = vsub.f32 %v105, %v5969
    %5971 = vmatpush2.msra.mxu0 %v5970
    %5972 = vmatprep.subr.mxu0 0.0
    %v5973 = vand.u32 %v104, 4294901760
    %v5974 = vsub.f32 %v104, %v5973
    %5975 = vmatpush2.msra.mxu0 %v5974
    %5976 = vmatprep.subr.mxu0 0.0
    %v5977 = vand.u32 %v103, 4294901760
    %v5978 = vsub.f32 %v103, %v5977
    %5979 = vmatpush2.msra.mxu0 %v5978
    %5980 = vmatprep.subr.mxu0 0.0
    %v5981 = vand.u32 %v102, 4294901760
    %v5982 = vsub.f32 %v102, %v5981
    %5983 = vmatpush2.msra.mxu0 %v5982
    %5984 = vmatprep.subr.mxu0 0.0
    %v5985 = vand.u32 %v101, 4294901760
    %v5986 = vsub.f32 %v101, %v5985
    %5987 = vmatpush2.msra.mxu0 %v5986
    %5988 = vmatprep.subr.mxu0 0.0
    %v5989 = vand.u32 %v100, 4294901760
    %v5990 = vsub.f32 %v100, %v5989
    %5991 = vmatpush2.msra.mxu0 %v5990
    %5992 = vmatprep.subr.mxu0 0.0
    %v5993 = vand.u32 %v99, 4294901760
    %v5994 = vsub.f32 %v99, %v5993
    %5995 = vmatpush2.msra.mxu0 %v5994
    %5996 = vmatprep.subr.mxu0 0.0
    %v5997 = vand.u32 %v98, 4294901760
    %v5998 = vsub.f32 %v98, %v5997
    %5999 = vmatpush2.msra.mxu0 %v5998
    %6000 = vmatprep.subr.mxu0 0.0
    %v6001 = vand.u32 %v97, 4294901760
    %v6002 = vsub.f32 %v97, %v6001
    %6003 = vmatpush2.msra.mxu0 %v6002
    %6004 = vmatprep.subr.mxu0 0.0
    %v6005 = vand.u32 %v96, 4294901760
    %v6006 = vsub.f32 %v96, %v6005
    %6007 = vmatpush2.msra.mxu0 %v6006
    %6008 = vmatprep.subr.mxu0 0.0
    %v6009 = vand.u32 %v95, 4294901760
    %v6010 = vsub.f32 %v95, %v6009
    %6011 = vmatpush2.msra.mxu0 %v6010
    %6012 = vmatprep.subr.mxu0 0.0
    %v6013 = vand.u32 %v94, 4294901760
    %v6014 = vsub.f32 %v94, %v6013
    %6015 = vmatpush2.msra.mxu0 %v6014
    %6016 = vmatprep.subr.mxu0 0.0
    %v6017 = vand.u32 %v93, 4294901760
    %v6018 = vsub.f32 %v93, %v6017
    %6019 = vmatpush2.msra.mxu0 %v6018
    %v6020 = vand.u32 %v4684, 4294901760
    %v6021 = vsub.f32 %v4684, %v6020
    %6022 = vmatprep.mubr.f32.mxu0 %v6021
    %v6023 = vand.u32 %v4682, 4294901760
    %v6024 = vsub.f32 %v4682, %v6023
    %6025 = vmatmul.mubr.f32.gmra.mxu0 %v6024
    %v6026 = vpop.f32.mrf.mxu0
    %v6027 = vadd.f32 %v5889, %v6026
    %v6028 = vpop.f32.mrf.mxu0
    %6029 = vdwg.mxu0
    %6030 = vmatprep.subr.mxu0 0.0
    %v6031 = vand.u32 %v92, 4294901760
    %6032 = vmatpush1.msra.mxu0 %v6031
    %6033 = vmatprep.subr.mxu0 0.0
    %v6034 = vand.u32 %v91, 4294901760
    %6035 = vmatpush1.msra.mxu0 %v6034
    %6036 = vmatprep.subr.mxu0 0.0
    %v6037 = vand.u32 %v90, 4294901760
    %6038 = vmatpush1.msra.mxu0 %v6037
    %6039 = vmatprep.subr.mxu0 0.0
    %v6040 = vand.u32 %v89, 4294901760
    %6041 = vmatpush1.msra.mxu0 %v6040
    %6042 = vmatprep.subr.mxu0 0.0
    %v6043 = vand.u32 %v88, 4294901760
    %6044 = vmatpush1.msra.mxu0 %v6043
    %6045 = vmatprep.subr.mxu0 0.0
    %v6046 = vand.u32 %v87, 4294901760
    %6047 = vmatpush1.msra.mxu0 %v6046
    %6048 = vmatprep.subr.mxu0 0.0
    %v6049 = vand.u32 %v86, 4294901760
    %6050 = vmatpush1.msra.mxu0 %v6049
    %6051 = vmatprep.subr.mxu0 0.0
    %v6052 = vand.u32 %v85, 4294901760
    %6053 = vmatpush1.msra.mxu0 %v6052
    %6054 = vmatprep.subr.mxu0 0.0
    %v6055 = vand.u32 %v84, 4294901760
    %6056 = vmatpush1.msra.mxu0 %v6055
    %6057 = vmatprep.subr.mxu0 0.0
    %v6058 = vand.u32 %v83, 4294901760
    %6059 = vmatpush1.msra.mxu0 %v6058
    %6060 = vmatprep.subr.mxu0 0.0
    %v6061 = vand.u32 %v82, 4294901760
    %6062 = vmatpush1.msra.mxu0 %v6061
    %6063 = vmatprep.subr.mxu0 0.0
    %v6064 = vand.u32 %v81, 4294901760
    %6065 = vmatpush1.msra.mxu0 %v6064
    %6066 = vmatprep.subr.mxu0 0.0
    %v6067 = vand.u32 %v80, 4294901760
    %6068 = vmatpush1.msra.mxu0 %v6067
    %6069 = vmatprep.subr.mxu0 0.0
    %v6070 = vand.u32 %v79, 4294901760
    %6071 = vmatpush1.msra.mxu0 %v6070
    %6072 = vmatprep.subr.mxu0 0.0
    %v6073 = vand.u32 %v78, 4294901760
    %6074 = vmatpush1.msra.mxu0 %v6073
    %6075 = vmatprep.subr.mxu0 0.0
    %v6076 = vand.u32 %v77, 4294901760
    %6077 = vmatpush1.msra.mxu0 %v6076
    %6078 = vmatprep.subr.mxu0 0.0
    %v6079 = vand.u32 %v108, 4294901760
    %6080 = vmatpush2.msra.mxu0 %v6079
    %6081 = vmatprep.subr.mxu0 0.0
    %v6082 = vand.u32 %v107, 4294901760
    %6083 = vmatpush2.msra.mxu0 %v6082
    %6084 = vmatprep.subr.mxu0 0.0
    %v6085 = vand.u32 %v106, 4294901760
    %6086 = vmatpush2.msra.mxu0 %v6085
    %6087 = vmatprep.subr.mxu0 0.0
    %v6088 = vand.u32 %v105, 4294901760
    %6089 = vmatpush2.msra.mxu0 %v6088
    %6090 = vmatprep.subr.mxu0 0.0
    %v6091 = vand.u32 %v104, 4294901760
    %6092 = vmatpush2.msra.mxu0 %v6091
    %6093 = vmatprep.subr.mxu0 0.0
    %v6094 = vand.u32 %v103, 4294901760
    %6095 = vmatpush2.msra.mxu0 %v6094
    %6096 = vmatprep.subr.mxu0 0.0
    %v6097 = vand.u32 %v102, 4294901760
    %6098 = vmatpush2.msra.mxu0 %v6097
    %6099 = vmatprep.subr.mxu0 0.0
    %v6100 = vand.u32 %v101, 4294901760
    %6101 = vmatpush2.msra.mxu0 %v6100
    %6102 = vmatprep.subr.mxu0 0.0
    %v6103 = vand.u32 %v100, 4294901760
    %6104 = vmatpush2.msra.mxu0 %v6103
    %6105 = vmatprep.subr.mxu0 0.0
    %v6106 = vand.u32 %v99, 4294901760
    %6107 = vmatpush2.msra.mxu0 %v6106
    %6108 = vmatprep.subr.mxu0 0.0
    %v6109 = vand.u32 %v98, 4294901760
    %6110 = vmatpush2.msra.mxu0 %v6109
    %6111 = vmatprep.subr.mxu0 0.0
    %v6112 = vand.u32 %v97, 4294901760
    %6113 = vmatpush2.msra.mxu0 %v6112
    %6114 = vmatprep.subr.mxu0 0.0
    %v6115 = vand.u32 %v96, 4294901760
    %6116 = vmatpush2.msra.mxu0 %v6115
    %6117 = vmatprep.subr.mxu0 0.0
    %v6118 = vand.u32 %v95, 4294901760
    %6119 = vmatpush2.msra.mxu0 %v6118
    %6120 = vmatprep.subr.mxu0 0.0
    %v6121 = vand.u32 %v94, 4294901760
    %6122 = vmatpush2.msra.mxu0 %v6121
    %6123 = vmatprep.subr.mxu0 0.0
    %v6124 = vand.u32 %v93, 4294901760
    %6125 = vmatpush2.msra.mxu0 %v6124
    %v6126 = vand.u32 %v4684, 4294901760
    %v6127 = vsub.f32 %v4684, %v6126
    %v6128 = vand.u32 %v6127, 4294901760
    %6129 = vmatprep.mubr.f32.mxu0 %v6128
    %v6130 = vand.u32 %v4682, 4294901760
    %v6131 = vsub.f32 %v4682, %v6130
    %v6132 = vand.u32 %v6131, 4294901760
    %6133 = vmatmul.mubr.f32.gmra.mxu0 %v6132
    %v6134 = vpop.f32.mrf.mxu0
    %v6135 = vadd.f32 %v6027, %v6134
    %v6136 = vpop.f32.mrf.mxu0
    %6137 = vdwg.mxu0
    %6138 = vmatprep.subr.mxu0 0.0
    %v6139 = vand.u32 %v92, 4294901760
    %v6140 = vsub.f32 %v92, %v6139
    %v6141 = vand.u32 %v6140, 4294901760
    %6142 = vmatpush1.msra.mxu0 %v6141
    %6143 = vmatprep.subr.mxu0 0.0
    %v6144 = vand.u32 %v91, 4294901760
    %v6145 = vsub.f32 %v91, %v6144
    %v6146 = vand.u32 %v6145, 4294901760
    %6147 = vmatpush1.msra.mxu0 %v6146
    %6148 = vmatprep.subr.mxu0 0.0
    %v6149 = vand.u32 %v90, 4294901760
    %v6150 = vsub.f32 %v90, %v6149
    %v6151 = vand.u32 %v6150, 4294901760
    %6152 = vmatpush1.msra.mxu0 %v6151
    %6153 = vmatprep.subr.mxu0 0.0
    %v6154 = vand.u32 %v89, 4294901760
    %v6155 = vsub.f32 %v89, %v6154
    %v6156 = vand.u32 %v6155, 4294901760
    %6157 = vmatpush1.msra.mxu0 %v6156
    %6158 = vmatprep.subr.mxu0 0.0
    %v6159 = vand.u32 %v88, 4294901760
    %v6160 = vsub.f32 %v88, %v6159
    %v6161 = vand.u32 %v6160, 4294901760
    %6162 = vmatpush1.msra.mxu0 %v6161
    %6163 = vmatprep.subr.mxu0 0.0
    %v6164 = vand.u32 %v87, 4294901760
    %v6165 = vsub.f32 %v87, %v6164
    %v6166 = vand.u32 %v6165, 4294901760
    %6167 = vmatpush1.msra.mxu0 %v6166
    %6168 = vmatprep.subr.mxu0 0.0
    %v6169 = vand.u32 %v86, 4294901760
    %v6170 = vsub.f32 %v86, %v6169
    %v6171 = vand.u32 %v6170, 4294901760
    %6172 = vmatpush1.msra.mxu0 %v6171
    %6173 = vmatprep.subr.mxu0 0.0
    %v6174 = vand.u32 %v85, 4294901760
    %v6175 = vsub.f32 %v85, %v6174
    %v6176 = vand.u32 %v6175, 4294901760
    %6177 = vmatpush1.msra.mxu0 %v6176
    %6178 = vmatprep.subr.mxu0 0.0
    %v6179 = vand.u32 %v84, 4294901760
    %v6180 = vsub.f32 %v84, %v6179
    %v6181 = vand.u32 %v6180, 4294901760
    %6182 = vmatpush1.msra.mxu0 %v6181
    %6183 = vmatprep.subr.mxu0 0.0
    %v6184 = vand.u32 %v83, 4294901760
    %v6185 = vsub.f32 %v83, %v6184
    %v6186 = vand.u32 %v6185, 4294901760
    %6187 = vmatpush1.msra.mxu0 %v6186
    %6188 = vmatprep.subr.mxu0 0.0
    %v6189 = vand.u32 %v82, 4294901760
    %v6190 = vsub.f32 %v82, %v6189
    %v6191 = vand.u32 %v6190, 4294901760
    %6192 = vmatpush1.msra.mxu0 %v6191
    %6193 = vmatprep.subr.mxu0 0.0
    %v6194 = vand.u32 %v81, 4294901760
    %v6195 = vsub.f32 %v81, %v6194
    %v6196 = vand.u32 %v6195, 4294901760
    %6197 = vmatpush1.msra.mxu0 %v6196
    %6198 = vmatprep.subr.mxu0 0.0
    %v6199 = vand.u32 %v80, 4294901760
    %v6200 = vsub.f32 %v80, %v6199
    %v6201 = vand.u32 %v6200, 4294901760
    %6202 = vmatpush1.msra.mxu0 %v6201
    %6203 = vmatprep.subr.mxu0 0.0
    %v6204 = vand.u32 %v79, 4294901760
    %v6205 = vsub.f32 %v79, %v6204
    %v6206 = vand.u32 %v6205, 4294901760
    %6207 = vmatpush1.msra.mxu0 %v6206
    %6208 = vmatprep.subr.mxu0 0.0
    %v6209 = vand.u32 %v78, 4294901760
    %v6210 = vsub.f32 %v78, %v6209
    %v6211 = vand.u32 %v6210, 4294901760
    %6212 = vmatpush1.msra.mxu0 %v6211
    %6213 = vmatprep.subr.mxu0 0.0
    %v6214 = vand.u32 %v77, 4294901760
    %v6215 = vsub.f32 %v77, %v6214
    %v6216 = vand.u32 %v6215, 4294901760
    %6217 = vmatpush1.msra.mxu0 %v6216
    %6218 = vmatprep.subr.mxu0 0.0
    %v6219 = vand.u32 %v108, 4294901760
    %v6220 = vsub.f32 %v108, %v6219
    %v6221 = vand.u32 %v6220, 4294901760
    %6222 = vmatpush2.msra.mxu0 %v6221
    %6223 = vmatprep.subr.mxu0 0.0
    %v6224 = vand.u32 %v107, 4294901760
    %v6225 = vsub.f32 %v107, %v6224
    %v6226 = vand.u32 %v6225, 4294901760
    %6227 = vmatpush2.msra.mxu0 %v6226
    %6228 = vmatprep.subr.mxu0 0.0
    %v6229 = vand.u32 %v106, 4294901760
    %v6230 = vsub.f32 %v106, %v6229
    %v6231 = vand.u32 %v6230, 4294901760
    %6232 = vmatpush2.msra.mxu0 %v6231
    %6233 = vmatprep.subr.mxu0 0.0
    %v6234 = vand.u32 %v105, 4294901760
    %v6235 = vsub.f32 %v105, %v6234
    %v6236 = vand.u32 %v6235, 4294901760
    %6237 = vmatpush2.msra.mxu0 %v6236
    %6238 = vmatprep.subr.mxu0 0.0
    %v6239 = vand.u32 %v104, 4294901760
    %v6240 = vsub.f32 %v104, %v6239
    %v6241 = vand.u32 %v6240, 4294901760
    %6242 = vmatpush2.msra.mxu0 %v6241
    %6243 = vmatprep.subr.mxu0 0.0
    %v6244 = vand.u32 %v103, 4294901760
    %v6245 = vsub.f32 %v103, %v6244
    %v6246 = vand.u32 %v6245, 4294901760
    %6247 = vmatpush2.msra.mxu0 %v6246
    %6248 = vmatprep.subr.mxu0 0.0
    %v6249 = vand.u32 %v102, 4294901760
    %v6250 = vsub.f32 %v102, %v6249
    %v6251 = vand.u32 %v6250, 4294901760
    %6252 = vmatpush2.msra.mxu0 %v6251
    %6253 = vmatprep.subr.mxu0 0.0
    %v6254 = vand.u32 %v101, 4294901760
    %v6255 = vsub.f32 %v101, %v6254
    %v6256 = vand.u32 %v6255, 4294901760
    %6257 = vmatpush2.msra.mxu0 %v6256
    %6258 = vmatprep.subr.mxu0 0.0
    %v6259 = vand.u32 %v100, 4294901760
    %v6260 = vsub.f32 %v100, %v6259
    %v6261 = vand.u32 %v6260, 4294901760
    %6262 = vmatpush2.msra.mxu0 %v6261
    %6263 = vmatprep.subr.mxu0 0.0
    %v6264 = vand.u32 %v99, 4294901760
    %v6265 = vsub.f32 %v99, %v6264
    %v6266 = vand.u32 %v6265, 4294901760
    %6267 = vmatpush2.msra.mxu0 %v6266
    %6268 = vmatprep.subr.mxu0 0.0
    %v6269 = vand.u32 %v98, 4294901760
    %v6270 = vsub.f32 %v98, %v6269
    %v6271 = vand.u32 %v6270, 4294901760
    %6272 = vmatpush2.msra.mxu0 %v6271
    %6273 = vmatprep.subr.mxu0 0.0
    %v6274 = vand.u32 %v97, 4294901760
    %v6275 = vsub.f32 %v97, %v6274
    %v6276 = vand.u32 %v6275, 4294901760
    %6277 = vmatpush2.msra.mxu0 %v6276
    %6278 = vmatprep.subr.mxu0 0.0
    %v6279 = vand.u32 %v96, 4294901760
    %v6280 = vsub.f32 %v96, %v6279
    %v6281 = vand.u32 %v6280, 4294901760
    %6282 = vmatpush2.msra.mxu0 %v6281
    %6283 = vmatprep.subr.mxu0 0.0
    %v6284 = vand.u32 %v95, 4294901760
    %v6285 = vsub.f32 %v95, %v6284
    %v6286 = vand.u32 %v6285, 4294901760
    %6287 = vmatpush2.msra.mxu0 %v6286
    %6288 = vmatprep.subr.mxu0 0.0
    %v6289 = vand.u32 %v94, 4294901760
    %v6290 = vsub.f32 %v94, %v6289
    %v6291 = vand.u32 %v6290, 4294901760
    %6292 = vmatpush2.msra.mxu0 %v6291
    %6293 = vmatprep.subr.mxu0 0.0
    %v6294 = vand.u32 %v93, 4294901760
    %v6295 = vsub.f32 %v93, %v6294
    %v6296 = vand.u32 %v6295, 4294901760
    %6297 = vmatpush2.msra.mxu0 %v6296
    %v6298 = vand.u32 %v4684, 4294901760
    %6299 = vmatprep.mubr.f32.mxu0 %v6298
    %v6300 = vand.u32 %v4682, 4294901760
    %6301 = vmatmul.mubr.f32.gmra.mxu0 %v6300
    %v6302 = vpop.f32.mrf.mxu0
    %v6303 = vadd.f32 %v6135, %v6302
    %v6304 = vpop.f32.mrf.mxu0
    %6305 = vdwg.mxu0
    %6306 = vmatprep.subr.mxu0 0.0
    %v6307 = vand.u32 %v92, 4294901760
    %6308 = vmatpush1.msra.mxu0 %v6307
    %6309 = vmatprep.subr.mxu0 0.0
    %v6310 = vand.u32 %v91, 4294901760
    %6311 = vmatpush1.msra.mxu0 %v6310
    %6312 = vmatprep.subr.mxu0 0.0
    %v6313 = vand.u32 %v90, 4294901760
    %6314 = vmatpush1.msra.mxu0 %v6313
    %6315 = vmatprep.subr.mxu0 0.0
    %v6316 = vand.u32 %v89, 4294901760
    %6317 = vmatpush1.msra.mxu0 %v6316
    %6318 = vmatprep.subr.mxu0 0.0
    %v6319 = vand.u32 %v88, 4294901760
    %6320 = vmatpush1.msra.mxu0 %v6319
    %6321 = vmatprep.subr.mxu0 0.0
    %v6322 = vand.u32 %v87, 4294901760
    %6323 = vmatpush1.msra.mxu0 %v6322
    %6324 = vmatprep.subr.mxu0 0.0
    %v6325 = vand.u32 %v86, 4294901760
    %6326 = vmatpush1.msra.mxu0 %v6325
    %6327 = vmatprep.subr.mxu0 0.0
    %v6328 = vand.u32 %v85, 4294901760
    %6329 = vmatpush1.msra.mxu0 %v6328
    %6330 = vmatprep.subr.mxu0 0.0
    %v6331 = vand.u32 %v84, 4294901760
    %6332 = vmatpush1.msra.mxu0 %v6331
    %6333 = vmatprep.subr.mxu0 0.0
    %v6334 = vand.u32 %v83, 4294901760
    %6335 = vmatpush1.msra.mxu0 %v6334
    %6336 = vmatprep.subr.mxu0 0.0
    %v6337 = vand.u32 %v82, 4294901760
    %6338 = vmatpush1.msra.mxu0 %v6337
    %6339 = vmatprep.subr.mxu0 0.0
    %v6340 = vand.u32 %v81, 4294901760
    %6341 = vmatpush1.msra.mxu0 %v6340
    %6342 = vmatprep.subr.mxu0 0.0
    %v6343 = vand.u32 %v80, 4294901760
    %6344 = vmatpush1.msra.mxu0 %v6343
    %6345 = vmatprep.subr.mxu0 0.0
    %v6346 = vand.u32 %v79, 4294901760
    %6347 = vmatpush1.msra.mxu0 %v6346
    %6348 = vmatprep.subr.mxu0 0.0
    %v6349 = vand.u32 %v78, 4294901760
    %6350 = vmatpush1.msra.mxu0 %v6349
    %6351 = vmatprep.subr.mxu0 0.0
    %v6352 = vand.u32 %v77, 4294901760
    %6353 = vmatpush1.msra.mxu0 %v6352
    %6354 = vmatprep.subr.mxu0 0.0
    %v6355 = vand.u32 %v108, 4294901760
    %6356 = vmatpush2.msra.mxu0 %v6355
    %6357 = vmatprep.subr.mxu0 0.0
    %v6358 = vand.u32 %v107, 4294901760
    %6359 = vmatpush2.msra.mxu0 %v6358
    %6360 = vmatprep.subr.mxu0 0.0
    %v6361 = vand.u32 %v106, 4294901760
    %6362 = vmatpush2.msra.mxu0 %v6361
    %6363 = vmatprep.subr.mxu0 0.0
    %v6364 = vand.u32 %v105, 4294901760
    %6365 = vmatpush2.msra.mxu0 %v6364
    %6366 = vmatprep.subr.mxu0 0.0
    %v6367 = vand.u32 %v104, 4294901760
    %6368 = vmatpush2.msra.mxu0 %v6367
    %6369 = vmatprep.subr.mxu0 0.0
    %v6370 = vand.u32 %v103, 4294901760
    %6371 = vmatpush2.msra.mxu0 %v6370
    %6372 = vmatprep.subr.mxu0 0.0
    %v6373 = vand.u32 %v102, 4294901760
    %6374 = vmatpush2.msra.mxu0 %v6373
    %6375 = vmatprep.subr.mxu0 0.0
    %v6376 = vand.u32 %v101, 4294901760
    %6377 = vmatpush2.msra.mxu0 %v6376
    %6378 = vmatprep.subr.mxu0 0.0
    %v6379 = vand.u32 %v100, 4294901760
    %6380 = vmatpush2.msra.mxu0 %v6379
    %6381 = vmatprep.subr.mxu0 0.0
    %v6382 = vand.u32 %v99, 4294901760
    %6383 = vmatpush2.msra.mxu0 %v6382
    %6384 = vmatprep.subr.mxu0 0.0
    %v6385 = vand.u32 %v98, 4294901760
    %6386 = vmatpush2.msra.mxu0 %v6385
    %6387 = vmatprep.subr.mxu0 0.0
    %v6388 = vand.u32 %v97, 4294901760
    %6389 = vmatpush2.msra.mxu0 %v6388
    %6390 = vmatprep.subr.mxu0 0.0
    %v6391 = vand.u32 %v96, 4294901760
    %6392 = vmatpush2.msra.mxu0 %v6391
    %6393 = vmatprep.subr.mxu0 0.0
    %v6394 = vand.u32 %v95, 4294901760
    %6395 = vmatpush2.msra.mxu0 %v6394
    %6396 = vmatprep.subr.mxu0 0.0
    %v6397 = vand.u32 %v94, 4294901760
    %6398 = vmatpush2.msra.mxu0 %v6397
    %6399 = vmatprep.subr.mxu0 0.0
    %v6400 = vand.u32 %v93, 4294901760
    %6401 = vmatpush2.msra.mxu0 %v6400
    %v6402 = vand.u32 %v4684, 4294901760
    %6403 = vmatprep.mubr.f32.mxu0 %v6402
    %v6404 = vand.u32 %v4682, 4294901760
    %6405 = vmatmul.mubr.f32.gmra.mxu0 %v6404
    %v6406 = vpop.f32.mrf.mxu0
    %v6407 = vadd.f32 %v6303, %v6406
    %v6408 = vpop.f32.mrf.mxu0
    %6409 = vdwg.mxu0
    %v6411 = vsel %vm1854, %v5545, 0
    %6413 = vmatprep.subr.mxu0 0.0
    %6414 = vmatpush1.msra.mxu0 0.0
    %6415 = vmatprep.subr.mxu0 0.0
    %6416 = vmatpush1.msra.mxu0 0.0
    %6417 = vmatprep.subr.mxu0 0.0
    %6418 = vmatpush1.msra.mxu0 0.0
    %6419 = vmatprep.subr.mxu0 0.0
    %6420 = vmatpush1.msra.mxu0 0.0
    %6421 = vmatprep.subr.mxu0 0.0
    %6422 = vmatpush1.msra.mxu0 0.0
    %6423 = vmatprep.subr.mxu0 0.0
    %6424 = vmatpush1.msra.mxu0 0.0
    %6425 = vmatprep.subr.mxu0 0.0
    %6426 = vmatpush1.msra.mxu0 0.0
    %6427 = vmatprep.subr.mxu0 0.0
    %6428 = vmatpush1.msra.mxu0 0.0
    %6429 = vmatprep.subr.mxu0 0.0
    %6430 = vmatpush1.msra.mxu0 0.0
    %6431 = vmatprep.subr.mxu0 0.0
    %6432 = vmatpush1.msra.mxu0 0.0
    %6433 = vmatprep.subr.mxu0 0.0
    %6434 = vmatpush1.msra.mxu0 0.0
    %6435 = vmatprep.subr.mxu0 0.0
    %6436 = vmatpush1.msra.mxu0 0.0
    %6437 = vmatprep.subr.mxu0 0.0
    %6438 = vmatpush1.msra.mxu0 0.0
    %6439 = vmatprep.subr.mxu0 0.0
    %6440 = vmatpush1.msra.mxu0 0.0
    %6441 = vmatprep.subr.mxu0 0.0
    %6442 = vmatpush1.msra.mxu0 0.0
    %6443 = vmatprep.subr.mxu0 0.0
    %v6444 = vand.u32 %v6411, 4294901760
    %6445 = vmatpush1.msra.mxu0 %v6444
    %6446 = vmatprep.subr.mxu0 0.0
    %6447 = vmatpush2.msra.mxu0 0.0
    %6448 = vmatprep.subr.mxu0 0.0
    %6449 = vmatpush2.msra.mxu0 0.0
    %6450 = vmatprep.subr.mxu0 0.0
    %6451 = vmatpush2.msra.mxu0 0.0
    %6452 = vmatprep.subr.mxu0 0.0
    %6453 = vmatpush2.msra.mxu0 0.0
    %6454 = vmatprep.subr.mxu0 0.0
    %6455 = vmatpush2.msra.mxu0 0.0
    %6456 = vmatprep.subr.mxu0 0.0
    %6457 = vmatpush2.msra.mxu0 0.0
    %6458 = vmatprep.subr.mxu0 0.0
    %6459 = vmatpush2.msra.mxu0 0.0
    %6460 = vmatprep.subr.mxu0 0.0
    %6461 = vmatpush2.msra.mxu0 0.0
    %6462 = vmatprep.subr.mxu0 0.0
    %6463 = vmatpush2.msra.mxu0 0.0
    %6464 = vmatprep.subr.mxu0 0.0
    %6465 = vmatpush2.msra.mxu0 0.0
    %6466 = vmatprep.subr.mxu0 0.0
    %6467 = vmatpush2.msra.mxu0 0.0
    %6468 = vmatprep.subr.mxu0 0.0
    %6469 = vmatpush2.msra.mxu0 0.0
    %6470 = vmatprep.subr.mxu0 0.0
    %6471 = vmatpush2.msra.mxu0 0.0
    %6472 = vmatprep.subr.mxu0 0.0
    %6473 = vmatpush2.msra.mxu0 0.0
    %6474 = vmatprep.subr.mxu0 0.0
    %6475 = vmatpush2.msra.mxu0 0.0
    %6476 = vmatprep.subr.mxu0 0.0
    %6477 = vmatpush2.msra.mxu0 0.0
    %6478 = vmatprep.mubr.f32.mxu0 0.0
    %v6479 = vand.u32 %v1852, 4294901760
    %v6480 = vsub.f32 %v1852, %v6479
    %v6481 = vand.u32 %v6480, 4294901760
    %v6482 = vsub.f32 %v6480, %v6481
    %v6483 = vand.u32 %v6482, 4294901760
    %6484 = vmatmul.mubr.f32.gmra.mxu0 %v6483
    %v6485 = vpop.f32.mrf.mxu0
    %v6486 = vadd.f32 %v1848, %v6485
    %v6487 = vpop.f32.mrf.mxu0
    %6488 = vdwg.mxu0
    %6489 = vmatprep.subr.mxu0 0.0
    %6490 = vmatpush1.msra.mxu0 0.0
    %6491 = vmatprep.subr.mxu0 0.0
    %6492 = vmatpush1.msra.mxu0 0.0
    %6493 = vmatprep.subr.mxu0 0.0
    %6494 = vmatpush1.msra.mxu0 0.0
    %6495 = vmatprep.subr.mxu0 0.0
    %6496 = vmatpush1.msra.mxu0 0.0
    %6497 = vmatprep.subr.mxu0 0.0
    %6498 = vmatpush1.msra.mxu0 0.0
    %6499 = vmatprep.subr.mxu0 0.0
    %6500 = vmatpush1.msra.mxu0 0.0
    %6501 = vmatprep.subr.mxu0 0.0
    %6502 = vmatpush1.msra.mxu0 0.0
    %6503 = vmatprep.subr.mxu0 0.0
    %6504 = vmatpush1.msra.mxu0 0.0
    %6505 = vmatprep.subr.mxu0 0.0
    %6506 = vmatpush1.msra.mxu0 0.0
    %6507 = vmatprep.subr.mxu0 0.0
    %6508 = vmatpush1.msra.mxu0 0.0
    %6509 = vmatprep.subr.mxu0 0.0
    %6510 = vmatpush1.msra.mxu0 0.0
    %6511 = vmatprep.subr.mxu0 0.0
    %6512 = vmatpush1.msra.mxu0 0.0
    %6513 = vmatprep.subr.mxu0 0.0
    %6514 = vmatpush1.msra.mxu0 0.0
    %6515 = vmatprep.subr.mxu0 0.0
    %6516 = vmatpush1.msra.mxu0 0.0
    %6517 = vmatprep.subr.mxu0 0.0
    %6518 = vmatpush1.msra.mxu0 0.0
    %6519 = vmatprep.subr.mxu0 0.0
    %v6520 = vand.u32 %v6411, 4294901760
    %v6521 = vsub.f32 %v6411, %v6520
    %v6522 = vand.u32 %v6521, 4294901760
    %v6523 = vsub.f32 %v6521, %v6522
    %v6524 = vand.u32 %v6523, 4294901760
    %6525 = vmatpush1.msra.mxu0 %v6524
    %6526 = vmatprep.subr.mxu0 0.0
    %6527 = vmatpush2.msra.mxu0 0.0
    %6528 = vmatprep.subr.mxu0 0.0
    %6529 = vmatpush2.msra.mxu0 0.0
    %6530 = vmatprep.subr.mxu0 0.0
    %6531 = vmatpush2.msra.mxu0 0.0
    %6532 = vmatprep.subr.mxu0 0.0
    %6533 = vmatpush2.msra.mxu0 0.0
    %6534 = vmatprep.subr.mxu0 0.0
    %6535 = vmatpush2.msra.mxu0 0.0
    %6536 = vmatprep.subr.mxu0 0.0
    %6537 = vmatpush2.msra.mxu0 0.0
    %6538 = vmatprep.subr.mxu0 0.0
    %6539 = vmatpush2.msra.mxu0 0.0
    %6540 = vmatprep.subr.mxu0 0.0
    %6541 = vmatpush2.msra.mxu0 0.0
    %6542 = vmatprep.subr.mxu0 0.0
    %6543 = vmatpush2.msra.mxu0 0.0
    %6544 = vmatprep.subr.mxu0 0.0
    %6545 = vmatpush2.msra.mxu0 0.0
    %6546 = vmatprep.subr.mxu0 0.0
    %6547 = vmatpush2.msra.mxu0 0.0
    %6548 = vmatprep.subr.mxu0 0.0
    %6549 = vmatpush2.msra.mxu0 0.0
    %6550 = vmatprep.subr.mxu0 0.0
    %6551 = vmatpush2.msra.mxu0 0.0
    %6552 = vmatprep.subr.mxu0 0.0
    %6553 = vmatpush2.msra.mxu0 0.0
    %6554 = vmatprep.subr.mxu0 0.0
    %6555 = vmatpush2.msra.mxu0 0.0
    %6556 = vmatprep.subr.mxu0 0.0
    %6557 = vmatpush2.msra.mxu0 0.0
    %6558 = vmatprep.mubr.f32.mxu0 0.0
    %v6559 = vand.u32 %v1852, 4294901760
    %6560 = vmatmul.mubr.f32.gmra.mxu0 %v6559
    %v6561 = vpop.f32.mrf.mxu0
    %v6562 = vadd.f32 %v6486, %v6561
    %v6563 = vpop.f32.mrf.mxu0
    %6564 = vdwg.mxu0
    %6565 = vmatprep.subr.mxu0 0.0
    %6566 = vmatpush1.msra.mxu0 0.0
    %6567 = vmatprep.subr.mxu0 0.0
    %6568 = vmatpush1.msra.mxu0 0.0
    %6569 = vmatprep.subr.mxu0 0.0
    %6570 = vmatpush1.msra.mxu0 0.0
    %6571 = vmatprep.subr.mxu0 0.0
    %6572 = vmatpush1.msra.mxu0 0.0
    %6573 = vmatprep.subr.mxu0 0.0
    %6574 = vmatpush1.msra.mxu0 0.0
    %6575 = vmatprep.subr.mxu0 0.0
    %6576 = vmatpush1.msra.mxu0 0.0
    %6577 = vmatprep.subr.mxu0 0.0
    %6578 = vmatpush1.msra.mxu0 0.0
    %6579 = vmatprep.subr.mxu0 0.0
    %6580 = vmatpush1.msra.mxu0 0.0
    %6581 = vmatprep.subr.mxu0 0.0
    %6582 = vmatpush1.msra.mxu0 0.0
    %6583 = vmatprep.subr.mxu0 0.0
    %6584 = vmatpush1.msra.mxu0 0.0
    %6585 = vmatprep.subr.mxu0 0.0
    %6586 = vmatpush1.msra.mxu0 0.0
    %6587 = vmatprep.subr.mxu0 0.0
    %6588 = vmatpush1.msra.mxu0 0.0
    %6589 = vmatprep.subr.mxu0 0.0
    %6590 = vmatpush1.msra.mxu0 0.0
    %6591 = vmatprep.subr.mxu0 0.0
    %6592 = vmatpush1.msra.mxu0 0.0
    %6593 = vmatprep.subr.mxu0 0.0
    %6594 = vmatpush1.msra.mxu0 0.0
    %6595 = vmatprep.subr.mxu0 0.0
    %v6596 = vand.u32 %v6411, 4294901760
    %v6597 = vsub.f32 %v6411, %v6596
    %6598 = vmatpush1.msra.mxu0 %v6597
    %6599 = vmatprep.subr.mxu0 0.0
    %6600 = vmatpush2.msra.mxu0 0.0
    %6601 = vmatprep.subr.mxu0 0.0
    %6602 = vmatpush2.msra.mxu0 0.0
    %6603 = vmatprep.subr.mxu0 0.0
    %6604 = vmatpush2.msra.mxu0 0.0
    %6605 = vmatprep.subr.mxu0 0.0
    %6606 = vmatpush2.msra.mxu0 0.0
    %6607 = vmatprep.subr.mxu0 0.0
    %6608 = vmatpush2.msra.mxu0 0.0
    %6609 = vmatprep.subr.mxu0 0.0
    %6610 = vmatpush2.msra.mxu0 0.0
    %6611 = vmatprep.subr.mxu0 0.0
    %6612 = vmatpush2.msra.mxu0 0.0
    %6613 = vmatprep.subr.mxu0 0.0
    %6614 = vmatpush2.msra.mxu0 0.0
    %6615 = vmatprep.subr.mxu0 0.0
    %6616 = vmatpush2.msra.mxu0 0.0
    %6617 = vmatprep.subr.mxu0 0.0
    %6618 = vmatpush2.msra.mxu0 0.0
    %6619 = vmatprep.subr.mxu0 0.0
    %6620 = vmatpush2.msra.mxu0 0.0
    %6621 = vmatprep.subr.mxu0 0.0
    %6622 = vmatpush2.msra.mxu0 0.0
    %6623 = vmatprep.subr.mxu0 0.0
    %6624 = vmatpush2.msra.mxu0 0.0
    %6625 = vmatprep.subr.mxu0 0.0
    %6626 = vmatpush2.msra.mxu0 0.0
    %6627 = vmatprep.subr.mxu0 0.0
    %6628 = vmatpush2.msra.mxu0 0.0
    %6629 = vmatprep.subr.mxu0 0.0
    %6630 = vmatpush2.msra.mxu0 0.0
    %6631 = vmatprep.mubr.f32.mxu0 0.0
    %v6632 = vand.u32 %v1852, 4294901760
    %v6633 = vsub.f32 %v1852, %v6632
    %6634 = vmatmul.mubr.f32.gmra.mxu0 %v6633
    %v6635 = vpop.f32.mrf.mxu0
    %v6636 = vadd.f32 %v6562, %v6635
    %v6637 = vpop.f32.mrf.mxu0
    %6638 = vdwg.mxu0
    %6639 = vmatprep.subr.mxu0 0.0
    %6640 = vmatpush1.msra.mxu0 0.0
    %6641 = vmatprep.subr.mxu0 0.0
    %6642 = vmatpush1.msra.mxu0 0.0
    %6643 = vmatprep.subr.mxu0 0.0
    %6644 = vmatpush1.msra.mxu0 0.0
    %6645 = vmatprep.subr.mxu0 0.0
    %6646 = vmatpush1.msra.mxu0 0.0
    %6647 = vmatprep.subr.mxu0 0.0
    %6648 = vmatpush1.msra.mxu0 0.0
    %6649 = vmatprep.subr.mxu0 0.0
    %6650 = vmatpush1.msra.mxu0 0.0
    %6651 = vmatprep.subr.mxu0 0.0
    %6652 = vmatpush1.msra.mxu0 0.0
    %6653 = vmatprep.subr.mxu0 0.0
    %6654 = vmatpush1.msra.mxu0 0.0
    %6655 = vmatprep.subr.mxu0 0.0
    %6656 = vmatpush1.msra.mxu0 0.0
    %6657 = vmatprep.subr.mxu0 0.0
    %6658 = vmatpush1.msra.mxu0 0.0
    %6659 = vmatprep.subr.mxu0 0.0
    %6660 = vmatpush1.msra.mxu0 0.0
    %6661 = vmatprep.subr.mxu0 0.0
    %6662 = vmatpush1.msra.mxu0 0.0
    %6663 = vmatprep.subr.mxu0 0.0
    %6664 = vmatpush1.msra.mxu0 0.0
    %6665 = vmatprep.subr.mxu0 0.0
    %6666 = vmatpush1.msra.mxu0 0.0
    %6667 = vmatprep.subr.mxu0 0.0
    %6668 = vmatpush1.msra.mxu0 0.0
    %6669 = vmatprep.subr.mxu0 0.0
    %v6670 = vand.u32 %v6411, 4294901760
    %6671 = vmatpush1.msra.mxu0 %v6670
    %6672 = vmatprep.subr.mxu0 0.0
    %6673 = vmatpush2.msra.mxu0 0.0
    %6674 = vmatprep.subr.mxu0 0.0
    %6675 = vmatpush2.msra.mxu0 0.0
    %6676 = vmatprep.subr.mxu0 0.0
    %6677 = vmatpush2.msra.mxu0 0.0
    %6678 = vmatprep.subr.mxu0 0.0
    %6679 = vmatpush2.msra.mxu0 0.0
    %6680 = vmatprep.subr.mxu0 0.0
    %6681 = vmatpush2.msra.mxu0 0.0
    %6682 = vmatprep.subr.mxu0 0.0
    %6683 = vmatpush2.msra.mxu0 0.0
    %6684 = vmatprep.subr.mxu0 0.0
    %6685 = vmatpush2.msra.mxu0 0.0
    %6686 = vmatprep.subr.mxu0 0.0
    %6687 = vmatpush2.msra.mxu0 0.0
    %6688 = vmatprep.subr.mxu0 0.0
    %6689 = vmatpush2.msra.mxu0 0.0
    %6690 = vmatprep.subr.mxu0 0.0
    %6691 = vmatpush2.msra.mxu0 0.0
    %6692 = vmatprep.subr.mxu0 0.0
    %6693 = vmatpush2.msra.mxu0 0.0
    %6694 = vmatprep.subr.mxu0 0.0
    %6695 = vmatpush2.msra.mxu0 0.0
    %6696 = vmatprep.subr.mxu0 0.0
    %6697 = vmatpush2.msra.mxu0 0.0
    %6698 = vmatprep.subr.mxu0 0.0
    %6699 = vmatpush2.msra.mxu0 0.0
    %6700 = vmatprep.subr.mxu0 0.0
    %6701 = vmatpush2.msra.mxu0 0.0
    %6702 = vmatprep.subr.mxu0 0.0
    %6703 = vmatpush2.msra.mxu0 0.0
    %6704 = vmatprep.mubr.f32.mxu0 0.0
    %v6705 = vand.u32 %v1852, 4294901760
    %v6706 = vsub.f32 %v1852, %v6705
    %v6707 = vand.u32 %v6706, 4294901760
    %6708 = vmatmul.mubr.f32.gmra.mxu0 %v6707
    %v6709 = vpop.f32.mrf.mxu0
    %v6710 = vadd.f32 %v6636, %v6709
    %v6711 = vpop.f32.mrf.mxu0
    %6712 = vdwg.mxu0
    %6713 = vmatprep.subr.mxu0 0.0
    %6714 = vmatpush1.msra.mxu0 0.0
    %6715 = vmatprep.subr.mxu0 0.0
    %6716 = vmatpush1.msra.mxu0 0.0
    %6717 = vmatprep.subr.mxu0 0.0
    %6718 = vmatpush1.msra.mxu0 0.0
    %6719 = vmatprep.subr.mxu0 0.0
    %6720 = vmatpush1.msra.mxu0 0.0
    %6721 = vmatprep.subr.mxu0 0.0
    %6722 = vmatpush1.msra.mxu0 0.0
    %6723 = vmatprep.subr.mxu0 0.0
    %6724 = vmatpush1.msra.mxu0 0.0
    %6725 = vmatprep.subr.mxu0 0.0
    %6726 = vmatpush1.msra.mxu0 0.0
    %6727 = vmatprep.subr.mxu0 0.0
    %6728 = vmatpush1.msra.mxu0 0.0
    %6729 = vmatprep.subr.mxu0 0.0
    %6730 = vmatpush1.msra.mxu0 0.0
    %6731 = vmatprep.subr.mxu0 0.0
    %6732 = vmatpush1.msra.mxu0 0.0
    %6733 = vmatprep.subr.mxu0 0.0
    %6734 = vmatpush1.msra.mxu0 0.0
    %6735 = vmatprep.subr.mxu0 0.0
    %6736 = vmatpush1.msra.mxu0 0.0
    %6737 = vmatprep.subr.mxu0 0.0
    %6738 = vmatpush1.msra.mxu0 0.0
    %6739 = vmatprep.subr.mxu0 0.0
    %6740 = vmatpush1.msra.mxu0 0.0
    %6741 = vmatprep.subr.mxu0 0.0
    %6742 = vmatpush1.msra.mxu0 0.0
    %6743 = vmatprep.subr.mxu0 0.0
    %v6744 = vand.u32 %v6411, 4294901760
    %v6745 = vsub.f32 %v6411, %v6744
    %v6746 = vand.u32 %v6745, 4294901760
    %6747 = vmatpush1.msra.mxu0 %v6746
    %6748 = vmatprep.subr.mxu0 0.0
    %6749 = vmatpush2.msra.mxu0 0.0
    %6750 = vmatprep.subr.mxu0 0.0
    %6751 = vmatpush2.msra.mxu0 0.0
    %6752 = vmatprep.subr.mxu0 0.0
    %6753 = vmatpush2.msra.mxu0 0.0
    %6754 = vmatprep.subr.mxu0 0.0
    %6755 = vmatpush2.msra.mxu0 0.0
    %6756 = vmatprep.subr.mxu0 0.0
    %6757 = vmatpush2.msra.mxu0 0.0
    %6758 = vmatprep.subr.mxu0 0.0
    %6759 = vmatpush2.msra.mxu0 0.0
    %6760 = vmatprep.subr.mxu0 0.0
    %6761 = vmatpush2.msra.mxu0 0.0
    %6762 = vmatprep.subr.mxu0 0.0
    %6763 = vmatpush2.msra.mxu0 0.0
    %6764 = vmatprep.subr.mxu0 0.0
    %6765 = vmatpush2.msra.mxu0 0.0
    %6766 = vmatprep.subr.mxu0 0.0
    %6767 = vmatpush2.msra.mxu0 0.0
    %6768 = vmatprep.subr.mxu0 0.0
    %6769 = vmatpush2.msra.mxu0 0.0
    %6770 = vmatprep.subr.mxu0 0.0
    %6771 = vmatpush2.msra.mxu0 0.0
    %6772 = vmatprep.subr.mxu0 0.0
    %6773 = vmatpush2.msra.mxu0 0.0
    %6774 = vmatprep.subr.mxu0 0.0
    %6775 = vmatpush2.msra.mxu0 0.0
    %6776 = vmatprep.subr.mxu0 0.0
    %6777 = vmatpush2.msra.mxu0 0.0
    %6778 = vmatprep.subr.mxu0 0.0
    %6779 = vmatpush2.msra.mxu0 0.0
    %6780 = vmatprep.mubr.f32.mxu0 0.0
    %v6781 = vand.u32 %v1852, 4294901760
    %6782 = vmatmul.mubr.f32.gmra.mxu0 %v6781
    %v6783 = vpop.f32.mrf.mxu0
    %v6784 = vadd.f32 %v6710, %v6783
    %v6785 = vpop.f32.mrf.mxu0
    %6786 = vdwg.mxu0
    %6787 = vmatprep.subr.mxu0 0.0
    %6788 = vmatpush1.msra.mxu0 0.0
    %6789 = vmatprep.subr.mxu0 0.0
    %6790 = vmatpush1.msra.mxu0 0.0
    %6791 = vmatprep.subr.mxu0 0.0
    %6792 = vmatpush1.msra.mxu0 0.0
    %6793 = vmatprep.subr.mxu0 0.0
    %6794 = vmatpush1.msra.mxu0 0.0
    %6795 = vmatprep.subr.mxu0 0.0
    %6796 = vmatpush1.msra.mxu0 0.0
    %6797 = vmatprep.subr.mxu0 0.0
    %6798 = vmatpush1.msra.mxu0 0.0
    %6799 = vmatprep.subr.mxu0 0.0
    %6800 = vmatpush1.msra.mxu0 0.0
    %6801 = vmatprep.subr.mxu0 0.0
    %6802 = vmatpush1.msra.mxu0 0.0
    %6803 = vmatprep.subr.mxu0 0.0
    %6804 = vmatpush1.msra.mxu0 0.0
    %6805 = vmatprep.subr.mxu0 0.0
    %6806 = vmatpush1.msra.mxu0 0.0
    %6807 = vmatprep.subr.mxu0 0.0
    %6808 = vmatpush1.msra.mxu0 0.0
    %6809 = vmatprep.subr.mxu0 0.0
    %6810 = vmatpush1.msra.mxu0 0.0
    %6811 = vmatprep.subr.mxu0 0.0
    %6812 = vmatpush1.msra.mxu0 0.0
    %6813 = vmatprep.subr.mxu0 0.0
    %6814 = vmatpush1.msra.mxu0 0.0
    %6815 = vmatprep.subr.mxu0 0.0
    %6816 = vmatpush1.msra.mxu0 0.0
    %6817 = vmatprep.subr.mxu0 0.0
    %v6818 = vand.u32 %v6411, 4294901760
    %6819 = vmatpush1.msra.mxu0 %v6818
    %6820 = vmatprep.subr.mxu0 0.0
    %6821 = vmatpush2.msra.mxu0 0.0
    %6822 = vmatprep.subr.mxu0 0.0
    %6823 = vmatpush2.msra.mxu0 0.0
    %6824 = vmatprep.subr.mxu0 0.0
    %6825 = vmatpush2.msra.mxu0 0.0
    %6826 = vmatprep.subr.mxu0 0.0
    %6827 = vmatpush2.msra.mxu0 0.0
    %6828 = vmatprep.subr.mxu0 0.0
    %6829 = vmatpush2.msra.mxu0 0.0
    %6830 = vmatprep.subr.mxu0 0.0
    %6831 = vmatpush2.msra.mxu0 0.0
    %6832 = vmatprep.subr.mxu0 0.0
    %6833 = vmatpush2.msra.mxu0 0.0
    %6834 = vmatprep.subr.mxu0 0.0
    %6835 = vmatpush2.msra.mxu0 0.0
    %6836 = vmatprep.subr.mxu0 0.0
    %6837 = vmatpush2.msra.mxu0 0.0
    %6838 = vmatprep.subr.mxu0 0.0
    %6839 = vmatpush2.msra.mxu0 0.0
    %6840 = vmatprep.subr.mxu0 0.0
    %6841 = vmatpush2.msra.mxu0 0.0
    %6842 = vmatprep.subr.mxu0 0.0
    %6843 = vmatpush2.msra.mxu0 0.0
    %6844 = vmatprep.subr.mxu0 0.0
    %6845 = vmatpush2.msra.mxu0 0.0
    %6846 = vmatprep.subr.mxu0 0.0
    %6847 = vmatpush2.msra.mxu0 0.0
    %6848 = vmatprep.subr.mxu0 0.0
    %6849 = vmatpush2.msra.mxu0 0.0
    %6850 = vmatprep.subr.mxu0 0.0
    %6851 = vmatpush2.msra.mxu0 0.0
    %6852 = vmatprep.mubr.f32.mxu0 0.0
    %v6853 = vand.u32 %v1852, 4294901760
    %6854 = vmatmul.mubr.f32.gmra.mxu0 %v6853
    %v6855 = vpop.f32.mrf.mxu0
    %v6856 = vadd.f32 %v6784, %v6855
    %v6857 = vpop.f32.mrf.mxu0
    %6858 = vdwg.mxu0
    %v6860 = vsel %vm1854, %v6407, 0
    %6862 = vmatprep.subr.mxu0 0.0
    %6863 = vmatpush1.msra.mxu0 0.0
    %6864 = vmatprep.subr.mxu0 0.0
    %6865 = vmatpush1.msra.mxu0 0.0
    %6866 = vmatprep.subr.mxu0 0.0
    %6867 = vmatpush1.msra.mxu0 0.0
    %6868 = vmatprep.subr.mxu0 0.0
    %6869 = vmatpush1.msra.mxu0 0.0
    %6870 = vmatprep.subr.mxu0 0.0
    %6871 = vmatpush1.msra.mxu0 0.0
    %6872 = vmatprep.subr.mxu0 0.0
    %6873 = vmatpush1.msra.mxu0 0.0
    %6874 = vmatprep.subr.mxu0 0.0
    %6875 = vmatpush1.msra.mxu0 0.0
    %6876 = vmatprep.subr.mxu0 0.0
    %6877 = vmatpush1.msra.mxu0 0.0
    %6878 = vmatprep.subr.mxu0 0.0
    %6879 = vmatpush1.msra.mxu0 0.0
    %6880 = vmatprep.subr.mxu0 0.0
    %6881 = vmatpush1.msra.mxu0 0.0
    %6882 = vmatprep.subr.mxu0 0.0
    %6883 = vmatpush1.msra.mxu0 0.0
    %6884 = vmatprep.subr.mxu0 0.0
    %6885 = vmatpush1.msra.mxu0 0.0
    %6886 = vmatprep.subr.mxu0 0.0
    %6887 = vmatpush1.msra.mxu0 0.0
    %6888 = vmatprep.subr.mxu0 0.0
    %6889 = vmatpush1.msra.mxu0 0.0
    %6890 = vmatprep.subr.mxu0 0.0
    %6891 = vmatpush1.msra.mxu0 0.0
    %6892 = vmatprep.subr.mxu0 0.0
    %v6893 = vand.u32 %v6860, 4294901760
    %6894 = vmatpush1.msra.mxu0 %v6893
    %6895 = vmatprep.subr.mxu0 0.0
    %6896 = vmatpush2.msra.mxu0 0.0
    %6897 = vmatprep.subr.mxu0 0.0
    %6898 = vmatpush2.msra.mxu0 0.0
    %6899 = vmatprep.subr.mxu0 0.0
    %6900 = vmatpush2.msra.mxu0 0.0
    %6901 = vmatprep.subr.mxu0 0.0
    %6902 = vmatpush2.msra.mxu0 0.0
    %6903 = vmatprep.subr.mxu0 0.0
    %6904 = vmatpush2.msra.mxu0 0.0
    %6905 = vmatprep.subr.mxu0 0.0
    %6906 = vmatpush2.msra.mxu0 0.0
    %6907 = vmatprep.subr.mxu0 0.0
    %6908 = vmatpush2.msra.mxu0 0.0
    %6909 = vmatprep.subr.mxu0 0.0
    %6910 = vmatpush2.msra.mxu0 0.0
    %6911 = vmatprep.subr.mxu0 0.0
    %6912 = vmatpush2.msra.mxu0 0.0
    %6913 = vmatprep.subr.mxu0 0.0
    %6914 = vmatpush2.msra.mxu0 0.0
    %6915 = vmatprep.subr.mxu0 0.0
    %6916 = vmatpush2.msra.mxu0 0.0
    %6917 = vmatprep.subr.mxu0 0.0
    %6918 = vmatpush2.msra.mxu0 0.0
    %6919 = vmatprep.subr.mxu0 0.0
    %6920 = vmatpush2.msra.mxu0 0.0
    %6921 = vmatprep.subr.mxu0 0.0
    %6922 = vmatpush2.msra.mxu0 0.0
    %6923 = vmatprep.subr.mxu0 0.0
    %6924 = vmatpush2.msra.mxu0 0.0
    %6925 = vmatprep.subr.mxu0 0.0
    %6926 = vmatpush2.msra.mxu0 0.0
    %6927 = vmatprep.mubr.f32.mxu0 0.0
    %v6928 = vand.u32 %v1852, 4294901760
    %v6929 = vsub.f32 %v1852, %v6928
    %v6930 = vand.u32 %v6929, 4294901760
    %v6931 = vsub.f32 %v6929, %v6930
    %v6932 = vand.u32 %v6931, 4294901760
    %6933 = vmatmul.mubr.f32.gmra.mxu0 %v6932
    %v6934 = vpop.f32.mrf.mxu0
    %v6935 = vadd.f32 %v1848, %v6934
    %v6936 = vpop.f32.mrf.mxu0
    %6937 = vdwg.mxu0
    %6938 = vmatprep.subr.mxu0 0.0
    %6939 = vmatpush1.msra.mxu0 0.0
    %6940 = vmatprep.subr.mxu0 0.0
    %6941 = vmatpush1.msra.mxu0 0.0
    %6942 = vmatprep.subr.mxu0 0.0
    %6943 = vmatpush1.msra.mxu0 0.0
    %6944 = vmatprep.subr.mxu0 0.0
    %6945 = vmatpush1.msra.mxu0 0.0
    %6946 = vmatprep.subr.mxu0 0.0
    %6947 = vmatpush1.msra.mxu0 0.0
    %6948 = vmatprep.subr.mxu0 0.0
    %6949 = vmatpush1.msra.mxu0 0.0
    %6950 = vmatprep.subr.mxu0 0.0
    %6951 = vmatpush1.msra.mxu0 0.0
    %6952 = vmatprep.subr.mxu0 0.0
    %6953 = vmatpush1.msra.mxu0 0.0
    %6954 = vmatprep.subr.mxu0 0.0
    %6955 = vmatpush1.msra.mxu0 0.0
    %6956 = vmatprep.subr.mxu0 0.0
    %6957 = vmatpush1.msra.mxu0 0.0
    %6958 = vmatprep.subr.mxu0 0.0
    %6959 = vmatpush1.msra.mxu0 0.0
    %6960 = vmatprep.subr.mxu0 0.0
    %6961 = vmatpush1.msra.mxu0 0.0
    %6962 = vmatprep.subr.mxu0 0.0
    %6963 = vmatpush1.msra.mxu0 0.0
    %6964 = vmatprep.subr.mxu0 0.0
    %6965 = vmatpush1.msra.mxu0 0.0
    %6966 = vmatprep.subr.mxu0 0.0
    %6967 = vmatpush1.msra.mxu0 0.0
    %6968 = vmatprep.subr.mxu0 0.0
    %v6969 = vand.u32 %v6860, 4294901760
    %v6970 = vsub.f32 %v6860, %v6969
    %v6971 = vand.u32 %v6970, 4294901760
    %v6972 = vsub.f32 %v6970, %v6971
    %v6973 = vand.u32 %v6972, 4294901760
    %6974 = vmatpush1.msra.mxu0 %v6973
    %6975 = vmatprep.subr.mxu0 0.0
    %6976 = vmatpush2.msra.mxu0 0.0
    %6977 = vmatprep.subr.mxu0 0.0
    %6978 = vmatpush2.msra.mxu0 0.0
    %6979 = vmatprep.subr.mxu0 0.0
    %6980 = vmatpush2.msra.mxu0 0.0
    %6981 = vmatprep.subr.mxu0 0.0
    %6982 = vmatpush2.msra.mxu0 0.0
    %6983 = vmatprep.subr.mxu0 0.0
    %6984 = vmatpush2.msra.mxu0 0.0
    %6985 = vmatprep.subr.mxu0 0.0
    %6986 = vmatpush2.msra.mxu0 0.0
    %6987 = vmatprep.subr.mxu0 0.0
    %6988 = vmatpush2.msra.mxu0 0.0
    %6989 = vmatprep.subr.mxu0 0.0
    %6990 = vmatpush2.msra.mxu0 0.0
    %6991 = vmatprep.subr.mxu0 0.0
    %6992 = vmatpush2.msra.mxu0 0.0
    %6993 = vmatprep.subr.mxu0 0.0
    %6994 = vmatpush2.msra.mxu0 0.0
    %6995 = vmatprep.subr.mxu0 0.0
    %6996 = vmatpush2.msra.mxu0 0.0
    %6997 = vmatprep.subr.mxu0 0.0
    %6998 = vmatpush2.msra.mxu0 0.0
    %6999 = vmatprep.subr.mxu0 0.0
    %7000 = vmatpush2.msra.mxu0 0.0
    %7001 = vmatprep.subr.mxu0 0.0
    %7002 = vmatpush2.msra.mxu0 0.0
    %7003 = vmatprep.subr.mxu0 0.0
    %7004 = vmatpush2.msra.mxu0 0.0
    %7005 = vmatprep.subr.mxu0 0.0
    %7006 = vmatpush2.msra.mxu0 0.0
    %7007 = vmatprep.mubr.f32.mxu0 0.0
    %v7008 = vand.u32 %v1852, 4294901760
    %7009 = vmatmul.mubr.f32.gmra.mxu0 %v7008
    %v7010 = vpop.f32.mrf.mxu0
    %v7011 = vadd.f32 %v6935, %v7010
    %v7012 = vpop.f32.mrf.mxu0
    %7013 = vdwg.mxu0
    %7014 = vmatprep.subr.mxu0 0.0
    %7015 = vmatpush1.msra.mxu0 0.0
    %7016 = vmatprep.subr.mxu0 0.0
    %7017 = vmatpush1.msra.mxu0 0.0
    %7018 = vmatprep.subr.mxu0 0.0
    %7019 = vmatpush1.msra.mxu0 0.0
    %7020 = vmatprep.subr.mxu0 0.0
    %7021 = vmatpush1.msra.mxu0 0.0
    %7022 = vmatprep.subr.mxu0 0.0
    %7023 = vmatpush1.msra.mxu0 0.0
    %7024 = vmatprep.subr.mxu0 0.0
    %7025 = vmatpush1.msra.mxu0 0.0
    %7026 = vmatprep.subr.mxu0 0.0
    %7027 = vmatpush1.msra.mxu0 0.0
    %7028 = vmatprep.subr.mxu0 0.0
    %7029 = vmatpush1.msra.mxu0 0.0
    %7030 = vmatprep.subr.mxu0 0.0
    %7031 = vmatpush1.msra.mxu0 0.0
    %7032 = vmatprep.subr.mxu0 0.0
    %7033 = vmatpush1.msra.mxu0 0.0
    %7034 = vmatprep.subr.mxu0 0.0
    %7035 = vmatpush1.msra.mxu0 0.0
    %7036 = vmatprep.subr.mxu0 0.0
    %7037 = vmatpush1.msra.mxu0 0.0
    %7038 = vmatprep.subr.mxu0 0.0
    %7039 = vmatpush1.msra.mxu0 0.0
    %7040 = vmatprep.subr.mxu0 0.0
    %7041 = vmatpush1.msra.mxu0 0.0
    %7042 = vmatprep.subr.mxu0 0.0
    %7043 = vmatpush1.msra.mxu0 0.0
    %7044 = vmatprep.subr.mxu0 0.0
    %v7045 = vand.u32 %v6860, 4294901760
    %v7046 = vsub.f32 %v6860, %v7045
    %7047 = vmatpush1.msra.mxu0 %v7046
    %7048 = vmatprep.subr.mxu0 0.0
    %7049 = vmatpush2.msra.mxu0 0.0
    %7050 = vmatprep.subr.mxu0 0.0
    %7051 = vmatpush2.msra.mxu0 0.0
    %7052 = vmatprep.subr.mxu0 0.0
    %7053 = vmatpush2.msra.mxu0 0.0
    %7054 = vmatprep.subr.mxu0 0.0
    %7055 = vmatpush2.msra.mxu0 0.0
    %7056 = vmatprep.subr.mxu0 0.0
    %7057 = vmatpush2.msra.mxu0 0.0
    %7058 = vmatprep.subr.mxu0 0.0
    %7059 = vmatpush2.msra.mxu0 0.0
    %7060 = vmatprep.subr.mxu0 0.0
    %7061 = vmatpush2.msra.mxu0 0.0
    %7062 = vmatprep.subr.mxu0 0.0
    %7063 = vmatpush2.msra.mxu0 0.0
    %7064 = vmatprep.subr.mxu0 0.0
    %7065 = vmatpush2.msra.mxu0 0.0
    %7066 = vmatprep.subr.mxu0 0.0
    %7067 = vmatpush2.msra.mxu0 0.0
    %7068 = vmatprep.subr.mxu0 0.0
    %7069 = vmatpush2.msra.mxu0 0.0
    %7070 = vmatprep.subr.mxu0 0.0
    %7071 = vmatpush2.msra.mxu0 0.0
    %7072 = vmatprep.subr.mxu0 0.0
    %7073 = vmatpush2.msra.mxu0 0.0
    %7074 = vmatprep.subr.mxu0 0.0
    %7075 = vmatpush2.msra.mxu0 0.0
    %7076 = vmatprep.subr.mxu0 0.0
    %7077 = vmatpush2.msra.mxu0 0.0
    %7078 = vmatprep.subr.mxu0 0.0
    %7079 = vmatpush2.msra.mxu0 0.0
    %7080 = vmatprep.mubr.f32.mxu0 0.0
    %v7081 = vand.u32 %v1852, 4294901760
    %v7082 = vsub.f32 %v1852, %v7081
    %7083 = vmatmul.mubr.f32.gmra.mxu0 %v7082
    %v7084 = vpop.f32.mrf.mxu0
    %v7085 = vadd.f32 %v7011, %v7084
    %v7086 = vpop.f32.mrf.mxu0
    %7087 = vdwg.mxu0
    %7088 = vmatprep.subr.mxu0 0.0
    %7089 = vmatpush1.msra.mxu0 0.0
    %7090 = vmatprep.subr.mxu0 0.0
    %7091 = vmatpush1.msra.mxu0 0.0
    %7092 = vmatprep.subr.mxu0 0.0
    %7093 = vmatpush1.msra.mxu0 0.0
    %7094 = vmatprep.subr.mxu0 0.0
    %7095 = vmatpush1.msra.mxu0 0.0
    %7096 = vmatprep.subr.mxu0 0.0
    %7097 = vmatpush1.msra.mxu0 0.0
    %7098 = vmatprep.subr.mxu0 0.0
    %7099 = vmatpush1.msra.mxu0 0.0
    %7100 = vmatprep.subr.mxu0 0.0
    %7101 = vmatpush1.msra.mxu0 0.0
    %7102 = vmatprep.subr.mxu0 0.0
    %7103 = vmatpush1.msra.mxu0 0.0
    %7104 = vmatprep.subr.mxu0 0.0
    %7105 = vmatpush1.msra.mxu0 0.0
    %7106 = vmatprep.subr.mxu0 0.0
    %7107 = vmatpush1.msra.mxu0 0.0
    %7108 = vmatprep.subr.mxu0 0.0
    %7109 = vmatpush1.msra.mxu0 0.0
    %7110 = vmatprep.subr.mxu0 0.0
    %7111 = vmatpush1.msra.mxu0 0.0
    %7112 = vmatprep.subr.mxu0 0.0
    %7113 = vmatpush1.msra.mxu0 0.0
    %7114 = vmatprep.subr.mxu0 0.0
    %7115 = vmatpush1.msra.mxu0 0.0
    %7116 = vmatprep.subr.mxu0 0.0
    %7117 = vmatpush1.msra.mxu0 0.0
    %7118 = vmatprep.subr.mxu0 0.0
    %v7119 = vand.u32 %v6860, 4294901760
    %7120 = vmatpush1.msra.mxu0 %v7119
    %7121 = vmatprep.subr.mxu0 0.0
    %7122 = vmatpush2.msra.mxu0 0.0
    %7123 = vmatprep.subr.mxu0 0.0
    %7124 = vmatpush2.msra.mxu0 0.0
    %7125 = vmatprep.subr.mxu0 0.0
    %7126 = vmatpush2.msra.mxu0 0.0
    %7127 = vmatprep.subr.mxu0 0.0
    %7128 = vmatpush2.msra.mxu0 0.0
    %7129 = vmatprep.subr.mxu0 0.0
    %7130 = vmatpush2.msra.mxu0 0.0
    %7131 = vmatprep.subr.mxu0 0.0
    %7132 = vmatpush2.msra.mxu0 0.0
    %7133 = vmatprep.subr.mxu0 0.0
    %7134 = vmatpush2.msra.mxu0 0.0
    %7135 = vmatprep.subr.mxu0 0.0
    %7136 = vmatpush2.msra.mxu0 0.0
    %7137 = vmatprep.subr.mxu0 0.0
    %7138 = vmatpush2.msra.mxu0 0.0
    %7139 = vmatprep.subr.mxu0 0.0
    %7140 = vmatpush2.msra.mxu0 0.0
    %7141 = vmatprep.subr.mxu0 0.0
    %7142 = vmatpush2.msra.mxu0 0.0
    %7143 = vmatprep.subr.mxu0 0.0
    %7144 = vmatpush2.msra.mxu0 0.0
    %7145 = vmatprep.subr.mxu0 0.0
    %7146 = vmatpush2.msra.mxu0 0.0
    %7147 = vmatprep.subr.mxu0 0.0
    %7148 = vmatpush2.msra.mxu0 0.0
    %7149 = vmatprep.subr.mxu0 0.0
    %7150 = vmatpush2.msra.mxu0 0.0
    %7151 = vmatprep.subr.mxu0 0.0
    %7152 = vmatpush2.msra.mxu0 0.0
    %7153 = vmatprep.mubr.f32.mxu0 0.0
    %v7154 = vand.u32 %v1852, 4294901760
    %v7155 = vsub.f32 %v1852, %v7154
    %v7156 = vand.u32 %v7155, 4294901760
    %7157 = vmatmul.mubr.f32.gmra.mxu0 %v7156
    %v7158 = vpop.f32.mrf.mxu0
    %v7159 = vadd.f32 %v7085, %v7158
    %v7160 = vpop.f32.mrf.mxu0
    %7161 = vdwg.mxu0
    %7162 = vmatprep.subr.mxu0 0.0
    %7163 = vmatpush1.msra.mxu0 0.0
    %7164 = vmatprep.subr.mxu0 0.0
    %7165 = vmatpush1.msra.mxu0 0.0
    %7166 = vmatprep.subr.mxu0 0.0
    %7167 = vmatpush1.msra.mxu0 0.0
    %7168 = vmatprep.subr.mxu0 0.0
    %7169 = vmatpush1.msra.mxu0 0.0
    %7170 = vmatprep.subr.mxu0 0.0
    %7171 = vmatpush1.msra.mxu0 0.0
    %7172 = vmatprep.subr.mxu0 0.0
    %7173 = vmatpush1.msra.mxu0 0.0
    %7174 = vmatprep.subr.mxu0 0.0
    %7175 = vmatpush1.msra.mxu0 0.0
    %7176 = vmatprep.subr.mxu0 0.0
    %7177 = vmatpush1.msra.mxu0 0.0
    %7178 = vmatprep.subr.mxu0 0.0
    %7179 = vmatpush1.msra.mxu0 0.0
    %7180 = vmatprep.subr.mxu0 0.0
    %7181 = vmatpush1.msra.mxu0 0.0
    %7182 = vmatprep.subr.mxu0 0.0
    %7183 = vmatpush1.msra.mxu0 0.0
    %7184 = vmatprep.subr.mxu0 0.0
    %7185 = vmatpush1.msra.mxu0 0.0
    %7186 = vmatprep.subr.mxu0 0.0
    %7187 = vmatpush1.msra.mxu0 0.0
    %7188 = vmatprep.subr.mxu0 0.0
    %7189 = vmatpush1.msra.mxu0 0.0
    %7190 = vmatprep.subr.mxu0 0.0
    %7191 = vmatpush1.msra.mxu0 0.0
    %7192 = vmatprep.subr.mxu0 0.0
    %v7193 = vand.u32 %v6860, 4294901760
    %v7194 = vsub.f32 %v6860, %v7193
    %v7195 = vand.u32 %v7194, 4294901760
    %7196 = vmatpush1.msra.mxu0 %v7195
    %7197 = vmatprep.subr.mxu0 0.0
    %7198 = vmatpush2.msra.mxu0 0.0
    %7199 = vmatprep.subr.mxu0 0.0
    %7200 = vmatpush2.msra.mxu0 0.0
    %7201 = vmatprep.subr.mxu0 0.0
    %7202 = vmatpush2.msra.mxu0 0.0
    %7203 = vmatprep.subr.mxu0 0.0
    %7204 = vmatpush2.msra.mxu0 0.0
    %7205 = vmatprep.subr.mxu0 0.0
    %7206 = vmatpush2.msra.mxu0 0.0
    %7207 = vmatprep.subr.mxu0 0.0
    %7208 = vmatpush2.msra.mxu0 0.0
    %7209 = vmatprep.subr.mxu0 0.0
    %7210 = vmatpush2.msra.mxu0 0.0
    %7211 = vmatprep.subr.mxu0 0.0
    %7212 = vmatpush2.msra.mxu0 0.0
    %7213 = vmatprep.subr.mxu0 0.0
    %7214 = vmatpush2.msra.mxu0 0.0
    %7215 = vmatprep.subr.mxu0 0.0
    %7216 = vmatpush2.msra.mxu0 0.0
    %7217 = vmatprep.subr.mxu0 0.0
    %7218 = vmatpush2.msra.mxu0 0.0
    %7219 = vmatprep.subr.mxu0 0.0
    %7220 = vmatpush2.msra.mxu0 0.0
    %7221 = vmatprep.subr.mxu0 0.0
    %7222 = vmatpush2.msra.mxu0 0.0
    %7223 = vmatprep.subr.mxu0 0.0
    %7224 = vmatpush2.msra.mxu0 0.0
    %7225 = vmatprep.subr.mxu0 0.0
    %7226 = vmatpush2.msra.mxu0 0.0
    %7227 = vmatprep.subr.mxu0 0.0
    %7228 = vmatpush2.msra.mxu0 0.0
    %7229 = vmatprep.mubr.f32.mxu0 0.0
    %v7230 = vand.u32 %v1852, 4294901760
    %7231 = vmatmul.mubr.f32.gmra.mxu0 %v7230
    %v7232 = vpop.f32.mrf.mxu0
    %v7233 = vadd.f32 %v7159, %v7232
    %v7234 = vpop.f32.mrf.mxu0
    %7235 = vdwg.mxu0
    %7236 = vmatprep.subr.mxu0 0.0
    %7237 = vmatpush1.msra.mxu0 0.0
    %7238 = vmatprep.subr.mxu0 0.0
    %7239 = vmatpush1.msra.mxu0 0.0
    %7240 = vmatprep.subr.mxu0 0.0
    %7241 = vmatpush1.msra.mxu0 0.0
    %7242 = vmatprep.subr.mxu0 0.0
    %7243 = vmatpush1.msra.mxu0 0.0
    %7244 = vmatprep.subr.mxu0 0.0
    %7245 = vmatpush1.msra.mxu0 0.0
    %7246 = vmatprep.subr.mxu0 0.0
    %7247 = vmatpush1.msra.mxu0 0.0
    %7248 = vmatprep.subr.mxu0 0.0
    %7249 = vmatpush1.msra.mxu0 0.0
    %7250 = vmatprep.subr.mxu0 0.0
    %7251 = vmatpush1.msra.mxu0 0.0
    %7252 = vmatprep.subr.mxu0 0.0
    %7253 = vmatpush1.msra.mxu0 0.0
    %7254 = vmatprep.subr.mxu0 0.0
    %7255 = vmatpush1.msra.mxu0 0.0
    %7256 = vmatprep.subr.mxu0 0.0
    %7257 = vmatpush1.msra.mxu0 0.0
    %7258 = vmatprep.subr.mxu0 0.0
    %7259 = vmatpush1.msra.mxu0 0.0
    %7260 = vmatprep.subr.mxu0 0.0
    %7261 = vmatpush1.msra.mxu0 0.0
    %7262 = vmatprep.subr.mxu0 0.0
    %7263 = vmatpush1.msra.mxu0 0.0
    %7264 = vmatprep.subr.mxu0 0.0
    %7265 = vmatpush1.msra.mxu0 0.0
    %7266 = vmatprep.subr.mxu0 0.0
    %v7267 = vand.u32 %v6860, 4294901760
    %7268 = vmatpush1.msra.mxu0 %v7267
    %7269 = vmatprep.subr.mxu0 0.0
    %7270 = vmatpush2.msra.mxu0 0.0
    %7271 = vmatprep.subr.mxu0 0.0
    %7272 = vmatpush2.msra.mxu0 0.0
    %7273 = vmatprep.subr.mxu0 0.0
    %7274 = vmatpush2.msra.mxu0 0.0
    %7275 = vmatprep.subr.mxu0 0.0
    %7276 = vmatpush2.msra.mxu0 0.0
    %7277 = vmatprep.subr.mxu0 0.0
    %7278 = vmatpush2.msra.mxu0 0.0
    %7279 = vmatprep.subr.mxu0 0.0
    %7280 = vmatpush2.msra.mxu0 0.0
    %7281 = vmatprep.subr.mxu0 0.0
    %7282 = vmatpush2.msra.mxu0 0.0
    %7283 = vmatprep.subr.mxu0 0.0
    %7284 = vmatpush2.msra.mxu0 0.0
    %7285 = vmatprep.subr.mxu0 0.0
    %7286 = vmatpush2.msra.mxu0 0.0
    %7287 = vmatprep.subr.mxu0 0.0
    %7288 = vmatpush2.msra.mxu0 0.0
    %7289 = vmatprep.subr.mxu0 0.0
    %7290 = vmatpush2.msra.mxu0 0.0
    %7291 = vmatprep.subr.mxu0 0.0
    %7292 = vmatpush2.msra.mxu0 0.0
    %7293 = vmatprep.subr.mxu0 0.0
    %7294 = vmatpush2.msra.mxu0 0.0
    %7295 = vmatprep.subr.mxu0 0.0
    %7296 = vmatpush2.msra.mxu0 0.0
    %7297 = vmatprep.subr.mxu0 0.0
    %7298 = vmatpush2.msra.mxu0 0.0
    %7299 = vmatprep.subr.mxu0 0.0
    %7300 = vmatpush2.msra.mxu0 0.0
    %7301 = vmatprep.mubr.f32.mxu0 0.0
    %v7302 = vand.u32 %v1852, 4294901760
    %7303 = vmatmul.mubr.f32.gmra.mxu0 %v7302
    %v7304 = vpop.f32.mrf.mxu0
    %v7305 = vadd.f32 %v7233, %v7304
    %v7306 = vpop.f32.mrf.mxu0
    %7307 = vdwg.mxu0
    %v7308 = vadd.f32 %v6856, 3.0
    %v7309 = vmax.f32 %v7308, 0.0
    %v7310 = vmin.f32 %v7309, 6.0
    %v7311 = vmul.f32 %v6856, %v7310
    %v7312 = vmul.f32 %v7311, 0.16666667
    %v7313 = vadd.f32 %v7305, 3.0
    %v7314 = vmax.f32 %v7313, 0.0
    %v7315 = vmin.f32 %v7314, 6.0
    %v7316 = vmul.f32 %v7305, %v7315
    %v7317 = vmul.f32 %v7316, 0.16666667
    %7318 = vmatprep.subr.mxu0 0.0
    %7319 = vmatpush1.msra.mxu0 0.0
    %7320 = vmatprep.subr.mxu0 0.0
    %7321 = vmatpush1.msra.mxu0 0.0
    %7322 = vmatprep.subr.mxu0 0.0
    %7323 = vmatpush1.msra.mxu0 0.0
    %7324 = vmatprep.subr.mxu0 0.0
    %7325 = vmatpush1.msra.mxu0 0.0
    %7326 = vmatprep.subr.mxu0 0.0
    %7327 = vmatpush1.msra.mxu0 0.0
    %7328 = vmatprep.subr.mxu0 0.0
    %7329 = vmatpush1.msra.mxu0 0.0
    %7330 = vmatprep.subr.mxu0 0.0
    %7331 = vmatpush1.msra.mxu0 0.0
    %7332 = vmatprep.subr.mxu0 0.0
    %7333 = vmatpush1.msra.mxu0 0.0
    %7334 = vmatprep.subr.mxu0 0.0
    %7335 = vmatpush1.msra.mxu0 0.0
    %7336 = vmatprep.subr.mxu0 0.0
    %7337 = vmatpush1.msra.mxu0 0.0
    %7338 = vmatprep.subr.mxu0 0.0
    %7339 = vmatpush1.msra.mxu0 0.0
    %7340 = vmatprep.subr.mxu0 0.0
    %7341 = vmatpush1.msra.mxu0 0.0
    %7342 = vmatprep.subr.mxu0 0.0
    %7343 = vmatpush1.msra.mxu0 0.0
    %7344 = vmatprep.subr.mxu0 0.0
    %7345 = vmatpush1.msra.mxu0 0.0
    %7346 = vmatprep.subr.mxu0 0.0
    %7347 = vmatpush1.msra.mxu0 0.0
    %7348 = vmatprep.subr.mxu0 0.0
    %v7349 = vand.u32 %v7312, 4294901760
    %7350 = vmatpush1.msra.mxu0 %v7349
    %7351 = vmatprep.subr.mxu0 0.0
    %7352 = vmatpush2.msra.mxu0 0.0
    %7353 = vmatprep.subr.mxu0 0.0
    %7354 = vmatpush2.msra.mxu0 0.0
    %7355 = vmatprep.subr.mxu0 0.0
    %7356 = vmatpush2.msra.mxu0 0.0
    %7357 = vmatprep.subr.mxu0 0.0
    %7358 = vmatpush2.msra.mxu0 0.0
    %7359 = vmatprep.subr.mxu0 0.0
    %7360 = vmatpush2.msra.mxu0 0.0
    %7361 = vmatprep.subr.mxu0 0.0
    %7362 = vmatpush2.msra.mxu0 0.0
    %7363 = vmatprep.subr.mxu0 0.0
    %7364 = vmatpush2.msra.mxu0 0.0
    %7365 = vmatprep.subr.mxu0 0.0
    %7366 = vmatpush2.msra.mxu0 0.0
    %7367 = vmatprep.subr.mxu0 0.0
    %7368 = vmatpush2.msra.mxu0 0.0
    %7369 = vmatprep.subr.mxu0 0.0
    %7370 = vmatpush2.msra.mxu0 0.0
    %7371 = vmatprep.subr.mxu0 0.0
    %7372 = vmatpush2.msra.mxu0 0.0
    %7373 = vmatprep.subr.mxu0 0.0
    %7374 = vmatpush2.msra.mxu0 0.0
    %7375 = vmatprep.subr.mxu0 0.0
    %7376 = vmatpush2.msra.mxu0 0.0
    %7377 = vmatprep.subr.mxu0 0.0
    %7378 = vmatpush2.msra.mxu0 0.0
    %7379 = vmatprep.subr.mxu0 0.0
    %7380 = vmatpush2.msra.mxu0 0.0
    %7381 = vmatprep.subr.mxu0 0.0
    %7382 = vmatpush2.msra.mxu0 0.0
    %7383 = vmatprep.mubr.f32.mxu0 0.0
    %v7384 = vand.u32 %v2770, 4294901760
    %v7385 = vsub.f32 %v2770, %v7384
    %v7386 = vand.u32 %v7385, 4294901760
    %v7387 = vsub.f32 %v7385, %v7386
    %v7388 = vand.u32 %v7387, 4294901760
    %7389 = vmatmul.mubr.f32.gmra.mxu0 %v7388
    %v7390 = vpop.f32.mrf.mxu0
    %v7391 = vadd.f32 %v2766, %v7390
    %v7392 = vpop.f32.mrf.mxu0
    %7393 = vdwg.mxu0
    %7394 = vmatprep.subr.mxu0 0.0
    %7395 = vmatpush1.msra.mxu0 0.0
    %7396 = vmatprep.subr.mxu0 0.0
    %7397 = vmatpush1.msra.mxu0 0.0
    %7398 = vmatprep.subr.mxu0 0.0
    %7399 = vmatpush1.msra.mxu0 0.0
    %7400 = vmatprep.subr.mxu0 0.0
    %7401 = vmatpush1.msra.mxu0 0.0
    %7402 = vmatprep.subr.mxu0 0.0
    %7403 = vmatpush1.msra.mxu0 0.0
    %7404 = vmatprep.subr.mxu0 0.0
    %7405 = vmatpush1.msra.mxu0 0.0
    %7406 = vmatprep.subr.mxu0 0.0
    %7407 = vmatpush1.msra.mxu0 0.0
    %7408 = vmatprep.subr.mxu0 0.0
    %7409 = vmatpush1.msra.mxu0 0.0
    %7410 = vmatprep.subr.mxu0 0.0
    %7411 = vmatpush1.msra.mxu0 0.0
    %7412 = vmatprep.subr.mxu0 0.0
    %7413 = vmatpush1.msra.mxu0 0.0
    %7414 = vmatprep.subr.mxu0 0.0
    %7415 = vmatpush1.msra.mxu0 0.0
    %7416 = vmatprep.subr.mxu0 0.0
    %7417 = vmatpush1.msra.mxu0 0.0
    %7418 = vmatprep.subr.mxu0 0.0
    %7419 = vmatpush1.msra.mxu0 0.0
    %7420 = vmatprep.subr.mxu0 0.0
    %7421 = vmatpush1.msra.mxu0 0.0
    %7422 = vmatprep.subr.mxu0 0.0
    %7423 = vmatpush1.msra.mxu0 0.0
    %7424 = vmatprep.subr.mxu0 0.0
    %v7425 = vand.u32 %v7312, 4294901760
    %v7426 = vsub.f32 %v7312, %v7425
    %v7427 = vand.u32 %v7426, 4294901760
    %v7428 = vsub.f32 %v7426, %v7427
    %v7429 = vand.u32 %v7428, 4294901760
    %7430 = vmatpush1.msra.mxu0 %v7429
    %7431 = vmatprep.subr.mxu0 0.0
    %7432 = vmatpush2.msra.mxu0 0.0
    %7433 = vmatprep.subr.mxu0 0.0
    %7434 = vmatpush2.msra.mxu0 0.0
    %7435 = vmatprep.subr.mxu0 0.0
    %7436 = vmatpush2.msra.mxu0 0.0
    %7437 = vmatprep.subr.mxu0 0.0
    %7438 = vmatpush2.msra.mxu0 0.0
    %7439 = vmatprep.subr.mxu0 0.0
    %7440 = vmatpush2.msra.mxu0 0.0
    %7441 = vmatprep.subr.mxu0 0.0
    %7442 = vmatpush2.msra.mxu0 0.0
    %7443 = vmatprep.subr.mxu0 0.0
    %7444 = vmatpush2.msra.mxu0 0.0
    %7445 = vmatprep.subr.mxu0 0.0
    %7446 = vmatpush2.msra.mxu0 0.0
    %7447 = vmatprep.subr.mxu0 0.0
    %7448 = vmatpush2.msra.mxu0 0.0
    %7449 = vmatprep.subr.mxu0 0.0
    %7450 = vmatpush2.msra.mxu0 0.0
    %7451 = vmatprep.subr.mxu0 0.0
    %7452 = vmatpush2.msra.mxu0 0.0
    %7453 = vmatprep.subr.mxu0 0.0
    %7454 = vmatpush2.msra.mxu0 0.0
    %7455 = vmatprep.subr.mxu0 0.0
    %7456 = vmatpush2.msra.mxu0 0.0
    %7457 = vmatprep.subr.mxu0 0.0
    %7458 = vmatpush2.msra.mxu0 0.0
    %7459 = vmatprep.subr.mxu0 0.0
    %7460 = vmatpush2.msra.mxu0 0.0
    %7461 = vmatprep.subr.mxu0 0.0
    %7462 = vmatpush2.msra.mxu0 0.0
    %7463 = vmatprep.mubr.f32.mxu0 0.0
    %v7464 = vand.u32 %v2770, 4294901760
    %7465 = vmatmul.mubr.f32.gmra.mxu0 %v7464
    %v7466 = vpop.f32.mrf.mxu0
    %v7467 = vadd.f32 %v7391, %v7466
    %v7468 = vpop.f32.mrf.mxu0
    %7469 = vdwg.mxu0
    %7470 = vmatprep.subr.mxu0 0.0
    %7471 = vmatpush1.msra.mxu0 0.0
    %7472 = vmatprep.subr.mxu0 0.0
    %7473 = vmatpush1.msra.mxu0 0.0
    %7474 = vmatprep.subr.mxu0 0.0
    %7475 = vmatpush1.msra.mxu0 0.0
    %7476 = vmatprep.subr.mxu0 0.0
    %7477 = vmatpush1.msra.mxu0 0.0
    %7478 = vmatprep.subr.mxu0 0.0
    %7479 = vmatpush1.msra.mxu0 0.0
    %7480 = vmatprep.subr.mxu0 0.0
    %7481 = vmatpush1.msra.mxu0 0.0
    %7482 = vmatprep.subr.mxu0 0.0
    %7483 = vmatpush1.msra.mxu0 0.0
    %7484 = vmatprep.subr.mxu0 0.0
    %7485 = vmatpush1.msra.mxu0 0.0
    %7486 = vmatprep.subr.mxu0 0.0
    %7487 = vmatpush1.msra.mxu0 0.0
    %7488 = vmatprep.subr.mxu0 0.0
    %7489 = vmatpush1.msra.mxu0 0.0
    %7490 = vmatprep.subr.mxu0 0.0
    %7491 = vmatpush1.msra.mxu0 0.0
    %7492 = vmatprep.subr.mxu0 0.0
    %7493 = vmatpush1.msra.mxu0 0.0
    %7494 = vmatprep.subr.mxu0 0.0
    %7495 = vmatpush1.msra.mxu0 0.0
    %7496 = vmatprep.subr.mxu0 0.0
    %7497 = vmatpush1.msra.mxu0 0.0
    %7498 = vmatprep.subr.mxu0 0.0
    %7499 = vmatpush1.msra.mxu0 0.0
    %7500 = vmatprep.subr.mxu0 0.0
    %v7501 = vand.u32 %v7312, 4294901760
    %v7502 = vsub.f32 %v7312, %v7501
    %7503 = vmatpush1.msra.mxu0 %v7502
    %7504 = vmatprep.subr.mxu0 0.0
    %7505 = vmatpush2.msra.mxu0 0.0
    %7506 = vmatprep.subr.mxu0 0.0
    %7507 = vmatpush2.msra.mxu0 0.0
    %7508 = vmatprep.subr.mxu0 0.0
    %7509 = vmatpush2.msra.mxu0 0.0
    %7510 = vmatprep.subr.mxu0 0.0
    %7511 = vmatpush2.msra.mxu0 0.0
    %7512 = vmatprep.subr.mxu0 0.0
    %7513 = vmatpush2.msra.mxu0 0.0
    %7514 = vmatprep.subr.mxu0 0.0
    %7515 = vmatpush2.msra.mxu0 0.0
    %7516 = vmatprep.subr.mxu0 0.0
    %7517 = vmatpush2.msra.mxu0 0.0
    %7518 = vmatprep.subr.mxu0 0.0
    %7519 = vmatpush2.msra.mxu0 0.0
    %7520 = vmatprep.subr.mxu0 0.0
    %7521 = vmatpush2.msra.mxu0 0.0
    %7522 = vmatprep.subr.mxu0 0.0
    %7523 = vmatpush2.msra.mxu0 0.0
    %7524 = vmatprep.subr.mxu0 0.0
    %7525 = vmatpush2.msra.mxu0 0.0
    %7526 = vmatprep.subr.mxu0 0.0
    %7527 = vmatpush2.msra.mxu0 0.0
    %7528 = vmatprep.subr.mxu0 0.0
    %7529 = vmatpush2.msra.mxu0 0.0
    %7530 = vmatprep.subr.mxu0 0.0
    %7531 = vmatpush2.msra.mxu0 0.0
    %7532 = vmatprep.subr.mxu0 0.0
    %7533 = vmatpush2.msra.mxu0 0.0
    %7534 = vmatprep.subr.mxu0 0.0
    %7535 = vmatpush2.msra.mxu0 0.0
    %7536 = vmatprep.mubr.f32.mxu0 0.0
    %v7537 = vand.u32 %v2770, 4294901760
    %v7538 = vsub.f32 %v2770, %v7537
    %7539 = vmatmul.mubr.f32.gmra.mxu0 %v7538
    %v7540 = vpop.f32.mrf.mxu0
    %v7541 = vadd.f32 %v7467, %v7540
    %v7542 = vpop.f32.mrf.mxu0
    %7543 = vdwg.mxu0
    %7544 = vmatprep.subr.mxu0 0.0
    %7545 = vmatpush1.msra.mxu0 0.0
    %7546 = vmatprep.subr.mxu0 0.0
    %7547 = vmatpush1.msra.mxu0 0.0
    %7548 = vmatprep.subr.mxu0 0.0
    %7549 = vmatpush1.msra.mxu0 0.0
    %7550 = vmatprep.subr.mxu0 0.0
    %7551 = vmatpush1.msra.mxu0 0.0
    %7552 = vmatprep.subr.mxu0 0.0
    %7553 = vmatpush1.msra.mxu0 0.0
    %7554 = vmatprep.subr.mxu0 0.0
    %7555 = vmatpush1.msra.mxu0 0.0
    %7556 = vmatprep.subr.mxu0 0.0
    %7557 = vmatpush1.msra.mxu0 0.0
    %7558 = vmatprep.subr.mxu0 0.0
    %7559 = vmatpush1.msra.mxu0 0.0
    %7560 = vmatprep.subr.mxu0 0.0
    %7561 = vmatpush1.msra.mxu0 0.0
    %7562 = vmatprep.subr.mxu0 0.0
    %7563 = vmatpush1.msra.mxu0 0.0
    %7564 = vmatprep.subr.mxu0 0.0
    %7565 = vmatpush1.msra.mxu0 0.0
    %7566 = vmatprep.subr.mxu0 0.0
    %7567 = vmatpush1.msra.mxu0 0.0
    %7568 = vmatprep.subr.mxu0 0.0
    %7569 = vmatpush1.msra.mxu0 0.0
    %7570 = vmatprep.subr.mxu0 0.0
    %7571 = vmatpush1.msra.mxu0 0.0
    %7572 = vmatprep.subr.mxu0 0.0
    %7573 = vmatpush1.msra.mxu0 0.0
    %7574 = vmatprep.subr.mxu0 0.0
    %v7575 = vand.u32 %v7312, 4294901760
    %7576 = vmatpush1.msra.mxu0 %v7575
    %7577 = vmatprep.subr.mxu0 0.0
    %7578 = vmatpush2.msra.mxu0 0.0
    %7579 = vmatprep.subr.mxu0 0.0
    %7580 = vmatpush2.msra.mxu0 0.0
    %7581 = vmatprep.subr.mxu0 0.0
    %7582 = vmatpush2.msra.mxu0 0.0
    %7583 = vmatprep.subr.mxu0 0.0
    %7584 = vmatpush2.msra.mxu0 0.0
    %7585 = vmatprep.subr.mxu0 0.0
    %7586 = vmatpush2.msra.mxu0 0.0
    %7587 = vmatprep.subr.mxu0 0.0
    %7588 = vmatpush2.msra.mxu0 0.0
    %7589 = vmatprep.subr.mxu0 0.0
    %7590 = vmatpush2.msra.mxu0 0.0
    %7591 = vmatprep.subr.mxu0 0.0
    %7592 = vmatpush2.msra.mxu0 0.0
    %7593 = vmatprep.subr.mxu0 0.0
    %7594 = vmatpush2.msra.mxu0 0.0
    %7595 = vmatprep.subr.mxu0 0.0
    %7596 = vmatpush2.msra.mxu0 0.0
    %7597 = vmatprep.subr.mxu0 0.0
    %7598 = vmatpush2.msra.mxu0 0.0
    %7599 = vmatprep.subr.mxu0 0.0
    %7600 = vmatpush2.msra.mxu0 0.0
    %7601 = vmatprep.subr.mxu0 0.0
    %7602 = vmatpush2.msra.mxu0 0.0
    %7603 = vmatprep.subr.mxu0 0.0
    %7604 = vmatpush2.msra.mxu0 0.0
    %7605 = vmatprep.subr.mxu0 0.0
    %7606 = vmatpush2.msra.mxu0 0.0
    %7607 = vmatprep.subr.mxu0 0.0
    %7608 = vmatpush2.msra.mxu0 0.0
    %7609 = vmatprep.mubr.f32.mxu0 0.0
    %v7610 = vand.u32 %v2770, 4294901760
    %v7611 = vsub.f32 %v2770, %v7610
    %v7612 = vand.u32 %v7611, 4294901760
    %7613 = vmatmul.mubr.f32.gmra.mxu0 %v7612
    %v7614 = vpop.f32.mrf.mxu0
    %v7615 = vadd.f32 %v7541, %v7614
    %v7616 = vpop.f32.mrf.mxu0
    %7617 = vdwg.mxu0
    %7618 = vmatprep.subr.mxu0 0.0
    %7619 = vmatpush1.msra.mxu0 0.0
    %7620 = vmatprep.subr.mxu0 0.0
    %7621 = vmatpush1.msra.mxu0 0.0
    %7622 = vmatprep.subr.mxu0 0.0
    %7623 = vmatpush1.msra.mxu0 0.0
    %7624 = vmatprep.subr.mxu0 0.0
    %7625 = vmatpush1.msra.mxu0 0.0
    %7626 = vmatprep.subr.mxu0 0.0
    %7627 = vmatpush1.msra.mxu0 0.0
    %7628 = vmatprep.subr.mxu0 0.0
    %7629 = vmatpush1.msra.mxu0 0.0
    %7630 = vmatprep.subr.mxu0 0.0
    %7631 = vmatpush1.msra.mxu0 0.0
    %7632 = vmatprep.subr.mxu0 0.0
    %7633 = vmatpush1.msra.mxu0 0.0
    %7634 = vmatprep.subr.mxu0 0.0
    %7635 = vmatpush1.msra.mxu0 0.0
    %7636 = vmatprep.subr.mxu0 0.0
    %7637 = vmatpush1.msra.mxu0 0.0
    %7638 = vmatprep.subr.mxu0 0.0
    %7639 = vmatpush1.msra.mxu0 0.0
    %7640 = vmatprep.subr.mxu0 0.0
    %7641 = vmatpush1.msra.mxu0 0.0
    %7642 = vmatprep.subr.mxu0 0.0
    %7643 = vmatpush1.msra.mxu0 0.0
    %7644 = vmatprep.subr.mxu0 0.0
    %7645 = vmatpush1.msra.mxu0 0.0
    %7646 = vmatprep.subr.mxu0 0.0
    %7647 = vmatpush1.msra.mxu0 0.0
    %7648 = vmatprep.subr.mxu0 0.0
    %v7649 = vand.u32 %v7312, 4294901760
    %v7650 = vsub.f32 %v7312, %v7649
    %v7651 = vand.u32 %v7650, 4294901760
    %7652 = vmatpush1.msra.mxu0 %v7651
    %7653 = vmatprep.subr.mxu0 0.0
    %7654 = vmatpush2.msra.mxu0 0.0
    %7655 = vmatprep.subr.mxu0 0.0
    %7656 = vmatpush2.msra.mxu0 0.0
    %7657 = vmatprep.subr.mxu0 0.0
    %7658 = vmatpush2.msra.mxu0 0.0
    %7659 = vmatprep.subr.mxu0 0.0
    %7660 = vmatpush2.msra.mxu0 0.0
    %7661 = vmatprep.subr.mxu0 0.0
    %7662 = vmatpush2.msra.mxu0 0.0
    %7663 = vmatprep.subr.mxu0 0.0
    %7664 = vmatpush2.msra.mxu0 0.0
    %7665 = vmatprep.subr.mxu0 0.0
    %7666 = vmatpush2.msra.mxu0 0.0
    %7667 = vmatprep.subr.mxu0 0.0
    %7668 = vmatpush2.msra.mxu0 0.0
    %7669 = vmatprep.subr.mxu0 0.0
    %7670 = vmatpush2.msra.mxu0 0.0
    %7671 = vmatprep.subr.mxu0 0.0
    %7672 = vmatpush2.msra.mxu0 0.0
    %7673 = vmatprep.subr.mxu0 0.0
    %7674 = vmatpush2.msra.mxu0 0.0
    %7675 = vmatprep.subr.mxu0 0.0
    %7676 = vmatpush2.msra.mxu0 0.0
    %7677 = vmatprep.subr.mxu0 0.0
    %7678 = vmatpush2.msra.mxu0 0.0
    %7679 = vmatprep.subr.mxu0 0.0
    %7680 = vmatpush2.msra.mxu0 0.0
    %7681 = vmatprep.subr.mxu0 0.0
    %7682 = vmatpush2.msra.mxu0 0.0
    %7683 = vmatprep.subr.mxu0 0.0
    %7684 = vmatpush2.msra.mxu0 0.0
    %7685 = vmatprep.mubr.f32.mxu0 0.0
    %v7686 = vand.u32 %v2770, 4294901760
    %7687 = vmatmul.mubr.f32.gmra.mxu0 %v7686
    %v7688 = vpop.f32.mrf.mxu0
    %v7689 = vadd.f32 %v7615, %v7688
    %v7690 = vpop.f32.mrf.mxu0
    %7691 = vdwg.mxu0
    %7692 = vmatprep.subr.mxu0 0.0
    %7693 = vmatpush1.msra.mxu0 0.0
    %7694 = vmatprep.subr.mxu0 0.0
    %7695 = vmatpush1.msra.mxu0 0.0
    %7696 = vmatprep.subr.mxu0 0.0
    %7697 = vmatpush1.msra.mxu0 0.0
    %7698 = vmatprep.subr.mxu0 0.0
    %7699 = vmatpush1.msra.mxu0 0.0
    %7700 = vmatprep.subr.mxu0 0.0
    %7701 = vmatpush1.msra.mxu0 0.0
    %7702 = vmatprep.subr.mxu0 0.0
    %7703 = vmatpush1.msra.mxu0 0.0
    %7704 = vmatprep.subr.mxu0 0.0
    %7705 = vmatpush1.msra.mxu0 0.0
    %7706 = vmatprep.subr.mxu0 0.0
    %7707 = vmatpush1.msra.mxu0 0.0
    %7708 = vmatprep.subr.mxu0 0.0
    %7709 = vmatpush1.msra.mxu0 0.0
    %7710 = vmatprep.subr.mxu0 0.0
    %7711 = vmatpush1.msra.mxu0 0.0
    %7712 = vmatprep.subr.mxu0 0.0
    %7713 = vmatpush1.msra.mxu0 0.0
    %7714 = vmatprep.subr.mxu0 0.0
    %7715 = vmatpush1.msra.mxu0 0.0
    %7716 = vmatprep.subr.mxu0 0.0
    %7717 = vmatpush1.msra.mxu0 0.0
    %7718 = vmatprep.subr.mxu0 0.0
    %7719 = vmatpush1.msra.mxu0 0.0
    %7720 = vmatprep.subr.mxu0 0.0
    %7721 = vmatpush1.msra.mxu0 0.0
    %7722 = vmatprep.subr.mxu0 0.0
    %v7723 = vand.u32 %v7312, 4294901760
    %7724 = vmatpush1.msra.mxu0 %v7723
    %7725 = vmatprep.subr.mxu0 0.0
    %7726 = vmatpush2.msra.mxu0 0.0
    %7727 = vmatprep.subr.mxu0 0.0
    %7728 = vmatpush2.msra.mxu0 0.0
    %7729 = vmatprep.subr.mxu0 0.0
    %7730 = vmatpush2.msra.mxu0 0.0
    %7731 = vmatprep.subr.mxu0 0.0
    %7732 = vmatpush2.msra.mxu0 0.0
    %7733 = vmatprep.subr.mxu0 0.0
    %7734 = vmatpush2.msra.mxu0 0.0
    %7735 = vmatprep.subr.mxu0 0.0
    %7736 = vmatpush2.msra.mxu0 0.0
    %7737 = vmatprep.subr.mxu0 0.0
    %7738 = vmatpush2.msra.mxu0 0.0
    %7739 = vmatprep.subr.mxu0 0.0
    %7740 = vmatpush2.msra.mxu0 0.0
    %7741 = vmatprep.subr.mxu0 0.0
    %7742 = vmatpush2.msra.mxu0 0.0
    %7743 = vmatprep.subr.mxu0 0.0
    %7744 = vmatpush2.msra.mxu0 0.0
    %7745 = vmatprep.subr.mxu0 0.0
    %7746 = vmatpush2.msra.mxu0 0.0
    %7747 = vmatprep.subr.mxu0 0.0
    %7748 = vmatpush2.msra.mxu0 0.0
    %7749 = vmatprep.subr.mxu0 0.0
    %7750 = vmatpush2.msra.mxu0 0.0
    %7751 = vmatprep.subr.mxu0 0.0
    %7752 = vmatpush2.msra.mxu0 0.0
    %7753 = vmatprep.subr.mxu0 0.0
    %7754 = vmatpush2.msra.mxu0 0.0
    %7755 = vmatprep.subr.mxu0 0.0
    %7756 = vmatpush2.msra.mxu0 0.0
    %7757 = vmatprep.mubr.f32.mxu0 0.0
    %v7758 = vand.u32 %v2770, 4294901760
    %7759 = vmatmul.mubr.f32.gmra.mxu0 %v7758
    %v7760 = vpop.f32.mrf.mxu0
    %v7761 = vadd.f32 %v7689, %v7760
    %v7762 = vpop.f32.mrf.mxu0
    %7763 = vdwg.mxu0
    %v7764 = vxor.u32 %v7761, 2147483648
    %v7765 = vmul.f32 %v7764, 1.442695
    %v7766 = vpow.pop %v7765
    %v7767 = vadd.f32 %v7766, 1.0
    %v7768 = vrcp.pop %v7767
    %v7769 = vmul.f32 1.0, %v7768
    %7770 = vmatprep.subr.mxu0 0.0
    %7771 = vmatpush1.msra.mxu0 0.0
    %7772 = vmatprep.subr.mxu0 0.0
    %7773 = vmatpush1.msra.mxu0 0.0
    %7774 = vmatprep.subr.mxu0 0.0
    %7775 = vmatpush1.msra.mxu0 0.0
    %7776 = vmatprep.subr.mxu0 0.0
    %7777 = vmatpush1.msra.mxu0 0.0
    %7778 = vmatprep.subr.mxu0 0.0
    %7779 = vmatpush1.msra.mxu0 0.0
    %7780 = vmatprep.subr.mxu0 0.0
    %7781 = vmatpush1.msra.mxu0 0.0
    %7782 = vmatprep.subr.mxu0 0.0
    %7783 = vmatpush1.msra.mxu0 0.0
    %7784 = vmatprep.subr.mxu0 0.0
    %7785 = vmatpush1.msra.mxu0 0.0
    %7786 = vmatprep.subr.mxu0 0.0
    %7787 = vmatpush1.msra.mxu0 0.0
    %7788 = vmatprep.subr.mxu0 0.0
    %7789 = vmatpush1.msra.mxu0 0.0
    %7790 = vmatprep.subr.mxu0 0.0
    %7791 = vmatpush1.msra.mxu0 0.0
    %7792 = vmatprep.subr.mxu0 0.0
    %7793 = vmatpush1.msra.mxu0 0.0
    %7794 = vmatprep.subr.mxu0 0.0
    %7795 = vmatpush1.msra.mxu0 0.0
    %7796 = vmatprep.subr.mxu0 0.0
    %7797 = vmatpush1.msra.mxu0 0.0
    %7798 = vmatprep.subr.mxu0 0.0
    %7799 = vmatpush1.msra.mxu0 0.0
    %7800 = vmatprep.subr.mxu0 0.0
    %v7801 = vand.u32 %v7317, 4294901760
    %7802 = vmatpush1.msra.mxu0 %v7801
    %7803 = vmatprep.subr.mxu0 0.0
    %7804 = vmatpush2.msra.mxu0 0.0
    %7805 = vmatprep.subr.mxu0 0.0
    %7806 = vmatpush2.msra.mxu0 0.0
    %7807 = vmatprep.subr.mxu0 0.0
    %7808 = vmatpush2.msra.mxu0 0.0
    %7809 = vmatprep.subr.mxu0 0.0
    %7810 = vmatpush2.msra.mxu0 0.0
    %7811 = vmatprep.subr.mxu0 0.0
    %7812 = vmatpush2.msra.mxu0 0.0
    %7813 = vmatprep.subr.mxu0 0.0
    %7814 = vmatpush2.msra.mxu0 0.0
    %7815 = vmatprep.subr.mxu0 0.0
    %7816 = vmatpush2.msra.mxu0 0.0
    %7817 = vmatprep.subr.mxu0 0.0
    %7818 = vmatpush2.msra.mxu0 0.0
    %7819 = vmatprep.subr.mxu0 0.0
    %7820 = vmatpush2.msra.mxu0 0.0
    %7821 = vmatprep.subr.mxu0 0.0
    %7822 = vmatpush2.msra.mxu0 0.0
    %7823 = vmatprep.subr.mxu0 0.0
    %7824 = vmatpush2.msra.mxu0 0.0
    %7825 = vmatprep.subr.mxu0 0.0
    %7826 = vmatpush2.msra.mxu0 0.0
    %7827 = vmatprep.subr.mxu0 0.0
    %7828 = vmatpush2.msra.mxu0 0.0
    %7829 = vmatprep.subr.mxu0 0.0
    %7830 = vmatpush2.msra.mxu0 0.0
    %7831 = vmatprep.subr.mxu0 0.0
    %7832 = vmatpush2.msra.mxu0 0.0
    %7833 = vmatprep.subr.mxu0 0.0
    %7834 = vmatpush2.msra.mxu0 0.0
    %7835 = vmatprep.mubr.f32.mxu0 0.0
    %v7836 = vand.u32 %v3230, 4294901760
    %v7837 = vsub.f32 %v3230, %v7836
    %v7838 = vand.u32 %v7837, 4294901760
    %v7839 = vsub.f32 %v7837, %v7838
    %v7840 = vand.u32 %v7839, 4294901760
    %7841 = vmatmul.mubr.f32.gmra.mxu0 %v7840
    %v7842 = vpop.f32.mrf.mxu0
    %v7843 = vadd.f32 %v3227, %v7842
    %v7844 = vpop.f32.mrf.mxu0
    %7845 = vdwg.mxu0
    %7846 = vmatprep.subr.mxu0 0.0
    %7847 = vmatpush1.msra.mxu0 0.0
    %7848 = vmatprep.subr.mxu0 0.0
    %7849 = vmatpush1.msra.mxu0 0.0
    %7850 = vmatprep.subr.mxu0 0.0
    %7851 = vmatpush1.msra.mxu0 0.0
    %7852 = vmatprep.subr.mxu0 0.0
    %7853 = vmatpush1.msra.mxu0 0.0
    %7854 = vmatprep.subr.mxu0 0.0
    %7855 = vmatpush1.msra.mxu0 0.0
    %7856 = vmatprep.subr.mxu0 0.0
    %7857 = vmatpush1.msra.mxu0 0.0
    %7858 = vmatprep.subr.mxu0 0.0
    %7859 = vmatpush1.msra.mxu0 0.0
    %7860 = vmatprep.subr.mxu0 0.0
    %7861 = vmatpush1.msra.mxu0 0.0
    %7862 = vmatprep.subr.mxu0 0.0
    %7863 = vmatpush1.msra.mxu0 0.0
    %7864 = vmatprep.subr.mxu0 0.0
    %7865 = vmatpush1.msra.mxu0 0.0
    %7866 = vmatprep.subr.mxu0 0.0
    %7867 = vmatpush1.msra.mxu0 0.0
    %7868 = vmatprep.subr.mxu0 0.0
    %7869 = vmatpush1.msra.mxu0 0.0
    %7870 = vmatprep.subr.mxu0 0.0
    %7871 = vmatpush1.msra.mxu0 0.0
    %7872 = vmatprep.subr.mxu0 0.0
    %7873 = vmatpush1.msra.mxu0 0.0
    %7874 = vmatprep.subr.mxu0 0.0
    %7875 = vmatpush1.msra.mxu0 0.0
    %7876 = vmatprep.subr.mxu0 0.0
    %v7877 = vand.u32 %v7317, 4294901760
    %v7878 = vsub.f32 %v7317, %v7877
    %v7879 = vand.u32 %v7878, 4294901760
    %v7880 = vsub.f32 %v7878, %v7879
    %v7881 = vand.u32 %v7880, 4294901760
    %7882 = vmatpush1.msra.mxu0 %v7881
    %7883 = vmatprep.subr.mxu0 0.0
    %7884 = vmatpush2.msra.mxu0 0.0
    %7885 = vmatprep.subr.mxu0 0.0
    %7886 = vmatpush2.msra.mxu0 0.0
    %7887 = vmatprep.subr.mxu0 0.0
    %7888 = vmatpush2.msra.mxu0 0.0
    %7889 = vmatprep.subr.mxu0 0.0
    %7890 = vmatpush2.msra.mxu0 0.0
    %7891 = vmatprep.subr.mxu0 0.0
    %7892 = vmatpush2.msra.mxu0 0.0
    %7893 = vmatprep.subr.mxu0 0.0
    %7894 = vmatpush2.msra.mxu0 0.0
    %7895 = vmatprep.subr.mxu0 0.0
    %7896 = vmatpush2.msra.mxu0 0.0
    %7897 = vmatprep.subr.mxu0 0.0
    %7898 = vmatpush2.msra.mxu0 0.0
    %7899 = vmatprep.subr.mxu0 0.0
    %7900 = vmatpush2.msra.mxu0 0.0
    %7901 = vmatprep.subr.mxu0 0.0
    %7902 = vmatpush2.msra.mxu0 0.0
    %7903 = vmatprep.subr.mxu0 0.0
    %7904 = vmatpush2.msra.mxu0 0.0
    %7905 = vmatprep.subr.mxu0 0.0
    %7906 = vmatpush2.msra.mxu0 0.0
    %7907 = vmatprep.subr.mxu0 0.0
    %7908 = vmatpush2.msra.mxu0 0.0
    %7909 = vmatprep.subr.mxu0 0.0
    %7910 = vmatpush2.msra.mxu0 0.0
    %7911 = vmatprep.subr.mxu0 0.0
    %7912 = vmatpush2.msra.mxu0 0.0
    %7913 = vmatprep.subr.mxu0 0.0
    %7914 = vmatpush2.msra.mxu0 0.0
    %7915 = vmatprep.mubr.f32.mxu0 0.0
    %v7916 = vand.u32 %v3230, 4294901760
    %7917 = vmatmul.mubr.f32.gmra.mxu0 %v7916
    %v7918 = vpop.f32.mrf.mxu0
    %v7919 = vadd.f32 %v7843, %v7918
    %v7920 = vpop.f32.mrf.mxu0
    %7921 = vdwg.mxu0
    %7922 = vmatprep.subr.mxu0 0.0
    %7923 = vmatpush1.msra.mxu0 0.0
    %7924 = vmatprep.subr.mxu0 0.0
    %7925 = vmatpush1.msra.mxu0 0.0
    %7926 = vmatprep.subr.mxu0 0.0
    %7927 = vmatpush1.msra.mxu0 0.0
    %7928 = vmatprep.subr.mxu0 0.0
    %7929 = vmatpush1.msra.mxu0 0.0
    %7930 = vmatprep.subr.mxu0 0.0
    %7931 = vmatpush1.msra.mxu0 0.0
    %7932 = vmatprep.subr.mxu0 0.0
    %7933 = vmatpush1.msra.mxu0 0.0
    %7934 = vmatprep.subr.mxu0 0.0
    %7935 = vmatpush1.msra.mxu0 0.0
    %7936 = vmatprep.subr.mxu0 0.0
    %7937 = vmatpush1.msra.mxu0 0.0
    %7938 = vmatprep.subr.mxu0 0.0
    %7939 = vmatpush1.msra.mxu0 0.0
    %7940 = vmatprep.subr.mxu0 0.0
    %7941 = vmatpush1.msra.mxu0 0.0
    %7942 = vmatprep.subr.mxu0 0.0
    %7943 = vmatpush1.msra.mxu0 0.0
    %7944 = vmatprep.subr.mxu0 0.0
    %7945 = vmatpush1.msra.mxu0 0.0
    %7946 = vmatprep.subr.mxu0 0.0
    %7947 = vmatpush1.msra.mxu0 0.0
    %7948 = vmatprep.subr.mxu0 0.0
    %7949 = vmatpush1.msra.mxu0 0.0
    %7950 = vmatprep.subr.mxu0 0.0
    %7951 = vmatpush1.msra.mxu0 0.0
    %7952 = vmatprep.subr.mxu0 0.0
    %v7953 = vand.u32 %v7317, 4294901760
    %v7954 = vsub.f32 %v7317, %v7953
    %7955 = vmatpush1.msra.mxu0 %v7954
    %7956 = vmatprep.subr.mxu0 0.0
    %7957 = vmatpush2.msra.mxu0 0.0
    %7958 = vmatprep.subr.mxu0 0.0
    %7959 = vmatpush2.msra.mxu0 0.0
    %7960 = vmatprep.subr.mxu0 0.0
    %7961 = vmatpush2.msra.mxu0 0.0
    %7962 = vmatprep.subr.mxu0 0.0
    %7963 = vmatpush2.msra.mxu0 0.0
    %7964 = vmatprep.subr.mxu0 0.0
    %7965 = vmatpush2.msra.mxu0 0.0
    %7966 = vmatprep.subr.mxu0 0.0
    %7967 = vmatpush2.msra.mxu0 0.0
    %7968 = vmatprep.subr.mxu0 0.0
    %7969 = vmatpush2.msra.mxu0 0.0
    %7970 = vmatprep.subr.mxu0 0.0
    %7971 = vmatpush2.msra.mxu0 0.0
    %7972 = vmatprep.subr.mxu0 0.0
    %7973 = vmatpush2.msra.mxu0 0.0
    %7974 = vmatprep.subr.mxu0 0.0
    %7975 = vmatpush2.msra.mxu0 0.0
    %7976 = vmatprep.subr.mxu0 0.0
    %7977 = vmatpush2.msra.mxu0 0.0
    %7978 = vmatprep.subr.mxu0 0.0
    %7979 = vmatpush2.msra.mxu0 0.0
    %7980 = vmatprep.subr.mxu0 0.0
    %7981 = vmatpush2.msra.mxu0 0.0
    %7982 = vmatprep.subr.mxu0 0.0
    %7983 = vmatpush2.msra.mxu0 0.0
    %7984 = vmatprep.subr.mxu0 0.0
    %7985 = vmatpush2.msra.mxu0 0.0
    %7986 = vmatprep.subr.mxu0 0.0
    %7987 = vmatpush2.msra.mxu0 0.0
    %7988 = vmatprep.mubr.f32.mxu0 0.0
    %v7989 = vand.u32 %v3230, 4294901760
    %v7990 = vsub.f32 %v3230, %v7989
    %7991 = vmatmul.mubr.f32.gmra.mxu0 %v7990
    %v7992 = vpop.f32.mrf.mxu0
    %v7993 = vadd.f32 %v7919, %v7992
    %v7994 = vpop.f32.mrf.mxu0
    %7995 = vdwg.mxu0
    %7996 = vmatprep.subr.mxu0 0.0
    %7997 = vmatpush1.msra.mxu0 0.0
    %7998 = vmatprep.subr.mxu0 0.0
    %7999 = vmatpush1.msra.mxu0 0.0
    %8000 = vmatprep.subr.mxu0 0.0
    %8001 = vmatpush1.msra.mxu0 0.0
    %8002 = vmatprep.subr.mxu0 0.0
    %8003 = vmatpush1.msra.mxu0 0.0
    %8004 = vmatprep.subr.mxu0 0.0
    %8005 = vmatpush1.msra.mxu0 0.0
    %8006 = vmatprep.subr.mxu0 0.0
    %8007 = vmatpush1.msra.mxu0 0.0
    %8008 = vmatprep.subr.mxu0 0.0
    %8009 = vmatpush1.msra.mxu0 0.0
    %8010 = vmatprep.subr.mxu0 0.0
    %8011 = vmatpush1.msra.mxu0 0.0
    %8012 = vmatprep.subr.mxu0 0.0
    %8013 = vmatpush1.msra.mxu0 0.0
    %8014 = vmatprep.subr.mxu0 0.0
    %8015 = vmatpush1.msra.mxu0 0.0
    %8016 = vmatprep.subr.mxu0 0.0
    %8017 = vmatpush1.msra.mxu0 0.0
    %8018 = vmatprep.subr.mxu0 0.0
    %8019 = vmatpush1.msra.mxu0 0.0
    %8020 = vmatprep.subr.mxu0 0.0
    %8021 = vmatpush1.msra.mxu0 0.0
    %8022 = vmatprep.subr.mxu0 0.0
    %8023 = vmatpush1.msra.mxu0 0.0
    %8024 = vmatprep.subr.mxu0 0.0
    %8025 = vmatpush1.msra.mxu0 0.0
    %8026 = vmatprep.subr.mxu0 0.0
    %v8027 = vand.u32 %v7317, 4294901760
    %8028 = vmatpush1.msra.mxu0 %v8027
    %8029 = vmatprep.subr.mxu0 0.0
    %8030 = vmatpush2.msra.mxu0 0.0
    %8031 = vmatprep.subr.mxu0 0.0
    %8032 = vmatpush2.msra.mxu0 0.0
    %8033 = vmatprep.subr.mxu0 0.0
    %8034 = vmatpush2.msra.mxu0 0.0
    %8035 = vmatprep.subr.mxu0 0.0
    %8036 = vmatpush2.msra.mxu0 0.0
    %8037 = vmatprep.subr.mxu0 0.0
    %8038 = vmatpush2.msra.mxu0 0.0
    %8039 = vmatprep.subr.mxu0 0.0
    %8040 = vmatpush2.msra.mxu0 0.0
    %8041 = vmatprep.subr.mxu0 0.0
    %8042 = vmatpush2.msra.mxu0 0.0
    %8043 = vmatprep.subr.mxu0 0.0
    %8044 = vmatpush2.msra.mxu0 0.0
    %8045 = vmatprep.subr.mxu0 0.0
    %8046 = vmatpush2.msra.mxu0 0.0
    %8047 = vmatprep.subr.mxu0 0.0
    %8048 = vmatpush2.msra.mxu0 0.0
    %8049 = vmatprep.subr.mxu0 0.0
    %8050 = vmatpush2.msra.mxu0 0.0
    %8051 = vmatprep.subr.mxu0 0.0
    %8052 = vmatpush2.msra.mxu0 0.0
    %8053 = vmatprep.subr.mxu0 0.0
    %8054 = vmatpush2.msra.mxu0 0.0
    %8055 = vmatprep.subr.mxu0 0.0
    %8056 = vmatpush2.msra.mxu0 0.0
    %8057 = vmatprep.subr.mxu0 0.0
    %8058 = vmatpush2.msra.mxu0 0.0
    %8059 = vmatprep.subr.mxu0 0.0
    %8060 = vmatpush2.msra.mxu0 0.0
    %8061 = vmatprep.mubr.f32.mxu0 0.0
    %v8062 = vand.u32 %v3230, 4294901760
    %v8063 = vsub.f32 %v3230, %v8062
    %v8064 = vand.u32 %v8063, 4294901760
    %8065 = vmatmul.mubr.f32.gmra.mxu0 %v8064
    %v8066 = vpop.f32.mrf.mxu0
    %v8067 = vadd.f32 %v7993, %v8066
    %v8068 = vpop.f32.mrf.mxu0
    %8069 = vdwg.mxu0
    %8070 = vmatprep.subr.mxu0 0.0
    %8071 = vmatpush1.msra.mxu0 0.0
    %8072 = vmatprep.subr.mxu0 0.0
    %8073 = vmatpush1.msra.mxu0 0.0
    %8074 = vmatprep.subr.mxu0 0.0
    %8075 = vmatpush1.msra.mxu0 0.0
    %8076 = vmatprep.subr.mxu0 0.0
    %8077 = vmatpush1.msra.mxu0 0.0
    %8078 = vmatprep.subr.mxu0 0.0
    %8079 = vmatpush1.msra.mxu0 0.0
    %8080 = vmatprep.subr.mxu0 0.0
    %8081 = vmatpush1.msra.mxu0 0.0
    %8082 = vmatprep.subr.mxu0 0.0
    %8083 = vmatpush1.msra.mxu0 0.0
    %8084 = vmatprep.subr.mxu0 0.0
    %8085 = vmatpush1.msra.mxu0 0.0
    %8086 = vmatprep.subr.mxu0 0.0
    %8087 = vmatpush1.msra.mxu0 0.0
    %8088 = vmatprep.subr.mxu0 0.0
    %8089 = vmatpush1.msra.mxu0 0.0
    %8090 = vmatprep.subr.mxu0 0.0
    %8091 = vmatpush1.msra.mxu0 0.0
    %8092 = vmatprep.subr.mxu0 0.0
    %8093 = vmatpush1.msra.mxu0 0.0
    %8094 = vmatprep.subr.mxu0 0.0
    %8095 = vmatpush1.msra.mxu0 0.0
    %8096 = vmatprep.subr.mxu0 0.0
    %8097 = vmatpush1.msra.mxu0 0.0
    %8098 = vmatprep.subr.mxu0 0.0
    %8099 = vmatpush1.msra.mxu0 0.0
    %8100 = vmatprep.subr.mxu0 0.0
    %v8101 = vand.u32 %v7317, 4294901760
    %v8102 = vsub.f32 %v7317, %v8101
    %v8103 = vand.u32 %v8102, 4294901760
    %8104 = vmatpush1.msra.mxu0 %v8103
    %8105 = vmatprep.subr.mxu0 0.0
    %8106 = vmatpush2.msra.mxu0 0.0
    %8107 = vmatprep.subr.mxu0 0.0
    %8108 = vmatpush2.msra.mxu0 0.0
    %8109 = vmatprep.subr.mxu0 0.0
    %8110 = vmatpush2.msra.mxu0 0.0
    %8111 = vmatprep.subr.mxu0 0.0
    %8112 = vmatpush2.msra.mxu0 0.0
    %8113 = vmatprep.subr.mxu0 0.0
    %8114 = vmatpush2.msra.mxu0 0.0
    %8115 = vmatprep.subr.mxu0 0.0
    %8116 = vmatpush2.msra.mxu0 0.0
    %8117 = vmatprep.subr.mxu0 0.0
    %8118 = vmatpush2.msra.mxu0 0.0
    %8119 = vmatprep.subr.mxu0 0.0
    %8120 = vmatpush2.msra.mxu0 0.0
    %8121 = vmatprep.subr.mxu0 0.0
    %8122 = vmatpush2.msra.mxu0 0.0
    %8123 = vmatprep.subr.mxu0 0.0
    %8124 = vmatpush2.msra.mxu0 0.0
    %8125 = vmatprep.subr.mxu0 0.0
    %8126 = vmatpush2.msra.mxu0 0.0
    %8127 = vmatprep.subr.mxu0 0.0
    %8128 = vmatpush2.msra.mxu0 0.0
    %8129 = vmatprep.subr.mxu0 0.0
    %8130 = vmatpush2.msra.mxu0 0.0
    %8131 = vmatprep.subr.mxu0 0.0
    %8132 = vmatpush2.msra.mxu0 0.0
    %8133 = vmatprep.subr.mxu0 0.0
    %8134 = vmatpush2.msra.mxu0 0.0
    %8135 = vmatprep.subr.mxu0 0.0
    %8136 = vmatpush2.msra.mxu0 0.0
    %8137 = vmatprep.mubr.f32.mxu0 0.0
    %v8138 = vand.u32 %v3230, 4294901760
    %8139 = vmatmul.mubr.f32.gmra.mxu0 %v8138
    %v8140 = vpop.f32.mrf.mxu0
    %v8141 = vadd.f32 %v8067, %v8140
    %v8142 = vpop.f32.mrf.mxu0
    %8143 = vdwg.mxu0
    %8144 = vmatprep.subr.mxu0 0.0
    %8145 = vmatpush1.msra.mxu0 0.0
    %8146 = vmatprep.subr.mxu0 0.0
    %8147 = vmatpush1.msra.mxu0 0.0
    %8148 = vmatprep.subr.mxu0 0.0
    %8149 = vmatpush1.msra.mxu0 0.0
    %8150 = vmatprep.subr.mxu0 0.0
    %8151 = vmatpush1.msra.mxu0 0.0
    %8152 = vmatprep.subr.mxu0 0.0
    %8153 = vmatpush1.msra.mxu0 0.0
    %8154 = vmatprep.subr.mxu0 0.0
    %8155 = vmatpush1.msra.mxu0 0.0
    %8156 = vmatprep.subr.mxu0 0.0
    %8157 = vmatpush1.msra.mxu0 0.0
    %8158 = vmatprep.subr.mxu0 0.0
    %8159 = vmatpush1.msra.mxu0 0.0
    %8160 = vmatprep.subr.mxu0 0.0
    %8161 = vmatpush1.msra.mxu0 0.0
    %8162 = vmatprep.subr.mxu0 0.0
    %8163 = vmatpush1.msra.mxu0 0.0
    %8164 = vmatprep.subr.mxu0 0.0
    %8165 = vmatpush1.msra.mxu0 0.0
    %8166 = vmatprep.subr.mxu0 0.0
    %8167 = vmatpush1.msra.mxu0 0.0
    %8168 = vmatprep.subr.mxu0 0.0
    %8169 = vmatpush1.msra.mxu0 0.0
    %8170 = vmatprep.subr.mxu0 0.0
    %8171 = vmatpush1.msra.mxu0 0.0
    %8172 = vmatprep.subr.mxu0 0.0
    %8173 = vmatpush1.msra.mxu0 0.0
    %8174 = vmatprep.subr.mxu0 0.0
    %v8175 = vand.u32 %v7317, 4294901760
    %8176 = vmatpush1.msra.mxu0 %v8175
    %8177 = vmatprep.subr.mxu0 0.0
    %8178 = vmatpush2.msra.mxu0 0.0
    %8179 = vmatprep.subr.mxu0 0.0
    %8180 = vmatpush2.msra.mxu0 0.0
    %8181 = vmatprep.subr.mxu0 0.0
    %8182 = vmatpush2.msra.mxu0 0.0
    %8183 = vmatprep.subr.mxu0 0.0
    %8184 = vmatpush2.msra.mxu0 0.0
    %8185 = vmatprep.subr.mxu0 0.0
    %8186 = vmatpush2.msra.mxu0 0.0
    %8187 = vmatprep.subr.mxu0 0.0
    %8188 = vmatpush2.msra.mxu0 0.0
    %8189 = vmatprep.subr.mxu0 0.0
    %8190 = vmatpush2.msra.mxu0 0.0
    %8191 = vmatprep.subr.mxu0 0.0
    %8192 = vmatpush2.msra.mxu0 0.0
    %8193 = vmatprep.subr.mxu0 0.0
    %8194 = vmatpush2.msra.mxu0 0.0
    %8195 = vmatprep.subr.mxu0 0.0
    %8196 = vmatpush2.msra.mxu0 0.0
    %8197 = vmatprep.subr.mxu0 0.0
    %8198 = vmatpush2.msra.mxu0 0.0
    %8199 = vmatprep.subr.mxu0 0.0
    %8200 = vmatpush2.msra.mxu0 0.0
    %8201 = vmatprep.subr.mxu0 0.0
    %8202 = vmatpush2.msra.mxu0 0.0
    %8203 = vmatprep.subr.mxu0 0.0
    %8204 = vmatpush2.msra.mxu0 0.0
    %8205 = vmatprep.subr.mxu0 0.0
    %8206 = vmatpush2.msra.mxu0 0.0
    %8207 = vmatprep.subr.mxu0 0.0
    %8208 = vmatpush2.msra.mxu0 0.0
    %8209 = vmatprep.mubr.f32.mxu0 0.0
    %v8210 = vand.u32 %v3230, 4294901760
    %8211 = vmatmul.mubr.f32.gmra.mxu0 %v8210
    %v8212 = vpop.f32.mrf.mxu0
    %v8213 = vadd.f32 %v8141, %v8212
    %v8214 = vpop.f32.mrf.mxu0
    %8215 = vdwg.mxu0
    %v8216 = vxor.u32 %v8213, 2147483648
    %v8217 = vmul.f32 %v8216, 1.442695
    %v8218 = vpow.pop %v8217
    %v8219 = vadd.f32 %v8218, 1.0
    %v8220 = vrcp.pop %v8219
    %v8221 = vmul.f32 1.0, %v8220
    %v8223 = vsel %vm3684, %v7769, 0
    %8225 = vmatprep.subr.mxu0 0.0
    %8226 = vmatpush1.msra.mxu0 0.0
    %8227 = vmatprep.subr.mxu0 0.0
    %8228 = vmatpush1.msra.mxu0 0.0
    %8229 = vmatprep.subr.mxu0 0.0
    %8230 = vmatpush1.msra.mxu0 0.0
    %8231 = vmatprep.subr.mxu0 0.0
    %8232 = vmatpush1.msra.mxu0 0.0
    %8233 = vmatprep.subr.mxu0 0.0
    %8234 = vmatpush1.msra.mxu0 0.0
    %8235 = vmatprep.subr.mxu0 0.0
    %8236 = vmatpush1.msra.mxu0 0.0
    %8237 = vmatprep.subr.mxu0 0.0
    %8238 = vmatpush1.msra.mxu0 0.0
    %8239 = vmatprep.subr.mxu0 0.0
    %8240 = vmatpush1.msra.mxu0 0.0
    %8241 = vmatprep.subr.mxu0 0.0
    %8242 = vmatpush1.msra.mxu0 0.0
    %8243 = vmatprep.subr.mxu0 0.0
    %8244 = vmatpush1.msra.mxu0 0.0
    %8245 = vmatprep.subr.mxu0 0.0
    %8246 = vmatpush1.msra.mxu0 0.0
    %8247 = vmatprep.subr.mxu0 0.0
    %8248 = vmatpush1.msra.mxu0 0.0
    %8249 = vmatprep.subr.mxu0 0.0
    %8250 = vmatpush1.msra.mxu0 0.0
    %8251 = vmatprep.subr.mxu0 0.0
    %8252 = vmatpush1.msra.mxu0 0.0
    %v8253 = vand.u32 %v112, 4294901760
    %8254 = vmatprep.subr.mxu0 %v8253
    %v8255 = vand.u32 %v111, 4294901760
    %8256 = vmatpush1.msra.mxu0 %v8255
    %v8257 = vand.u32 %v110, 4294901760
    %8258 = vmatprep.subr.mxu0 %v8257
    %v8259 = vand.u32 %v109, 4294901760
    %8260 = vmatpush1.msra.mxu0 %v8259
    %8261 = vmatprep.subr.mxu0 0.0
    %8262 = vmatpush2.msra.mxu0 0.0
    %8263 = vmatprep.subr.mxu0 0.0
    %8264 = vmatpush2.msra.mxu0 0.0
    %8265 = vmatprep.subr.mxu0 0.0
    %8266 = vmatpush2.msra.mxu0 0.0
    %8267 = vmatprep.subr.mxu0 0.0
    %8268 = vmatpush2.msra.mxu0 0.0
    %8269 = vmatprep.subr.mxu0 0.0
    %8270 = vmatpush2.msra.mxu0 0.0
    %8271 = vmatprep.subr.mxu0 0.0
    %8272 = vmatpush2.msra.mxu0 0.0
    %8273 = vmatprep.subr.mxu0 0.0
    %8274 = vmatpush2.msra.mxu0 0.0
    %8275 = vmatprep.subr.mxu0 0.0
    %8276 = vmatpush2.msra.mxu0 0.0
    %8277 = vmatprep.subr.mxu0 0.0
    %8278 = vmatpush2.msra.mxu0 0.0
    %8279 = vmatprep.subr.mxu0 0.0
    %8280 = vmatpush2.msra.mxu0 0.0
    %8281 = vmatprep.subr.mxu0 0.0
    %8282 = vmatpush2.msra.mxu0 0.0
    %8283 = vmatprep.subr.mxu0 0.0
    %8284 = vmatpush2.msra.mxu0 0.0
    %8285 = vmatprep.subr.mxu0 0.0
    %8286 = vmatpush2.msra.mxu0 0.0
    %8287 = vmatprep.subr.mxu0 0.0
    %8288 = vmatpush2.msra.mxu0 0.0
    %8289 = vmatprep.subr.mxu0 0.0
    %8290 = vmatpush2.msra.mxu0 0.0
    %8291 = vmatprep.subr.mxu0 0.0
    %8292 = vmatpush2.msra.mxu0 0.0
    %8293 = vmatprep.mubr.f32.mxu0 0.0
    %v8294 = vand.u32 %v8223, 4294901760
    %v8295 = vsub.f32 %v8223, %v8294
    %v8296 = vand.u32 %v8295, 4294901760
    %v8297 = vsub.f32 %v8295, %v8296
    %v8298 = vand.u32 %v8297, 4294901760
    %8299 = vmatmul.mubr.f32.gmra.mxu0 %v8298
    %v8300 = vpop.f32.mrf.mxu0
    %v8301 = vadd.f32 0.0, %v8300
    %v8302 = vpop.f32.mrf.mxu0
    %v8303 = vadd.f32 0.0, %v8302
    %8304 = vdwg.mxu0
    %8305 = vmatprep.subr.mxu0 0.0
    %8306 = vmatpush1.msra.mxu0 0.0
    %8307 = vmatprep.subr.mxu0 0.0
    %8308 = vmatpush1.msra.mxu0 0.0
    %8309 = vmatprep.subr.mxu0 0.0
    %8310 = vmatpush1.msra.mxu0 0.0
    %8311 = vmatprep.subr.mxu0 0.0
    %8312 = vmatpush1.msra.mxu0 0.0
    %8313 = vmatprep.subr.mxu0 0.0
    %8314 = vmatpush1.msra.mxu0 0.0
    %8315 = vmatprep.subr.mxu0 0.0
    %8316 = vmatpush1.msra.mxu0 0.0
    %8317 = vmatprep.subr.mxu0 0.0
    %8318 = vmatpush1.msra.mxu0 0.0
    %8319 = vmatprep.subr.mxu0 0.0
    %8320 = vmatpush1.msra.mxu0 0.0
    %8321 = vmatprep.subr.mxu0 0.0
    %8322 = vmatpush1.msra.mxu0 0.0
    %8323 = vmatprep.subr.mxu0 0.0
    %8324 = vmatpush1.msra.mxu0 0.0
    %8325 = vmatprep.subr.mxu0 0.0
    %8326 = vmatpush1.msra.mxu0 0.0
    %8327 = vmatprep.subr.mxu0 0.0
    %8328 = vmatpush1.msra.mxu0 0.0
    %8329 = vmatprep.subr.mxu0 0.0
    %8330 = vmatpush1.msra.mxu0 0.0
    %8331 = vmatprep.subr.mxu0 0.0
    %8332 = vmatpush1.msra.mxu0 0.0
    %v8333 = vand.u32 %v112, 4294901760
    %v8334 = vsub.f32 %v112, %v8333
    %v8335 = vand.u32 %v8334, 4294901760
    %v8336 = vsub.f32 %v8334, %v8335
    %v8337 = vand.u32 %v8336, 4294901760
    %8338 = vmatprep.subr.mxu0 %v8337
    %v8339 = vand.u32 %v111, 4294901760
    %v8340 = vsub.f32 %v111, %v8339
    %v8341 = vand.u32 %v8340, 4294901760
    %v8342 = vsub.f32 %v8340, %v8341
    %v8343 = vand.u32 %v8342, 4294901760
    %8344 = vmatpush1.msra.mxu0 %v8343
    %v8345 = vand.u32 %v110, 4294901760
    %v8346 = vsub.f32 %v110, %v8345
    %v8347 = vand.u32 %v8346, 4294901760
    %v8348 = vsub.f32 %v8346, %v8347
    %v8349 = vand.u32 %v8348, 4294901760
    %8350 = vmatprep.subr.mxu0 %v8349
    %v8351 = vand.u32 %v109, 4294901760
    %v8352 = vsub.f32 %v109, %v8351
    %v8353 = vand.u32 %v8352, 4294901760
    %v8354 = vsub.f32 %v8352, %v8353
    %v8355 = vand.u32 %v8354, 4294901760
    %8356 = vmatpush1.msra.mxu0 %v8355
    %8357 = vmatprep.subr.mxu0 0.0
    %8358 = vmatpush2.msra.mxu0 0.0
    %8359 = vmatprep.subr.mxu0 0.0
    %8360 = vmatpush2.msra.mxu0 0.0
    %8361 = vmatprep.subr.mxu0 0.0
    %8362 = vmatpush2.msra.mxu0 0.0
    %8363 = vmatprep.subr.mxu0 0.0
    %8364 = vmatpush2.msra.mxu0 0.0
    %8365 = vmatprep.subr.mxu0 0.0
    %8366 = vmatpush2.msra.mxu0 0.0
    %8367 = vmatprep.subr.mxu0 0.0
    %8368 = vmatpush2.msra.mxu0 0.0
    %8369 = vmatprep.subr.mxu0 0.0
    %8370 = vmatpush2.msra.mxu0 0.0
    %8371 = vmatprep.subr.mxu0 0.0
    %8372 = vmatpush2.msra.mxu0 0.0
    %8373 = vmatprep.subr.mxu0 0.0
    %8374 = vmatpush2.msra.mxu0 0.0
    %8375 = vmatprep.subr.mxu0 0.0
    %8376 = vmatpush2.msra.mxu0 0.0
    %8377 = vmatprep.subr.mxu0 0.0
    %8378 = vmatpush2.msra.mxu0 0.0
    %8379 = vmatprep.subr.mxu0 0.0
    %8380 = vmatpush2.msra.mxu0 0.0
    %8381 = vmatprep.subr.mxu0 0.0
    %8382 = vmatpush2.msra.mxu0 0.0
    %8383 = vmatprep.subr.mxu0 0.0
    %8384 = vmatpush2.msra.mxu0 0.0
    %8385 = vmatprep.subr.mxu0 0.0
    %8386 = vmatpush2.msra.mxu0 0.0
    %8387 = vmatprep.subr.mxu0 0.0
    %8388 = vmatpush2.msra.mxu0 0.0
    %8389 = vmatprep.mubr.f32.mxu0 0.0
    %v8390 = vand.u32 %v8223, 4294901760
    %8391 = vmatmul.mubr.f32.gmra.mxu0 %v8390
    %v8392 = vpop.f32.mrf.mxu0
    %v8393 = vadd.f32 %v8301, %v8392
    %v8394 = vpop.f32.mrf.mxu0
    %v8395 = vadd.f32 %v8303, %v8394
    %8396 = vdwg.mxu0
    %8397 = vmatprep.subr.mxu0 0.0
    %8398 = vmatpush1.msra.mxu0 0.0
    %8399 = vmatprep.subr.mxu0 0.0
    %8400 = vmatpush1.msra.mxu0 0.0
    %8401 = vmatprep.subr.mxu0 0.0
    %8402 = vmatpush1.msra.mxu0 0.0
    %8403 = vmatprep.subr.mxu0 0.0
    %8404 = vmatpush1.msra.mxu0 0.0
    %8405 = vmatprep.subr.mxu0 0.0
    %8406 = vmatpush1.msra.mxu0 0.0
    %8407 = vmatprep.subr.mxu0 0.0
    %8408 = vmatpush1.msra.mxu0 0.0
    %8409 = vmatprep.subr.mxu0 0.0
    %8410 = vmatpush1.msra.mxu0 0.0
    %8411 = vmatprep.subr.mxu0 0.0
    %8412 = vmatpush1.msra.mxu0 0.0
    %8413 = vmatprep.subr.mxu0 0.0
    %8414 = vmatpush1.msra.mxu0 0.0
    %8415 = vmatprep.subr.mxu0 0.0
    %8416 = vmatpush1.msra.mxu0 0.0
    %8417 = vmatprep.subr.mxu0 0.0
    %8418 = vmatpush1.msra.mxu0 0.0
    %8419 = vmatprep.subr.mxu0 0.0
    %8420 = vmatpush1.msra.mxu0 0.0
    %8421 = vmatprep.subr.mxu0 0.0
    %8422 = vmatpush1.msra.mxu0 0.0
    %8423 = vmatprep.subr.mxu0 0.0
    %8424 = vmatpush1.msra.mxu0 0.0
    %v8425 = vand.u32 %v112, 4294901760
    %v8426 = vsub.f32 %v112, %v8425
    %8427 = vmatprep.subr.mxu0 %v8426
    %v8428 = vand.u32 %v111, 4294901760
    %v8429 = vsub.f32 %v111, %v8428
    %8430 = vmatpush1.msra.mxu0 %v8429
    %v8431 = vand.u32 %v110, 4294901760
    %v8432 = vsub.f32 %v110, %v8431
    %8433 = vmatprep.subr.mxu0 %v8432
    %v8434 = vand.u32 %v109, 4294901760
    %v8435 = vsub.f32 %v109, %v8434
    %8436 = vmatpush1.msra.mxu0 %v8435
    %8437 = vmatprep.subr.mxu0 0.0
    %8438 = vmatpush2.msra.mxu0 0.0
    %8439 = vmatprep.subr.mxu0 0.0
    %8440 = vmatpush2.msra.mxu0 0.0
    %8441 = vmatprep.subr.mxu0 0.0
    %8442 = vmatpush2.msra.mxu0 0.0
    %8443 = vmatprep.subr.mxu0 0.0
    %8444 = vmatpush2.msra.mxu0 0.0
    %8445 = vmatprep.subr.mxu0 0.0
    %8446 = vmatpush2.msra.mxu0 0.0
    %8447 = vmatprep.subr.mxu0 0.0
    %8448 = vmatpush2.msra.mxu0 0.0
    %8449 = vmatprep.subr.mxu0 0.0
    %8450 = vmatpush2.msra.mxu0 0.0
    %8451 = vmatprep.subr.mxu0 0.0
    %8452 = vmatpush2.msra.mxu0 0.0
    %8453 = vmatprep.subr.mxu0 0.0
    %8454 = vmatpush2.msra.mxu0 0.0
    %8455 = vmatprep.subr.mxu0 0.0
    %8456 = vmatpush2.msra.mxu0 0.0
    %8457 = vmatprep.subr.mxu0 0.0
    %8458 = vmatpush2.msra.mxu0 0.0
    %8459 = vmatprep.subr.mxu0 0.0
    %8460 = vmatpush2.msra.mxu0 0.0
    %8461 = vmatprep.subr.mxu0 0.0
    %8462 = vmatpush2.msra.mxu0 0.0
    %8463 = vmatprep.subr.mxu0 0.0
    %8464 = vmatpush2.msra.mxu0 0.0
    %8465 = vmatprep.subr.mxu0 0.0
    %8466 = vmatpush2.msra.mxu0 0.0
    %8467 = vmatprep.subr.mxu0 0.0
    %8468 = vmatpush2.msra.mxu0 0.0
    %8469 = vmatprep.mubr.f32.mxu0 0.0
    %v8470 = vand.u32 %v8223, 4294901760
    %v8471 = vsub.f32 %v8223, %v8470
    %8472 = vmatmul.mubr.f32.gmra.mxu0 %v8471
    %v8473 = vpop.f32.mrf.mxu0
    %v8474 = vadd.f32 %v8393, %v8473
    %v8475 = vpop.f32.mrf.mxu0
    %v8476 = vadd.f32 %v8395, %v8475
    %8477 = vdwg.mxu0
    %8478 = vmatprep.subr.mxu0 0.0
    %8479 = vmatpush1.msra.mxu0 0.0
    %8480 = vmatprep.subr.mxu0 0.0
    %8481 = vmatpush1.msra.mxu0 0.0
    %8482 = vmatprep.subr.mxu0 0.0
    %8483 = vmatpush1.msra.mxu0 0.0
    %8484 = vmatprep.subr.mxu0 0.0
    %8485 = vmatpush1.msra.mxu0 0.0
    %8486 = vmatprep.subr.mxu0 0.0
    %8487 = vmatpush1.msra.mxu0 0.0
    %8488 = vmatprep.subr.mxu0 0.0
    %8489 = vmatpush1.msra.mxu0 0.0
    %8490 = vmatprep.subr.mxu0 0.0
    %8491 = vmatpush1.msra.mxu0 0.0
    %8492 = vmatprep.subr.mxu0 0.0
    %8493 = vmatpush1.msra.mxu0 0.0
    %8494 = vmatprep.subr.mxu0 0.0
    %8495 = vmatpush1.msra.mxu0 0.0
    %8496 = vmatprep.subr.mxu0 0.0
    %8497 = vmatpush1.msra.mxu0 0.0
    %8498 = vmatprep.subr.mxu0 0.0
    %8499 = vmatpush1.msra.mxu0 0.0
    %8500 = vmatprep.subr.mxu0 0.0
    %8501 = vmatpush1.msra.mxu0 0.0
    %8502 = vmatprep.subr.mxu0 0.0
    %8503 = vmatpush1.msra.mxu0 0.0
    %8504 = vmatprep.subr.mxu0 0.0
    %8505 = vmatpush1.msra.mxu0 0.0
    %v8506 = vand.u32 %v112, 4294901760
    %8507 = vmatprep.subr.mxu0 %v8506
    %v8508 = vand.u32 %v111, 4294901760
    %8509 = vmatpush1.msra.mxu0 %v8508
    %v8510 = vand.u32 %v110, 4294901760
    %8511 = vmatprep.subr.mxu0 %v8510
    %v8512 = vand.u32 %v109, 4294901760
    %8513 = vmatpush1.msra.mxu0 %v8512
    %8514 = vmatprep.subr.mxu0 0.0
    %8515 = vmatpush2.msra.mxu0 0.0
    %8516 = vmatprep.subr.mxu0 0.0
    %8517 = vmatpush2.msra.mxu0 0.0
    %8518 = vmatprep.subr.mxu0 0.0
    %8519 = vmatpush2.msra.mxu0 0.0
    %8520 = vmatprep.subr.mxu0 0.0
    %8521 = vmatpush2.msra.mxu0 0.0
    %8522 = vmatprep.subr.mxu0 0.0
    %8523 = vmatpush2.msra.mxu0 0.0
    %8524 = vmatprep.subr.mxu0 0.0
    %8525 = vmatpush2.msra.mxu0 0.0
    %8526 = vmatprep.subr.mxu0 0.0
    %8527 = vmatpush2.msra.mxu0 0.0
    %8528 = vmatprep.subr.mxu0 0.0
    %8529 = vmatpush2.msra.mxu0 0.0
    %8530 = vmatprep.subr.mxu0 0.0
    %8531 = vmatpush2.msra.mxu0 0.0
    %8532 = vmatprep.subr.mxu0 0.0
    %8533 = vmatpush2.msra.mxu0 0.0
    %8534 = vmatprep.subr.mxu0 0.0
    %8535 = vmatpush2.msra.mxu0 0.0
    %8536 = vmatprep.subr.mxu0 0.0
    %8537 = vmatpush2.msra.mxu0 0.0
    %8538 = vmatprep.subr.mxu0 0.0
    %8539 = vmatpush2.msra.mxu0 0.0
    %8540 = vmatprep.subr.mxu0 0.0
    %8541 = vmatpush2.msra.mxu0 0.0
    %8542 = vmatprep.subr.mxu0 0.0
    %8543 = vmatpush2.msra.mxu0 0.0
    %8544 = vmatprep.subr.mxu0 0.0
    %8545 = vmatpush2.msra.mxu0 0.0
    %8546 = vmatprep.mubr.f32.mxu0 0.0
    %v8547 = vand.u32 %v8223, 4294901760
    %v8548 = vsub.f32 %v8223, %v8547
    %v8549 = vand.u32 %v8548, 4294901760
    %8550 = vmatmul.mubr.f32.gmra.mxu0 %v8549
    %v8551 = vpop.f32.mrf.mxu0
    %v8552 = vadd.f32 %v8474, %v8551
    %v8553 = vpop.f32.mrf.mxu0
    %v8554 = vadd.f32 %v8476, %v8553
    %8555 = vdwg.mxu0
    %8556 = vmatprep.subr.mxu0 0.0
    %8557 = vmatpush1.msra.mxu0 0.0
    %8558 = vmatprep.subr.mxu0 0.0
    %8559 = vmatpush1.msra.mxu0 0.0
    %8560 = vmatprep.subr.mxu0 0.0
    %8561 = vmatpush1.msra.mxu0 0.0
    %8562 = vmatprep.subr.mxu0 0.0
    %8563 = vmatpush1.msra.mxu0 0.0
    %8564 = vmatprep.subr.mxu0 0.0
    %8565 = vmatpush1.msra.mxu0 0.0
    %8566 = vmatprep.subr.mxu0 0.0
    %8567 = vmatpush1.msra.mxu0 0.0
    %8568 = vmatprep.subr.mxu0 0.0
    %8569 = vmatpush1.msra.mxu0 0.0
    %8570 = vmatprep.subr.mxu0 0.0
    %8571 = vmatpush1.msra.mxu0 0.0
    %8572 = vmatprep.subr.mxu0 0.0
    %8573 = vmatpush1.msra.mxu0 0.0
    %8574 = vmatprep.subr.mxu0 0.0
    %8575 = vmatpush1.msra.mxu0 0.0
    %8576 = vmatprep.subr.mxu0 0.0
    %8577 = vmatpush1.msra.mxu0 0.0
    %8578 = vmatprep.subr.mxu0 0.0
    %8579 = vmatpush1.msra.mxu0 0.0
    %8580 = vmatprep.subr.mxu0 0.0
    %8581 = vmatpush1.msra.mxu0 0.0
    %8582 = vmatprep.subr.mxu0 0.0
    %8583 = vmatpush1.msra.mxu0 0.0
    %v8584 = vand.u32 %v112, 4294901760
    %v8585 = vsub.f32 %v112, %v8584
    %v8586 = vand.u32 %v8585, 4294901760
    %8587 = vmatprep.subr.mxu0 %v8586
    %v8588 = vand.u32 %v111, 4294901760
    %v8589 = vsub.f32 %v111, %v8588
    %v8590 = vand.u32 %v8589, 4294901760
    %8591 = vmatpush1.msra.mxu0 %v8590
    %v8592 = vand.u32 %v110, 4294901760
    %v8593 = vsub.f32 %v110, %v8592
    %v8594 = vand.u32 %v8593, 4294901760
    %8595 = vmatprep.subr.mxu0 %v8594
    %v8596 = vand.u32 %v109, 4294901760
    %v8597 = vsub.f32 %v109, %v8596
    %v8598 = vand.u32 %v8597, 4294901760
    %8599 = vmatpush1.msra.mxu0 %v8598
    %8600 = vmatprep.subr.mxu0 0.0
    %8601 = vmatpush2.msra.mxu0 0.0
    %8602 = vmatprep.subr.mxu0 0.0
    %8603 = vmatpush2.msra.mxu0 0.0
    %8604 = vmatprep.subr.mxu0 0.0
    %8605 = vmatpush2.msra.mxu0 0.0
    %8606 = vmatprep.subr.mxu0 0.0
    %8607 = vmatpush2.msra.mxu0 0.0
    %8608 = vmatprep.subr.mxu0 0.0
    %8609 = vmatpush2.msra.mxu0 0.0
    %8610 = vmatprep.subr.mxu0 0.0
    %8611 = vmatpush2.msra.mxu0 0.0
    %8612 = vmatprep.subr.mxu0 0.0
    %8613 = vmatpush2.msra.mxu0 0.0
    %8614 = vmatprep.subr.mxu0 0.0
    %8615 = vmatpush2.msra.mxu0 0.0
    %8616 = vmatprep.subr.mxu0 0.0
    %8617 = vmatpush2.msra.mxu0 0.0
    %8618 = vmatprep.subr.mxu0 0.0
    %8619 = vmatpush2.msra.mxu0 0.0
    %8620 = vmatprep.subr.mxu0 0.0
    %8621 = vmatpush2.msra.mxu0 0.0
    %8622 = vmatprep.subr.mxu0 0.0
    %8623 = vmatpush2.msra.mxu0 0.0
    %8624 = vmatprep.subr.mxu0 0.0
    %8625 = vmatpush2.msra.mxu0 0.0
    %8626 = vmatprep.subr.mxu0 0.0
    %8627 = vmatpush2.msra.mxu0 0.0
    %8628 = vmatprep.subr.mxu0 0.0
    %8629 = vmatpush2.msra.mxu0 0.0
    %8630 = vmatprep.subr.mxu0 0.0
    %8631 = vmatpush2.msra.mxu0 0.0
    %8632 = vmatprep.mubr.f32.mxu0 0.0
    %v8633 = vand.u32 %v8223, 4294901760
    %8634 = vmatmul.mubr.f32.gmra.mxu0 %v8633
    %v8635 = vpop.f32.mrf.mxu0
    %v8636 = vadd.f32 %v8552, %v8635
    %v8637 = vpop.f32.mrf.mxu0
    %v8638 = vadd.f32 %v8554, %v8637
    %8639 = vdwg.mxu0
    %8640 = vmatprep.subr.mxu0 0.0
    %8641 = vmatpush1.msra.mxu0 0.0
    %8642 = vmatprep.subr.mxu0 0.0
    %8643 = vmatpush1.msra.mxu0 0.0
    %8644 = vmatprep.subr.mxu0 0.0
    %8645 = vmatpush1.msra.mxu0 0.0
    %8646 = vmatprep.subr.mxu0 0.0
    %8647 = vmatpush1.msra.mxu0 0.0
    %8648 = vmatprep.subr.mxu0 0.0
    %8649 = vmatpush1.msra.mxu0 0.0
    %8650 = vmatprep.subr.mxu0 0.0
    %8651 = vmatpush1.msra.mxu0 0.0
    %8652 = vmatprep.subr.mxu0 0.0
    %8653 = vmatpush1.msra.mxu0 0.0
    %8654 = vmatprep.subr.mxu0 0.0
    %8655 = vmatpush1.msra.mxu0 0.0
    %8656 = vmatprep.subr.mxu0 0.0
    %8657 = vmatpush1.msra.mxu0 0.0
    %8658 = vmatprep.subr.mxu0 0.0
    %8659 = vmatpush1.msra.mxu0 0.0
    %8660 = vmatprep.subr.mxu0 0.0
    %8661 = vmatpush1.msra.mxu0 0.0
    %8662 = vmatprep.subr.mxu0 0.0
    %8663 = vmatpush1.msra.mxu0 0.0
    %8664 = vmatprep.subr.mxu0 0.0
    %8665 = vmatpush1.msra.mxu0 0.0
    %8666 = vmatprep.subr.mxu0 0.0
    %8667 = vmatpush1.msra.mxu0 0.0
    %v8668 = vand.u32 %v112, 4294901760
    %8669 = vmatprep.subr.mxu0 %v8668
    %v8670 = vand.u32 %v111, 4294901760
    %8671 = vmatpush1.msra.mxu0 %v8670
    %v8672 = vand.u32 %v110, 4294901760
    %8673 = vmatprep.subr.mxu0 %v8672
    %v8674 = vand.u32 %v109, 4294901760
    %8675 = vmatpush1.msra.mxu0 %v8674
    %8676 = vmatprep.subr.mxu0 0.0
    %8677 = vmatpush2.msra.mxu0 0.0
    %8678 = vmatprep.subr.mxu0 0.0
    %8679 = vmatpush2.msra.mxu0 0.0
    %8680 = vmatprep.subr.mxu0 0.0
    %8681 = vmatpush2.msra.mxu0 0.0
    %8682 = vmatprep.subr.mxu0 0.0
    %8683 = vmatpush2.msra.mxu0 0.0
    %8684 = vmatprep.subr.mxu0 0.0
    %8685 = vmatpush2.msra.mxu0 0.0
    %8686 = vmatprep.subr.mxu0 0.0
    %8687 = vmatpush2.msra.mxu0 0.0
    %8688 = vmatprep.subr.mxu0 0.0
    %8689 = vmatpush2.msra.mxu0 0.0
    %8690 = vmatprep.subr.mxu0 0.0
    %8691 = vmatpush2.msra.mxu0 0.0
    %8692 = vmatprep.subr.mxu0 0.0
    %8693 = vmatpush2.msra.mxu0 0.0
    %8694 = vmatprep.subr.mxu0 0.0
    %8695 = vmatpush2.msra.mxu0 0.0
    %8696 = vmatprep.subr.mxu0 0.0
    %8697 = vmatpush2.msra.mxu0 0.0
    %8698 = vmatprep.subr.mxu0 0.0
    %8699 = vmatpush2.msra.mxu0 0.0
    %8700 = vmatprep.subr.mxu0 0.0
    %8701 = vmatpush2.msra.mxu0 0.0
    %8702 = vmatprep.subr.mxu0 0.0
    %8703 = vmatpush2.msra.mxu0 0.0
    %8704 = vmatprep.subr.mxu0 0.0
    %8705 = vmatpush2.msra.mxu0 0.0
    %8706 = vmatprep.subr.mxu0 0.0
    %8707 = vmatpush2.msra.mxu0 0.0
    %8708 = vmatprep.mubr.f32.mxu0 0.0
    %v8709 = vand.u32 %v8223, 4294901760
    %8710 = vmatmul.mubr.f32.gmra.mxu0 %v8709
    %v8711 = vpop.f32.mrf.mxu0
    %v8712 = vadd.f32 %v8636, %v8711
    %v8713 = vpop.f32.mrf.mxu0
    %v8714 = vadd.f32 %v8638, %v8713
    %8715 = vdwg.mxu0
    %v8717 = vsel %vm3684, %v8221, 0
    %8719 = vmatprep.subr.mxu0 0.0
    %8720 = vmatpush1.msra.mxu0 0.0
    %8721 = vmatprep.subr.mxu0 0.0
    %8722 = vmatpush1.msra.mxu0 0.0
    %8723 = vmatprep.subr.mxu0 0.0
    %8724 = vmatpush1.msra.mxu0 0.0
    %8725 = vmatprep.subr.mxu0 0.0
    %8726 = vmatpush1.msra.mxu0 0.0
    %8727 = vmatprep.subr.mxu0 0.0
    %8728 = vmatpush1.msra.mxu0 0.0
    %8729 = vmatprep.subr.mxu0 0.0
    %8730 = vmatpush1.msra.mxu0 0.0
    %8731 = vmatprep.subr.mxu0 0.0
    %8732 = vmatpush1.msra.mxu0 0.0
    %8733 = vmatprep.subr.mxu0 0.0
    %8734 = vmatpush1.msra.mxu0 0.0
    %8735 = vmatprep.subr.mxu0 0.0
    %8736 = vmatpush1.msra.mxu0 0.0
    %8737 = vmatprep.subr.mxu0 0.0
    %8738 = vmatpush1.msra.mxu0 0.0
    %8739 = vmatprep.subr.mxu0 0.0
    %8740 = vmatpush1.msra.mxu0 0.0
    %8741 = vmatprep.subr.mxu0 0.0
    %8742 = vmatpush1.msra.mxu0 0.0
    %8743 = vmatprep.subr.mxu0 0.0
    %8744 = vmatpush1.msra.mxu0 0.0
    %8745 = vmatprep.subr.mxu0 0.0
    %8746 = vmatpush1.msra.mxu0 0.0
    %v8747 = vand.u32 %v116, 4294901760
    %8748 = vmatprep.subr.mxu0 %v8747
    %v8749 = vand.u32 %v115, 4294901760
    %8750 = vmatpush1.msra.mxu0 %v8749
    %v8751 = vand.u32 %v114, 4294901760
    %8752 = vmatprep.subr.mxu0 %v8751
    %v8753 = vand.u32 %v113, 4294901760
    %8754 = vmatpush1.msra.mxu0 %v8753
    %8755 = vmatprep.subr.mxu0 0.0
    %8756 = vmatpush2.msra.mxu0 0.0
    %8757 = vmatprep.subr.mxu0 0.0
    %8758 = vmatpush2.msra.mxu0 0.0
    %8759 = vmatprep.subr.mxu0 0.0
    %8760 = vmatpush2.msra.mxu0 0.0
    %8761 = vmatprep.subr.mxu0 0.0
    %8762 = vmatpush2.msra.mxu0 0.0
    %8763 = vmatprep.subr.mxu0 0.0
    %8764 = vmatpush2.msra.mxu0 0.0
    %8765 = vmatprep.subr.mxu0 0.0
    %8766 = vmatpush2.msra.mxu0 0.0
    %8767 = vmatprep.subr.mxu0 0.0
    %8768 = vmatpush2.msra.mxu0 0.0
    %8769 = vmatprep.subr.mxu0 0.0
    %8770 = vmatpush2.msra.mxu0 0.0
    %8771 = vmatprep.subr.mxu0 0.0
    %8772 = vmatpush2.msra.mxu0 0.0
    %8773 = vmatprep.subr.mxu0 0.0
    %8774 = vmatpush2.msra.mxu0 0.0
    %8775 = vmatprep.subr.mxu0 0.0
    %8776 = vmatpush2.msra.mxu0 0.0
    %8777 = vmatprep.subr.mxu0 0.0
    %8778 = vmatpush2.msra.mxu0 0.0
    %8779 = vmatprep.subr.mxu0 0.0
    %8780 = vmatpush2.msra.mxu0 0.0
    %8781 = vmatprep.subr.mxu0 0.0
    %8782 = vmatpush2.msra.mxu0 0.0
    %8783 = vmatprep.subr.mxu0 0.0
    %8784 = vmatpush2.msra.mxu0 0.0
    %8785 = vmatprep.subr.mxu0 0.0
    %8786 = vmatpush2.msra.mxu0 0.0
    %8787 = vmatprep.mubr.f32.mxu0 0.0
    %v8788 = vand.u32 %v8717, 4294901760
    %v8789 = vsub.f32 %v8717, %v8788
    %v8790 = vand.u32 %v8789, 4294901760
    %v8791 = vsub.f32 %v8789, %v8790
    %v8792 = vand.u32 %v8791, 4294901760
    %8793 = vmatmul.mubr.f32.gmra.mxu0 %v8792
    %v8794 = vpop.f32.mrf.mxu0
    %v8795 = vadd.f32 0.0, %v8794
    %v8796 = vpop.f32.mrf.mxu0
    %v8797 = vadd.f32 0.0, %v8796
    %8798 = vdwg.mxu0
    %8799 = vmatprep.subr.mxu0 0.0
    %8800 = vmatpush1.msra.mxu0 0.0
    %8801 = vmatprep.subr.mxu0 0.0
    %8802 = vmatpush1.msra.mxu0 0.0
    %8803 = vmatprep.subr.mxu0 0.0
    %8804 = vmatpush1.msra.mxu0 0.0
    %8805 = vmatprep.subr.mxu0 0.0
    %8806 = vmatpush1.msra.mxu0 0.0
    %8807 = vmatprep.subr.mxu0 0.0
    %8808 = vmatpush1.msra.mxu0 0.0
    %8809 = vmatprep.subr.mxu0 0.0
    %8810 = vmatpush1.msra.mxu0 0.0
    %8811 = vmatprep.subr.mxu0 0.0
    %8812 = vmatpush1.msra.mxu0 0.0
    %8813 = vmatprep.subr.mxu0 0.0
    %8814 = vmatpush1.msra.mxu0 0.0
    %8815 = vmatprep.subr.mxu0 0.0
    %8816 = vmatpush1.msra.mxu0 0.0
    %8817 = vmatprep.subr.mxu0 0.0
    %8818 = vmatpush1.msra.mxu0 0.0
    %8819 = vmatprep.subr.mxu0 0.0
    %8820 = vmatpush1.msra.mxu0 0.0
    %8821 = vmatprep.subr.mxu0 0.0
    %8822 = vmatpush1.msra.mxu0 0.0
    %8823 = vmatprep.subr.mxu0 0.0
    %8824 = vmatpush1.msra.mxu0 0.0
    %8825 = vmatprep.subr.mxu0 0.0
    %8826 = vmatpush1.msra.mxu0 0.0
    %v8827 = vand.u32 %v116, 4294901760
    %v8828 = vsub.f32 %v116, %v8827
    %v8829 = vand.u32 %v8828, 4294901760
    %v8830 = vsub.f32 %v8828, %v8829
    %v8831 = vand.u32 %v8830, 4294901760
    %8832 = vmatprep.subr.mxu0 %v8831
    %v8833 = vand.u32 %v115, 4294901760
    %v8834 = vsub.f32 %v115, %v8833
    %v8835 = vand.u32 %v8834, 4294901760
    %v8836 = vsub.f32 %v8834, %v8835
    %v8837 = vand.u32 %v8836, 4294901760
    %8838 = vmatpush1.msra.mxu0 %v8837
    %v8839 = vand.u32 %v114, 4294901760
    %v8840 = vsub.f32 %v114, %v8839
    %v8841 = vand.u32 %v8840, 4294901760
    %v8842 = vsub.f32 %v8840, %v8841
    %v8843 = vand.u32 %v8842, 4294901760
    %8844 = vmatprep.subr.mxu0 %v8843
    %v8845 = vand.u32 %v113, 4294901760
    %v8846 = vsub.f32 %v113, %v8845
    %v8847 = vand.u32 %v8846, 4294901760
    %v8848 = vsub.f32 %v8846, %v8847
    %v8849 = vand.u32 %v8848, 4294901760
    %8850 = vmatpush1.msra.mxu0 %v8849
    %8851 = vmatprep.subr.mxu0 0.0
    %8852 = vmatpush2.msra.mxu0 0.0
    %8853 = vmatprep.subr.mxu0 0.0
    %8854 = vmatpush2.msra.mxu0 0.0
    %8855 = vmatprep.subr.mxu0 0.0
    %8856 = vmatpush2.msra.mxu0 0.0
    %8857 = vmatprep.subr.mxu0 0.0
    %8858 = vmatpush2.msra.mxu0 0.0
    %8859 = vmatprep.subr.mxu0 0.0
    %8860 = vmatpush2.msra.mxu0 0.0
    %8861 = vmatprep.subr.mxu0 0.0
    %8862 = vmatpush2.msra.mxu0 0.0
    %8863 = vmatprep.subr.mxu0 0.0
    %8864 = vmatpush2.msra.mxu0 0.0
    %8865 = vmatprep.subr.mxu0 0.0
    %8866 = vmatpush2.msra.mxu0 0.0
    %8867 = vmatprep.subr.mxu0 0.0
    %8868 = vmatpush2.msra.mxu0 0.0
    %8869 = vmatprep.subr.mxu0 0.0
    %8870 = vmatpush2.msra.mxu0 0.0
    %8871 = vmatprep.subr.mxu0 0.0
    %8872 = vmatpush2.msra.mxu0 0.0
    %8873 = vmatprep.subr.mxu0 0.0
    %8874 = vmatpush2.msra.mxu0 0.0
    %8875 = vmatprep.subr.mxu0 0.0
    %8876 = vmatpush2.msra.mxu0 0.0
    %8877 = vmatprep.subr.mxu0 0.0
    %8878 = vmatpush2.msra.mxu0 0.0
    %8879 = vmatprep.subr.mxu0 0.0
    %8880 = vmatpush2.msra.mxu0 0.0
    %8881 = vmatprep.subr.mxu0 0.0
    %8882 = vmatpush2.msra.mxu0 0.0
    %8883 = vmatprep.mubr.f32.mxu0 0.0
    %v8884 = vand.u32 %v8717, 4294901760
    %8885 = vmatmul.mubr.f32.gmra.mxu0 %v8884
    %v8886 = vpop.f32.mrf.mxu0
    %v8887 = vadd.f32 %v8795, %v8886
    %v8888 = vpop.f32.mrf.mxu0
    %v8889 = vadd.f32 %v8797, %v8888
    %8890 = vdwg.mxu0
    %8891 = vmatprep.subr.mxu0 0.0
    %8892 = vmatpush1.msra.mxu0 0.0
    %8893 = vmatprep.subr.mxu0 0.0
    %8894 = vmatpush1.msra.mxu0 0.0
    %8895 = vmatprep.subr.mxu0 0.0
    %8896 = vmatpush1.msra.mxu0 0.0
    %8897 = vmatprep.subr.mxu0 0.0
    %8898 = vmatpush1.msra.mxu0 0.0
    %8899 = vmatprep.subr.mxu0 0.0
    %8900 = vmatpush1.msra.mxu0 0.0
    %8901 = vmatprep.subr.mxu0 0.0
    %8902 = vmatpush1.msra.mxu0 0.0
    %8903 = vmatprep.subr.mxu0 0.0
    %8904 = vmatpush1.msra.mxu0 0.0
    %8905 = vmatprep.subr.mxu0 0.0
    %8906 = vmatpush1.msra.mxu0 0.0
    %8907 = vmatprep.subr.mxu0 0.0
    %8908 = vmatpush1.msra.mxu0 0.0
    %8909 = vmatprep.subr.mxu0 0.0
    %8910 = vmatpush1.msra.mxu0 0.0
    %8911 = vmatprep.subr.mxu0 0.0
    %8912 = vmatpush1.msra.mxu0 0.0
    %8913 = vmatprep.subr.mxu0 0.0
    %8914 = vmatpush1.msra.mxu0 0.0
    %8915 = vmatprep.subr.mxu0 0.0
    %8916 = vmatpush1.msra.mxu0 0.0
    %8917 = vmatprep.subr.mxu0 0.0
    %8918 = vmatpush1.msra.mxu0 0.0
    %v8919 = vand.u32 %v116, 4294901760
    %v8920 = vsub.f32 %v116, %v8919
    %8921 = vmatprep.subr.mxu0 %v8920
    %v8922 = vand.u32 %v115, 4294901760
    %v8923 = vsub.f32 %v115, %v8922
    %8924 = vmatpush1.msra.mxu0 %v8923
    %v8925 = vand.u32 %v114, 4294901760
    %v8926 = vsub.f32 %v114, %v8925
    %8927 = vmatprep.subr.mxu0 %v8926
    %v8928 = vand.u32 %v113, 4294901760
    %v8929 = vsub.f32 %v113, %v8928
    %8930 = vmatpush1.msra.mxu0 %v8929
    %8931 = vmatprep.subr.mxu0 0.0
    %8932 = vmatpush2.msra.mxu0 0.0
    %8933 = vmatprep.subr.mxu0 0.0
    %8934 = vmatpush2.msra.mxu0 0.0
    %8935 = vmatprep.subr.mxu0 0.0
    %8936 = vmatpush2.msra.mxu0 0.0
    %8937 = vmatprep.subr.mxu0 0.0
    %8938 = vmatpush2.msra.mxu0 0.0
    %8939 = vmatprep.subr.mxu0 0.0
    %8940 = vmatpush2.msra.mxu0 0.0
    %8941 = vmatprep.subr.mxu0 0.0
    %8942 = vmatpush2.msra.mxu0 0.0
    %8943 = vmatprep.subr.mxu0 0.0
    %8944 = vmatpush2.msra.mxu0 0.0
    %8945 = vmatprep.subr.mxu0 0.0
    %8946 = vmatpush2.msra.mxu0 0.0
    %8947 = vmatprep.subr.mxu0 0.0
    %8948 = vmatpush2.msra.mxu0 0.0
    %8949 = vmatprep.subr.mxu0 0.0
    %8950 = vmatpush2.msra.mxu0 0.0
    %8951 = vmatprep.subr.mxu0 0.0
    %8952 = vmatpush2.msra.mxu0 0.0
    %8953 = vmatprep.subr.mxu0 0.0
    %8954 = vmatpush2.msra.mxu0 0.0
    %8955 = vmatprep.subr.mxu0 0.0
    %8956 = vmatpush2.msra.mxu0 0.0
    %8957 = vmatprep.subr.mxu0 0.0
    %8958 = vmatpush2.msra.mxu0 0.0
    %8959 = vmatprep.subr.mxu0 0.0
    %8960 = vmatpush2.msra.mxu0 0.0
    %8961 = vmatprep.subr.mxu0 0.0
    %8962 = vmatpush2.msra.mxu0 0.0
    %8963 = vmatprep.mubr.f32.mxu0 0.0
    %v8964 = vand.u32 %v8717, 4294901760
    %v8965 = vsub.f32 %v8717, %v8964
    %8966 = vmatmul.mubr.f32.gmra.mxu0 %v8965
    %v8967 = vpop.f32.mrf.mxu0
    %v8968 = vadd.f32 %v8887, %v8967
    %v8969 = vpop.f32.mrf.mxu0
    %v8970 = vadd.f32 %v8889, %v8969
    %8971 = vdwg.mxu0
    %8972 = vmatprep.subr.mxu0 0.0
    %8973 = vmatpush1.msra.mxu0 0.0
    %8974 = vmatprep.subr.mxu0 0.0
    %8975 = vmatpush1.msra.mxu0 0.0
    %8976 = vmatprep.subr.mxu0 0.0
    %8977 = vmatpush1.msra.mxu0 0.0
    %8978 = vmatprep.subr.mxu0 0.0
    %8979 = vmatpush1.msra.mxu0 0.0
    %8980 = vmatprep.subr.mxu0 0.0
    %8981 = vmatpush1.msra.mxu0 0.0
    %8982 = vmatprep.subr.mxu0 0.0
    %8983 = vmatpush1.msra.mxu0 0.0
    %8984 = vmatprep.subr.mxu0 0.0
    %8985 = vmatpush1.msra.mxu0 0.0
    %8986 = vmatprep.subr.mxu0 0.0
    %8987 = vmatpush1.msra.mxu0 0.0
    %8988 = vmatprep.subr.mxu0 0.0
    %8989 = vmatpush1.msra.mxu0 0.0
    %8990 = vmatprep.subr.mxu0 0.0
    %8991 = vmatpush1.msra.mxu0 0.0
    %8992 = vmatprep.subr.mxu0 0.0
    %8993 = vmatpush1.msra.mxu0 0.0
    %8994 = vmatprep.subr.mxu0 0.0
    %8995 = vmatpush1.msra.mxu0 0.0
    %8996 = vmatprep.subr.mxu0 0.0
    %8997 = vmatpush1.msra.mxu0 0.0
    %8998 = vmatprep.subr.mxu0 0.0
    %8999 = vmatpush1.msra.mxu0 0.0
    %v9000 = vand.u32 %v116, 4294901760
    %9001 = vmatprep.subr.mxu0 %v9000
    %v9002 = vand.u32 %v115, 4294901760
    %9003 = vmatpush1.msra.mxu0 %v9002
    %v9004 = vand.u32 %v114, 4294901760
    %9005 = vmatprep.subr.mxu0 %v9004
    %v9006 = vand.u32 %v113, 4294901760
    %9007 = vmatpush1.msra.mxu0 %v9006
    %9008 = vmatprep.subr.mxu0 0.0
    %9009 = vmatpush2.msra.mxu0 0.0
    %9010 = vmatprep.subr.mxu0 0.0
    %9011 = vmatpush2.msra.mxu0 0.0
    %9012 = vmatprep.subr.mxu0 0.0
    %9013 = vmatpush2.msra.mxu0 0.0
    %9014 = vmatprep.subr.mxu0 0.0
    %9015 = vmatpush2.msra.mxu0 0.0
    %9016 = vmatprep.subr.mxu0 0.0
    %9017 = vmatpush2.msra.mxu0 0.0
    %9018 = vmatprep.subr.mxu0 0.0
    %9019 = vmatpush2.msra.mxu0 0.0
    %9020 = vmatprep.subr.mxu0 0.0
    %9021 = vmatpush2.msra.mxu0 0.0
    %9022 = vmatprep.subr.mxu0 0.0
    %9023 = vmatpush2.msra.mxu0 0.0
    %9024 = vmatprep.subr.mxu0 0.0
    %9025 = vmatpush2.msra.mxu0 0.0
    %9026 = vmatprep.subr.mxu0 0.0
    %9027 = vmatpush2.msra.mxu0 0.0
    %9028 = vmatprep.subr.mxu0 0.0
    %9029 = vmatpush2.msra.mxu0 0.0
    %9030 = vmatprep.subr.mxu0 0.0
    %9031 = vmatpush2.msra.mxu0 0.0
    %9032 = vmatprep.subr.mxu0 0.0
    %9033 = vmatpush2.msra.mxu0 0.0
    %9034 = vmatprep.subr.mxu0 0.0
    %9035 = vmatpush2.msra.mxu0 0.0
    %9036 = vmatprep.subr.mxu0 0.0
    %9037 = vmatpush2.msra.mxu0 0.0
    %9038 = vmatprep.subr.mxu0 0.0
    %9039 = vmatpush2.msra.mxu0 0.0
    %9040 = vmatprep.mubr.f32.mxu0 0.0
    %v9041 = vand.u32 %v8717, 4294901760
    %v9042 = vsub.f32 %v8717, %v9041
    %v9043 = vand.u32 %v9042, 4294901760
    %9044 = vmatmul.mubr.f32.gmra.mxu0 %v9043
    %v9045 = vpop.f32.mrf.mxu0
    %v9046 = vadd.f32 %v8968, %v9045
    %v9047 = vpop.f32.mrf.mxu0
    %v9048 = vadd.f32 %v8970, %v9047
    %9049 = vdwg.mxu0
    %9050 = vmatprep.subr.mxu0 0.0
    %9051 = vmatpush1.msra.mxu0 0.0
    %9052 = vmatprep.subr.mxu0 0.0
    %9053 = vmatpush1.msra.mxu0 0.0
    %9054 = vmatprep.subr.mxu0 0.0
    %9055 = vmatpush1.msra.mxu0 0.0
    %9056 = vmatprep.subr.mxu0 0.0
    %9057 = vmatpush1.msra.mxu0 0.0
    %9058 = vmatprep.subr.mxu0 0.0
    %9059 = vmatpush1.msra.mxu0 0.0
    %9060 = vmatprep.subr.mxu0 0.0
    %9061 = vmatpush1.msra.mxu0 0.0
    %9062 = vmatprep.subr.mxu0 0.0
    %9063 = vmatpush1.msra.mxu0 0.0
    %9064 = vmatprep.subr.mxu0 0.0
    %9065 = vmatpush1.msra.mxu0 0.0
    %9066 = vmatprep.subr.mxu0 0.0
    %9067 = vmatpush1.msra.mxu0 0.0
    %9068 = vmatprep.subr.mxu0 0.0
    %9069 = vmatpush1.msra.mxu0 0.0
    %9070 = vmatprep.subr.mxu0 0.0
    %9071 = vmatpush1.msra.mxu0 0.0
    %9072 = vmatprep.subr.mxu0 0.0
    %9073 = vmatpush1.msra.mxu0 0.0
    %9074 = vmatprep.subr.mxu0 0.0
    %9075 = vmatpush1.msra.mxu0 0.0
    %9076 = vmatprep.subr.mxu0 0.0
    %9077 = vmatpush1.msra.mxu0 0.0
    %v9078 = vand.u32 %v116, 4294901760
    %v9079 = vsub.f32 %v116, %v9078
    %v9080 = vand.u32 %v9079, 4294901760
    %9081 = vmatprep.subr.mxu0 %v9080
    %v9082 = vand.u32 %v115, 4294901760
    %v9083 = vsub.f32 %v115, %v9082
    %v9084 = vand.u32 %v9083, 4294901760
    %9085 = vmatpush1.msra.mxu0 %v9084
    %v9086 = vand.u32 %v114, 4294901760
    %v9087 = vsub.f32 %v114, %v9086
    %v9088 = vand.u32 %v9087, 4294901760
    %9089 = vmatprep.subr.mxu0 %v9088
    %v9090 = vand.u32 %v113, 4294901760
    %v9091 = vsub.f32 %v113, %v9090
    %v9092 = vand.u32 %v9091, 4294901760
    %9093 = vmatpush1.msra.mxu0 %v9092
    %9094 = vmatprep.subr.mxu0 0.0
    %9095 = vmatpush2.msra.mxu0 0.0
    %9096 = vmatprep.subr.mxu0 0.0
    %9097 = vmatpush2.msra.mxu0 0.0
    %9098 = vmatprep.subr.mxu0 0.0
    %9099 = vmatpush2.msra.mxu0 0.0
    %9100 = vmatprep.subr.mxu0 0.0
    %9101 = vmatpush2.msra.mxu0 0.0
    %9102 = vmatprep.subr.mxu0 0.0
    %9103 = vmatpush2.msra.mxu0 0.0
    %9104 = vmatprep.subr.mxu0 0.0
    %9105 = vmatpush2.msra.mxu0 0.0
    %9106 = vmatprep.subr.mxu0 0.0
    %9107 = vmatpush2.msra.mxu0 0.0
    %9108 = vmatprep.subr.mxu0 0.0
    %9109 = vmatpush2.msra.mxu0 0.0
    %9110 = vmatprep.subr.mxu0 0.0
    %9111 = vmatpush2.msra.mxu0 0.0
    %9112 = vmatprep.subr.mxu0 0.0
    %9113 = vmatpush2.msra.mxu0 0.0
    %9114 = vmatprep.subr.mxu0 0.0
    %9115 = vmatpush2.msra.mxu0 0.0
    %9116 = vmatprep.subr.mxu0 0.0
    %9117 = vmatpush2.msra.mxu0 0.0
    %9118 = vmatprep.subr.mxu0 0.0
    %9119 = vmatpush2.msra.mxu0 0.0
    %9120 = vmatprep.subr.mxu0 0.0
    %9121 = vmatpush2.msra.mxu0 0.0
    %9122 = vmatprep.subr.mxu0 0.0
    %9123 = vmatpush2.msra.mxu0 0.0
    %9124 = vmatprep.subr.mxu0 0.0
    %9125 = vmatpush2.msra.mxu0 0.0
    %9126 = vmatprep.mubr.f32.mxu0 0.0
    %v9127 = vand.u32 %v8717, 4294901760
    %9128 = vmatmul.mubr.f32.gmra.mxu0 %v9127
    %v9129 = vpop.f32.mrf.mxu0
    %v9130 = vadd.f32 %v9046, %v9129
    %v9131 = vpop.f32.mrf.mxu0
    %v9132 = vadd.f32 %v9048, %v9131
    %9133 = vdwg.mxu0
    %9134 = vmatprep.subr.mxu0 0.0
    %9135 = vmatpush1.msra.mxu0 0.0
    %9136 = vmatprep.subr.mxu0 0.0
    %9137 = vmatpush1.msra.mxu0 0.0
    %9138 = vmatprep.subr.mxu0 0.0
    %9139 = vmatpush1.msra.mxu0 0.0
    %9140 = vmatprep.subr.mxu0 0.0
    %9141 = vmatpush1.msra.mxu0 0.0
    %9142 = vmatprep.subr.mxu0 0.0
    %9143 = vmatpush1.msra.mxu0 0.0
    %9144 = vmatprep.subr.mxu0 0.0
    %9145 = vmatpush1.msra.mxu0 0.0
    %9146 = vmatprep.subr.mxu0 0.0
    %9147 = vmatpush1.msra.mxu0 0.0
    %9148 = vmatprep.subr.mxu0 0.0
    %9149 = vmatpush1.msra.mxu0 0.0
    %9150 = vmatprep.subr.mxu0 0.0
    %9151 = vmatpush1.msra.mxu0 0.0
    %9152 = vmatprep.subr.mxu0 0.0
    %9153 = vmatpush1.msra.mxu0 0.0
    %9154 = vmatprep.subr.mxu0 0.0
    %9155 = vmatpush1.msra.mxu0 0.0
    %9156 = vmatprep.subr.mxu0 0.0
    %9157 = vmatpush1.msra.mxu0 0.0
    %9158 = vmatprep.subr.mxu0 0.0
    %9159 = vmatpush1.msra.mxu0 0.0
    %9160 = vmatprep.subr.mxu0 0.0
    %9161 = vmatpush1.msra.mxu0 0.0
    %v9162 = vand.u32 %v116, 4294901760
    %9163 = vmatprep.subr.mxu0 %v9162
    %v9164 = vand.u32 %v115, 4294901760
    %9165 = vmatpush1.msra.mxu0 %v9164
    %v9166 = vand.u32 %v114, 4294901760
    %9167 = vmatprep.subr.mxu0 %v9166
    %v9168 = vand.u32 %v113, 4294901760
    %9169 = vmatpush1.msra.mxu0 %v9168
    %9170 = vmatprep.subr.mxu0 0.0
    %9171 = vmatpush2.msra.mxu0 0.0
    %9172 = vmatprep.subr.mxu0 0.0
    %9173 = vmatpush2.msra.mxu0 0.0
    %9174 = vmatprep.subr.mxu0 0.0
    %9175 = vmatpush2.msra.mxu0 0.0
    %9176 = vmatprep.subr.mxu0 0.0
    %9177 = vmatpush2.msra.mxu0 0.0
    %9178 = vmatprep.subr.mxu0 0.0
    %9179 = vmatpush2.msra.mxu0 0.0
    %9180 = vmatprep.subr.mxu0 0.0
    %9181 = vmatpush2.msra.mxu0 0.0
    %9182 = vmatprep.subr.mxu0 0.0
    %9183 = vmatpush2.msra.mxu0 0.0
    %9184 = vmatprep.subr.mxu0 0.0
    %9185 = vmatpush2.msra.mxu0 0.0
    %9186 = vmatprep.subr.mxu0 0.0
    %9187 = vmatpush2.msra.mxu0 0.0
    %9188 = vmatprep.subr.mxu0 0.0
    %9189 = vmatpush2.msra.mxu0 0.0
    %9190 = vmatprep.subr.mxu0 0.0
    %9191 = vmatpush2.msra.mxu0 0.0
    %9192 = vmatprep.subr.mxu0 0.0
    %9193 = vmatpush2.msra.mxu0 0.0
    %9194 = vmatprep.subr.mxu0 0.0
    %9195 = vmatpush2.msra.mxu0 0.0
    %9196 = vmatprep.subr.mxu0 0.0
    %9197 = vmatpush2.msra.mxu0 0.0
    %9198 = vmatprep.subr.mxu0 0.0
    %9199 = vmatpush2.msra.mxu0 0.0
    %9200 = vmatprep.subr.mxu0 0.0
    %9201 = vmatpush2.msra.mxu0 0.0
    %9202 = vmatprep.mubr.f32.mxu0 0.0
    %v9203 = vand.u32 %v8717, 4294901760
    %9204 = vmatmul.mubr.f32.gmra.mxu0 %v9203
    %v9205 = vpop.f32.mrf.mxu0
    %v9206 = vadd.f32 %v9130, %v9205
    %v9207 = vpop.f32.mrf.mxu0
    %v9208 = vadd.f32 %v9132, %v9207
    %9209 = vdwg.mxu0
    %v9210 = vmul.f32 %v8712, %v9206
    %v9211 = vmul.f32 %v8714, %v9208
    %v9214 = vcombine.low %v9210, %v9211
    %v9216 = vmul.f32 %v4682, %v9214
    %s9217 = scalar_lea.vmem [#allocation2], 8
    %9218 = vst [vmem:[%s9217] sm:$0xff] %v9216
    // Predicated region
    $region46: #{tpu_custom_call.1} parent=1 // pred_check
      _
    $region47: #{tpu_custom_call.1} parent=1 // pred_check_branch
      %9220 = sbr.rel (0) target = $region49
    $region48: #{tpu_custom_call.1} parent=1 // pred_region
      %s9222 = ssub.s32 256, 256
      %9223 = vsyncadd [#allocation3], %s9222
      %s9224 = sshll.u32 [#allocation2], 4
      %s9225 = int_to_ptr.vmem [resolvable:$true] %s9224
      %9230 = dma.vmem_to_hbm [thread:$0]  %s9225, 256, %s11, [#allocation3], 128, 128, 8
    $region49: #{tpu_custom_call.1} parent=1 // pred_fallthru
      _
    // Predicated region
    $region50: #{tpu_custom_call.1} parent=1 // pred_check
      _
    $region51: #{tpu_custom_call.1} parent=1 // pred_check_branch
      %9232 = sbr.rel (0) target = $region53
    $region52: #{tpu_custom_call.1} parent=1 // pred_region
      %9233 = dma.done [#allocation3], 256
    $region53: #{tpu_custom_call.1} parent=1 // pred_fallthru
      _
    %9234 = vsyncpa [#allocation3], 1

</llo_original>
